<compile_context>
chip_gen: v7x
topology: tpu7x:2x2x1
jax: 0.10.0
libtpu: 0.0.40
codegen_flags: <defaults>
</compile_context>

<pallas_src>
import math

import jax
import jax.numpy as jnp
from jax.experimental import pallas as pl
from jax.experimental.pallas import tpu as pltpu


_LN_EPS = 1e-5
_NEG_INF = -1e30

# Rows of the per-layer packed small-parameter table (shape (15, nhid), f32).
_SA_BQ, _SA_BK, _SA_BV, _SA_BO = 0, 1, 2, 3
_CA_BQ, _CA_BK, _CA_BV, _CA_BO = 4, 5, 6, 7
_N1G, _N1B, _N2G, _N2B, _N3G, _N3B = 8, 9, 10, 11, 12, 13
_B2 = 14
_N_VEC = 15

# Per-layer kernel operands: sa_wqkv, sa_wo, ca_wq, ca_wkv, ca_wo, w1, w2, vec, b1
_PER_LAYER_REFS = 9


# ------------------------------- fused kernel -------------------------------

def _build_forward_kernel(*, nlayers, nhead, B, Lt, Lmem, E, n_pad, emb_scale):
    """Whole decoder forward in one kernel; layers statically unrolled."""
    dh = E // nhead

    def kernel(*refs):
        emb_ref, pe_ref, mem_ref = refs[0], refs[1], refs[2]
        fc_w_ref = refs[3 + nlayers * _PER_LAYER_REFS]
        fc_b_ref = refs[4 + nlayers * _PER_LAYER_REFS]
        out_ref = refs[5 + nlayers * _PER_LAYER_REFS]

        # --- prologue: word_emb * sqrt(nhid) + positional encoding (f32) ---
        x = emb_ref[...] * emb_scale + pe_ref[...]            # (B, Lt, E)
        x = x.reshape(B * Lt, E)

        # cross-attn memory: cast to bf16 ONCE, reused by every layer.
        mem_bf = mem_ref[...].reshape(B * Lmem, E).astype(jnp.bfloat16)

        # --- causal additive bias generated in-kernel (no HBM mask input) ---
        row_i = jax.lax.broadcasted_iota(jnp.int32, (Lt, Lt), 0)
        col_i = jax.lax.broadcasted_iota(jnp.int32, (Lt, Lt), 1)
        causal = jnp.where(col_i <= row_i, 0.0, _NEG_INF).astype(jnp.float32)

        def layernorm(xv, g, b):
            mean = jnp.mean(xv, axis=-1, keepdims=True)
            var = jnp.mean(jnp.square(xv - mean), axis=-1, keepdims=True)
            return (xv - mean) * jax.lax.rsqrt(var + _LN_EPS) * g + b

        def mha(q_all, k_all, v_all, Lq, Lk, wo_ref, bo, bias):
            """All heads inside the kernel (static unroll, batched over B).
            1/sqrt(dh) is pre-folded into the Q weights; the out-projection is
            distributed over heads (no lane concat); softmax denominator uses
            the EUP approx-reciprocal; statistics stay f32."""
            wo = wo_ref[...]                                   # (E, E) bf16
            acc = None
            for h in range(nhead):
                sl = slice(h * dh, (h + 1) * dh)
                qh = q_all[:, sl].reshape(B, Lq, dh).astype(jnp.bfloat16)
                kh = k_all[:, sl].reshape(B, Lk, dh).astype(jnp.bfloat16)
                vh = v_all[:, sl].reshape(B, Lk, dh).astype(jnp.bfloat16)
                s = jnp.einsum('bqd,bkd->bqk', qh, kh,
                               preferred_element_type=jnp.float32)
                if bias is not None:
                    s = s + bias[None, :, :]
                s = s - jnp.max(s, axis=-1, keepdims=True)     # f32 softmax
                p = jnp.exp(s)
                p = p * pl.reciprocal(jnp.sum(p, axis=-1, keepdims=True),
                                      approx=True)
                o = jnp.einsum('bqk,bkd->bqd', p.astype(jnp.bfloat16), vh,
                               preferred_element_type=jnp.float32)
                contrib = jnp.dot(o.reshape(B * Lq, dh).astype(jnp.bfloat16),
                                  wo[sl, :],
                                  preferred_element_type=jnp.float32)
                acc = contrib if acc is None else acc + contrib
            return acc + bo

        for l in range(nlayers):
            base = 3 + l * _PER_LAYER_REFS
            (sa_wqkv, sa_wo, ca_wq, ca_wkv, ca_wo,
             w1, w2, vec_ref, b1_ref) = refs[base:base + _PER_LAYER_REFS]
            vec = vec_ref[...]                                 # (15, E) f32

            def row(i, _v=vec):                                # (1, E) slice
                return _v[i:i + 1, :]

            # self-attention: one fused QKV matmul + in-kernel causal mask.
            x_bf = x.astype(jnp.bfloat16)
            qkv = jnp.dot(x_bf, sa_wqkv[...], preferred_element_type=jnp.float32)
            sa = mha(qkv[:, 0:E] + row(_SA_BQ),
                     qkv[:, E:2 * E] + row(_SA_BK),
                     qkv[:, 2 * E:3 * E] + row(_SA_BV),
                     Lt, Lt, sa_wo, row(_SA_BO), causal)
            x = layernorm(x + sa, row(_N1G), row(_N1B))

            # cross-attention: fused KV matmul on memory, no memory mask.
            x_bf = x.astype(jnp.bfloat16)
            q_all = (jnp.dot(x_bf, ca_wq[...],
                             preferred_element_type=jnp.float32) + row(_CA_BQ))
            kv = jnp.dot(mem_bf, ca_wkv[...], preferred_element_type=jnp.float32)
            ca = mha(q_all,
                     kv[:, 0:E] + row(_CA_BK),
                     kv[:, E:2 * E] + row(_CA_BV),
                     Lt, Lmem, ca_wo, row(_CA_BO), None)
            x = layernorm(x + ca, row(_N2G), row(_N2B))

            # feed-forward (ReLU), residual, post-norm.
            x_bf = x.astype(jnp.bfloat16)
            h1 = (jnp.dot(x_bf, w1[...],
                          preferred_element_type=jnp.float32) + b1_ref[...])
            h1 = jnp.maximum(h1, 0.0)
            h2 = (jnp.dot(h1.astype(jnp.bfloat16), w2[...],
                          preferred_element_type=jnp.float32) + row(_B2))
            x = layernorm(x + h2, row(_N3G), row(_N3B))

        # dec_fc with ntoken padded to a multiple of 128 -> lane-dense store.
        logits = (jnp.dot(x.astype(jnp.bfloat16), fc_w_ref[...],
                          preferred_element_type=jnp.float32) + fc_b_ref[...])
        out_ref[...] = logits.reshape(B, Lt, n_pad)

    return kernel


# --------------------------------- wrapper ---------------------------------

def make_positional_encoding(max_len, d_model):
    position = jnp.arange(max_len, dtype=jnp.float32)[:, None]
    div_term = jnp.exp(jnp.arange(0, d_model, 2, dtype=jnp.float32)
                       * (-math.log(10000.0) / d_model))
    pe = jnp.zeros((max_len, d_model), jnp.float32)
    pe = pe.at[:, 0::2].set(jnp.sin(position * div_term))
    pe = pe.at[:, 1::2].set(jnp.cos(position * div_term))
    return pe  # (max_len, d_model)


def transformer_model_forward(params, src_mem, tgt, *, nhead, nhid):
    """TransformerModel.forward (w2v path, selection_result=False), eval mode."""
    # TODO(synk): Cnn10 feature extractor + pretrained .pth loading are not
    # translatable; decoder_only=True makes encode() a pass-through, so
    # src_mem stands in for feature_extractor(src) with shape (L_mem, B, nhid).
    Lmem, B, E = src_mem.shape
    Lt = tgt.shape[1]
    ntoken = params["ntoken"]
    n_pad = params["dec_fc_b_pad"].shape[1]
    nlayers = len(params["layers"])

    emb = params["word_emb"][tgt].astype(jnp.float32)     # (B, Lt, E) gather (glue)
    pe = params["pe"][:Lt][None, :, :]                    # (1, Lt, E)
    mem_bf = jnp.transpose(src_mem, (1, 0, 2)).astype(jnp.float32)  # batch-first

    inputs = [emb, pe, mem_bf]
    for lp in params["layers"]:
        inputs += [lp["sa_wqkv"], lp["sa_wo"], lp["ca_wq"], lp["ca_wkv"],
                   lp["ca_wo"], lp["w1"], lp["w2"], lp["vec"], lp["b1"]]
    inputs += [params["dec_fc_w_pad"], params["dec_fc_b_pad"]]

    kernel = _build_forward_kernel(
        nlayers=nlayers, nhead=nhead, B=B, Lt=Lt, Lmem=Lmem, E=E,
        n_pad=n_pad, emb_scale=math.sqrt(nhid))

    out_pad = pl.pallas_call(
        kernel,
        out_shape=jax.ShapeDtypeStruct((B, Lt, n_pad), jnp.float32),
        compiler_params=pltpu.CompilerParams(vmem_limit_bytes=32 * 1024 * 1024),
    )(*inputs)

    return out_pad[:, :, :ntoken]                         # (B, Lt, ntoken)


# ------------------------------ parameter init ------------------------------

def init_params(key, *, nhid, nhead, nlayers, ntoken, dff, max_len=2000):
    keys = iter(jax.random.split(key, 12 * nlayers + 8))
    dh = nhid // nhead
    q_scale = 1.0 / math.sqrt(dh)

    def nrm(shape, s=0.02):
        return jax.random.normal(next(keys), shape, jnp.float32) * s

    def unif(shape, a):
        return jax.random.uniform(next(keys), shape, jnp.float32, -a, a)

    layers = []
    for _ in range(nlayers):
        wq, wk, wv, wo = (nrm((nhid, nhid)) for _ in range(4))
        cq, ck, cv, co = (nrm((nhid, nhid)) for _ in range(4))
        # Fold the 1/sqrt(dh) attention scale into the Q projections at
        # build time (weights — and Q biases, were they nonzero) -> the kernel
        # never multiplies by the scale.
        wq = wq * q_scale
        cq = cq * q_scale

        # Packed per-layer small-parameter table: 15 rows of length nhid in a
        # single f32 operand (one padded VMEM tile) instead of 13 tiny arrays.
        vec = jnp.zeros((_N_VEC, nhid), jnp.float32)
        vec = vec.at[_N1G].set(1.0).at[_N2G].set(1.0).at[_N3G].set(1.0)
        # (attention / out-proj / LN-beta / FFN biases are zero at init; a real
        #  checkpoint would fill rows 0..7 and 14 here, with rows _SA_BQ and
        #  _CA_BQ pre-multiplied by q_scale.)

        layers.append(dict(
            # fused QKV / KV weights, bf16 for MXU + halved weight traffic
            sa_wqkv=jnp.concatenate([wq, wk, wv], axis=1).astype(jnp.bfloat16),
            sa_wo=wo.astype(jnp.bfloat16),
            ca_wq=cq.astype(jnp.bfloat16),
            ca_wkv=jnp.concatenate([ck, cv], axis=1).astype(jnp.bfloat16),
            ca_wo=co.astype(jnp.bfloat16),
            w1=nrm((nhid, dff)).astype(jnp.bfloat16),
            w2=nrm((dff, nhid)).astype(jnp.bfloat16),
            vec=vec,
            b1=jnp.zeros((1, dff), jnp.float32),
        ))

    # dec_fc: pad ntoken -> multiple of 128 for lane-dense kernel output.
    n_pad = ((ntoken + 127) // 128) * 128
    dec_fc_w = unif((nhid, ntoken), 0.1)                  # init_weights(): U(-0.1, 0.1)
    dec_fc_w_pad = jnp.zeros((nhid, n_pad), jnp.float32).at[:, :ntoken].set(dec_fc_w)

    return dict(
        layers=layers,
        word_emb=unif((ntoken, nhid), 0.1),               # w2v random_init U(-0.1, 0.1)
        dec_fc_w_pad=dec_fc_w_pad.astype(jnp.bfloat16),
        dec_fc_b_pad=jnp.zeros((1, n_pad), jnp.float32),  # init_weights(): zero bias
        pe=make_positional_encoding(max_len, nhid),
        ntoken=ntoken,
    )


# ----------------------------------- main -----------------------------------

if __name__ == "__main__":
    nhid, nhead, nlayers, ntoken, dff = 32, 4, 2, 50, 2048
    B, Lt, Lmem = 2, 8, 16

    key = jax.random.PRNGKey(0)
    kp, ks, kt = jax.random.split(key, 3)
    params = init_params(kp, nhid=nhid, nhead=nhead, nlayers=nlayers,
                         ntoken=ntoken, dff=dff)

    src_mem = jax.random.normal(ks, (Lmem, B, nhid), jnp.float32)  # encoder memory
    tgt = jax.random.randint(kt, (B, Lt), 0, ntoken, dtype=jnp.int32)

    out = transformer_model_forward(params, src_mem, tgt, nhead=nhead, nhid=nhid)
    out = jax.block_until_ready(out)

    assert out.shape == (B, Lt, ntoken), out.shape
    assert bool(jnp.all(jnp.isfinite(out)))
    print("KERNEL_OK")
</pallas_src>

<mosaic_0001>
module attributes {stable_mosaic.version = 11 : i64} {
  func.func @kernel(%arg0: memref<2x8x32xf32, #tpu.memory_space<vmem>>, %arg1: memref<1x8x32xf32, #tpu.memory_space<vmem>>, %arg2: memref<2x16x32xf32, #tpu.memory_space<vmem>>, %arg3: memref<32x96xbf16, #tpu.memory_space<vmem>>, %arg4: memref<32x32xbf16, #tpu.memory_space<vmem>>, %arg5: memref<32x32xbf16, #tpu.memory_space<vmem>>, %arg6: memref<32x64xbf16, #tpu.memory_space<vmem>>, %arg7: memref<32x32xbf16, #tpu.memory_space<vmem>>, %arg8: memref<32x2048xbf16, #tpu.memory_space<vmem>>, %arg9: memref<2048x32xbf16, #tpu.memory_space<vmem>>, %arg10: memref<15x32xf32, #tpu.memory_space<vmem>>, %arg11: memref<1x2048xf32, #tpu.memory_space<vmem>>, %arg12: memref<32x96xbf16, #tpu.memory_space<vmem>>, %arg13: memref<32x32xbf16, #tpu.memory_space<vmem>>, %arg14: memref<32x32xbf16, #tpu.memory_space<vmem>>, %arg15: memref<32x64xbf16, #tpu.memory_space<vmem>>, %arg16: memref<32x32xbf16, #tpu.memory_space<vmem>>, %arg17: memref<32x2048xbf16, #tpu.memory_space<vmem>>, %arg18: memref<2048x32xbf16, #tpu.memory_space<vmem>>, %arg19: memref<15x32xf32, #tpu.memory_space<vmem>>, %arg20: memref<1x2048xf32, #tpu.memory_space<vmem>>, %arg21: memref<32x128xbf16, #tpu.memory_space<vmem>>, %arg22: memref<1x128xf32, #tpu.memory_space<vmem>>, %arg23: memref<2x8x128xf32, #tpu.memory_space<vmem>>) attributes {dimension_semantics = [], scalar_prefetch = 0 : i64, scratch_operands = 0 : i64, tpu.core_type = #tpu.core_type<tc>} {
    %c0 = arith.constant 0 : index
    %c0_0 = arith.constant 0 : index
    %c0_1 = arith.constant 0 : index
    %0 = vector.load %arg0[%c0, %c0_0, %c0_1] : memref<2x8x32xf32, #tpu.memory_space<vmem>>, vector<2x8x32xf32>
    %cst = arith.constant 5.65685415 : f32
    %1 = vector.broadcast %cst : f32 to vector<2x8x32xf32>
    %2 = arith.mulf %0, %1 : vector<2x8x32xf32>
    %c0_2 = arith.constant 0 : index
    %c0_3 = arith.constant 0 : index
    %c0_4 = arith.constant 0 : index
    %3 = vector.load %arg1[%c0_2, %c0_3, %c0_4] : memref<1x8x32xf32, #tpu.memory_space<vmem>>, vector<1x8x32xf32>
    %4 = vector.broadcast %3 : vector<1x8x32xf32> to vector<2x8x32xf32>
    %5 = arith.addf %2, %4 : vector<2x8x32xf32>
    %6 = vector.shape_cast %5 : vector<2x8x32xf32> to vector<16x32xf32>
    %c0_5 = arith.constant 0 : index
    %c0_6 = arith.constant 0 : index
    %c0_7 = arith.constant 0 : index
    %7 = vector.load %arg2[%c0_5, %c0_6, %c0_7] : memref<2x16x32xf32, #tpu.memory_space<vmem>>, vector<2x16x32xf32>
    %8 = vector.shape_cast %7 : vector<2x16x32xf32> to vector<32x32xf32>
    %9 = arith.truncf %8 : vector<32x32xf32> to vector<32x32xbf16>
    %10 = tpu.iota {dimensions = array<i32: 0>} : vector<8x8xi32>
    %11 = tpu.iota {dimensions = array<i32: 1>} : vector<8x8xi32>
    %12 = arith.cmpi sle, %11, %10 : vector<8x8xi32>
    %cst_8 = arith.constant 0.000000e+00 : f32
    %cst_9 = arith.constant -1.000000e+30 : f32
    %13 = vector.broadcast %cst_8 : f32 to vector<8x8xf32>
    %14 = vector.broadcast %cst_9 : f32 to vector<8x8xf32>
    %15 = arith.select %12, %13, %14 : vector<8x8xi1>, vector<8x8xf32>
    %c0_10 = arith.constant 0 : index
    %c0_11 = arith.constant 0 : index
    %16 = vector.load %arg10[%c0_10, %c0_11] : memref<15x32xf32, #tpu.memory_space<vmem>>, vector<15x32xf32>
    %17 = arith.truncf %6 : vector<16x32xf32> to vector<16x32xbf16>
    %c0_12 = arith.constant 0 : index
    %c0_13 = arith.constant 0 : index
    %18 = vector.load %arg3[%c0_12, %c0_13] : memref<32x96xbf16, #tpu.memory_space<vmem>>, vector<32x96xbf16>
    %cst_14 = arith.constant dense<0.000000e+00> : vector<16x96xf32>
    %19 = tpu.matmul %17, %18, %cst_14 {dimension_numbers = #tpu.dot_dimension_numbers<[1], [0], [0], [1], [0, 0, 1, 1], [], []>} : vector<16x32xbf16>, vector<32x96xbf16>, vector<16x96xf32> -> vector<16x96xf32>
    %20 = vector.extract_strided_slice %19 {offsets = [0, 0], sizes = [16, 32], strides = [1, 1]} : vector<16x96xf32> to vector<16x32xf32>
    %21 = vector.extract_strided_slice %16 {offsets = [0, 0], sizes = [1, 32], strides = [1, 1]} : vector<15x32xf32> to vector<1x32xf32>
    %22 = vector.broadcast %21 : vector<1x32xf32> to vector<16x32xf32>
    %23 = arith.addf %20, %22 : vector<16x32xf32>
    %24 = vector.extract_strided_slice %19 {offsets = [0, 32], sizes = [16, 32], strides = [1, 1]} : vector<16x96xf32> to vector<16x32xf32>
    %25 = vector.extract_strided_slice %16 {offsets = [1, 0], sizes = [1, 32], strides = [1, 1]} : vector<15x32xf32> to vector<1x32xf32>
    %26 = vector.broadcast %25 : vector<1x32xf32> to vector<16x32xf32>
    %27 = arith.addf %24, %26 : vector<16x32xf32>
    %28 = vector.extract_strided_slice %19 {offsets = [0, 64], sizes = [16, 32], strides = [1, 1]} : vector<16x96xf32> to vector<16x32xf32>
    %29 = vector.extract_strided_slice %16 {offsets = [2, 0], sizes = [1, 32], strides = [1, 1]} : vector<15x32xf32> to vector<1x32xf32>
    %30 = vector.broadcast %29 : vector<1x32xf32> to vector<16x32xf32>
    %31 = arith.addf %28, %30 : vector<16x32xf32>
    %32 = vector.extract_strided_slice %16 {offsets = [3, 0], sizes = [1, 32], strides = [1, 1]} : vector<15x32xf32> to vector<1x32xf32>
    %c0_15 = arith.constant 0 : index
    %c0_16 = arith.constant 0 : index
    %33 = vector.load %arg4[%c0_15, %c0_16] : memref<32x32xbf16, #tpu.memory_space<vmem>>, vector<32x32xbf16>
    %34 = vector.extract_strided_slice %23 {offsets = [0, 0], sizes = [16, 8], strides = [1, 1]} : vector<16x32xf32> to vector<16x8xf32>
    %35 = vector.shape_cast %34 : vector<16x8xf32> to vector<2x8x8xf32>
    %36 = arith.truncf %35 : vector<2x8x8xf32> to vector<2x8x8xbf16>
    %37 = vector.extract_strided_slice %27 {offsets = [0, 0], sizes = [16, 8], strides = [1, 1]} : vector<16x32xf32> to vector<16x8xf32>
    %38 = vector.shape_cast %37 : vector<16x8xf32> to vector<2x8x8xf32>
    %39 = arith.truncf %38 : vector<2x8x8xf32> to vector<2x8x8xbf16>
    %40 = vector.extract_strided_slice %31 {offsets = [0, 0], sizes = [16, 8], strides = [1, 1]} : vector<16x32xf32> to vector<16x8xf32>
    %41 = vector.shape_cast %40 : vector<16x8xf32> to vector<2x8x8xf32>
    %42 = arith.truncf %41 : vector<2x8x8xf32> to vector<2x8x8xbf16>
    "tpu.trace_start"() <{level = 10 : i32, message = "bqd,bkd->bqk"}> : () -> ()
    %cst_17 = arith.constant dense<0.000000e+00> : vector<2x8x8xf32>
    %43 = tpu.matmul %36, %39, %cst_17 {dimension_numbers = #tpu.dot_dimension_numbers<[2], [2], [1], [1], [0, 0, 0, 1, 1, 1], [0], [0]>} : vector<2x8x8xbf16>, vector<2x8x8xbf16>, vector<2x8x8xf32> -> vector<2x8x8xf32>
    "tpu.trace_stop"() : () -> ()
    %44 = vector.shape_cast %15 : vector<8x8xf32> to vector<1x8x8xf32>
    %45 = vector.broadcast %44 : vector<1x8x8xf32> to vector<2x8x8xf32>
    %46 = arith.addf %43, %45 : vector<2x8x8xf32>
    %cst_18 = arith.constant dense<0xFF800000> : vector<2x8xf32>
    %47 = vector.multi_reduction <maximumf>, %46, %cst_18 [2] : vector<2x8x8xf32> to vector<2x8xf32>
    %48 = vector.shape_cast %47 : vector<2x8xf32> to vector<2x8x1xf32>
    %49 = vector.broadcast %48 : vector<2x8x1xf32> to vector<2x8x8xf32>
    %50 = arith.subf %46, %49 : vector<2x8x8xf32>
    %51 = math.exp %50 : vector<2x8x8xf32>
    %cst_19 = arith.constant dense<0.000000e+00> : vector<2x8xf32>
    %52 = vector.multi_reduction <add>, %51, %cst_19 [2] : vector<2x8x8xf32> to vector<2x8xf32>
    %53 = vector.shape_cast %52 : vector<2x8xf32> to vector<2x8x1xf32>
    %54 = tpu.reciprocal %53 {approx = true} : vector<2x8x1xf32> -> vector<2x8x1xf32>
    %55 = vector.broadcast %54 : vector<2x8x1xf32> to vector<2x8x8xf32>
    %56 = arith.mulf %51, %55 : vector<2x8x8xf32>
    %57 = arith.truncf %56 : vector<2x8x8xf32> to vector<2x8x8xbf16>
    "tpu.trace_start"() <{level = 10 : i32, message = "bqk,bkd->bqd"}> : () -> ()
    %cst_20 = arith.constant dense<0.000000e+00> : vector<2x8x8xf32>
    %58 = tpu.matmul %57, %42, %cst_20 {dimension_numbers = #tpu.dot_dimension_numbers<[2], [1], [1], [2], [0, 0, 0, 1, 1, 2], [0], [0]>} : vector<2x8x8xbf16>, vector<2x8x8xbf16>, vector<2x8x8xf32> -> vector<2x8x8xf32>
    "tpu.trace_stop"() : () -> ()
    %59 = vector.shape_cast %58 : vector<2x8x8xf32> to vector<16x8xf32>
    %60 = arith.truncf %59 : vector<16x8xf32> to vector<16x8xbf16>
    %61 = vector.extract_strided_slice %33 {offsets = [0, 0], sizes = [8, 32], strides = [1, 1]} : vector<32x32xbf16> to vector<8x32xbf16>
    %cst_21 = arith.constant dense<0.000000e+00> : vector<16x32xf32>
    %62 = tpu.matmul %60, %61, %cst_21 {dimension_numbers = #tpu.dot_dimension_numbers<[1], [0], [0], [1], [0, 0, 1, 1], [], []>} : vector<16x8xbf16>, vector<8x32xbf16>, vector<16x32xf32> -> vector<16x32xf32>
    %63 = vector.extract_strided_slice %23 {offsets = [0, 8], sizes = [16, 8], strides = [1, 1]} : vector<16x32xf32> to vector<16x8xf32>
    %64 = vector.shape_cast %63 : vector<16x8xf32> to vector<2x8x8xf32>
    %65 = arith.truncf %64 : vector<2x8x8xf32> to vector<2x8x8xbf16>
    %66 = vector.extract_strided_slice %27 {offsets = [0, 8], sizes = [16, 8], strides = [1, 1]} : vector<16x32xf32> to vector<16x8xf32>
    %67 = vector.shape_cast %66 : vector<16x8xf32> to vector<2x8x8xf32>
    %68 = arith.truncf %67 : vector<2x8x8xf32> to vector<2x8x8xbf16>
    %69 = vector.extract_strided_slice %31 {offsets = [0, 8], sizes = [16, 8], strides = [1, 1]} : vector<16x32xf32> to vector<16x8xf32>
    %70 = vector.shape_cast %69 : vector<16x8xf32> to vector<2x8x8xf32>
    %71 = arith.truncf %70 : vector<2x8x8xf32> to vector<2x8x8xbf16>
    "tpu.trace_start"() <{level = 10 : i32, message = "bqd,bkd->bqk"}> : () -> ()
    %cst_22 = arith.constant dense<0.000000e+00> : vector<2x8x8xf32>
    %72 = tpu.matmul %65, %68, %cst_22 {dimension_numbers = #tpu.dot_dimension_numbers<[2], [2], [1], [1], [0, 0, 0, 1, 1, 1], [0], [0]>} : vector<2x8x8xbf16>, vector<2x8x8xbf16>, vector<2x8x8xf32> -> vector<2x8x8xf32>
    "tpu.trace_stop"() : () -> ()
    %73 = vector.shape_cast %15 : vector<8x8xf32> to vector<1x8x8xf32>
    %74 = vector.broadcast %73 : vector<1x8x8xf32> to vector<2x8x8xf32>
    %75 = arith.addf %72, %74 : vector<2x8x8xf32>
    %cst_23 = arith.constant dense<0xFF800000> : vector<2x8xf32>
    %76 = vector.multi_reduction <maximumf>, %75, %cst_23 [2] : vector<2x8x8xf32> to vector<2x8xf32>
    %77 = vector.shape_cast %76 : vector<2x8xf32> to vector<2x8x1xf32>
    %78 = vector.broadcast %77 : vector<2x8x1xf32> to vector<2x8x8xf32>
    %79 = arith.subf %75, %78 : vector<2x8x8xf32>
    %80 = math.exp %79 : vector<2x8x8xf32>
    %cst_24 = arith.constant dense<0.000000e+00> : vector<2x8xf32>
    %81 = vector.multi_reduction <add>, %80, %cst_24 [2] : vector<2x8x8xf32> to vector<2x8xf32>
    %82 = vector.shape_cast %81 : vector<2x8xf32> to vector<2x8x1xf32>
    %83 = tpu.reciprocal %82 {approx = true} : vector<2x8x1xf32> -> vector<2x8x1xf32>
    %84 = vector.broadcast %83 : vector<2x8x1xf32> to vector<2x8x8xf32>
    %85 = arith.mulf %80, %84 : vector<2x8x8xf32>
    %86 = arith.truncf %85 : vector<2x8x8xf32> to vector<2x8x8xbf16>
    "tpu.trace_start"() <{level = 10 : i32, message = "bqk,bkd->bqd"}> : () -> ()
    %cst_25 = arith.constant dense<0.000000e+00> : vector<2x8x8xf32>
    %87 = tpu.matmul %86, %71, %cst_25 {dimension_numbers = #tpu.dot_dimension_numbers<[2], [1], [1], [2], [0, 0, 0, 1, 1, 2], [0], [0]>} : vector<2x8x8xbf16>, vector<2x8x8xbf16>, vector<2x8x8xf32> -> vector<2x8x8xf32>
    "tpu.trace_stop"() : () -> ()
    %88 = vector.shape_cast %87 : vector<2x8x8xf32> to vector<16x8xf32>
    %89 = arith.truncf %88 : vector<16x8xf32> to vector<16x8xbf16>
    %90 = vector.extract_strided_slice %33 {offsets = [8, 0], sizes = [8, 32], strides = [1, 1]} : vector<32x32xbf16> to vector<8x32xbf16>
    %cst_26 = arith.constant dense<0.000000e+00> : vector<16x32xf32>
    %91 = tpu.matmul %89, %90, %cst_26 {dimension_numbers = #tpu.dot_dimension_numbers<[1], [0], [0], [1], [0, 0, 1, 1], [], []>} : vector<16x8xbf16>, vector<8x32xbf16>, vector<16x32xf32> -> vector<16x32xf32>
    %92 = arith.addf %62, %91 : vector<16x32xf32>
    %93 = vector.extract_strided_slice %23 {offsets = [0, 16], sizes = [16, 8], strides = [1, 1]} : vector<16x32xf32> to vector<16x8xf32>
    %94 = vector.shape_cast %93 : vector<16x8xf32> to vector<2x8x8xf32>
    %95 = arith.truncf %94 : vector<2x8x8xf32> to vector<2x8x8xbf16>
    %96 = vector.extract_strided_slice %27 {offsets = [0, 16], sizes = [16, 8], strides = [1, 1]} : vector<16x32xf32> to vector<16x8xf32>
    %97 = vector.shape_cast %96 : vector<16x8xf32> to vector<2x8x8xf32>
    %98 = arith.truncf %97 : vector<2x8x8xf32> to vector<2x8x8xbf16>
    %99 = vector.extract_strided_slice %31 {offsets = [0, 16], sizes = [16, 8], strides = [1, 1]} : vector<16x32xf32> to vector<16x8xf32>
    %100 = vector.shape_cast %99 : vector<16x8xf32> to vector<2x8x8xf32>
    %101 = arith.truncf %100 : vector<2x8x8xf32> to vector<2x8x8xbf16>
    "tpu.trace_start"() <{level = 10 : i32, message = "bqd,bkd->bqk"}> : () -> ()
    %cst_27 = arith.constant dense<0.000000e+00> : vector<2x8x8xf32>
    %102 = tpu.matmul %95, %98, %cst_27 {dimension_numbers = #tpu.dot_dimension_numbers<[2], [2], [1], [1], [0, 0, 0, 1, 1, 1], [0], [0]>} : vector<2x8x8xbf16>, vector<2x8x8xbf16>, vector<2x8x8xf32> -> vector<2x8x8xf32>
    "tpu.trace_stop"() : () -> ()
    %103 = vector.shape_cast %15 : vector<8x8xf32> to vector<1x8x8xf32>
    %104 = vector.broadcast %103 : vector<1x8x8xf32> to vector<2x8x8xf32>
    %105 = arith.addf %102, %104 : vector<2x8x8xf32>
    %cst_28 = arith.constant dense<0xFF800000> : vector<2x8xf32>
    %106 = vector.multi_reduction <maximumf>, %105, %cst_28 [2] : vector<2x8x8xf32> to vector<2x8xf32>
    %107 = vector.shape_cast %106 : vector<2x8xf32> to vector<2x8x1xf32>
    %108 = vector.broadcast %107 : vector<2x8x1xf32> to vector<2x8x8xf32>
    %109 = arith.subf %105, %108 : vector<2x8x8xf32>
    %110 = math.exp %109 : vector<2x8x8xf32>
    %cst_29 = arith.constant dense<0.000000e+00> : vector<2x8xf32>
    %111 = vector.multi_reduction <add>, %110, %cst_29 [2] : vector<2x8x8xf32> to vector<2x8xf32>
    %112 = vector.shape_cast %111 : vector<2x8xf32> to vector<2x8x1xf32>
    %113 = tpu.reciprocal %112 {approx = true} : vector<2x8x1xf32> -> vector<2x8x1xf32>
    %114 = vector.broadcast %113 : vector<2x8x1xf32> to vector<2x8x8xf32>
    %115 = arith.mulf %110, %114 : vector<2x8x8xf32>
    %116 = arith.truncf %115 : vector<2x8x8xf32> to vector<2x8x8xbf16>
    "tpu.trace_start"() <{level = 10 : i32, message = "bqk,bkd->bqd"}> : () -> ()
    %cst_30 = arith.constant dense<0.000000e+00> : vector<2x8x8xf32>
    %117 = tpu.matmul %116, %101, %cst_30 {dimension_numbers = #tpu.dot_dimension_numbers<[2], [1], [1], [2], [0, 0, 0, 1, 1, 2], [0], [0]>} : vector<2x8x8xbf16>, vector<2x8x8xbf16>, vector<2x8x8xf32> -> vector<2x8x8xf32>
    "tpu.trace_stop"() : () -> ()
    %118 = vector.shape_cast %117 : vector<2x8x8xf32> to vector<16x8xf32>
    %119 = arith.truncf %118 : vector<16x8xf32> to vector<16x8xbf16>
    %120 = vector.extract_strided_slice %33 {offsets = [16, 0], sizes = [8, 32], strides = [1, 1]} : vector<32x32xbf16> to vector<8x32xbf16>
    %cst_31 = arith.constant dense<0.000000e+00> : vector<16x32xf32>
    %121 = tpu.matmul %119, %120, %cst_31 {dimension_numbers = #tpu.dot_dimension_numbers<[1], [0], [0], [1], [0, 0, 1, 1], [], []>} : vector<16x8xbf16>, vector<8x32xbf16>, vector<16x32xf32> -> vector<16x32xf32>
    %122 = arith.addf %92, %121 : vector<16x32xf32>
    %123 = vector.extract_strided_slice %23 {offsets = [0, 24], sizes = [16, 8], strides = [1, 1]} : vector<16x32xf32> to vector<16x8xf32>
    %124 = vector.shape_cast %123 : vector<16x8xf32> to vector<2x8x8xf32>
    %125 = arith.truncf %124 : vector<2x8x8xf32> to vector<2x8x8xbf16>
    %126 = vector.extract_strided_slice %27 {offsets = [0, 24], sizes = [16, 8], strides = [1, 1]} : vector<16x32xf32> to vector<16x8xf32>
    %127 = vector.shape_cast %126 : vector<16x8xf32> to vector<2x8x8xf32>
    %128 = arith.truncf %127 : vector<2x8x8xf32> to vector<2x8x8xbf16>
    %129 = vector.extract_strided_slice %31 {offsets = [0, 24], sizes = [16, 8], strides = [1, 1]} : vector<16x32xf32> to vector<16x8xf32>
    %130 = vector.shape_cast %129 : vector<16x8xf32> to vector<2x8x8xf32>
    %131 = arith.truncf %130 : vector<2x8x8xf32> to vector<2x8x8xbf16>
    "tpu.trace_start"() <{level = 10 : i32, message = "bqd,bkd->bqk"}> : () -> ()
    %cst_32 = arith.constant dense<0.000000e+00> : vector<2x8x8xf32>
    %132 = tpu.matmul %125, %128, %cst_32 {dimension_numbers = #tpu.dot_dimension_numbers<[2], [2], [1], [1], [0, 0, 0, 1, 1, 1], [0], [0]>} : vector<2x8x8xbf16>, vector<2x8x8xbf16>, vector<2x8x8xf32> -> vector<2x8x8xf32>
    "tpu.trace_stop"() : () -> ()
    %133 = vector.shape_cast %15 : vector<8x8xf32> to vector<1x8x8xf32>
    %134 = vector.broadcast %133 : vector<1x8x8xf32> to vector<2x8x8xf32>
    %135 = arith.addf %132, %134 : vector<2x8x8xf32>
    %cst_33 = arith.constant dense<0xFF800000> : vector<2x8xf32>
    %136 = vector.multi_reduction <maximumf>, %135, %cst_33 [2] : vector<2x8x8xf32> to vector<2x8xf32>
    %137 = vector.shape_cast %136 : vector<2x8xf32> to vector<2x8x1xf32>
    %138 = vector.broadcast %137 : vector<2x8x1xf32> to vector<2x8x8xf32>
    %139 = arith.subf %135, %138 : vector<2x8x8xf32>
    %140 = math.exp %139 : vector<2x8x8xf32>
    %cst_34 = arith.constant dense<0.000000e+00> : vector<2x8xf32>
    %141 = vector.multi_reduction <add>, %140, %cst_34 [2] : vector<2x8x8xf32> to vector<2x8xf32>
    %142 = vector.shape_cast %141 : vector<2x8xf32> to vector<2x8x1xf32>
    %143 = tpu.reciprocal %142 {approx = true} : vector<2x8x1xf32> -> vector<2x8x1xf32>
    %144 = vector.broadcast %143 : vector<2x8x1xf32> to vector<2x8x8xf32>
    %145 = arith.mulf %140, %144 : vector<2x8x8xf32>
    %146 = arith.truncf %145 : vector<2x8x8xf32> to vector<2x8x8xbf16>
    "tpu.trace_start"() <{level = 10 : i32, message = "bqk,bkd->bqd"}> : () -> ()
    %cst_35 = arith.constant dense<0.000000e+00> : vector<2x8x8xf32>
    %147 = tpu.matmul %146, %131, %cst_35 {dimension_numbers = #tpu.dot_dimension_numbers<[2], [1], [1], [2], [0, 0, 0, 1, 1, 2], [0], [0]>} : vector<2x8x8xbf16>, vector<2x8x8xbf16>, vector<2x8x8xf32> -> vector<2x8x8xf32>
    "tpu.trace_stop"() : () -> ()
    %148 = vector.shape_cast %147 : vector<2x8x8xf32> to vector<16x8xf32>
    %149 = arith.truncf %148 : vector<16x8xf32> to vector<16x8xbf16>
    %150 = vector.extract_strided_slice %33 {offsets = [24, 0], sizes = [8, 32], strides = [1, 1]} : vector<32x32xbf16> to vector<8x32xbf16>
    %cst_36 = arith.constant dense<0.000000e+00> : vector<16x32xf32>
    %151 = tpu.matmul %149, %150, %cst_36 {dimension_numbers = #tpu.dot_dimension_numbers<[1], [0], [0], [1], [0, 0, 1, 1], [], []>} : vector<16x8xbf16>, vector<8x32xbf16>, vector<16x32xf32> -> vector<16x32xf32>
    %152 = arith.addf %122, %151 : vector<16x32xf32>
    %153 = vector.broadcast %32 : vector<1x32xf32> to vector<16x32xf32>
    %154 = arith.addf %152, %153 : vector<16x32xf32>
    %155 = arith.addf %6, %154 : vector<16x32xf32>
    %156 = vector.extract_strided_slice %16 {offsets = [8, 0], sizes = [1, 32], strides = [1, 1]} : vector<15x32xf32> to vector<1x32xf32>
    %157 = vector.extract_strided_slice %16 {offsets = [9, 0], sizes = [1, 32], strides = [1, 1]} : vector<15x32xf32> to vector<1x32xf32>
    %cst_37 = arith.constant dense<0.000000e+00> : vector<16xf32>
    %158 = vector.multi_reduction <add>, %155, %cst_37 [1] : vector<16x32xf32> to vector<16xf32>
    %159 = vector.shape_cast %158 : vector<16xf32> to vector<16x1xf32>
    %cst_38 = arith.constant 3.200000e+01 : f32
    %160 = vector.broadcast %cst_38 : f32 to vector<16x1xf32>
    %161 = arith.divf %159, %160 : vector<16x1xf32>
    %162 = vector.broadcast %161 : vector<16x1xf32> to vector<16x32xf32>
    %163 = arith.subf %155, %162 : vector<16x32xf32>
    %164 = arith.mulf %163, %163 : vector<16x32xf32>
    %cst_39 = arith.constant dense<0.000000e+00> : vector<16xf32>
    %165 = vector.multi_reduction <add>, %164, %cst_39 [1] : vector<16x32xf32> to vector<16xf32>
    %166 = vector.shape_cast %165 : vector<16xf32> to vector<16x1xf32>
    %cst_40 = arith.constant 3.200000e+01 : f32
    %167 = vector.broadcast %cst_40 : f32 to vector<16x1xf32>
    %168 = arith.divf %166, %167 : vector<16x1xf32>
    %169 = vector.broadcast %161 : vector<16x1xf32> to vector<16x32xf32>
    %170 = arith.subf %155, %169 : vector<16x32xf32>
    %cst_41 = arith.constant 9.99999974E-6 : f32
    %171 = vector.broadcast %cst_41 : f32 to vector<16x1xf32>
    %172 = arith.addf %168, %171 : vector<16x1xf32>
    %173 = math.rsqrt %172 : vector<16x1xf32>
    %174 = vector.broadcast %173 : vector<16x1xf32> to vector<16x32xf32>
    %175 = arith.mulf %170, %174 : vector<16x32xf32>
    %176 = vector.broadcast %156 : vector<1x32xf32> to vector<16x32xf32>
    %177 = arith.mulf %175, %176 : vector<16x32xf32>
    %178 = vector.broadcast %157 : vector<1x32xf32> to vector<16x32xf32>
    %179 = arith.addf %177, %178 : vector<16x32xf32>
    %180 = arith.truncf %179 : vector<16x32xf32> to vector<16x32xbf16>
    %c0_42 = arith.constant 0 : index
    %c0_43 = arith.constant 0 : index
    %181 = vector.load %arg5[%c0_42, %c0_43] : memref<32x32xbf16, #tpu.memory_space<vmem>>, vector<32x32xbf16>
    %cst_44 = arith.constant dense<0.000000e+00> : vector<16x32xf32>
    %182 = tpu.matmul %180, %181, %cst_44 {dimension_numbers = #tpu.dot_dimension_numbers<[1], [0], [0], [1], [0, 0, 1, 1], [], []>} : vector<16x32xbf16>, vector<32x32xbf16>, vector<16x32xf32> -> vector<16x32xf32>
    %183 = vector.extract_strided_slice %16 {offsets = [4, 0], sizes = [1, 32], strides = [1, 1]} : vector<15x32xf32> to vector<1x32xf32>
    %184 = vector.broadcast %183 : vector<1x32xf32> to vector<16x32xf32>
    %185 = arith.addf %182, %184 : vector<16x32xf32>
    %c0_45 = arith.constant 0 : index
    %c0_46 = arith.constant 0 : index
    %186 = vector.load %arg6[%c0_45, %c0_46] : memref<32x64xbf16, #tpu.memory_space<vmem>>, vector<32x64xbf16>
    %cst_47 = arith.constant dense<0.000000e+00> : vector<32x64xf32>
    %187 = tpu.matmul %9, %186, %cst_47 {dimension_numbers = #tpu.dot_dimension_numbers<[1], [0], [0], [1], [0, 0, 1, 1], [], []>} : vector<32x32xbf16>, vector<32x64xbf16>, vector<32x64xf32> -> vector<32x64xf32>
    %188 = vector.extract_strided_slice %187 {offsets = [0, 0], sizes = [32, 32], strides = [1, 1]} : vector<32x64xf32> to vector<32x32xf32>
    %189 = vector.extract_strided_slice %16 {offsets = [5, 0], sizes = [1, 32], strides = [1, 1]} : vector<15x32xf32> to vector<1x32xf32>
    %190 = vector.broadcast %189 : vector<1x32xf32> to vector<32x32xf32>
    %191 = arith.addf %188, %190 : vector<32x32xf32>
    %192 = vector.extract_strided_slice %187 {offsets = [0, 32], sizes = [32, 32], strides = [1, 1]} : vector<32x64xf32> to vector<32x32xf32>
    %193 = vector.extract_strided_slice %16 {offsets = [6, 0], sizes = [1, 32], strides = [1, 1]} : vector<15x32xf32> to vector<1x32xf32>
    %194 = vector.broadcast %193 : vector<1x32xf32> to vector<32x32xf32>
    %195 = arith.addf %192, %194 : vector<32x32xf32>
    %196 = vector.extract_strided_slice %16 {offsets = [7, 0], sizes = [1, 32], strides = [1, 1]} : vector<15x32xf32> to vector<1x32xf32>
    %c0_48 = arith.constant 0 : index
    %c0_49 = arith.constant 0 : index
    %197 = vector.load %arg7[%c0_48, %c0_49] : memref<32x32xbf16, #tpu.memory_space<vmem>>, vector<32x32xbf16>
    %198 = vector.extract_strided_slice %185 {offsets = [0, 0], sizes = [16, 8], strides = [1, 1]} : vector<16x32xf32> to vector<16x8xf32>
    %199 = vector.shape_cast %198 : vector<16x8xf32> to vector<2x8x8xf32>
    %200 = arith.truncf %199 : vector<2x8x8xf32> to vector<2x8x8xbf16>
    %201 = vector.extract_strided_slice %191 {offsets = [0, 0], sizes = [32, 8], strides = [1, 1]} : vector<32x32xf32> to vector<32x8xf32>
    %202 = vector.shape_cast %201 : vector<32x8xf32> to vector<2x16x8xf32>
    %203 = arith.truncf %202 : vector<2x16x8xf32> to vector<2x16x8xbf16>
    %204 = vector.extract_strided_slice %195 {offsets = [0, 0], sizes = [32, 8], strides = [1, 1]} : vector<32x32xf32> to vector<32x8xf32>
    %205 = vector.shape_cast %204 : vector<32x8xf32> to vector<2x16x8xf32>
    %206 = arith.truncf %205 : vector<2x16x8xf32> to vector<2x16x8xbf16>
    "tpu.trace_start"() <{level = 10 : i32, message = "bqd,bkd->bqk"}> : () -> ()
    %cst_50 = arith.constant dense<0.000000e+00> : vector<2x8x16xf32>
    %207 = tpu.matmul %200, %203, %cst_50 {dimension_numbers = #tpu.dot_dimension_numbers<[2], [2], [1], [1], [0, 0, 0, 1, 1, 1], [0], [0]>} : vector<2x8x8xbf16>, vector<2x16x8xbf16>, vector<2x8x16xf32> -> vector<2x8x16xf32>
    "tpu.trace_stop"() : () -> ()
    %cst_51 = arith.constant dense<0xFF800000> : vector<2x8xf32>
    %208 = vector.multi_reduction <maximumf>, %207, %cst_51 [2] : vector<2x8x16xf32> to vector<2x8xf32>
    %209 = vector.shape_cast %208 : vector<2x8xf32> to vector<2x8x1xf32>
    %210 = vector.broadcast %209 : vector<2x8x1xf32> to vector<2x8x16xf32>
    %211 = arith.subf %207, %210 : vector<2x8x16xf32>
    %212 = math.exp %211 : vector<2x8x16xf32>
    %cst_52 = arith.constant dense<0.000000e+00> : vector<2x8xf32>
    %213 = vector.multi_reduction <add>, %212, %cst_52 [2] : vector<2x8x16xf32> to vector<2x8xf32>
    %214 = vector.shape_cast %213 : vector<2x8xf32> to vector<2x8x1xf32>
    %215 = tpu.reciprocal %214 {approx = true} : vector<2x8x1xf32> -> vector<2x8x1xf32>
    %216 = vector.broadcast %215 : vector<2x8x1xf32> to vector<2x8x16xf32>
    %217 = arith.mulf %212, %216 : vector<2x8x16xf32>
    %218 = arith.truncf %217 : vector<2x8x16xf32> to vector<2x8x16xbf16>
    "tpu.trace_start"() <{level = 10 : i32, message = "bqk,bkd->bqd"}> : () -> ()
    %cst_53 = arith.constant dense<0.000000e+00> : vector<2x8x8xf32>
    %219 = tpu.matmul %218, %206, %cst_53 {dimension_numbers = #tpu.dot_dimension_numbers<[2], [1], [1], [2], [0, 0, 0, 1, 1, 2], [0], [0]>} : vector<2x8x16xbf16>, vector<2x16x8xbf16>, vector<2x8x8xf32> -> vector<2x8x8xf32>
    "tpu.trace_stop"() : () -> ()
    %220 = vector.shape_cast %219 : vector<2x8x8xf32> to vector<16x8xf32>
    %221 = arith.truncf %220 : vector<16x8xf32> to vector<16x8xbf16>
    %222 = vector.extract_strided_slice %197 {offsets = [0, 0], sizes = [8, 32], strides = [1, 1]} : vector<32x32xbf16> to vector<8x32xbf16>
    %cst_54 = arith.constant dense<0.000000e+00> : vector<16x32xf32>
    %223 = tpu.matmul %221, %222, %cst_54 {dimension_numbers = #tpu.dot_dimension_numbers<[1], [0], [0], [1], [0, 0, 1, 1], [], []>} : vector<16x8xbf16>, vector<8x32xbf16>, vector<16x32xf32> -> vector<16x32xf32>
    %224 = vector.extract_strided_slice %185 {offsets = [0, 8], sizes = [16, 8], strides = [1, 1]} : vector<16x32xf32> to vector<16x8xf32>
    %225 = vector.shape_cast %224 : vector<16x8xf32> to vector<2x8x8xf32>
    %226 = arith.truncf %225 : vector<2x8x8xf32> to vector<2x8x8xbf16>
    %227 = vector.extract_strided_slice %191 {offsets = [0, 8], sizes = [32, 8], strides = [1, 1]} : vector<32x32xf32> to vector<32x8xf32>
    %228 = vector.shape_cast %227 : vector<32x8xf32> to vector<2x16x8xf32>
    %229 = arith.truncf %228 : vector<2x16x8xf32> to vector<2x16x8xbf16>
    %230 = vector.extract_strided_slice %195 {offsets = [0, 8], sizes = [32, 8], strides = [1, 1]} : vector<32x32xf32> to vector<32x8xf32>
    %231 = vector.shape_cast %230 : vector<32x8xf32> to vector<2x16x8xf32>
    %232 = arith.truncf %231 : vector<2x16x8xf32> to vector<2x16x8xbf16>
    "tpu.trace_start"() <{level = 10 : i32, message = "bqd,bkd->bqk"}> : () -> ()
    %cst_55 = arith.constant dense<0.000000e+00> : vector<2x8x16xf32>
    %233 = tpu.matmul %226, %229, %cst_55 {dimension_numbers = #tpu.dot_dimension_numbers<[2], [2], [1], [1], [0, 0, 0, 1, 1, 1], [0], [0]>} : vector<2x8x8xbf16>, vector<2x16x8xbf16>, vector<2x8x16xf32> -> vector<2x8x16xf32>
    "tpu.trace_stop"() : () -> ()
    %cst_56 = arith.constant dense<0xFF800000> : vector<2x8xf32>
    %234 = vector.multi_reduction <maximumf>, %233, %cst_56 [2] : vector<2x8x16xf32> to vector<2x8xf32>
    %235 = vector.shape_cast %234 : vector<2x8xf32> to vector<2x8x1xf32>
    %236 = vector.broadcast %235 : vector<2x8x1xf32> to vector<2x8x16xf32>
    %237 = arith.subf %233, %236 : vector<2x8x16xf32>
    %238 = math.exp %237 : vector<2x8x16xf32>
    %cst_57 = arith.constant dense<0.000000e+00> : vector<2x8xf32>
    %239 = vector.multi_reduction <add>, %238, %cst_57 [2] : vector<2x8x16xf32> to vector<2x8xf32>
    %240 = vector.shape_cast %239 : vector<2x8xf32> to vector<2x8x1xf32>
    %241 = tpu.reciprocal %240 {approx = true} : vector<2x8x1xf32> -> vector<2x8x1xf32>
    %242 = vector.broadcast %241 : vector<2x8x1xf32> to vector<2x8x16xf32>
    %243 = arith.mulf %238, %242 : vector<2x8x16xf32>
    %244 = arith.truncf %243 : vector<2x8x16xf32> to vector<2x8x16xbf16>
    "tpu.trace_start"() <{level = 10 : i32, message = "bqk,bkd->bqd"}> : () -> ()
    %cst_58 = arith.constant dense<0.000000e+00> : vector<2x8x8xf32>
    %245 = tpu.matmul %244, %232, %cst_58 {dimension_numbers = #tpu.dot_dimension_numbers<[2], [1], [1], [2], [0, 0, 0, 1, 1, 2], [0], [0]>} : vector<2x8x16xbf16>, vector<2x16x8xbf16>, vector<2x8x8xf32> -> vector<2x8x8xf32>
    "tpu.trace_stop"() : () -> ()
    %246 = vector.shape_cast %245 : vector<2x8x8xf32> to vector<16x8xf32>
    %247 = arith.truncf %246 : vector<16x8xf32> to vector<16x8xbf16>
    %248 = vector.extract_strided_slice %197 {offsets = [8, 0], sizes = [8, 32], strides = [1, 1]} : vector<32x32xbf16> to vector<8x32xbf16>
    %cst_59 = arith.constant dense<0.000000e+00> : vector<16x32xf32>
    %249 = tpu.matmul %247, %248, %cst_59 {dimension_numbers = #tpu.dot_dimension_numbers<[1], [0], [0], [1], [0, 0, 1, 1], [], []>} : vector<16x8xbf16>, vector<8x32xbf16>, vector<16x32xf32> -> vector<16x32xf32>
    %250 = arith.addf %223, %249 : vector<16x32xf32>
    %251 = vector.extract_strided_slice %185 {offsets = [0, 16], sizes = [16, 8], strides = [1, 1]} : vector<16x32xf32> to vector<16x8xf32>
    %252 = vector.shape_cast %251 : vector<16x8xf32> to vector<2x8x8xf32>
    %253 = arith.truncf %252 : vector<2x8x8xf32> to vector<2x8x8xbf16>
    %254 = vector.extract_strided_slice %191 {offsets = [0, 16], sizes = [32, 8], strides = [1, 1]} : vector<32x32xf32> to vector<32x8xf32>
    %255 = vector.shape_cast %254 : vector<32x8xf32> to vector<2x16x8xf32>
    %256 = arith.truncf %255 : vector<2x16x8xf32> to vector<2x16x8xbf16>
    %257 = vector.extract_strided_slice %195 {offsets = [0, 16], sizes = [32, 8], strides = [1, 1]} : vector<32x32xf32> to vector<32x8xf32>
    %258 = vector.shape_cast %257 : vector<32x8xf32> to vector<2x16x8xf32>
    %259 = arith.truncf %258 : vector<2x16x8xf32> to vector<2x16x8xbf16>
    "tpu.trace_start"() <{level = 10 : i32, message = "bqd,bkd->bqk"}> : () -> ()
    %cst_60 = arith.constant dense<0.000000e+00> : vector<2x8x16xf32>
    %260 = tpu.matmul %253, %256, %cst_60 {dimension_numbers = #tpu.dot_dimension_numbers<[2], [2], [1], [1], [0, 0, 0, 1, 1, 1], [0], [0]>} : vector<2x8x8xbf16>, vector<2x16x8xbf16>, vector<2x8x16xf32> -> vector<2x8x16xf32>
    "tpu.trace_stop"() : () -> ()
    %cst_61 = arith.constant dense<0xFF800000> : vector<2x8xf32>
    %261 = vector.multi_reduction <maximumf>, %260, %cst_61 [2] : vector<2x8x16xf32> to vector<2x8xf32>
    %262 = vector.shape_cast %261 : vector<2x8xf32> to vector<2x8x1xf32>
    %263 = vector.broadcast %262 : vector<2x8x1xf32> to vector<2x8x16xf32>
    %264 = arith.subf %260, %263 : vector<2x8x16xf32>
    %265 = math.exp %264 : vector<2x8x16xf32>
    %cst_62 = arith.constant dense<0.000000e+00> : vector<2x8xf32>
    %266 = vector.multi_reduction <add>, %265, %cst_62 [2] : vector<2x8x16xf32> to vector<2x8xf32>
    %267 = vector.shape_cast %266 : vector<2x8xf32> to vector<2x8x1xf32>
    %268 = tpu.reciprocal %267 {approx = true} : vector<2x8x1xf32> -> vector<2x8x1xf32>
    %269 = vector.broadcast %268 : vector<2x8x1xf32> to vector<2x8x16xf32>
    %270 = arith.mulf %265, %269 : vector<2x8x16xf32>
    %271 = arith.truncf %270 : vector<2x8x16xf32> to vector<2x8x16xbf16>
    "tpu.trace_start"() <{level = 10 : i32, message = "bqk,bkd->bqd"}> : () -> ()
    %cst_63 = arith.constant dense<0.000000e+00> : vector<2x8x8xf32>
    %272 = tpu.matmul %271, %259, %cst_63 {dimension_numbers = #tpu.dot_dimension_numbers<[2], [1], [1], [2], [0, 0, 0, 1, 1, 2], [0], [0]>} : vector<2x8x16xbf16>, vector<2x16x8xbf16>, vector<2x8x8xf32> -> vector<2x8x8xf32>
    "tpu.trace_stop"() : () -> ()
    %273 = vector.shape_cast %272 : vector<2x8x8xf32> to vector<16x8xf32>
    %274 = arith.truncf %273 : vector<16x8xf32> to vector<16x8xbf16>
    %275 = vector.extract_strided_slice %197 {offsets = [16, 0], sizes = [8, 32], strides = [1, 1]} : vector<32x32xbf16> to vector<8x32xbf16>
    %cst_64 = arith.constant dense<0.000000e+00> : vector<16x32xf32>
    %276 = tpu.matmul %274, %275, %cst_64 {dimension_numbers = #tpu.dot_dimension_numbers<[1], [0], [0], [1], [0, 0, 1, 1], [], []>} : vector<16x8xbf16>, vector<8x32xbf16>, vector<16x32xf32> -> vector<16x32xf32>
    %277 = arith.addf %250, %276 : vector<16x32xf32>
    %278 = vector.extract_strided_slice %185 {offsets = [0, 24], sizes = [16, 8], strides = [1, 1]} : vector<16x32xf32> to vector<16x8xf32>
    %279 = vector.shape_cast %278 : vector<16x8xf32> to vector<2x8x8xf32>
    %280 = arith.truncf %279 : vector<2x8x8xf32> to vector<2x8x8xbf16>
    %281 = vector.extract_strided_slice %191 {offsets = [0, 24], sizes = [32, 8], strides = [1, 1]} : vector<32x32xf32> to vector<32x8xf32>
    %282 = vector.shape_cast %281 : vector<32x8xf32> to vector<2x16x8xf32>
    %283 = arith.truncf %282 : vector<2x16x8xf32> to vector<2x16x8xbf16>
    %284 = vector.extract_strided_slice %195 {offsets = [0, 24], sizes = [32, 8], strides = [1, 1]} : vector<32x32xf32> to vector<32x8xf32>
    %285 = vector.shape_cast %284 : vector<32x8xf32> to vector<2x16x8xf32>
    %286 = arith.truncf %285 : vector<2x16x8xf32> to vector<2x16x8xbf16>
    "tpu.trace_start"() <{level = 10 : i32, message = "bqd,bkd->bqk"}> : () -> ()
    %cst_65 = arith.constant dense<0.000000e+00> : vector<2x8x16xf32>
    %287 = tpu.matmul %280, %283, %cst_65 {dimension_numbers = #tpu.dot_dimension_numbers<[2], [2], [1], [1], [0, 0, 0, 1, 1, 1], [0], [0]>} : vector<2x8x8xbf16>, vector<2x16x8xbf16>, vector<2x8x16xf32> -> vector<2x8x16xf32>
    "tpu.trace_stop"() : () -> ()
    %cst_66 = arith.constant dense<0xFF800000> : vector<2x8xf32>
    %288 = vector.multi_reduction <maximumf>, %287, %cst_66 [2] : vector<2x8x16xf32> to vector<2x8xf32>
    %289 = vector.shape_cast %288 : vector<2x8xf32> to vector<2x8x1xf32>
    %290 = vector.broadcast %289 : vector<2x8x1xf32> to vector<2x8x16xf32>
    %291 = arith.subf %287, %290 : vector<2x8x16xf32>
    %292 = math.exp %291 : vector<2x8x16xf32>
    %cst_67 = arith.constant dense<0.000000e+00> : vector<2x8xf32>
    %293 = vector.multi_reduction <add>, %292, %cst_67 [2] : vector<2x8x16xf32> to vector<2x8xf32>
    %294 = vector.shape_cast %293 : vector<2x8xf32> to vector<2x8x1xf32>
    %295 = tpu.reciprocal %294 {approx = true} : vector<2x8x1xf32> -> vector<2x8x1xf32>
    %296 = vector.broadcast %295 : vector<2x8x1xf32> to vector<2x8x16xf32>
    %297 = arith.mulf %292, %296 : vector<2x8x16xf32>
    %298 = arith.truncf %297 : vector<2x8x16xf32> to vector<2x8x16xbf16>
    "tpu.trace_start"() <{level = 10 : i32, message = "bqk,bkd->bqd"}> : () -> ()
    %cst_68 = arith.constant dense<0.000000e+00> : vector<2x8x8xf32>
    %299 = tpu.matmul %298, %286, %cst_68 {dimension_numbers = #tpu.dot_dimension_numbers<[2], [1], [1], [2], [0, 0, 0, 1, 1, 2], [0], [0]>} : vector<2x8x16xbf16>, vector<2x16x8xbf16>, vector<2x8x8xf32> -> vector<2x8x8xf32>
    "tpu.trace_stop"() : () -> ()
    %300 = vector.shape_cast %299 : vector<2x8x8xf32> to vector<16x8xf32>
    %301 = arith.truncf %300 : vector<16x8xf32> to vector<16x8xbf16>
    %302 = vector.extract_strided_slice %197 {offsets = [24, 0], sizes = [8, 32], strides = [1, 1]} : vector<32x32xbf16> to vector<8x32xbf16>
    %cst_69 = arith.constant dense<0.000000e+00> : vector<16x32xf32>
    %303 = tpu.matmul %301, %302, %cst_69 {dimension_numbers = #tpu.dot_dimension_numbers<[1], [0], [0], [1], [0, 0, 1, 1], [], []>} : vector<16x8xbf16>, vector<8x32xbf16>, vector<16x32xf32> -> vector<16x32xf32>
    %304 = arith.addf %277, %303 : vector<16x32xf32>
    %305 = vector.broadcast %196 : vector<1x32xf32> to vector<16x32xf32>
    %306 = arith.addf %304, %305 : vector<16x32xf32>
    %307 = arith.addf %179, %306 : vector<16x32xf32>
    %308 = vector.extract_strided_slice %16 {offsets = [10, 0], sizes = [1, 32], strides = [1, 1]} : vector<15x32xf32> to vector<1x32xf32>
    %309 = vector.extract_strided_slice %16 {offsets = [11, 0], sizes = [1, 32], strides = [1, 1]} : vector<15x32xf32> to vector<1x32xf32>
    %cst_70 = arith.constant dense<0.000000e+00> : vector<16xf32>
    %310 = vector.multi_reduction <add>, %307, %cst_70 [1] : vector<16x32xf32> to vector<16xf32>
    %311 = vector.shape_cast %310 : vector<16xf32> to vector<16x1xf32>
    %cst_71 = arith.constant 3.200000e+01 : f32
    %312 = vector.broadcast %cst_71 : f32 to vector<16x1xf32>
    %313 = arith.divf %311, %312 : vector<16x1xf32>
    %314 = vector.broadcast %313 : vector<16x1xf32> to vector<16x32xf32>
    %315 = arith.subf %307, %314 : vector<16x32xf32>
    %316 = arith.mulf %315, %315 : vector<16x32xf32>
    %cst_72 = arith.constant dense<0.000000e+00> : vector<16xf32>
    %317 = vector.multi_reduction <add>, %316, %cst_72 [1] : vector<16x32xf32> to vector<16xf32>
    %318 = vector.shape_cast %317 : vector<16xf32> to vector<16x1xf32>
    %cst_73 = arith.constant 3.200000e+01 : f32
    %319 = vector.broadcast %cst_73 : f32 to vector<16x1xf32>
    %320 = arith.divf %318, %319 : vector<16x1xf32>
    %321 = vector.broadcast %313 : vector<16x1xf32> to vector<16x32xf32>
    %322 = arith.subf %307, %321 : vector<16x32xf32>
    %cst_74 = arith.constant 9.99999974E-6 : f32
    %323 = vector.broadcast %cst_74 : f32 to vector<16x1xf32>
    %324 = arith.addf %320, %323 : vector<16x1xf32>
    %325 = math.rsqrt %324 : vector<16x1xf32>
    %326 = vector.broadcast %325 : vector<16x1xf32> to vector<16x32xf32>
    %327 = arith.mulf %322, %326 : vector<16x32xf32>
    %328 = vector.broadcast %308 : vector<1x32xf32> to vector<16x32xf32>
    %329 = arith.mulf %327, %328 : vector<16x32xf32>
    %330 = vector.broadcast %309 : vector<1x32xf32> to vector<16x32xf32>
    %331 = arith.addf %329, %330 : vector<16x32xf32>
    %332 = arith.truncf %331 : vector<16x32xf32> to vector<16x32xbf16>
    %c0_75 = arith.constant 0 : index
    %c0_76 = arith.constant 0 : index
    %333 = vector.load %arg8[%c0_75, %c0_76] : memref<32x2048xbf16, #tpu.memory_space<vmem>>, vector<32x2048xbf16>
    %cst_77 = arith.constant dense<0.000000e+00> : vector<16x2048xf32>
    %334 = tpu.matmul %332, %333, %cst_77 {dimension_numbers = #tpu.dot_dimension_numbers<[1], [0], [0], [1], [0, 0, 1, 1], [], []>} : vector<16x32xbf16>, vector<32x2048xbf16>, vector<16x2048xf32> -> vector<16x2048xf32>
    %c0_78 = arith.constant 0 : index
    %c0_79 = arith.constant 0 : index
    %335 = vector.load %arg11[%c0_78, %c0_79] : memref<1x2048xf32, #tpu.memory_space<vmem>>, vector<1x2048xf32>
    %336 = vector.broadcast %335 : vector<1x2048xf32> to vector<16x2048xf32>
    %337 = arith.addf %334, %336 : vector<16x2048xf32>
    %cst_80 = arith.constant 0.000000e+00 : f32
    %338 = vector.broadcast %cst_80 : f32 to vector<16x2048xf32>
    %339 = arith.maximumf %337, %338 : vector<16x2048xf32>
    %340 = arith.truncf %339 : vector<16x2048xf32> to vector<16x2048xbf16>
    %c0_81 = arith.constant 0 : index
    %c0_82 = arith.constant 0 : index
    %341 = vector.load %arg9[%c0_81, %c0_82] : memref<2048x32xbf16, #tpu.memory_space<vmem>>, vector<2048x32xbf16>
    %cst_83 = arith.constant dense<0.000000e+00> : vector<16x32xf32>
    %342 = tpu.matmul %340, %341, %cst_83 {dimension_numbers = #tpu.dot_dimension_numbers<[1], [0], [0], [1], [0, 0, 1, 1], [], []>} : vector<16x2048xbf16>, vector<2048x32xbf16>, vector<16x32xf32> -> vector<16x32xf32>
    %343 = vector.extract_strided_slice %16 {offsets = [14, 0], sizes = [1, 32], strides = [1, 1]} : vector<15x32xf32> to vector<1x32xf32>
    %344 = vector.broadcast %343 : vector<1x32xf32> to vector<16x32xf32>
    %345 = arith.addf %342, %344 : vector<16x32xf32>
    %346 = arith.addf %331, %345 : vector<16x32xf32>
    %347 = vector.extract_strided_slice %16 {offsets = [12, 0], sizes = [1, 32], strides = [1, 1]} : vector<15x32xf32> to vector<1x32xf32>
    %348 = vector.extract_strided_slice %16 {offsets = [13, 0], sizes = [1, 32], strides = [1, 1]} : vector<15x32xf32> to vector<1x32xf32>
    %cst_84 = arith.constant dense<0.000000e+00> : vector<16xf32>
    %349 = vector.multi_reduction <add>, %346, %cst_84 [1] : vector<16x32xf32> to vector<16xf32>
    %350 = vector.shape_cast %349 : vector<16xf32> to vector<16x1xf32>
    %cst_85 = arith.constant 3.200000e+01 : f32
    %351 = vector.broadcast %cst_85 : f32 to vector<16x1xf32>
    %352 = arith.divf %350, %351 : vector<16x1xf32>
    %353 = vector.broadcast %352 : vector<16x1xf32> to vector<16x32xf32>
    %354 = arith.subf %346, %353 : vector<16x32xf32>
    %355 = arith.mulf %354, %354 : vector<16x32xf32>
    %cst_86 = arith.constant dense<0.000000e+00> : vector<16xf32>
    %356 = vector.multi_reduction <add>, %355, %cst_86 [1] : vector<16x32xf32> to vector<16xf32>
    %357 = vector.shape_cast %356 : vector<16xf32> to vector<16x1xf32>
    %cst_87 = arith.constant 3.200000e+01 : f32
    %358 = vector.broadcast %cst_87 : f32 to vector<16x1xf32>
    %359 = arith.divf %357, %358 : vector<16x1xf32>
    %360 = vector.broadcast %352 : vector<16x1xf32> to vector<16x32xf32>
    %361 = arith.subf %346, %360 : vector<16x32xf32>
    %cst_88 = arith.constant 9.99999974E-6 : f32
    %362 = vector.broadcast %cst_88 : f32 to vector<16x1xf32>
    %363 = arith.addf %359, %362 : vector<16x1xf32>
    %364 = math.rsqrt %363 : vector<16x1xf32>
    %365 = vector.broadcast %364 : vector<16x1xf32> to vector<16x32xf32>
    %366 = arith.mulf %361, %365 : vector<16x32xf32>
    %367 = vector.broadcast %347 : vector<1x32xf32> to vector<16x32xf32>
    %368 = arith.mulf %366, %367 : vector<16x32xf32>
    %369 = vector.broadcast %348 : vector<1x32xf32> to vector<16x32xf32>
    %370 = arith.addf %368, %369 : vector<16x32xf32>
    %c0_89 = arith.constant 0 : index
    %c0_90 = arith.constant 0 : index
    %371 = vector.load %arg19[%c0_89, %c0_90] : memref<15x32xf32, #tpu.memory_space<vmem>>, vector<15x32xf32>
    %372 = arith.truncf %370 : vector<16x32xf32> to vector<16x32xbf16>
    %c0_91 = arith.constant 0 : index
    %c0_92 = arith.constant 0 : index
    %373 = vector.load %arg12[%c0_91, %c0_92] : memref<32x96xbf16, #tpu.memory_space<vmem>>, vector<32x96xbf16>
    %cst_93 = arith.constant dense<0.000000e+00> : vector<16x96xf32>
    %374 = tpu.matmul %372, %373, %cst_93 {dimension_numbers = #tpu.dot_dimension_numbers<[1], [0], [0], [1], [0, 0, 1, 1], [], []>} : vector<16x32xbf16>, vector<32x96xbf16>, vector<16x96xf32> -> vector<16x96xf32>
    %375 = vector.extract_strided_slice %374 {offsets = [0, 0], sizes = [16, 32], strides = [1, 1]} : vector<16x96xf32> to vector<16x32xf32>
    %376 = vector.extract_strided_slice %371 {offsets = [0, 0], sizes = [1, 32], strides = [1, 1]} : vector<15x32xf32> to vector<1x32xf32>
    %377 = vector.broadcast %376 : vector<1x32xf32> to vector<16x32xf32>
    %378 = arith.addf %375, %377 : vector<16x32xf32>
    %379 = vector.extract_strided_slice %374 {offsets = [0, 32], sizes = [16, 32], strides = [1, 1]} : vector<16x96xf32> to vector<16x32xf32>
    %380 = vector.extract_strided_slice %371 {offsets = [1, 0], sizes = [1, 32], strides = [1, 1]} : vector<15x32xf32> to vector<1x32xf32>
    %381 = vector.broadcast %380 : vector<1x32xf32> to vector<16x32xf32>
    %382 = arith.addf %379, %381 : vector<16x32xf32>
    %383 = vector.extract_strided_slice %374 {offsets = [0, 64], sizes = [16, 32], strides = [1, 1]} : vector<16x96xf32> to vector<16x32xf32>
    %384 = vector.extract_strided_slice %371 {offsets = [2, 0], sizes = [1, 32], strides = [1, 1]} : vector<15x32xf32> to vector<1x32xf32>
    %385 = vector.broadcast %384 : vector<1x32xf32> to vector<16x32xf32>
    %386 = arith.addf %383, %385 : vector<16x32xf32>
    %387 = vector.extract_strided_slice %371 {offsets = [3, 0], sizes = [1, 32], strides = [1, 1]} : vector<15x32xf32> to vector<1x32xf32>
    %c0_94 = arith.constant 0 : index
    %c0_95 = arith.constant 0 : index
    %388 = vector.load %arg13[%c0_94, %c0_95] : memref<32x32xbf16, #tpu.memory_space<vmem>>, vector<32x32xbf16>
    %389 = vector.extract_strided_slice %378 {offsets = [0, 0], sizes = [16, 8], strides = [1, 1]} : vector<16x32xf32> to vector<16x8xf32>
    %390 = vector.shape_cast %389 : vector<16x8xf32> to vector<2x8x8xf32>
    %391 = arith.truncf %390 : vector<2x8x8xf32> to vector<2x8x8xbf16>
    %392 = vector.extract_strided_slice %382 {offsets = [0, 0], sizes = [16, 8], strides = [1, 1]} : vector<16x32xf32> to vector<16x8xf32>
    %393 = vector.shape_cast %392 : vector<16x8xf32> to vector<2x8x8xf32>
    %394 = arith.truncf %393 : vector<2x8x8xf32> to vector<2x8x8xbf16>
    %395 = vector.extract_strided_slice %386 {offsets = [0, 0], sizes = [16, 8], strides = [1, 1]} : vector<16x32xf32> to vector<16x8xf32>
    %396 = vector.shape_cast %395 : vector<16x8xf32> to vector<2x8x8xf32>
    %397 = arith.truncf %396 : vector<2x8x8xf32> to vector<2x8x8xbf16>
    "tpu.trace_start"() <{level = 10 : i32, message = "bqd,bkd->bqk"}> : () -> ()
    %cst_96 = arith.constant dense<0.000000e+00> : vector<2x8x8xf32>
    %398 = tpu.matmul %391, %394, %cst_96 {dimension_numbers = #tpu.dot_dimension_numbers<[2], [2], [1], [1], [0, 0, 0, 1, 1, 1], [0], [0]>} : vector<2x8x8xbf16>, vector<2x8x8xbf16>, vector<2x8x8xf32> -> vector<2x8x8xf32>
    "tpu.trace_stop"() : () -> ()
    %399 = vector.shape_cast %15 : vector<8x8xf32> to vector<1x8x8xf32>
    %400 = vector.broadcast %399 : vector<1x8x8xf32> to vector<2x8x8xf32>
    %401 = arith.addf %398, %400 : vector<2x8x8xf32>
    %cst_97 = arith.constant dense<0xFF800000> : vector<2x8xf32>
    %402 = vector.multi_reduction <maximumf>, %401, %cst_97 [2] : vector<2x8x8xf32> to vector<2x8xf32>
    %403 = vector.shape_cast %402 : vector<2x8xf32> to vector<2x8x1xf32>
    %404 = vector.broadcast %403 : vector<2x8x1xf32> to vector<2x8x8xf32>
    %405 = arith.subf %401, %404 : vector<2x8x8xf32>
    %406 = math.exp %405 : vector<2x8x8xf32>
    %cst_98 = arith.constant dense<0.000000e+00> : vector<2x8xf32>
    %407 = vector.multi_reduction <add>, %406, %cst_98 [2] : vector<2x8x8xf32> to vector<2x8xf32>
    %408 = vector.shape_cast %407 : vector<2x8xf32> to vector<2x8x1xf32>
    %409 = tpu.reciprocal %408 {approx = true} : vector<2x8x1xf32> -> vector<2x8x1xf32>
    %410 = vector.broadcast %409 : vector<2x8x1xf32> to vector<2x8x8xf32>
    %411 = arith.mulf %406, %410 : vector<2x8x8xf32>
    %412 = arith.truncf %411 : vector<2x8x8xf32> to vector<2x8x8xbf16>
    "tpu.trace_start"() <{level = 10 : i32, message = "bqk,bkd->bqd"}> : () -> ()
    %cst_99 = arith.constant dense<0.000000e+00> : vector<2x8x8xf32>
    %413 = tpu.matmul %412, %397, %cst_99 {dimension_numbers = #tpu.dot_dimension_numbers<[2], [1], [1], [2], [0, 0, 0, 1, 1, 2], [0], [0]>} : vector<2x8x8xbf16>, vector<2x8x8xbf16>, vector<2x8x8xf32> -> vector<2x8x8xf32>
    "tpu.trace_stop"() : () -> ()
    %414 = vector.shape_cast %413 : vector<2x8x8xf32> to vector<16x8xf32>
    %415 = arith.truncf %414 : vector<16x8xf32> to vector<16x8xbf16>
    %416 = vector.extract_strided_slice %388 {offsets = [0, 0], sizes = [8, 32], strides = [1, 1]} : vector<32x32xbf16> to vector<8x32xbf16>
    %cst_100 = arith.constant dense<0.000000e+00> : vector<16x32xf32>
    %417 = tpu.matmul %415, %416, %cst_100 {dimension_numbers = #tpu.dot_dimension_numbers<[1], [0], [0], [1], [0, 0, 1, 1], [], []>} : vector<16x8xbf16>, vector<8x32xbf16>, vector<16x32xf32> -> vector<16x32xf32>
    %418 = vector.extract_strided_slice %378 {offsets = [0, 8], sizes = [16, 8], strides = [1, 1]} : vector<16x32xf32> to vector<16x8xf32>
    %419 = vector.shape_cast %418 : vector<16x8xf32> to vector<2x8x8xf32>
    %420 = arith.truncf %419 : vector<2x8x8xf32> to vector<2x8x8xbf16>
    %421 = vector.extract_strided_slice %382 {offsets = [0, 8], sizes = [16, 8], strides = [1, 1]} : vector<16x32xf32> to vector<16x8xf32>
    %422 = vector.shape_cast %421 : vector<16x8xf32> to vector<2x8x8xf32>
    %423 = arith.truncf %422 : vector<2x8x8xf32> to vector<2x8x8xbf16>
    %424 = vector.extract_strided_slice %386 {offsets = [0, 8], sizes = [16, 8], strides = [1, 1]} : vector<16x32xf32> to vector<16x8xf32>
    %425 = vector.shape_cast %424 : vector<16x8xf32> to vector<2x8x8xf32>
    %426 = arith.truncf %425 : vector<2x8x8xf32> to vector<2x8x8xbf16>
    "tpu.trace_start"() <{level = 10 : i32, message = "bqd,bkd->bqk"}> : () -> ()
    %cst_101 = arith.constant dense<0.000000e+00> : vector<2x8x8xf32>
    %427 = tpu.matmul %420, %423, %cst_101 {dimension_numbers = #tpu.dot_dimension_numbers<[2], [2], [1], [1], [0, 0, 0, 1, 1, 1], [0], [0]>} : vector<2x8x8xbf16>, vector<2x8x8xbf16>, vector<2x8x8xf32> -> vector<2x8x8xf32>
    "tpu.trace_stop"() : () -> ()
    %428 = vector.shape_cast %15 : vector<8x8xf32> to vector<1x8x8xf32>
    %429 = vector.broadcast %428 : vector<1x8x8xf32> to vector<2x8x8xf32>
    %430 = arith.addf %427, %429 : vector<2x8x8xf32>
    %cst_102 = arith.constant dense<0xFF800000> : vector<2x8xf32>
    %431 = vector.multi_reduction <maximumf>, %430, %cst_102 [2] : vector<2x8x8xf32> to vector<2x8xf32>
    %432 = vector.shape_cast %431 : vector<2x8xf32> to vector<2x8x1xf32>
    %433 = vector.broadcast %432 : vector<2x8x1xf32> to vector<2x8x8xf32>
    %434 = arith.subf %430, %433 : vector<2x8x8xf32>
    %435 = math.exp %434 : vector<2x8x8xf32>
    %cst_103 = arith.constant dense<0.000000e+00> : vector<2x8xf32>
    %436 = vector.multi_reduction <add>, %435, %cst_103 [2] : vector<2x8x8xf32> to vector<2x8xf32>
    %437 = vector.shape_cast %436 : vector<2x8xf32> to vector<2x8x1xf32>
    %438 = tpu.reciprocal %437 {approx = true} : vector<2x8x1xf32> -> vector<2x8x1xf32>
    %439 = vector.broadcast %438 : vector<2x8x1xf32> to vector<2x8x8xf32>
    %440 = arith.mulf %435, %439 : vector<2x8x8xf32>
    %441 = arith.truncf %440 : vector<2x8x8xf32> to vector<2x8x8xbf16>
    "tpu.trace_start"() <{level = 10 : i32, message = "bqk,bkd->bqd"}> : () -> ()
    %cst_104 = arith.constant dense<0.000000e+00> : vector<2x8x8xf32>
    %442 = tpu.matmul %441, %426, %cst_104 {dimension_numbers = #tpu.dot_dimension_numbers<[2], [1], [1], [2], [0, 0, 0, 1, 1, 2], [0], [0]>} : vector<2x8x8xbf16>, vector<2x8x8xbf16>, vector<2x8x8xf32> -> vector<2x8x8xf32>
    "tpu.trace_stop"() : () -> ()
    %443 = vector.shape_cast %442 : vector<2x8x8xf32> to vector<16x8xf32>
    %444 = arith.truncf %443 : vector<16x8xf32> to vector<16x8xbf16>
    %445 = vector.extract_strided_slice %388 {offsets = [8, 0], sizes = [8, 32], strides = [1, 1]} : vector<32x32xbf16> to vector<8x32xbf16>
    %cst_105 = arith.constant dense<0.000000e+00> : vector<16x32xf32>
    %446 = tpu.matmul %444, %445, %cst_105 {dimension_numbers = #tpu.dot_dimension_numbers<[1], [0], [0], [1], [0, 0, 1, 1], [], []>} : vector<16x8xbf16>, vector<8x32xbf16>, vector<16x32xf32> -> vector<16x32xf32>
    %447 = arith.addf %417, %446 : vector<16x32xf32>
    %448 = vector.extract_strided_slice %378 {offsets = [0, 16], sizes = [16, 8], strides = [1, 1]} : vector<16x32xf32> to vector<16x8xf32>
    %449 = vector.shape_cast %448 : vector<16x8xf32> to vector<2x8x8xf32>
    %450 = arith.truncf %449 : vector<2x8x8xf32> to vector<2x8x8xbf16>
    %451 = vector.extract_strided_slice %382 {offsets = [0, 16], sizes = [16, 8], strides = [1, 1]} : vector<16x32xf32> to vector<16x8xf32>
    %452 = vector.shape_cast %451 : vector<16x8xf32> to vector<2x8x8xf32>
    %453 = arith.truncf %452 : vector<2x8x8xf32> to vector<2x8x8xbf16>
    %454 = vector.extract_strided_slice %386 {offsets = [0, 16], sizes = [16, 8], strides = [1, 1]} : vector<16x32xf32> to vector<16x8xf32>
    %455 = vector.shape_cast %454 : vector<16x8xf32> to vector<2x8x8xf32>
    %456 = arith.truncf %455 : vector<2x8x8xf32> to vector<2x8x8xbf16>
    "tpu.trace_start"() <{level = 10 : i32, message = "bqd,bkd->bqk"}> : () -> ()
    %cst_106 = arith.constant dense<0.000000e+00> : vector<2x8x8xf32>
    %457 = tpu.matmul %450, %453, %cst_106 {dimension_numbers = #tpu.dot_dimension_numbers<[2], [2], [1], [1], [0, 0, 0, 1, 1, 1], [0], [0]>} : vector<2x8x8xbf16>, vector<2x8x8xbf16>, vector<2x8x8xf32> -> vector<2x8x8xf32>
    "tpu.trace_stop"() : () -> ()
    %458 = vector.shape_cast %15 : vector<8x8xf32> to vector<1x8x8xf32>
    %459 = vector.broadcast %458 : vector<1x8x8xf32> to vector<2x8x8xf32>
    %460 = arith.addf %457, %459 : vector<2x8x8xf32>
    %cst_107 = arith.constant dense<0xFF800000> : vector<2x8xf32>
    %461 = vector.multi_reduction <maximumf>, %460, %cst_107 [2] : vector<2x8x8xf32> to vector<2x8xf32>
    %462 = vector.shape_cast %461 : vector<2x8xf32> to vector<2x8x1xf32>
    %463 = vector.broadcast %462 : vector<2x8x1xf32> to vector<2x8x8xf32>
    %464 = arith.subf %460, %463 : vector<2x8x8xf32>
    %465 = math.exp %464 : vector<2x8x8xf32>
    %cst_108 = arith.constant dense<0.000000e+00> : vector<2x8xf32>
    %466 = vector.multi_reduction <add>, %465, %cst_108 [2] : vector<2x8x8xf32> to vector<2x8xf32>
    %467 = vector.shape_cast %466 : vector<2x8xf32> to vector<2x8x1xf32>
    %468 = tpu.reciprocal %467 {approx = true} : vector<2x8x1xf32> -> vector<2x8x1xf32>
    %469 = vector.broadcast %468 : vector<2x8x1xf32> to vector<2x8x8xf32>
    %470 = arith.mulf %465, %469 : vector<2x8x8xf32>
    %471 = arith.truncf %470 : vector<2x8x8xf32> to vector<2x8x8xbf16>
    "tpu.trace_start"() <{level = 10 : i32, message = "bqk,bkd->bqd"}> : () -> ()
    %cst_109 = arith.constant dense<0.000000e+00> : vector<2x8x8xf32>
    %472 = tpu.matmul %471, %456, %cst_109 {dimension_numbers = #tpu.dot_dimension_numbers<[2], [1], [1], [2], [0, 0, 0, 1, 1, 2], [0], [0]>} : vector<2x8x8xbf16>, vector<2x8x8xbf16>, vector<2x8x8xf32> -> vector<2x8x8xf32>
    "tpu.trace_stop"() : () -> ()
    %473 = vector.shape_cast %472 : vector<2x8x8xf32> to vector<16x8xf32>
    %474 = arith.truncf %473 : vector<16x8xf32> to vector<16x8xbf16>
    %475 = vector.extract_strided_slice %388 {offsets = [16, 0], sizes = [8, 32], strides = [1, 1]} : vector<32x32xbf16> to vector<8x32xbf16>
    %cst_110 = arith.constant dense<0.000000e+00> : vector<16x32xf32>
    %476 = tpu.matmul %474, %475, %cst_110 {dimension_numbers = #tpu.dot_dimension_numbers<[1], [0], [0], [1], [0, 0, 1, 1], [], []>} : vector<16x8xbf16>, vector<8x32xbf16>, vector<16x32xf32> -> vector<16x32xf32>
    %477 = arith.addf %447, %476 : vector<16x32xf32>
    %478 = vector.extract_strided_slice %378 {offsets = [0, 24], sizes = [16, 8], strides = [1, 1]} : vector<16x32xf32> to vector<16x8xf32>
    %479 = vector.shape_cast %478 : vector<16x8xf32> to vector<2x8x8xf32>
    %480 = arith.truncf %479 : vector<2x8x8xf32> to vector<2x8x8xbf16>
    %481 = vector.extract_strided_slice %382 {offsets = [0, 24], sizes = [16, 8], strides = [1, 1]} : vector<16x32xf32> to vector<16x8xf32>
    %482 = vector.shape_cast %481 : vector<16x8xf32> to vector<2x8x8xf32>
    %483 = arith.truncf %482 : vector<2x8x8xf32> to vector<2x8x8xbf16>
    %484 = vector.extract_strided_slice %386 {offsets = [0, 24], sizes = [16, 8], strides = [1, 1]} : vector<16x32xf32> to vector<16x8xf32>
    %485 = vector.shape_cast %484 : vector<16x8xf32> to vector<2x8x8xf32>
    %486 = arith.truncf %485 : vector<2x8x8xf32> to vector<2x8x8xbf16>
    "tpu.trace_start"() <{level = 10 : i32, message = "bqd,bkd->bqk"}> : () -> ()
    %cst_111 = arith.constant dense<0.000000e+00> : vector<2x8x8xf32>
    %487 = tpu.matmul %480, %483, %cst_111 {dimension_numbers = #tpu.dot_dimension_numbers<[2], [2], [1], [1], [0, 0, 0, 1, 1, 1], [0], [0]>} : vector<2x8x8xbf16>, vector<2x8x8xbf16>, vector<2x8x8xf32> -> vector<2x8x8xf32>
    "tpu.trace_stop"() : () -> ()
    %488 = vector.shape_cast %15 : vector<8x8xf32> to vector<1x8x8xf32>
    %489 = vector.broadcast %488 : vector<1x8x8xf32> to vector<2x8x8xf32>
    %490 = arith.addf %487, %489 : vector<2x8x8xf32>
    %cst_112 = arith.constant dense<0xFF800000> : vector<2x8xf32>
    %491 = vector.multi_reduction <maximumf>, %490, %cst_112 [2] : vector<2x8x8xf32> to vector<2x8xf32>
    %492 = vector.shape_cast %491 : vector<2x8xf32> to vector<2x8x1xf32>
    %493 = vector.broadcast %492 : vector<2x8x1xf32> to vector<2x8x8xf32>
    %494 = arith.subf %490, %493 : vector<2x8x8xf32>
    %495 = math.exp %494 : vector<2x8x8xf32>
    %cst_113 = arith.constant dense<0.000000e+00> : vector<2x8xf32>
    %496 = vector.multi_reduction <add>, %495, %cst_113 [2] : vector<2x8x8xf32> to vector<2x8xf32>
    %497 = vector.shape_cast %496 : vector<2x8xf32> to vector<2x8x1xf32>
    %498 = tpu.reciprocal %497 {approx = true} : vector<2x8x1xf32> -> vector<2x8x1xf32>
    %499 = vector.broadcast %498 : vector<2x8x1xf32> to vector<2x8x8xf32>
    %500 = arith.mulf %495, %499 : vector<2x8x8xf32>
    %501 = arith.truncf %500 : vector<2x8x8xf32> to vector<2x8x8xbf16>
    "tpu.trace_start"() <{level = 10 : i32, message = "bqk,bkd->bqd"}> : () -> ()
    %cst_114 = arith.constant dense<0.000000e+00> : vector<2x8x8xf32>
    %502 = tpu.matmul %501, %486, %cst_114 {dimension_numbers = #tpu.dot_dimension_numbers<[2], [1], [1], [2], [0, 0, 0, 1, 1, 2], [0], [0]>} : vector<2x8x8xbf16>, vector<2x8x8xbf16>, vector<2x8x8xf32> -> vector<2x8x8xf32>
    "tpu.trace_stop"() : () -> ()
    %503 = vector.shape_cast %502 : vector<2x8x8xf32> to vector<16x8xf32>
    %504 = arith.truncf %503 : vector<16x8xf32> to vector<16x8xbf16>
    %505 = vector.extract_strided_slice %388 {offsets = [24, 0], sizes = [8, 32], strides = [1, 1]} : vector<32x32xbf16> to vector<8x32xbf16>
    %cst_115 = arith.constant dense<0.000000e+00> : vector<16x32xf32>
    %506 = tpu.matmul %504, %505, %cst_115 {dimension_numbers = #tpu.dot_dimension_numbers<[1], [0], [0], [1], [0, 0, 1, 1], [], []>} : vector<16x8xbf16>, vector<8x32xbf16>, vector<16x32xf32> -> vector<16x32xf32>
    %507 = arith.addf %477, %506 : vector<16x32xf32>
    %508 = vector.broadcast %387 : vector<1x32xf32> to vector<16x32xf32>
    %509 = arith.addf %507, %508 : vector<16x32xf32>
    %510 = arith.addf %370, %509 : vector<16x32xf32>
    %511 = vector.extract_strided_slice %371 {offsets = [8, 0], sizes = [1, 32], strides = [1, 1]} : vector<15x32xf32> to vector<1x32xf32>
    %512 = vector.extract_strided_slice %371 {offsets = [9, 0], sizes = [1, 32], strides = [1, 1]} : vector<15x32xf32> to vector<1x32xf32>
    %cst_116 = arith.constant dense<0.000000e+00> : vector<16xf32>
    %513 = vector.multi_reduction <add>, %510, %cst_116 [1] : vector<16x32xf32> to vector<16xf32>
    %514 = vector.shape_cast %513 : vector<16xf32> to vector<16x1xf32>
    %cst_117 = arith.constant 3.200000e+01 : f32
    %515 = vector.broadcast %cst_117 : f32 to vector<16x1xf32>
    %516 = arith.divf %514, %515 : vector<16x1xf32>
    %517 = vector.broadcast %516 : vector<16x1xf32> to vector<16x32xf32>
    %518 = arith.subf %510, %517 : vector<16x32xf32>
    %519 = arith.mulf %518, %518 : vector<16x32xf32>
    %cst_118 = arith.constant dense<0.000000e+00> : vector<16xf32>
    %520 = vector.multi_reduction <add>, %519, %cst_118 [1] : vector<16x32xf32> to vector<16xf32>
    %521 = vector.shape_cast %520 : vector<16xf32> to vector<16x1xf32>
    %cst_119 = arith.constant 3.200000e+01 : f32
    %522 = vector.broadcast %cst_119 : f32 to vector<16x1xf32>
    %523 = arith.divf %521, %522 : vector<16x1xf32>
    %524 = vector.broadcast %516 : vector<16x1xf32> to vector<16x32xf32>
    %525 = arith.subf %510, %524 : vector<16x32xf32>
    %cst_120 = arith.constant 9.99999974E-6 : f32
    %526 = vector.broadcast %cst_120 : f32 to vector<16x1xf32>
    %527 = arith.addf %523, %526 : vector<16x1xf32>
    %528 = math.rsqrt %527 : vector<16x1xf32>
    %529 = vector.broadcast %528 : vector<16x1xf32> to vector<16x32xf32>
    %530 = arith.mulf %525, %529 : vector<16x32xf32>
    %531 = vector.broadcast %511 : vector<1x32xf32> to vector<16x32xf32>
    %532 = arith.mulf %530, %531 : vector<16x32xf32>
    %533 = vector.broadcast %512 : vector<1x32xf32> to vector<16x32xf32>
    %534 = arith.addf %532, %533 : vector<16x32xf32>
    %535 = arith.truncf %534 : vector<16x32xf32> to vector<16x32xbf16>
    %c0_121 = arith.constant 0 : index
    %c0_122 = arith.constant 0 : index
    %536 = vector.load %arg14[%c0_121, %c0_122] : memref<32x32xbf16, #tpu.memory_space<vmem>>, vector<32x32xbf16>
    %cst_123 = arith.constant dense<0.000000e+00> : vector<16x32xf32>
    %537 = tpu.matmul %535, %536, %cst_123 {dimension_numbers = #tpu.dot_dimension_numbers<[1], [0], [0], [1], [0, 0, 1, 1], [], []>} : vector<16x32xbf16>, vector<32x32xbf16>, vector<16x32xf32> -> vector<16x32xf32>
    %538 = vector.extract_strided_slice %371 {offsets = [4, 0], sizes = [1, 32], strides = [1, 1]} : vector<15x32xf32> to vector<1x32xf32>
    %539 = vector.broadcast %538 : vector<1x32xf32> to vector<16x32xf32>
    %540 = arith.addf %537, %539 : vector<16x32xf32>
    %c0_124 = arith.constant 0 : index
    %c0_125 = arith.constant 0 : index
    %541 = vector.load %arg15[%c0_124, %c0_125] : memref<32x64xbf16, #tpu.memory_space<vmem>>, vector<32x64xbf16>
    %cst_126 = arith.constant dense<0.000000e+00> : vector<32x64xf32>
    %542 = tpu.matmul %9, %541, %cst_126 {dimension_numbers = #tpu.dot_dimension_numbers<[1], [0], [0], [1], [0, 0, 1, 1], [], []>} : vector<32x32xbf16>, vector<32x64xbf16>, vector<32x64xf32> -> vector<32x64xf32>
    %543 = vector.extract_strided_slice %542 {offsets = [0, 0], sizes = [32, 32], strides = [1, 1]} : vector<32x64xf32> to vector<32x32xf32>
    %544 = vector.extract_strided_slice %371 {offsets = [5, 0], sizes = [1, 32], strides = [1, 1]} : vector<15x32xf32> to vector<1x32xf32>
    %545 = vector.broadcast %544 : vector<1x32xf32> to vector<32x32xf32>
    %546 = arith.addf %543, %545 : vector<32x32xf32>
    %547 = vector.extract_strided_slice %542 {offsets = [0, 32], sizes = [32, 32], strides = [1, 1]} : vector<32x64xf32> to vector<32x32xf32>
    %548 = vector.extract_strided_slice %371 {offsets = [6, 0], sizes = [1, 32], strides = [1, 1]} : vector<15x32xf32> to vector<1x32xf32>
    %549 = vector.broadcast %548 : vector<1x32xf32> to vector<32x32xf32>
    %550 = arith.addf %547, %549 : vector<32x32xf32>
    %551 = vector.extract_strided_slice %371 {offsets = [7, 0], sizes = [1, 32], strides = [1, 1]} : vector<15x32xf32> to vector<1x32xf32>
    %c0_127 = arith.constant 0 : index
    %c0_128 = arith.constant 0 : index
    %552 = vector.load %arg16[%c0_127, %c0_128] : memref<32x32xbf16, #tpu.memory_space<vmem>>, vector<32x32xbf16>
    %553 = vector.extract_strided_slice %540 {offsets = [0, 0], sizes = [16, 8], strides = [1, 1]} : vector<16x32xf32> to vector<16x8xf32>
    %554 = vector.shape_cast %553 : vector<16x8xf32> to vector<2x8x8xf32>
    %555 = arith.truncf %554 : vector<2x8x8xf32> to vector<2x8x8xbf16>
    %556 = vector.extract_strided_slice %546 {offsets = [0, 0], sizes = [32, 8], strides = [1, 1]} : vector<32x32xf32> to vector<32x8xf32>
    %557 = vector.shape_cast %556 : vector<32x8xf32> to vector<2x16x8xf32>
    %558 = arith.truncf %557 : vector<2x16x8xf32> to vector<2x16x8xbf16>
    %559 = vector.extract_strided_slice %550 {offsets = [0, 0], sizes = [32, 8], strides = [1, 1]} : vector<32x32xf32> to vector<32x8xf32>
    %560 = vector.shape_cast %559 : vector<32x8xf32> to vector<2x16x8xf32>
    %561 = arith.truncf %560 : vector<2x16x8xf32> to vector<2x16x8xbf16>
    "tpu.trace_start"() <{level = 10 : i32, message = "bqd,bkd->bqk"}> : () -> ()
    %cst_129 = arith.constant dense<0.000000e+00> : vector<2x8x16xf32>
    %562 = tpu.matmul %555, %558, %cst_129 {dimension_numbers = #tpu.dot_dimension_numbers<[2], [2], [1], [1], [0, 0, 0, 1, 1, 1], [0], [0]>} : vector<2x8x8xbf16>, vector<2x16x8xbf16>, vector<2x8x16xf32> -> vector<2x8x16xf32>
    "tpu.trace_stop"() : () -> ()
    %cst_130 = arith.constant dense<0xFF800000> : vector<2x8xf32>
    %563 = vector.multi_reduction <maximumf>, %562, %cst_130 [2] : vector<2x8x16xf32> to vector<2x8xf32>
    %564 = vector.shape_cast %563 : vector<2x8xf32> to vector<2x8x1xf32>
    %565 = vector.broadcast %564 : vector<2x8x1xf32> to vector<2x8x16xf32>
    %566 = arith.subf %562, %565 : vector<2x8x16xf32>
    %567 = math.exp %566 : vector<2x8x16xf32>
    %cst_131 = arith.constant dense<0.000000e+00> : vector<2x8xf32>
    %568 = vector.multi_reduction <add>, %567, %cst_131 [2] : vector<2x8x16xf32> to vector<2x8xf32>
    %569 = vector.shape_cast %568 : vector<2x8xf32> to vector<2x8x1xf32>
    %570 = tpu.reciprocal %569 {approx = true} : vector<2x8x1xf32> -> vector<2x8x1xf32>
    %571 = vector.broadcast %570 : vector<2x8x1xf32> to vector<2x8x16xf32>
    %572 = arith.mulf %567, %571 : vector<2x8x16xf32>
    %573 = arith.truncf %572 : vector<2x8x16xf32> to vector<2x8x16xbf16>
    "tpu.trace_start"() <{level = 10 : i32, message = "bqk,bkd->bqd"}> : () -> ()
    %cst_132 = arith.constant dense<0.000000e+00> : vector<2x8x8xf32>
    %574 = tpu.matmul %573, %561, %cst_132 {dimension_numbers = #tpu.dot_dimension_numbers<[2], [1], [1], [2], [0, 0, 0, 1, 1, 2], [0], [0]>} : vector<2x8x16xbf16>, vector<2x16x8xbf16>, vector<2x8x8xf32> -> vector<2x8x8xf32>
    "tpu.trace_stop"() : () -> ()
    %575 = vector.shape_cast %574 : vector<2x8x8xf32> to vector<16x8xf32>
    %576 = arith.truncf %575 : vector<16x8xf32> to vector<16x8xbf16>
    %577 = vector.extract_strided_slice %552 {offsets = [0, 0], sizes = [8, 32], strides = [1, 1]} : vector<32x32xbf16> to vector<8x32xbf16>
    %cst_133 = arith.constant dense<0.000000e+00> : vector<16x32xf32>
    %578 = tpu.matmul %576, %577, %cst_133 {dimension_numbers = #tpu.dot_dimension_numbers<[1], [0], [0], [1], [0, 0, 1, 1], [], []>} : vector<16x8xbf16>, vector<8x32xbf16>, vector<16x32xf32> -> vector<16x32xf32>
    %579 = vector.extract_strided_slice %540 {offsets = [0, 8], sizes = [16, 8], strides = [1, 1]} : vector<16x32xf32> to vector<16x8xf32>
    %580 = vector.shape_cast %579 : vector<16x8xf32> to vector<2x8x8xf32>
    %581 = arith.truncf %580 : vector<2x8x8xf32> to vector<2x8x8xbf16>
    %582 = vector.extract_strided_slice %546 {offsets = [0, 8], sizes = [32, 8], strides = [1, 1]} : vector<32x32xf32> to vector<32x8xf32>
    %583 = vector.shape_cast %582 : vector<32x8xf32> to vector<2x16x8xf32>
    %584 = arith.truncf %583 : vector<2x16x8xf32> to vector<2x16x8xbf16>
    %585 = vector.extract_strided_slice %550 {offsets = [0, 8], sizes = [32, 8], strides = [1, 1]} : vector<32x32xf32> to vector<32x8xf32>
    %586 = vector.shape_cast %585 : vector<32x8xf32> to vector<2x16x8xf32>
    %587 = arith.truncf %586 : vector<2x16x8xf32> to vector<2x16x8xbf16>
    "tpu.trace_start"() <{level = 10 : i32, message = "bqd,bkd->bqk"}> : () -> ()
    %cst_134 = arith.constant dense<0.000000e+00> : vector<2x8x16xf32>
    %588 = tpu.matmul %581, %584, %cst_134 {dimension_numbers = #tpu.dot_dimension_numbers<[2], [2], [1], [1], [0, 0, 0, 1, 1, 1], [0], [0]>} : vector<2x8x8xbf16>, vector<2x16x8xbf16>, vector<2x8x16xf32> -> vector<2x8x16xf32>
    "tpu.trace_stop"() : () -> ()
    %cst_135 = arith.constant dense<0xFF800000> : vector<2x8xf32>
    %589 = vector.multi_reduction <maximumf>, %588, %cst_135 [2] : vector<2x8x16xf32> to vector<2x8xf32>
    %590 = vector.shape_cast %589 : vector<2x8xf32> to vector<2x8x1xf32>
    %591 = vector.broadcast %590 : vector<2x8x1xf32> to vector<2x8x16xf32>
    %592 = arith.subf %588, %591 : vector<2x8x16xf32>
    %593 = math.exp %592 : vector<2x8x16xf32>
    %cst_136 = arith.constant dense<0.000000e+00> : vector<2x8xf32>
    %594 = vector.multi_reduction <add>, %593, %cst_136 [2] : vector<2x8x16xf32> to vector<2x8xf32>
    %595 = vector.shape_cast %594 : vector<2x8xf32> to vector<2x8x1xf32>
    %596 = tpu.reciprocal %595 {approx = true} : vector<2x8x1xf32> -> vector<2x8x1xf32>
    %597 = vector.broadcast %596 : vector<2x8x1xf32> to vector<2x8x16xf32>
    %598 = arith.mulf %593, %597 : vector<2x8x16xf32>
    %599 = arith.truncf %598 : vector<2x8x16xf32> to vector<2x8x16xbf16>
    "tpu.trace_start"() <{level = 10 : i32, message = "bqk,bkd->bqd"}> : () -> ()
    %cst_137 = arith.constant dense<0.000000e+00> : vector<2x8x8xf32>
    %600 = tpu.matmul %599, %587, %cst_137 {dimension_numbers = #tpu.dot_dimension_numbers<[2], [1], [1], [2], [0, 0, 0, 1, 1, 2], [0], [0]>} : vector<2x8x16xbf16>, vector<2x16x8xbf16>, vector<2x8x8xf32> -> vector<2x8x8xf32>
    "tpu.trace_stop"() : () -> ()
    %601 = vector.shape_cast %600 : vector<2x8x8xf32> to vector<16x8xf32>
    %602 = arith.truncf %601 : vector<16x8xf32> to vector<16x8xbf16>
    %603 = vector.extract_strided_slice %552 {offsets = [8, 0], sizes = [8, 32], strides = [1, 1]} : vector<32x32xbf16> to vector<8x32xbf16>
    %cst_138 = arith.constant dense<0.000000e+00> : vector<16x32xf32>
    %604 = tpu.matmul %602, %603, %cst_138 {dimension_numbers = #tpu.dot_dimension_numbers<[1], [0], [0], [1], [0, 0, 1, 1], [], []>} : vector<16x8xbf16>, vector<8x32xbf16>, vector<16x32xf32> -> vector<16x32xf32>
    %605 = arith.addf %578, %604 : vector<16x32xf32>
    %606 = vector.extract_strided_slice %540 {offsets = [0, 16], sizes = [16, 8], strides = [1, 1]} : vector<16x32xf32> to vector<16x8xf32>
    %607 = vector.shape_cast %606 : vector<16x8xf32> to vector<2x8x8xf32>
    %608 = arith.truncf %607 : vector<2x8x8xf32> to vector<2x8x8xbf16>
    %609 = vector.extract_strided_slice %546 {offsets = [0, 16], sizes = [32, 8], strides = [1, 1]} : vector<32x32xf32> to vector<32x8xf32>
    %610 = vector.shape_cast %609 : vector<32x8xf32> to vector<2x16x8xf32>
    %611 = arith.truncf %610 : vector<2x16x8xf32> to vector<2x16x8xbf16>
    %612 = vector.extract_strided_slice %550 {offsets = [0, 16], sizes = [32, 8], strides = [1, 1]} : vector<32x32xf32> to vector<32x8xf32>
    %613 = vector.shape_cast %612 : vector<32x8xf32> to vector<2x16x8xf32>
    %614 = arith.truncf %613 : vector<2x16x8xf32> to vector<2x16x8xbf16>
    "tpu.trace_start"() <{level = 10 : i32, message = "bqd,bkd->bqk"}> : () -> ()
    %cst_139 = arith.constant dense<0.000000e+00> : vector<2x8x16xf32>
    %615 = tpu.matmul %608, %611, %cst_139 {dimension_numbers = #tpu.dot_dimension_numbers<[2], [2], [1], [1], [0, 0, 0, 1, 1, 1], [0], [0]>} : vector<2x8x8xbf16>, vector<2x16x8xbf16>, vector<2x8x16xf32> -> vector<2x8x16xf32>
    "tpu.trace_stop"() : () -> ()
    %cst_140 = arith.constant dense<0xFF800000> : vector<2x8xf32>
    %616 = vector.multi_reduction <maximumf>, %615, %cst_140 [2] : vector<2x8x16xf32> to vector<2x8xf32>
    %617 = vector.shape_cast %616 : vector<2x8xf32> to vector<2x8x1xf32>
    %618 = vector.broadcast %617 : vector<2x8x1xf32> to vector<2x8x16xf32>
    %619 = arith.subf %615, %618 : vector<2x8x16xf32>
    %620 = math.exp %619 : vector<2x8x16xf32>
    %cst_141 = arith.constant dense<0.000000e+00> : vector<2x8xf32>
    %621 = vector.multi_reduction <add>, %620, %cst_141 [2] : vector<2x8x16xf32> to vector<2x8xf32>
    %622 = vector.shape_cast %621 : vector<2x8xf32> to vector<2x8x1xf32>
    %623 = tpu.reciprocal %622 {approx = true} : vector<2x8x1xf32> -> vector<2x8x1xf32>
    %624 = vector.broadcast %623 : vector<2x8x1xf32> to vector<2x8x16xf32>
    %625 = arith.mulf %620, %624 : vector<2x8x16xf32>
    %626 = arith.truncf %625 : vector<2x8x16xf32> to vector<2x8x16xbf16>
    "tpu.trace_start"() <{level = 10 : i32, message = "bqk,bkd->bqd"}> : () -> ()
    %cst_142 = arith.constant dense<0.000000e+00> : vector<2x8x8xf32>
    %627 = tpu.matmul %626, %614, %cst_142 {dimension_numbers = #tpu.dot_dimension_numbers<[2], [1], [1], [2], [0, 0, 0, 1, 1, 2], [0], [0]>} : vector<2x8x16xbf16>, vector<2x16x8xbf16>, vector<2x8x8xf32> -> vector<2x8x8xf32>
    "tpu.trace_stop"() : () -> ()
    %628 = vector.shape_cast %627 : vector<2x8x8xf32> to vector<16x8xf32>
    %629 = arith.truncf %628 : vector<16x8xf32> to vector<16x8xbf16>
    %630 = vector.extract_strided_slice %552 {offsets = [16, 0], sizes = [8, 32], strides = [1, 1]} : vector<32x32xbf16> to vector<8x32xbf16>
    %cst_143 = arith.constant dense<0.000000e+00> : vector<16x32xf32>
    %631 = tpu.matmul %629, %630, %cst_143 {dimension_numbers = #tpu.dot_dimension_numbers<[1], [0], [0], [1], [0, 0, 1, 1], [], []>} : vector<16x8xbf16>, vector<8x32xbf16>, vector<16x32xf32> -> vector<16x32xf32>
    %632 = arith.addf %605, %631 : vector<16x32xf32>
    %633 = vector.extract_strided_slice %540 {offsets = [0, 24], sizes = [16, 8], strides = [1, 1]} : vector<16x32xf32> to vector<16x8xf32>
    %634 = vector.shape_cast %633 : vector<16x8xf32> to vector<2x8x8xf32>
    %635 = arith.truncf %634 : vector<2x8x8xf32> to vector<2x8x8xbf16>
    %636 = vector.extract_strided_slice %546 {offsets = [0, 24], sizes = [32, 8], strides = [1, 1]} : vector<32x32xf32> to vector<32x8xf32>
    %637 = vector.shape_cast %636 : vector<32x8xf32> to vector<2x16x8xf32>
    %638 = arith.truncf %637 : vector<2x16x8xf32> to vector<2x16x8xbf16>
    %639 = vector.extract_strided_slice %550 {offsets = [0, 24], sizes = [32, 8], strides = [1, 1]} : vector<32x32xf32> to vector<32x8xf32>
    %640 = vector.shape_cast %639 : vector<32x8xf32> to vector<2x16x8xf32>
    %641 = arith.truncf %640 : vector<2x16x8xf32> to vector<2x16x8xbf16>
    "tpu.trace_start"() <{level = 10 : i32, message = "bqd,bkd->bqk"}> : () -> ()
    %cst_144 = arith.constant dense<0.000000e+00> : vector<2x8x16xf32>
    %642 = tpu.matmul %635, %638, %cst_144 {dimension_numbers = #tpu.dot_dimension_numbers<[2], [2], [1], [1], [0, 0, 0, 1, 1, 1], [0], [0]>} : vector<2x8x8xbf16>, vector<2x16x8xbf16>, vector<2x8x16xf32> -> vector<2x8x16xf32>
    "tpu.trace_stop"() : () -> ()
    %cst_145 = arith.constant dense<0xFF800000> : vector<2x8xf32>
    %643 = vector.multi_reduction <maximumf>, %642, %cst_145 [2] : vector<2x8x16xf32> to vector<2x8xf32>
    %644 = vector.shape_cast %643 : vector<2x8xf32> to vector<2x8x1xf32>
    %645 = vector.broadcast %644 : vector<2x8x1xf32> to vector<2x8x16xf32>
    %646 = arith.subf %642, %645 : vector<2x8x16xf32>
    %647 = math.exp %646 : vector<2x8x16xf32>
    %cst_146 = arith.constant dense<0.000000e+00> : vector<2x8xf32>
    %648 = vector.multi_reduction <add>, %647, %cst_146 [2] : vector<2x8x16xf32> to vector<2x8xf32>
    %649 = vector.shape_cast %648 : vector<2x8xf32> to vector<2x8x1xf32>
    %650 = tpu.reciprocal %649 {approx = true} : vector<2x8x1xf32> -> vector<2x8x1xf32>
    %651 = vector.broadcast %650 : vector<2x8x1xf32> to vector<2x8x16xf32>
    %652 = arith.mulf %647, %651 : vector<2x8x16xf32>
    %653 = arith.truncf %652 : vector<2x8x16xf32> to vector<2x8x16xbf16>
    "tpu.trace_start"() <{level = 10 : i32, message = "bqk,bkd->bqd"}> : () -> ()
    %cst_147 = arith.constant dense<0.000000e+00> : vector<2x8x8xf32>
    %654 = tpu.matmul %653, %641, %cst_147 {dimension_numbers = #tpu.dot_dimension_numbers<[2], [1], [1], [2], [0, 0, 0, 1, 1, 2], [0], [0]>} : vector<2x8x16xbf16>, vector<2x16x8xbf16>, vector<2x8x8xf32> -> vector<2x8x8xf32>
    "tpu.trace_stop"() : () -> ()
    %655 = vector.shape_cast %654 : vector<2x8x8xf32> to vector<16x8xf32>
    %656 = arith.truncf %655 : vector<16x8xf32> to vector<16x8xbf16>
    %657 = vector.extract_strided_slice %552 {offsets = [24, 0], sizes = [8, 32], strides = [1, 1]} : vector<32x32xbf16> to vector<8x32xbf16>
    %cst_148 = arith.constant dense<0.000000e+00> : vector<16x32xf32>
    %658 = tpu.matmul %656, %657, %cst_148 {dimension_numbers = #tpu.dot_dimension_numbers<[1], [0], [0], [1], [0, 0, 1, 1], [], []>} : vector<16x8xbf16>, vector<8x32xbf16>, vector<16x32xf32> -> vector<16x32xf32>
    %659 = arith.addf %632, %658 : vector<16x32xf32>
    %660 = vector.broadcast %551 : vector<1x32xf32> to vector<16x32xf32>
    %661 = arith.addf %659, %660 : vector<16x32xf32>
    %662 = arith.addf %534, %661 : vector<16x32xf32>
    %663 = vector.extract_strided_slice %371 {offsets = [10, 0], sizes = [1, 32], strides = [1, 1]} : vector<15x32xf32> to vector<1x32xf32>
    %664 = vector.extract_strided_slice %371 {offsets = [11, 0], sizes = [1, 32], strides = [1, 1]} : vector<15x32xf32> to vector<1x32xf32>
    %cst_149 = arith.constant dense<0.000000e+00> : vector<16xf32>
    %665 = vector.multi_reduction <add>, %662, %cst_149 [1] : vector<16x32xf32> to vector<16xf32>
    %666 = vector.shape_cast %665 : vector<16xf32> to vector<16x1xf32>
    %cst_150 = arith.constant 3.200000e+01 : f32
    %667 = vector.broadcast %cst_150 : f32 to vector<16x1xf32>
    %668 = arith.divf %666, %667 : vector<16x1xf32>
    %669 = vector.broadcast %668 : vector<16x1xf32> to vector<16x32xf32>
    %670 = arith.subf %662, %669 : vector<16x32xf32>
    %671 = arith.mulf %670, %670 : vector<16x32xf32>
    %cst_151 = arith.constant dense<0.000000e+00> : vector<16xf32>
    %672 = vector.multi_reduction <add>, %671, %cst_151 [1] : vector<16x32xf32> to vector<16xf32>
    %673 = vector.shape_cast %672 : vector<16xf32> to vector<16x1xf32>
    %cst_152 = arith.constant 3.200000e+01 : f32
    %674 = vector.broadcast %cst_152 : f32 to vector<16x1xf32>
    %675 = arith.divf %673, %674 : vector<16x1xf32>
    %676 = vector.broadcast %668 : vector<16x1xf32> to vector<16x32xf32>
    %677 = arith.subf %662, %676 : vector<16x32xf32>
    %cst_153 = arith.constant 9.99999974E-6 : f32
    %678 = vector.broadcast %cst_153 : f32 to vector<16x1xf32>
    %679 = arith.addf %675, %678 : vector<16x1xf32>
    %680 = math.rsqrt %679 : vector<16x1xf32>
    %681 = vector.broadcast %680 : vector<16x1xf32> to vector<16x32xf32>
    %682 = arith.mulf %677, %681 : vector<16x32xf32>
    %683 = vector.broadcast %663 : vector<1x32xf32> to vector<16x32xf32>
    %684 = arith.mulf %682, %683 : vector<16x32xf32>
    %685 = vector.broadcast %664 : vector<1x32xf32> to vector<16x32xf32>
    %686 = arith.addf %684, %685 : vector<16x32xf32>
    %687 = arith.truncf %686 : vector<16x32xf32> to vector<16x32xbf16>
    %c0_154 = arith.constant 0 : index
    %c0_155 = arith.constant 0 : index
    %688 = vector.load %arg17[%c0_154, %c0_155] : memref<32x2048xbf16, #tpu.memory_space<vmem>>, vector<32x2048xbf16>
    %cst_156 = arith.constant dense<0.000000e+00> : vector<16x2048xf32>
    %689 = tpu.matmul %687, %688, %cst_156 {dimension_numbers = #tpu.dot_dimension_numbers<[1], [0], [0], [1], [0, 0, 1, 1], [], []>} : vector<16x32xbf16>, vector<32x2048xbf16>, vector<16x2048xf32> -> vector<16x2048xf32>
    %c0_157 = arith.constant 0 : index
    %c0_158 = arith.constant 0 : index
    %690 = vector.load %arg20[%c0_157, %c0_158] : memref<1x2048xf32, #tpu.memory_space<vmem>>, vector<1x2048xf32>
    %691 = vector.broadcast %690 : vector<1x2048xf32> to vector<16x2048xf32>
    %692 = arith.addf %689, %691 : vector<16x2048xf32>
    %cst_159 = arith.constant 0.000000e+00 : f32
    %693 = vector.broadcast %cst_159 : f32 to vector<16x2048xf32>
    %694 = arith.maximumf %692, %693 : vector<16x2048xf32>
    %695 = arith.truncf %694 : vector<16x2048xf32> to vector<16x2048xbf16>
    %c0_160 = arith.constant 0 : index
    %c0_161 = arith.constant 0 : index
    %696 = vector.load %arg18[%c0_160, %c0_161] : memref<2048x32xbf16, #tpu.memory_space<vmem>>, vector<2048x32xbf16>
    %cst_162 = arith.constant dense<0.000000e+00> : vector<16x32xf32>
    %697 = tpu.matmul %695, %696, %cst_162 {dimension_numbers = #tpu.dot_dimension_numbers<[1], [0], [0], [1], [0, 0, 1, 1], [], []>} : vector<16x2048xbf16>, vector<2048x32xbf16>, vector<16x32xf32> -> vector<16x32xf32>
    %698 = vector.extract_strided_slice %371 {offsets = [14, 0], sizes = [1, 32], strides = [1, 1]} : vector<15x32xf32> to vector<1x32xf32>
    %699 = vector.broadcast %698 : vector<1x32xf32> to vector<16x32xf32>
    %700 = arith.addf %697, %699 : vector<16x32xf32>
    %701 = arith.addf %686, %700 : vector<16x32xf32>
    %702 = vector.extract_strided_slice %371 {offsets = [12, 0], sizes = [1, 32], strides = [1, 1]} : vector<15x32xf32> to vector<1x32xf32>
    %703 = vector.extract_strided_slice %371 {offsets = [13, 0], sizes = [1, 32], strides = [1, 1]} : vector<15x32xf32> to vector<1x32xf32>
    %cst_163 = arith.constant dense<0.000000e+00> : vector<16xf32>
    %704 = vector.multi_reduction <add>, %701, %cst_163 [1] : vector<16x32xf32> to vector<16xf32>
    %705 = vector.shape_cast %704 : vector<16xf32> to vector<16x1xf32>
    %cst_164 = arith.constant 3.200000e+01 : f32
    %706 = vector.broadcast %cst_164 : f32 to vector<16x1xf32>
    %707 = arith.divf %705, %706 : vector<16x1xf32>
    %708 = vector.broadcast %707 : vector<16x1xf32> to vector<16x32xf32>
    %709 = arith.subf %701, %708 : vector<16x32xf32>
    %710 = arith.mulf %709, %709 : vector<16x32xf32>
    %cst_165 = arith.constant dense<0.000000e+00> : vector<16xf32>
    %711 = vector.multi_reduction <add>, %710, %cst_165 [1] : vector<16x32xf32> to vector<16xf32>
    %712 = vector.shape_cast %711 : vector<16xf32> to vector<16x1xf32>
    %cst_166 = arith.constant 3.200000e+01 : f32
    %713 = vector.broadcast %cst_166 : f32 to vector<16x1xf32>
    %714 = arith.divf %712, %713 : vector<16x1xf32>
    %715 = vector.broadcast %707 : vector<16x1xf32> to vector<16x32xf32>
    %716 = arith.subf %701, %715 : vector<16x32xf32>
    %cst_167 = arith.constant 9.99999974E-6 : f32
    %717 = vector.broadcast %cst_167 : f32 to vector<16x1xf32>
    %718 = arith.addf %714, %717 : vector<16x1xf32>
    %719 = math.rsqrt %718 : vector<16x1xf32>
    %720 = vector.broadcast %719 : vector<16x1xf32> to vector<16x32xf32>
    %721 = arith.mulf %716, %720 : vector<16x32xf32>
    %722 = vector.broadcast %702 : vector<1x32xf32> to vector<16x32xf32>
    %723 = arith.mulf %721, %722 : vector<16x32xf32>
    %724 = vector.broadcast %703 : vector<1x32xf32> to vector<16x32xf32>
    %725 = arith.addf %723, %724 : vector<16x32xf32>
    %726 = arith.truncf %725 : vector<16x32xf32> to vector<16x32xbf16>
    %c0_168 = arith.constant 0 : index
    %c0_169 = arith.constant 0 : index
    %727 = vector.load %arg21[%c0_168, %c0_169] : memref<32x128xbf16, #tpu.memory_space<vmem>>, vector<32x128xbf16>
    %cst_170 = arith.constant dense<0.000000e+00> : vector<16x128xf32>
    %728 = tpu.matmul %726, %727, %cst_170 {dimension_numbers = #tpu.dot_dimension_numbers<[1], [0], [0], [1], [0, 0, 1, 1], [], []>} : vector<16x32xbf16>, vector<32x128xbf16>, vector<16x128xf32> -> vector<16x128xf32>
    %c0_171 = arith.constant 0 : index
    %c0_172 = arith.constant 0 : index
    %729 = vector.load %arg22[%c0_171, %c0_172] : memref<1x128xf32, #tpu.memory_space<vmem>>, vector<1x128xf32>
    %730 = vector.broadcast %729 : vector<1x128xf32> to vector<16x128xf32>
    %731 = arith.addf %728, %730 : vector<16x128xf32>
    %732 = vector.shape_cast %731 : vector<16x128xf32> to vector<2x8x128xf32>
    %c0_173 = arith.constant 0 : index
    %c0_174 = arith.constant 0 : index
    %c0_175 = arith.constant 0 : index
    %733 = vector.load %arg23[%c0_173, %c0_174, %c0_175] : memref<2x8x128xf32, #tpu.memory_space<vmem>>, vector<2x8x128xf32>
    tpu.vector_store %arg23[%c0_173, %c0_174, %c0_175], %732 {strides = array<i32>} : memref<2x8x128xf32, #tpu.memory_space<vmem>>, vector<2x8x128xf32>,
    return
  }
}

</mosaic_0001>

<llo_original>
// kernel: tpu_custom_call.1
$region0: #{tpu_custom_call.1}
  #allocation0 [shape = 'u32[]', space=smem, size = 0x4, offset = 0x4, fixed_abs, tag = 'smem constant byte address 0x4 - core index']
  #allocation1 [shape = 'u32[144,128]{1,0:T(1,128)}', space=vmem, size = 0x12000, scoped, tag = 'internal scratch']
  %s0 = inlined_call_operand.vmem [shape: f32[2,8,32], index: 0, kind: input, shape index: {}]
  %s1 = inlined_call_operand.vmem [shape: f32[1,8,32], index: 1, kind: input, shape index: {}]
  %s2 = inlined_call_operand.vmem [shape: f32[2,16,32], index: 2, kind: input, shape index: {}]
  %s3 = inlined_call_operand.vmem [shape: bf16[32,96], index: 3, kind: input, shape index: {}]
  %s4 = inlined_call_operand.vmem [shape: bf16[32,32], index: 4, kind: input, shape index: {}]
  %s5 = inlined_call_operand.vmem [shape: bf16[32,32], index: 5, kind: input, shape index: {}]
  %s6 = inlined_call_operand.vmem [shape: bf16[32,64], index: 6, kind: input, shape index: {}]
  %s7 = inlined_call_operand.vmem [shape: bf16[32,32], index: 7, kind: input, shape index: {}]
  %s8 = inlined_call_operand.vmem [shape: bf16[32,2048], index: 8, kind: input, shape index: {}]
  %s9 = inlined_call_operand.vmem [shape: bf16[2048,32], index: 9, kind: input, shape index: {}]
  %s10 = inlined_call_operand.vmem [shape: f32[15,32], index: 10, kind: input, shape index: {}]
  %s11 = inlined_call_operand.vmem [shape: f32[1,2048], index: 11, kind: input, shape index: {}]
  %s12 = inlined_call_operand.vmem [shape: bf16[32,96], index: 12, kind: input, shape index: {}]
  %s13 = inlined_call_operand.vmem [shape: bf16[32,32], index: 13, kind: input, shape index: {}]
  %s14 = inlined_call_operand.vmem [shape: bf16[32,32], index: 14, kind: input, shape index: {}]
  %s15 = inlined_call_operand.vmem [shape: bf16[32,64], index: 15, kind: input, shape index: {}]
  %s16 = inlined_call_operand.vmem [shape: bf16[32,32], index: 16, kind: input, shape index: {}]
  %s17 = inlined_call_operand.vmem [shape: bf16[32,2048], index: 17, kind: input, shape index: {}]
  %s18 = inlined_call_operand.vmem [shape: bf16[2048,32], index: 18, kind: input, shape index: {}]
  %s19 = inlined_call_operand.vmem [shape: f32[15,32], index: 19, kind: input, shape index: {}]
  %s20 = inlined_call_operand.vmem [shape: f32[1,2048], index: 20, kind: input, shape index: {}]
  %s21 = inlined_call_operand.vmem [shape: bf16[32,128], index: 21, kind: input, shape index: {}]
  %s22 = inlined_call_operand.vmem [shape: f32[1,128], index: 22, kind: input, shape index: {}]
  %s23 = inlined_call_operand.hbm [shape: f32[2,8,128], index: 23, kind: output, shape index: {}]
  %s24 = sld [smem:[#allocation0]]
  $region102: #{tpu_custom_call.1} parent=0
    _
  %s26 = ssub.s32 1, %s24
  %s27 = scalar_select 0, %s26, %s24
  $region1: #{tpu_custom_call.1} parent=0
    #allocation2 [shape = 'u8[8192]{0}', space=vmem, size = 0x2000, scoped, tag = 'output window, operand 0, single buffered']
    #allocation3 [shape = 's32[1]{0}', space=sflag, size = 0x4, scoped, tag = 'scoped memory for tpu_custom_call.1']
    %28 = vsyncpa [#allocation3], 0
    // Predicated region
    $region2: #{tpu_custom_call.1} parent=1 // pred_check
      _
    $region3: #{tpu_custom_call.1} parent=1 // pred_check_branch
      %30 = sbr.rel (0) target = $region5
    $region4: #{tpu_custom_call.1} parent=1 // pred_region
      _
    $region5: #{tpu_custom_call.1} parent=1 // pred_fallthru
      _
    // Predicated region
    $region6: #{tpu_custom_call.1} parent=1 // pred_check
      _
    $region7: #{tpu_custom_call.1} parent=1 // pred_check_branch
      %32 = sbr.rel (0) target = $region9
    $region8: #{tpu_custom_call.1} parent=1 // pred_region
      _
    $region9: #{tpu_custom_call.1} parent=1 // pred_fallthru
      _
    // Predicated region
    $region10: #{tpu_custom_call.1} parent=1 // pred_check
      _
    $region11: #{tpu_custom_call.1} parent=1 // pred_check_branch
      %34 = sbr.rel (0) target = $region13
    $region12: #{tpu_custom_call.1} parent=1 // pred_region
      _
    $region13: #{tpu_custom_call.1} parent=1 // pred_fallthru
      _
    // Predicated region
    $region14: #{tpu_custom_call.1} parent=1 // pred_check
      _
    $region15: #{tpu_custom_call.1} parent=1 // pred_check_branch
      %36 = sbr.rel (0) target = $region17
    $region16: #{tpu_custom_call.1} parent=1 // pred_region
      _
    $region17: #{tpu_custom_call.1} parent=1 // pred_fallthru
      _
    // Predicated region
    $region18: #{tpu_custom_call.1} parent=1 // pred_check
      _
    $region19: #{tpu_custom_call.1} parent=1 // pred_check_branch
      %38 = sbr.rel (0) target = $region21
    $region20: #{tpu_custom_call.1} parent=1 // pred_region
      _
    $region21: #{tpu_custom_call.1} parent=1 // pred_fallthru
      _
    // Predicated region
    $region22: #{tpu_custom_call.1} parent=1 // pred_check
      _
    $region23: #{tpu_custom_call.1} parent=1 // pred_check_branch
      %40 = sbr.rel (0) target = $region25
    $region24: #{tpu_custom_call.1} parent=1 // pred_region
      _
    $region25: #{tpu_custom_call.1} parent=1 // pred_fallthru
      _
    // Predicated region
    $region26: #{tpu_custom_call.1} parent=1 // pred_check
      _
    $region27: #{tpu_custom_call.1} parent=1 // pred_check_branch
      %42 = sbr.rel (0) target = $region29
    $region28: #{tpu_custom_call.1} parent=1 // pred_region
      _
    $region29: #{tpu_custom_call.1} parent=1 // pred_fallthru
      _
    // Predicated region
    $region30: #{tpu_custom_call.1} parent=1 // pred_check
      _
    $region31: #{tpu_custom_call.1} parent=1 // pred_check_branch
      %44 = sbr.rel (0) target = $region33
    $region32: #{tpu_custom_call.1} parent=1 // pred_region
      _
    $region33: #{tpu_custom_call.1} parent=1 // pred_fallthru
      _
    // Predicated region
    $region34: #{tpu_custom_call.1} parent=1 // pred_check
      _
    $region35: #{tpu_custom_call.1} parent=1 // pred_check_branch
      %46 = sbr.rel (0) target = $region37
    $region36: #{tpu_custom_call.1} parent=1 // pred_region
      _
    $region37: #{tpu_custom_call.1} parent=1 // pred_fallthru
      _
    // Predicated region
    $region38: #{tpu_custom_call.1} parent=1 // pred_check
      _
    $region39: #{tpu_custom_call.1} parent=1 // pred_check_branch
      %48 = sbr.rel (0) target = $region41
    $region40: #{tpu_custom_call.1} parent=1 // pred_region
      _
    $region41: #{tpu_custom_call.1} parent=1 // pred_fallthru
      _
    // Predicated region
    $region42: #{tpu_custom_call.1} parent=1 // pred_check
      _
    $region43: #{tpu_custom_call.1} parent=1 // pred_check_branch
      %50 = sbr.rel (0) target = $region45
    $region44: #{tpu_custom_call.1} parent=1 // pred_region
      _
    $region45: #{tpu_custom_call.1} parent=1 // pred_fallthru
      _
    // Predicated region
    $region46: #{tpu_custom_call.1} parent=1 // pred_check
      _
    $region47: #{tpu_custom_call.1} parent=1 // pred_check_branch
      %52 = sbr.rel (0) target = $region49
    $region48: #{tpu_custom_call.1} parent=1 // pred_region
      _
    $region49: #{tpu_custom_call.1} parent=1 // pred_fallthru
      _
    // Predicated region
    $region50: #{tpu_custom_call.1} parent=1 // pred_check
      _
    $region51: #{tpu_custom_call.1} parent=1 // pred_check_branch
      %54 = sbr.rel (0) target = $region53
    $region52: #{tpu_custom_call.1} parent=1 // pred_region
      _
    $region53: #{tpu_custom_call.1} parent=1 // pred_fallthru
      _
    // Predicated region
    $region54: #{tpu_custom_call.1} parent=1 // pred_check
      _
    $region55: #{tpu_custom_call.1} parent=1 // pred_check_branch
      %56 = sbr.rel (0) target = $region57
    $region56: #{tpu_custom_call.1} parent=1 // pred_region
      _
    $region57: #{tpu_custom_call.1} parent=1 // pred_fallthru
      _
    // Predicated region
    $region58: #{tpu_custom_call.1} parent=1 // pred_check
      _
    $region59: #{tpu_custom_call.1} parent=1 // pred_check_branch
      %58 = sbr.rel (0) target = $region61
    $region60: #{tpu_custom_call.1} parent=1 // pred_region
      _
    $region61: #{tpu_custom_call.1} parent=1 // pred_fallthru
      _
    // Predicated region
    $region62: #{tpu_custom_call.1} parent=1 // pred_check
      _
    $region63: #{tpu_custom_call.1} parent=1 // pred_check_branch
      %60 = sbr.rel (0) target = $region65
    $region64: #{tpu_custom_call.1} parent=1 // pred_region
      _
    $region65: #{tpu_custom_call.1} parent=1 // pred_fallthru
      _
    // Predicated region
    $region66: #{tpu_custom_call.1} parent=1 // pred_check
      _
    $region67: #{tpu_custom_call.1} parent=1 // pred_check_branch
      %62 = sbr.rel (0) target = $region69
    $region68: #{tpu_custom_call.1} parent=1 // pred_region
      _
    $region69: #{tpu_custom_call.1} parent=1 // pred_fallthru
      _
    // Predicated region
    $region70: #{tpu_custom_call.1} parent=1 // pred_check
      _
    $region71: #{tpu_custom_call.1} parent=1 // pred_check_branch
      %64 = sbr.rel (0) target = $region73
    $region72: #{tpu_custom_call.1} parent=1 // pred_region
      _
    $region73: #{tpu_custom_call.1} parent=1 // pred_fallthru
      _
    // Predicated region
    $region74: #{tpu_custom_call.1} parent=1 // pred_check
      _
    $region75: #{tpu_custom_call.1} parent=1 // pred_check_branch
      %66 = sbr.rel (0) target = $region77
    $region76: #{tpu_custom_call.1} parent=1 // pred_region
      _
    $region77: #{tpu_custom_call.1} parent=1 // pred_fallthru
      _
    // Predicated region
    $region78: #{tpu_custom_call.1} parent=1 // pred_check
      _
    $region79: #{tpu_custom_call.1} parent=1 // pred_check_branch
      %68 = sbr.rel (0) target = $region81
    $region80: #{tpu_custom_call.1} parent=1 // pred_region
      _
    $region81: #{tpu_custom_call.1} parent=1 // pred_fallthru
      _
    // Predicated region
    $region82: #{tpu_custom_call.1} parent=1 // pred_check
      _
    $region83: #{tpu_custom_call.1} parent=1 // pred_check_branch
      %70 = sbr.rel (0) target = $region85
    $region84: #{tpu_custom_call.1} parent=1 // pred_region
      _
    $region85: #{tpu_custom_call.1} parent=1 // pred_fallthru
      _
    // Predicated region
    $region86: #{tpu_custom_call.1} parent=1 // pred_check
      _
    $region87: #{tpu_custom_call.1} parent=1 // pred_check_branch
      %72 = sbr.rel (0) target = $region89
    $region88: #{tpu_custom_call.1} parent=1 // pred_region
      _
    $region89: #{tpu_custom_call.1} parent=1 // pred_fallthru
      _
    // Predicated region
    $region90: #{tpu_custom_call.1} parent=1 // pred_check
      _
    $region91: #{tpu_custom_call.1} parent=1 // pred_check_branch
      %74 = sbr.rel (0) target = $region93
    $region92: #{tpu_custom_call.1} parent=1 // pred_region
      _
    $region93: #{tpu_custom_call.1} parent=1 // pred_fallthru
      _
    %v76 = vld [vmem:[%s0] sm:$0xff]
    %v77 = vld [vmem:[%s0 + $0x8] sm:$0xff]
    %v78 = vmul.f32 %v76, 5.656854
    %v79 = vmul.f32 %v77, 5.656854
    %v80 = vld [vmem:[%s1] sm:$0xff]
    %v81 = vadd.f32 %v78, %v80
    %v82 = vadd.f32 %v79, %v80
    %v83 = vld [vmem:[%s2] sm:$0xff]
    %v84 = vld [vmem:[%s2 + $0x8] sm:$0xff]
    %v85 = vld [vmem:[%s2 + $0x10] sm:$0xff]
    %v86 = vld [vmem:[%s2 + $0x18] sm:$0xff]
    %v87 = vpack.c.bf16 %v84, %v83
    %v88 = vpack.c.bf16 %v86, %v85
    %v89 = vlaneseq
    %v90 = vshrl.u32 %v89, 7
    %v91 = vlaneseq
    %v92 = vand.u32 %v91, 127
    %vm93 = vcmp.le.s32.totalorder %v92, %v90
    %v94 = vsel %vm93, 0.0, -1e+30
    %v95 = vld [vmem:[%s10] sm:$0xff]
    %v96 = vld [vmem:[%s10 + $0x8] sm:$0x7f]
    %v97 = vpack.c.bf16 %v82, %v81
    %v98 = vld [vmem:[%s3] sm:$0xf]
    %v99 = vld [vmem:[%s3 + $0x4] sm:$0xf]
    %v100 = vld [vmem:[%s3 + $0x8] sm:$0xf]
    %v101 = vld [vmem:[%s3 + $0xc] sm:$0xf]
    %v106 = vunpack.c.l.b16 %v98
    %v107 = vunpack.c.l.b16 %v99
    %v108 = vunpack.c.l.b16 %v100
    %v109 = vunpack.c.l.b16 %v101
    %v110 = vpack.c.b16 %v107, %v106
    %v111 = vpack.c.b16 %v109, %v108
    %vm114 = vcmask 261120
    %v116 = vsel %vm114, %v97, 0
    %118 = vmatprep.subr.bf16.mxu0 0
    %119 = vmatpush1.bf16.msra.mxu0 %v110
    %120 = vmatprep.subr.bf16.mxu0 0
    %121 = vmatpush1.bf16.msra.mxu0 %v111
    %122 = vmatprep.subr.bf16.mxu0 0
    %123 = vmatpush1.bf16.msra.mxu0 0
    %124 = vmatprep.subr.bf16.mxu0 0
    %125 = vmatpush1.bf16.msra.mxu0 0
    %126 = vmatprep.subr.bf16.mxu0 0
    %127 = vmatpush1.bf16.msra.mxu0 0
    %128 = vmatprep.subr.bf16.mxu0 0
    %129 = vmatpush1.bf16.msra.mxu0 0
    %130 = vmatprep.subr.bf16.mxu0 0
    %131 = vmatpush1.bf16.msra.mxu0 0
    %132 = vmatprep.subr.bf16.mxu0 0
    %133 = vmatpush1.bf16.msra.mxu0 0
    %134 = vmatprep.subr.bf16.mxu0 0
    %135 = vmatpush1.bf16.msra.mxu0 0
    %136 = vmatprep.subr.bf16.mxu0 0
    %137 = vmatpush1.bf16.msra.mxu0 0
    %138 = vmatprep.subr.bf16.mxu0 0
    %139 = vmatpush1.bf16.msra.mxu0 0
    %140 = vmatprep.subr.bf16.mxu0 0
    %141 = vmatpush1.bf16.msra.mxu0 0
    %142 = vmatprep.subr.bf16.mxu0 0
    %143 = vmatpush1.bf16.msra.mxu0 0
    %144 = vmatprep.subr.bf16.mxu0 0
    %145 = vmatpush1.bf16.msra.mxu0 0
    %146 = vmatprep.subr.bf16.mxu0 0
    %147 = vmatpush1.bf16.msra.mxu0 0
    %148 = vmatprep.subr.bf16.mxu0 0
    %149 = vmatpush1.bf16.msra.mxu0 0
    %150 = vmatprep.mubr.bf16.mxu0 0
    %151 = vmatmul.mubr.bf16.gmra.mrb[0].mxu0 %v116
    %v152 = vpop.f32.mrb[0].mxu0
    %v153 = vadd.f32 0.0, %v152
    %v154 = vpop.f32.mrb[0].mxu0
    %v155 = vpop.f32.mrb[0].mxu0
    %v156 = vadd.f32 0.0, %v155
    %v157 = vpop.f32.mrb[0].mxu0
    %158 = vdwg.mxu0
    %v159 = vlaneseq
    %v160 = vshrl.u32 %v159, 7
    %v161 = vsub.s32 0, %v160
    %v162 = vrot.slane %v95, %v161
    %v163 = vadd.f32 %v153, %v162
    %v164 = vadd.f32 %v156, %v162
    %v165 = vlaneseq
    %v166 = vshrl.u32 %v165, 7
    %v167 = vsub.s32 1, %v166
    %v168 = vrot.slane %v95, %v167
    %170 = vrot.lane.b32.xlu0 %v168, 32
    %v171 = vpop.permute.xlu0 %170
    %v173 = vadd.f32 %v153, %v171
    %v174 = vadd.f32 %v156, %v171
    %v175 = vlaneseq
    %v176 = vshrl.u32 %v175, 7
    %v177 = vsub.s32 2, %v176
    %v178 = vrot.slane %v95, %v177
    %180 = vrot.lane.b32.xlu0 %v178, 64
    %v181 = vpop.permute.xlu0 %180
    %v183 = vadd.f32 %v153, %v181
    %v184 = vadd.f32 %v156, %v181
    %v185 = vld [vmem:[%s4] sm:$0xf]
    %v186 = vld [vmem:[%s4 + $0x4] sm:$0xf]
    %v187 = vld [vmem:[%s4 + $0x8] sm:$0xf]
    %v188 = vld [vmem:[%s4 + $0xc] sm:$0xf]
    %v189 = vpack.c.bf16 %v163, %v163
    %v190 = vpack.c.bf16 %v164, %v164
    %v191 = vpack.c.bf16 %v173, %v173
    %v192 = vpack.c.bf16 %v174, %v174
    %v193 = vpack.c.bf16 %v183, %v183
    %v194 = vpack.c.bf16 %v184, %v184
    %196 = vrot.lane.b32.xlu0 %v191, 96
    %v197 = vpop.permute.xlu0 %196
    %vm198 = vcmask 64512
    %v200 = vsel %vm198, %v189, 0
    %v203 = vsel %vm198, %v197, 0
    %205 = vmatprep.subr.bf16.mxu0 0
    %206 = vmatpush1.bf16.xpose.msra.mxu0 %v203
    %207 = vmatprep.subr.bf16.mxu0 0
    %208 = vmatpush1.bf16.xpose.msra.mxu0 0
    %209 = vmatprep.subr.bf16.mxu0 0
    %210 = vmatpush1.bf16.xpose.msra.mxu0 0
    %211 = vmatprep.subr.bf16.mxu0 0
    %212 = vmatpush1.bf16.xpose.msra.mxu0 0
    %213 = vmatprep.subr.bf16.mxu0 0
    %214 = vmatpush1.bf16.xpose.msra.mxu0 0
    %215 = vmatprep.subr.bf16.mxu0 0
    %216 = vmatpush1.bf16.xpose.msra.mxu0 0
    %217 = vmatprep.subr.bf16.mxu0 0
    %218 = vmatpush1.bf16.xpose.msra.mxu0 0
    %219 = vmatprep.subr.bf16.mxu0 0
    %220 = vmatpush1.bf16.xpose.msra.mxu0 0
    %221 = vmatprep.subr.bf16.mxu0 0
    %222 = vmatpush1.bf16.xpose.msra.mxu0 0
    %223 = vmatprep.subr.bf16.mxu0 0
    %224 = vmatpush1.bf16.xpose.msra.mxu0 0
    %225 = vmatprep.subr.bf16.mxu0 0
    %226 = vmatpush1.bf16.xpose.msra.mxu0 0
    %227 = vmatprep.subr.bf16.mxu0 0
    %228 = vmatpush1.bf16.xpose.msra.mxu0 0
    %229 = vmatprep.subr.bf16.mxu0 0
    %230 = vmatpush1.bf16.xpose.msra.mxu0 0
    %231 = vmatprep.subr.bf16.mxu0 0
    %232 = vmatpush1.bf16.xpose.msra.mxu0 0
    %233 = vmatprep.subr.bf16.mxu0 0
    %234 = vmatpush1.bf16.xpose.msra.mxu0 0
    %235 = vmatprep.subr.bf16.mxu0 0
    %236 = vmatpush1.bf16.xpose.msra.mxu0 0
    %237 = vmatprep.mubr.bf16.mxu0 0
    %238 = vmatmul.mubr.bf16.gmra.mrb[0].mxu0 %v200
    %v239 = vpop.f32.mrb[0].mxu0
    %v240 = vadd.f32 %v94, %v239
    %v241 = vpop.f32.mrb[0].mxu0
    %v242 = vpop.f32.mrb[0].mxu0
    %v243 = vpop.f32.mrb[0].mxu0
    %244 = vdwg.mxu0
    %246 = vrot.lane.b32.xlu0 %v192, 96
    %v247 = vpop.permute.xlu0 %246
    %v249 = vsel %vm198, %v190, 0
    %v252 = vsel %vm198, %v247, 0
    %254 = vmatprep.subr.bf16.mxu0 0
    %255 = vmatpush1.bf16.xpose.msra.mxu0 %v252
    %256 = vmatprep.subr.bf16.mxu0 0
    %257 = vmatpush1.bf16.xpose.msra.mxu0 0
    %258 = vmatprep.subr.bf16.mxu0 0
    %259 = vmatpush1.bf16.xpose.msra.mxu0 0
    %260 = vmatprep.subr.bf16.mxu0 0
    %261 = vmatpush1.bf16.xpose.msra.mxu0 0
    %262 = vmatprep.subr.bf16.mxu0 0
    %263 = vmatpush1.bf16.xpose.msra.mxu0 0
    %264 = vmatprep.subr.bf16.mxu0 0
    %265 = vmatpush1.bf16.xpose.msra.mxu0 0
    %266 = vmatprep.subr.bf16.mxu0 0
    %267 = vmatpush1.bf16.xpose.msra.mxu0 0
    %268 = vmatprep.subr.bf16.mxu0 0
    %269 = vmatpush1.bf16.xpose.msra.mxu0 0
    %270 = vmatprep.subr.bf16.mxu0 0
    %271 = vmatpush1.bf16.xpose.msra.mxu0 0
    %272 = vmatprep.subr.bf16.mxu0 0
    %273 = vmatpush1.bf16.xpose.msra.mxu0 0
    %274 = vmatprep.subr.bf16.mxu0 0
    %275 = vmatpush1.bf16.xpose.msra.mxu0 0
    %276 = vmatprep.subr.bf16.mxu0 0
    %277 = vmatpush1.bf16.xpose.msra.mxu0 0
    %278 = vmatprep.subr.bf16.mxu0 0
    %279 = vmatpush1.bf16.xpose.msra.mxu0 0
    %280 = vmatprep.subr.bf16.mxu0 0
    %281 = vmatpush1.bf16.xpose.msra.mxu0 0
    %282 = vmatprep.subr.bf16.mxu0 0
    %283 = vmatpush1.bf16.xpose.msra.mxu0 0
    %284 = vmatprep.subr.bf16.mxu0 0
    %285 = vmatpush1.bf16.xpose.msra.mxu0 0
    %286 = vmatprep.mubr.bf16.mxu0 0
    %287 = vmatmul.mubr.bf16.gmra.mrb[0].mxu0 %v249
    %v288 = vpop.f32.mrb[0].mxu0
    %v289 = vadd.f32 %v94, %v288
    %v290 = vpop.f32.mrb[0].mxu0
    %v291 = vpop.f32.mrb[0].mxu0
    %v292 = vpop.f32.mrb[0].mxu0
    %293 = vdwg.mxu0
    %v294 = vsel %vm198, %v240, -inf
    %295 = vmax.xlane.f32.xlu0 %v294
    %v296 = vpop.xlane.xlu0 %295
    %v297 = vsel %vm198, %v289, -inf
    %298 = vmax.xlane.f32.xlu0 %v297
    %v299 = vpop.xlane.xlu0 %298
    %v300 = vsub.f32 %v240, %v296
    %v301 = vsub.f32 %v289, %v299
    %v302 = vmul.f32 %v300, 1.442695
    %v303 = vpow.pop %v302
    %v304 = vmul.f32 %v301, 1.442695
    %v305 = vpow.pop %v304
    %v306 = vsel %vm198, %v303, 0.0
    %307 = vadd.xlane.f32.xlu0 %v306
    %v308 = vpop.xlane.xlu0 %307
    %v309 = vsel %vm198, %v305, 0.0
    %310 = vadd.xlane.f32.xlu0 %v309
    %v311 = vpop.xlane.xlu0 %310
    %v312 = vrcp.pop %v308
    %v313 = vrcp.pop %v311
    %v314 = vmul.f32 %v303, %v312
    %v315 = vmul.f32 %v305, %v313
    %v316 = vpack.c.bf16 %v314, %v314
    %v317 = vpack.c.bf16 %v315, %v315
    %319 = vrot.lane.b32.xlu0 %v193, 64
    %v320 = vpop.permute.xlu0 %319
    %v322 = vsel %vm198, %v316, 0
    %vm324 = vcmask 1043456
    %v326 = vsel %vm324, %v320, 0
    %328 = vmatprep.subr.bf16.mxu0 0
    %329 = vmatpush1.bf16.msra.mxu0 %v326
    %330 = vmatprep.subr.bf16.mxu0 0
    %331 = vmatpush1.bf16.msra.mxu0 0
    %332 = vmatprep.subr.bf16.mxu0 0
    %333 = vmatpush1.bf16.msra.mxu0 0
    %334 = vmatprep.subr.bf16.mxu0 0
    %335 = vmatpush1.bf16.msra.mxu0 0
    %336 = vmatprep.subr.bf16.mxu0 0
    %337 = vmatpush1.bf16.msra.mxu0 0
    %338 = vmatprep.subr.bf16.mxu0 0
    %339 = vmatpush1.bf16.msra.mxu0 0
    %340 = vmatprep.subr.bf16.mxu0 0
    %341 = vmatpush1.bf16.msra.mxu0 0
    %342 = vmatprep.subr.bf16.mxu0 0
    %343 = vmatpush1.bf16.msra.mxu0 0
    %344 = vmatprep.subr.bf16.mxu0 0
    %345 = vmatpush1.bf16.msra.mxu0 0
    %346 = vmatprep.subr.bf16.mxu0 0
    %347 = vmatpush1.bf16.msra.mxu0 0
    %348 = vmatprep.subr.bf16.mxu0 0
    %349 = vmatpush1.bf16.msra.mxu0 0
    %350 = vmatprep.subr.bf16.mxu0 0
    %351 = vmatpush1.bf16.msra.mxu0 0
    %352 = vmatprep.subr.bf16.mxu0 0
    %353 = vmatpush1.bf16.msra.mxu0 0
    %354 = vmatprep.subr.bf16.mxu0 0
    %355 = vmatpush1.bf16.msra.mxu0 0
    %356 = vmatprep.subr.bf16.mxu0 0
    %357 = vmatpush1.bf16.msra.mxu0 0
    %358 = vmatprep.subr.bf16.mxu0 0
    %359 = vmatpush1.bf16.msra.mxu0 0
    %360 = vmatprep.mubr.bf16.mxu0 0
    %361 = vmatmul.mubr.bf16.gmra.mrb[0].mxu0 %v322
    %v362 = vpop.f32.mrb[0].mxu0
    %v363 = vadd.f32 0.0, %v362
    %v364 = vpop.f32.mrb[0].mxu0
    %v365 = vpop.f32.mrb[0].mxu0
    %v366 = vpop.f32.mrb[0].mxu0
    %367 = vdwg.mxu0
    %369 = vrot.lane.b32.xlu0 %v194, 64
    %v370 = vpop.permute.xlu0 %369
    %v372 = vsel %vm198, %v317, 0
    %v375 = vsel %vm324, %v370, 0
    %377 = vmatprep.subr.bf16.mxu0 0
    %378 = vmatpush1.bf16.msra.mxu0 %v375
    %379 = vmatprep.subr.bf16.mxu0 0
    %380 = vmatpush1.bf16.msra.mxu0 0
    %381 = vmatprep.subr.bf16.mxu0 0
    %382 = vmatpush1.bf16.msra.mxu0 0
    %383 = vmatprep.subr.bf16.mxu0 0
    %384 = vmatpush1.bf16.msra.mxu0 0
    %385 = vmatprep.subr.bf16.mxu0 0
    %386 = vmatpush1.bf16.msra.mxu0 0
    %387 = vmatprep.subr.bf16.mxu0 0
    %388 = vmatpush1.bf16.msra.mxu0 0
    %389 = vmatprep.subr.bf16.mxu0 0
    %390 = vmatpush1.bf16.msra.mxu0 0
    %391 = vmatprep.subr.bf16.mxu0 0
    %392 = vmatpush1.bf16.msra.mxu0 0
    %393 = vmatprep.subr.bf16.mxu0 0
    %394 = vmatpush1.bf16.msra.mxu0 0
    %395 = vmatprep.subr.bf16.mxu0 0
    %396 = vmatpush1.bf16.msra.mxu0 0
    %397 = vmatprep.subr.bf16.mxu0 0
    %398 = vmatpush1.bf16.msra.mxu0 0
    %399 = vmatprep.subr.bf16.mxu0 0
    %400 = vmatpush1.bf16.msra.mxu0 0
    %401 = vmatprep.subr.bf16.mxu0 0
    %402 = vmatpush1.bf16.msra.mxu0 0
    %403 = vmatprep.subr.bf16.mxu0 0
    %404 = vmatpush1.bf16.msra.mxu0 0
    %405 = vmatprep.subr.bf16.mxu0 0
    %406 = vmatpush1.bf16.msra.mxu0 0
    %407 = vmatprep.subr.bf16.mxu0 0
    %408 = vmatpush1.bf16.msra.mxu0 0
    %409 = vmatprep.mubr.bf16.mxu0 0
    %410 = vmatmul.mubr.bf16.gmra.mrb[0].mxu0 %v372
    %v411 = vpop.f32.mrb[0].mxu0
    %v412 = vadd.f32 0.0, %v411
    %v413 = vpop.f32.mrb[0].mxu0
    %v414 = vpop.f32.mrb[0].mxu0
    %v415 = vpop.f32.mrb[0].mxu0
    %416 = vdwg.mxu0
    %v417 = vpack.c.bf16 %v412, %v363
    %419 = vrot.lane.b32.xlu0 %v189, 120
    %v420 = vpop.permute.xlu0 %419
    %421 = vrot.lane.b32.xlu0 %v191, 88
    %v422 = vpop.permute.xlu0 %421
    %v424 = vsel %vm198, %v420, 0
    %v427 = vsel %vm198, %v422, 0
    %429 = vmatprep.subr.bf16.mxu0 0
    %430 = vmatpush1.bf16.xpose.msra.mxu0 %v427
    %431 = vmatprep.subr.bf16.mxu0 0
    %432 = vmatpush1.bf16.xpose.msra.mxu0 0
    %433 = vmatprep.subr.bf16.mxu0 0
    %434 = vmatpush1.bf16.xpose.msra.mxu0 0
    %435 = vmatprep.subr.bf16.mxu0 0
    %436 = vmatpush1.bf16.xpose.msra.mxu0 0
    %437 = vmatprep.subr.bf16.mxu0 0
    %438 = vmatpush1.bf16.xpose.msra.mxu0 0
    %439 = vmatprep.subr.bf16.mxu0 0
    %440 = vmatpush1.bf16.xpose.msra.mxu0 0
    %441 = vmatprep.subr.bf16.mxu0 0
    %442 = vmatpush1.bf16.xpose.msra.mxu0 0
    %443 = vmatprep.subr.bf16.mxu0 0
    %444 = vmatpush1.bf16.xpose.msra.mxu0 0
    %445 = vmatprep.subr.bf16.mxu0 0
    %446 = vmatpush1.bf16.xpose.msra.mxu0 0
    %447 = vmatprep.subr.bf16.mxu0 0
    %448 = vmatpush1.bf16.xpose.msra.mxu0 0
    %449 = vmatprep.subr.bf16.mxu0 0
    %450 = vmatpush1.bf16.xpose.msra.mxu0 0
    %451 = vmatprep.subr.bf16.mxu0 0
    %452 = vmatpush1.bf16.xpose.msra.mxu0 0
    %453 = vmatprep.subr.bf16.mxu0 0
    %454 = vmatpush1.bf16.xpose.msra.mxu0 0
    %455 = vmatprep.subr.bf16.mxu0 0
    %456 = vmatpush1.bf16.xpose.msra.mxu0 0
    %457 = vmatprep.subr.bf16.mxu0 0
    %458 = vmatpush1.bf16.xpose.msra.mxu0 0
    %459 = vmatprep.subr.bf16.mxu0 0
    %460 = vmatpush1.bf16.xpose.msra.mxu0 0
    %461 = vmatprep.mubr.bf16.mxu0 0
    %462 = vmatmul.mubr.bf16.gmra.mrb[0].mxu0 %v424
    %v463 = vpop.f32.mrb[0].mxu0
    %v464 = vadd.f32 %v94, %v463
    %v465 = vpop.f32.mrb[0].mxu0
    %v466 = vpop.f32.mrb[0].mxu0
    %v467 = vpop.f32.mrb[0].mxu0
    %468 = vdwg.mxu0
    %470 = vrot.lane.b32.xlu0 %v190, 120
    %v471 = vpop.permute.xlu0 %470
    %472 = vrot.lane.b32.xlu0 %v192, 88
    %v473 = vpop.permute.xlu0 %472
    %v475 = vsel %vm198, %v471, 0
    %v478 = vsel %vm198, %v473, 0
    %480 = vmatprep.subr.bf16.mxu0 0
    %481 = vmatpush1.bf16.xpose.msra.mxu0 %v478
    %482 = vmatprep.subr.bf16.mxu0 0
    %483 = vmatpush1.bf16.xpose.msra.mxu0 0
    %484 = vmatprep.subr.bf16.mxu0 0
    %485 = vmatpush1.bf16.xpose.msra.mxu0 0
    %486 = vmatprep.subr.bf16.mxu0 0
    %487 = vmatpush1.bf16.xpose.msra.mxu0 0
    %488 = vmatprep.subr.bf16.mxu0 0
    %489 = vmatpush1.bf16.xpose.msra.mxu0 0
    %490 = vmatprep.subr.bf16.mxu0 0
    %491 = vmatpush1.bf16.xpose.msra.mxu0 0
    %492 = vmatprep.subr.bf16.mxu0 0
    %493 = vmatpush1.bf16.xpose.msra.mxu0 0
    %494 = vmatprep.subr.bf16.mxu0 0
    %495 = vmatpush1.bf16.xpose.msra.mxu0 0
    %496 = vmatprep.subr.bf16.mxu0 0
    %497 = vmatpush1.bf16.xpose.msra.mxu0 0
    %498 = vmatprep.subr.bf16.mxu0 0
    %499 = vmatpush1.bf16.xpose.msra.mxu0 0
    %500 = vmatprep.subr.bf16.mxu0 0
    %501 = vmatpush1.bf16.xpose.msra.mxu0 0
    %502 = vmatprep.subr.bf16.mxu0 0
    %503 = vmatpush1.bf16.xpose.msra.mxu0 0
    %504 = vmatprep.subr.bf16.mxu0 0
    %505 = vmatpush1.bf16.xpose.msra.mxu0 0
    %506 = vmatprep.subr.bf16.mxu0 0
    %507 = vmatpush1.bf16.xpose.msra.mxu0 0
    %508 = vmatprep.subr.bf16.mxu0 0
    %509 = vmatpush1.bf16.xpose.msra.mxu0 0
    %510 = vmatprep.subr.bf16.mxu0 0
    %511 = vmatpush1.bf16.xpose.msra.mxu0 0
    %512 = vmatprep.mubr.bf16.mxu0 0
    %513 = vmatmul.mubr.bf16.gmra.mrb[0].mxu0 %v475
    %v514 = vpop.f32.mrb[0].mxu0
    %v515 = vadd.f32 %v94, %v514
    %v516 = vpop.f32.mrb[0].mxu0
    %v517 = vpop.f32.mrb[0].mxu0
    %v518 = vpop.f32.mrb[0].mxu0
    %519 = vdwg.mxu0
    %v520 = vsel %vm198, %v464, -inf
    %521 = vmax.xlane.f32.xlu0 %v520
    %v522 = vpop.xlane.xlu0 %521
    %v523 = vsel %vm198, %v515, -inf
    %524 = vmax.xlane.f32.xlu0 %v523
    %v525 = vpop.xlane.xlu0 %524
    %v526 = vsub.f32 %v464, %v522
    %v527 = vsub.f32 %v515, %v525
    %v528 = vmul.f32 %v526, 1.442695
    %v529 = vpow.pop %v528
    %v530 = vmul.f32 %v527, 1.442695
    %v531 = vpow.pop %v530
    %v532 = vsel %vm198, %v529, 0.0
    %533 = vadd.xlane.f32.xlu0 %v532
    %v534 = vpop.xlane.xlu0 %533
    %v535 = vsel %vm198, %v531, 0.0
    %536 = vadd.xlane.f32.xlu0 %v535
    %v537 = vpop.xlane.xlu0 %536
    %v538 = vrcp.pop %v534
    %v539 = vrcp.pop %v537
    %v540 = vmul.f32 %v529, %v538
    %v541 = vmul.f32 %v531, %v539
    %v542 = vpack.c.bf16 %v540, %v540
    %v543 = vpack.c.bf16 %v541, %v541
    %544 = vrot.lane.b32.xlu0 %v193, 56
    %v545 = vpop.permute.xlu0 %544
    %v547 = vsel %vm198, %v542, 0
    %v550 = vsel %vm324, %v545, 0
    %552 = vmatprep.subr.bf16.mxu0 0
    %553 = vmatpush1.bf16.msra.mxu0 %v550
    %554 = vmatprep.subr.bf16.mxu0 0
    %555 = vmatpush1.bf16.msra.mxu0 0
    %556 = vmatprep.subr.bf16.mxu0 0
    %557 = vmatpush1.bf16.msra.mxu0 0
    %558 = vmatprep.subr.bf16.mxu0 0
    %559 = vmatpush1.bf16.msra.mxu0 0
    %560 = vmatprep.subr.bf16.mxu0 0
    %561 = vmatpush1.bf16.msra.mxu0 0
    %562 = vmatprep.subr.bf16.mxu0 0
    %563 = vmatpush1.bf16.msra.mxu0 0
    %564 = vmatprep.subr.bf16.mxu0 0
    %565 = vmatpush1.bf16.msra.mxu0 0
    %566 = vmatprep.subr.bf16.mxu0 0
    %567 = vmatpush1.bf16.msra.mxu0 0
    %568 = vmatprep.subr.bf16.mxu0 0
    %569 = vmatpush1.bf16.msra.mxu0 0
    %570 = vmatprep.subr.bf16.mxu0 0
    %571 = vmatpush1.bf16.msra.mxu0 0
    %572 = vmatprep.subr.bf16.mxu0 0
    %573 = vmatpush1.bf16.msra.mxu0 0
    %574 = vmatprep.subr.bf16.mxu0 0
    %575 = vmatpush1.bf16.msra.mxu0 0
    %576 = vmatprep.subr.bf16.mxu0 0
    %577 = vmatpush1.bf16.msra.mxu0 0
    %578 = vmatprep.subr.bf16.mxu0 0
    %579 = vmatpush1.bf16.msra.mxu0 0
    %580 = vmatprep.subr.bf16.mxu0 0
    %581 = vmatpush1.bf16.msra.mxu0 0
    %582 = vmatprep.subr.bf16.mxu0 0
    %583 = vmatpush1.bf16.msra.mxu0 0
    %584 = vmatprep.mubr.bf16.mxu0 0
    %585 = vmatmul.mubr.bf16.gmra.mrb[0].mxu0 %v547
    %v586 = vpop.f32.mrb[0].mxu0
    %v587 = vadd.f32 0.0, %v586
    %v588 = vpop.f32.mrb[0].mxu0
    %v589 = vpop.f32.mrb[0].mxu0
    %v590 = vpop.f32.mrb[0].mxu0
    %591 = vdwg.mxu0
    %592 = vrot.lane.b32.xlu0 %v194, 56
    %v593 = vpop.permute.xlu0 %592
    %v595 = vsel %vm198, %v543, 0
    %v598 = vsel %vm324, %v593, 0
    %600 = vmatprep.subr.bf16.mxu0 0
    %601 = vmatpush1.bf16.msra.mxu0 %v598
    %602 = vmatprep.subr.bf16.mxu0 0
    %603 = vmatpush1.bf16.msra.mxu0 0
    %604 = vmatprep.subr.bf16.mxu0 0
    %605 = vmatpush1.bf16.msra.mxu0 0
    %606 = vmatprep.subr.bf16.mxu0 0
    %607 = vmatpush1.bf16.msra.mxu0 0
    %608 = vmatprep.subr.bf16.mxu0 0
    %609 = vmatpush1.bf16.msra.mxu0 0
    %610 = vmatprep.subr.bf16.mxu0 0
    %611 = vmatpush1.bf16.msra.mxu0 0
    %612 = vmatprep.subr.bf16.mxu0 0
    %613 = vmatpush1.bf16.msra.mxu0 0
    %614 = vmatprep.subr.bf16.mxu0 0
    %615 = vmatpush1.bf16.msra.mxu0 0
    %616 = vmatprep.subr.bf16.mxu0 0
    %617 = vmatpush1.bf16.msra.mxu0 0
    %618 = vmatprep.subr.bf16.mxu0 0
    %619 = vmatpush1.bf16.msra.mxu0 0
    %620 = vmatprep.subr.bf16.mxu0 0
    %621 = vmatpush1.bf16.msra.mxu0 0
    %622 = vmatprep.subr.bf16.mxu0 0
    %623 = vmatpush1.bf16.msra.mxu0 0
    %624 = vmatprep.subr.bf16.mxu0 0
    %625 = vmatpush1.bf16.msra.mxu0 0
    %626 = vmatprep.subr.bf16.mxu0 0
    %627 = vmatpush1.bf16.msra.mxu0 0
    %628 = vmatprep.subr.bf16.mxu0 0
    %629 = vmatpush1.bf16.msra.mxu0 0
    %630 = vmatprep.subr.bf16.mxu0 0
    %631 = vmatpush1.bf16.msra.mxu0 0
    %632 = vmatprep.mubr.bf16.mxu0 0
    %633 = vmatmul.mubr.bf16.gmra.mrb[0].mxu0 %v595
    %v634 = vpop.f32.mrb[0].mxu0
    %v635 = vadd.f32 0.0, %v634
    %v636 = vpop.f32.mrb[0].mxu0
    %v637 = vpop.f32.mrb[0].mxu0
    %v638 = vpop.f32.mrb[0].mxu0
    %639 = vdwg.mxu0
    %v640 = vpack.c.bf16 %v635, %v587
    %v642 = vsel %vm198, %v640, 0
    %v645 = vsel %vm324, %v186, 0
    %647 = vmatprep.subr.bf16.mxu0 0
    %648 = vmatpush1.bf16.msra.mxu0 %v645
    %649 = vmatprep.subr.bf16.mxu0 0
    %650 = vmatpush1.bf16.msra.mxu0 0
    %651 = vmatprep.subr.bf16.mxu0 0
    %652 = vmatpush1.bf16.msra.mxu0 0
    %653 = vmatprep.subr.bf16.mxu0 0
    %654 = vmatpush1.bf16.msra.mxu0 0
    %655 = vmatprep.subr.bf16.mxu0 0
    %656 = vmatpush1.bf16.msra.mxu0 0
    %657 = vmatprep.subr.bf16.mxu0 0
    %658 = vmatpush1.bf16.msra.mxu0 0
    %659 = vmatprep.subr.bf16.mxu0 0
    %660 = vmatpush1.bf16.msra.mxu0 0
    %661 = vmatprep.subr.bf16.mxu0 0
    %662 = vmatpush1.bf16.msra.mxu0 0
    %663 = vmatprep.subr.bf16.mxu0 0
    %664 = vmatpush1.bf16.msra.mxu0 0
    %665 = vmatprep.subr.bf16.mxu0 0
    %666 = vmatpush1.bf16.msra.mxu0 0
    %667 = vmatprep.subr.bf16.mxu0 0
    %668 = vmatpush1.bf16.msra.mxu0 0
    %669 = vmatprep.subr.bf16.mxu0 0
    %670 = vmatpush1.bf16.msra.mxu0 0
    %671 = vmatprep.subr.bf16.mxu0 0
    %672 = vmatpush1.bf16.msra.mxu0 0
    %673 = vmatprep.subr.bf16.mxu0 0
    %674 = vmatpush1.bf16.msra.mxu0 0
    %675 = vmatprep.subr.bf16.mxu0 0
    %676 = vmatpush1.bf16.msra.mxu0 0
    %677 = vmatprep.subr.bf16.mxu0 0
    %678 = vmatpush1.bf16.msra.mxu0 0
    %679 = vmatprep.mubr.bf16.mxu0 0
    %680 = vmatmul.mubr.bf16.gmra.mrb[0].mxu0 %v642
    %v681 = vpop.f32.mrb[0].mxu0
    %v682 = vadd.f32 0.0, %v681
    %v683 = vpop.f32.mrb[0].mxu0
    %v684 = vpop.f32.mrb[0].mxu0
    %v685 = vadd.f32 0.0, %v684
    %v686 = vpop.f32.mrb[0].mxu0
    %687 = vdwg.mxu0
    %v689 = vsel %vm198, %v417, 0
    %v692 = vsel %vm324, %v185, 0
    %694 = vmatprep.subr.bf16.mxu0 0
    %695 = vmatpush1.bf16.msra.mxu0 %v692
    %696 = vmatprep.subr.bf16.mxu0 0
    %697 = vmatpush1.bf16.msra.mxu0 0
    %698 = vmatprep.subr.bf16.mxu0 0
    %699 = vmatpush1.bf16.msra.mxu0 0
    %700 = vmatprep.subr.bf16.mxu0 0
    %701 = vmatpush1.bf16.msra.mxu0 0
    %702 = vmatprep.subr.bf16.mxu0 0
    %703 = vmatpush1.bf16.msra.mxu0 0
    %704 = vmatprep.subr.bf16.mxu0 0
    %705 = vmatpush1.bf16.msra.mxu0 0
    %706 = vmatprep.subr.bf16.mxu0 0
    %707 = vmatpush1.bf16.msra.mxu0 0
    %708 = vmatprep.subr.bf16.mxu0 0
    %709 = vmatpush1.bf16.msra.mxu0 0
    %710 = vmatprep.subr.bf16.mxu0 0
    %711 = vmatpush1.bf16.msra.mxu0 0
    %712 = vmatprep.subr.bf16.mxu0 0
    %713 = vmatpush1.bf16.msra.mxu0 0
    %714 = vmatprep.subr.bf16.mxu0 0
    %715 = vmatpush1.bf16.msra.mxu0 0
    %716 = vmatprep.subr.bf16.mxu0 0
    %717 = vmatpush1.bf16.msra.mxu0 0
    %718 = vmatprep.subr.bf16.mxu0 0
    %719 = vmatpush1.bf16.msra.mxu0 0
    %720 = vmatprep.subr.bf16.mxu0 0
    %721 = vmatpush1.bf16.msra.mxu0 0
    %722 = vmatprep.subr.bf16.mxu0 0
    %723 = vmatpush1.bf16.msra.mxu0 0
    %724 = vmatprep.subr.bf16.mxu0 0
    %725 = vmatpush1.bf16.msra.mxu0 0
    %726 = vmatprep.mubr.bf16.mxu0 0
    %727 = vmatmul.mubr.bf16.gmra.mrb[0].mxu0 %v689
    %v728 = vpop.f32.mrb[0].mxu0
    %v729 = vadd.f32 %v682, %v728
    %v730 = vpop.f32.mrb[0].mxu0
    %v731 = vpop.f32.mrb[0].mxu0
    %v732 = vadd.f32 %v685, %v731
    %v733 = vpop.f32.mrb[0].mxu0
    %734 = vdwg.mxu0
    %735 = vrot.lane.b32.xlu0 %v189, 112
    %v736 = vpop.permute.xlu0 %735
    %737 = vrot.lane.b32.xlu0 %v191, 80
    %v738 = vpop.permute.xlu0 %737
    %v740 = vsel %vm198, %v736, 0
    %v743 = vsel %vm198, %v738, 0
    %745 = vmatprep.subr.bf16.mxu0 0
    %746 = vmatpush1.bf16.xpose.msra.mxu0 %v743
    %747 = vmatprep.subr.bf16.mxu0 0
    %748 = vmatpush1.bf16.xpose.msra.mxu0 0
    %749 = vmatprep.subr.bf16.mxu0 0
    %750 = vmatpush1.bf16.xpose.msra.mxu0 0
    %751 = vmatprep.subr.bf16.mxu0 0
    %752 = vmatpush1.bf16.xpose.msra.mxu0 0
    %753 = vmatprep.subr.bf16.mxu0 0
    %754 = vmatpush1.bf16.xpose.msra.mxu0 0
    %755 = vmatprep.subr.bf16.mxu0 0
    %756 = vmatpush1.bf16.xpose.msra.mxu0 0
    %757 = vmatprep.subr.bf16.mxu0 0
    %758 = vmatpush1.bf16.xpose.msra.mxu0 0
    %759 = vmatprep.subr.bf16.mxu0 0
    %760 = vmatpush1.bf16.xpose.msra.mxu0 0
    %761 = vmatprep.subr.bf16.mxu0 0
    %762 = vmatpush1.bf16.xpose.msra.mxu0 0
    %763 = vmatprep.subr.bf16.mxu0 0
    %764 = vmatpush1.bf16.xpose.msra.mxu0 0
    %765 = vmatprep.subr.bf16.mxu0 0
    %766 = vmatpush1.bf16.xpose.msra.mxu0 0
    %767 = vmatprep.subr.bf16.mxu0 0
    %768 = vmatpush1.bf16.xpose.msra.mxu0 0
    %769 = vmatprep.subr.bf16.mxu0 0
    %770 = vmatpush1.bf16.xpose.msra.mxu0 0
    %771 = vmatprep.subr.bf16.mxu0 0
    %772 = vmatpush1.bf16.xpose.msra.mxu0 0
    %773 = vmatprep.subr.bf16.mxu0 0
    %774 = vmatpush1.bf16.xpose.msra.mxu0 0
    %775 = vmatprep.subr.bf16.mxu0 0
    %776 = vmatpush1.bf16.xpose.msra.mxu0 0
    %777 = vmatprep.mubr.bf16.mxu0 0
    %778 = vmatmul.mubr.bf16.gmra.mrb[0].mxu0 %v740
    %v779 = vpop.f32.mrb[0].mxu0
    %v780 = vadd.f32 %v94, %v779
    %v781 = vpop.f32.mrb[0].mxu0
    %v782 = vpop.f32.mrb[0].mxu0
    %v783 = vpop.f32.mrb[0].mxu0
    %784 = vdwg.mxu0
    %785 = vrot.lane.b32.xlu0 %v190, 112
    %v786 = vpop.permute.xlu0 %785
    %787 = vrot.lane.b32.xlu0 %v192, 80
    %v788 = vpop.permute.xlu0 %787
    %v790 = vsel %vm198, %v786, 0
    %v793 = vsel %vm198, %v788, 0
    %795 = vmatprep.subr.bf16.mxu0 0
    %796 = vmatpush1.bf16.xpose.msra.mxu0 %v793
    %797 = vmatprep.subr.bf16.mxu0 0
    %798 = vmatpush1.bf16.xpose.msra.mxu0 0
    %799 = vmatprep.subr.bf16.mxu0 0
    %800 = vmatpush1.bf16.xpose.msra.mxu0 0
    %801 = vmatprep.subr.bf16.mxu0 0
    %802 = vmatpush1.bf16.xpose.msra.mxu0 0
    %803 = vmatprep.subr.bf16.mxu0 0
    %804 = vmatpush1.bf16.xpose.msra.mxu0 0
    %805 = vmatprep.subr.bf16.mxu0 0
    %806 = vmatpush1.bf16.xpose.msra.mxu0 0
    %807 = vmatprep.subr.bf16.mxu0 0
    %808 = vmatpush1.bf16.xpose.msra.mxu0 0
    %809 = vmatprep.subr.bf16.mxu0 0
    %810 = vmatpush1.bf16.xpose.msra.mxu0 0
    %811 = vmatprep.subr.bf16.mxu0 0
    %812 = vmatpush1.bf16.xpose.msra.mxu0 0
    %813 = vmatprep.subr.bf16.mxu0 0
    %814 = vmatpush1.bf16.xpose.msra.mxu0 0
    %815 = vmatprep.subr.bf16.mxu0 0
    %816 = vmatpush1.bf16.xpose.msra.mxu0 0
    %817 = vmatprep.subr.bf16.mxu0 0
    %818 = vmatpush1.bf16.xpose.msra.mxu0 0
    %819 = vmatprep.subr.bf16.mxu0 0
    %820 = vmatpush1.bf16.xpose.msra.mxu0 0
    %821 = vmatprep.subr.bf16.mxu0 0
    %822 = vmatpush1.bf16.xpose.msra.mxu0 0
    %823 = vmatprep.subr.bf16.mxu0 0
    %824 = vmatpush1.bf16.xpose.msra.mxu0 0
    %825 = vmatprep.subr.bf16.mxu0 0
    %826 = vmatpush1.bf16.xpose.msra.mxu0 0
    %827 = vmatprep.mubr.bf16.mxu0 0
    %828 = vmatmul.mubr.bf16.gmra.mrb[0].mxu0 %v790
    %v829 = vpop.f32.mrb[0].mxu0
    %v830 = vadd.f32 %v94, %v829
    %v831 = vpop.f32.mrb[0].mxu0
    %v832 = vpop.f32.mrb[0].mxu0
    %v833 = vpop.f32.mrb[0].mxu0
    %834 = vdwg.mxu0
    %v835 = vsel %vm198, %v780, -inf
    %836 = vmax.xlane.f32.xlu0 %v835
    %v837 = vpop.xlane.xlu0 %836
    %v838 = vsel %vm198, %v830, -inf
    %839 = vmax.xlane.f32.xlu0 %v838
    %v840 = vpop.xlane.xlu0 %839
    %v841 = vsub.f32 %v780, %v837
    %v842 = vsub.f32 %v830, %v840
    %v843 = vmul.f32 %v841, 1.442695
    %v844 = vpow.pop %v843
    %v845 = vmul.f32 %v842, 1.442695
    %v846 = vpow.pop %v845
    %v847 = vsel %vm198, %v844, 0.0
    %848 = vadd.xlane.f32.xlu0 %v847
    %v849 = vpop.xlane.xlu0 %848
    %v850 = vsel %vm198, %v846, 0.0
    %851 = vadd.xlane.f32.xlu0 %v850
    %v852 = vpop.xlane.xlu0 %851
    %v853 = vrcp.pop %v849
    %v854 = vrcp.pop %v852
    %v855 = vmul.f32 %v844, %v853
    %v856 = vmul.f32 %v846, %v854
    %v857 = vpack.c.bf16 %v855, %v855
    %v858 = vpack.c.bf16 %v856, %v856
    %859 = vrot.lane.b32.xlu0 %v193, 48
    %v860 = vpop.permute.xlu0 %859
    %v862 = vsel %vm198, %v857, 0
    %v865 = vsel %vm324, %v860, 0
    %867 = vmatprep.subr.bf16.mxu0 0
    %868 = vmatpush1.bf16.msra.mxu0 %v865
    %869 = vmatprep.subr.bf16.mxu0 0
    %870 = vmatpush1.bf16.msra.mxu0 0
    %871 = vmatprep.subr.bf16.mxu0 0
    %872 = vmatpush1.bf16.msra.mxu0 0
    %873 = vmatprep.subr.bf16.mxu0 0
    %874 = vmatpush1.bf16.msra.mxu0 0
    %875 = vmatprep.subr.bf16.mxu0 0
    %876 = vmatpush1.bf16.msra.mxu0 0
    %877 = vmatprep.subr.bf16.mxu0 0
    %878 = vmatpush1.bf16.msra.mxu0 0
    %879 = vmatprep.subr.bf16.mxu0 0
    %880 = vmatpush1.bf16.msra.mxu0 0
    %881 = vmatprep.subr.bf16.mxu0 0
    %882 = vmatpush1.bf16.msra.mxu0 0
    %883 = vmatprep.subr.bf16.mxu0 0
    %884 = vmatpush1.bf16.msra.mxu0 0
    %885 = vmatprep.subr.bf16.mxu0 0
    %886 = vmatpush1.bf16.msra.mxu0 0
    %887 = vmatprep.subr.bf16.mxu0 0
    %888 = vmatpush1.bf16.msra.mxu0 0
    %889 = vmatprep.subr.bf16.mxu0 0
    %890 = vmatpush1.bf16.msra.mxu0 0
    %891 = vmatprep.subr.bf16.mxu0 0
    %892 = vmatpush1.bf16.msra.mxu0 0
    %893 = vmatprep.subr.bf16.mxu0 0
    %894 = vmatpush1.bf16.msra.mxu0 0
    %895 = vmatprep.subr.bf16.mxu0 0
    %896 = vmatpush1.bf16.msra.mxu0 0
    %897 = vmatprep.subr.bf16.mxu0 0
    %898 = vmatpush1.bf16.msra.mxu0 0
    %899 = vmatprep.mubr.bf16.mxu0 0
    %900 = vmatmul.mubr.bf16.gmra.mrb[0].mxu0 %v862
    %v901 = vpop.f32.mrb[0].mxu0
    %v902 = vadd.f32 0.0, %v901
    %v903 = vpop.f32.mrb[0].mxu0
    %v904 = vpop.f32.mrb[0].mxu0
    %v905 = vpop.f32.mrb[0].mxu0
    %906 = vdwg.mxu0
    %907 = vrot.lane.b32.xlu0 %v194, 48
    %v908 = vpop.permute.xlu0 %907
    %v910 = vsel %vm198, %v858, 0
    %v913 = vsel %vm324, %v908, 0
    %915 = vmatprep.subr.bf16.mxu0 0
    %916 = vmatpush1.bf16.msra.mxu0 %v913
    %917 = vmatprep.subr.bf16.mxu0 0
    %918 = vmatpush1.bf16.msra.mxu0 0
    %919 = vmatprep.subr.bf16.mxu0 0
    %920 = vmatpush1.bf16.msra.mxu0 0
    %921 = vmatprep.subr.bf16.mxu0 0
    %922 = vmatpush1.bf16.msra.mxu0 0
    %923 = vmatprep.subr.bf16.mxu0 0
    %924 = vmatpush1.bf16.msra.mxu0 0
    %925 = vmatprep.subr.bf16.mxu0 0
    %926 = vmatpush1.bf16.msra.mxu0 0
    %927 = vmatprep.subr.bf16.mxu0 0
    %928 = vmatpush1.bf16.msra.mxu0 0
    %929 = vmatprep.subr.bf16.mxu0 0
    %930 = vmatpush1.bf16.msra.mxu0 0
    %931 = vmatprep.subr.bf16.mxu0 0
    %932 = vmatpush1.bf16.msra.mxu0 0
    %933 = vmatprep.subr.bf16.mxu0 0
    %934 = vmatpush1.bf16.msra.mxu0 0
    %935 = vmatprep.subr.bf16.mxu0 0
    %936 = vmatpush1.bf16.msra.mxu0 0
    %937 = vmatprep.subr.bf16.mxu0 0
    %938 = vmatpush1.bf16.msra.mxu0 0
    %939 = vmatprep.subr.bf16.mxu0 0
    %940 = vmatpush1.bf16.msra.mxu0 0
    %941 = vmatprep.subr.bf16.mxu0 0
    %942 = vmatpush1.bf16.msra.mxu0 0
    %943 = vmatprep.subr.bf16.mxu0 0
    %944 = vmatpush1.bf16.msra.mxu0 0
    %945 = vmatprep.subr.bf16.mxu0 0
    %946 = vmatpush1.bf16.msra.mxu0 0
    %947 = vmatprep.mubr.bf16.mxu0 0
    %948 = vmatmul.mubr.bf16.gmra.mrb[0].mxu0 %v910
    %v949 = vpop.f32.mrb[0].mxu0
    %v950 = vadd.f32 0.0, %v949
    %v951 = vpop.f32.mrb[0].mxu0
    %v952 = vpop.f32.mrb[0].mxu0
    %v953 = vpop.f32.mrb[0].mxu0
    %954 = vdwg.mxu0
    %v955 = vpack.c.bf16 %v950, %v902
    %v957 = vsel %vm198, %v955, 0
    %v960 = vsel %vm324, %v187, 0
    %962 = vmatprep.subr.bf16.mxu0 0
    %963 = vmatpush1.bf16.msra.mxu0 %v960
    %964 = vmatprep.subr.bf16.mxu0 0
    %965 = vmatpush1.bf16.msra.mxu0 0
    %966 = vmatprep.subr.bf16.mxu0 0
    %967 = vmatpush1.bf16.msra.mxu0 0
    %968 = vmatprep.subr.bf16.mxu0 0
    %969 = vmatpush1.bf16.msra.mxu0 0
    %970 = vmatprep.subr.bf16.mxu0 0
    %971 = vmatpush1.bf16.msra.mxu0 0
    %972 = vmatprep.subr.bf16.mxu0 0
    %973 = vmatpush1.bf16.msra.mxu0 0
    %974 = vmatprep.subr.bf16.mxu0 0
    %975 = vmatpush1.bf16.msra.mxu0 0
    %976 = vmatprep.subr.bf16.mxu0 0
    %977 = vmatpush1.bf16.msra.mxu0 0
    %978 = vmatprep.subr.bf16.mxu0 0
    %979 = vmatpush1.bf16.msra.mxu0 0
    %980 = vmatprep.subr.bf16.mxu0 0
    %981 = vmatpush1.bf16.msra.mxu0 0
    %982 = vmatprep.subr.bf16.mxu0 0
    %983 = vmatpush1.bf16.msra.mxu0 0
    %984 = vmatprep.subr.bf16.mxu0 0
    %985 = vmatpush1.bf16.msra.mxu0 0
    %986 = vmatprep.subr.bf16.mxu0 0
    %987 = vmatpush1.bf16.msra.mxu0 0
    %988 = vmatprep.subr.bf16.mxu0 0
    %989 = vmatpush1.bf16.msra.mxu0 0
    %990 = vmatprep.subr.bf16.mxu0 0
    %991 = vmatpush1.bf16.msra.mxu0 0
    %992 = vmatprep.subr.bf16.mxu0 0
    %993 = vmatpush1.bf16.msra.mxu0 0
    %994 = vmatprep.mubr.bf16.mxu0 0
    %995 = vmatmul.mubr.bf16.gmra.mrb[0].mxu0 %v957
    %v996 = vpop.f32.mrb[0].mxu0
    %v997 = vadd.f32 0.0, %v996
    %v998 = vpop.f32.mrb[0].mxu0
    %v999 = vpop.f32.mrb[0].mxu0
    %v1000 = vadd.f32 0.0, %v999
    %v1001 = vpop.f32.mrb[0].mxu0
    %1002 = vdwg.mxu0
    %v1003 = vadd.f32 %v729, %v997
    %v1004 = vadd.f32 %v732, %v1000
    %1005 = vrot.lane.b32.xlu0 %v189, 104
    %v1006 = vpop.permute.xlu0 %1005
    %1007 = vrot.lane.b32.xlu0 %v191, 72
    %v1008 = vpop.permute.xlu0 %1007
    %v1010 = vsel %vm198, %v1006, 0
    %v1013 = vsel %vm198, %v1008, 0
    %1015 = vmatprep.subr.bf16.mxu0 0
    %1016 = vmatpush1.bf16.xpose.msra.mxu0 %v1013
    %1017 = vmatprep.subr.bf16.mxu0 0
    %1018 = vmatpush1.bf16.xpose.msra.mxu0 0
    %1019 = vmatprep.subr.bf16.mxu0 0
    %1020 = vmatpush1.bf16.xpose.msra.mxu0 0
    %1021 = vmatprep.subr.bf16.mxu0 0
    %1022 = vmatpush1.bf16.xpose.msra.mxu0 0
    %1023 = vmatprep.subr.bf16.mxu0 0
    %1024 = vmatpush1.bf16.xpose.msra.mxu0 0
    %1025 = vmatprep.subr.bf16.mxu0 0
    %1026 = vmatpush1.bf16.xpose.msra.mxu0 0
    %1027 = vmatprep.subr.bf16.mxu0 0
    %1028 = vmatpush1.bf16.xpose.msra.mxu0 0
    %1029 = vmatprep.subr.bf16.mxu0 0
    %1030 = vmatpush1.bf16.xpose.msra.mxu0 0
    %1031 = vmatprep.subr.bf16.mxu0 0
    %1032 = vmatpush1.bf16.xpose.msra.mxu0 0
    %1033 = vmatprep.subr.bf16.mxu0 0
    %1034 = vmatpush1.bf16.xpose.msra.mxu0 0
    %1035 = vmatprep.subr.bf16.mxu0 0
    %1036 = vmatpush1.bf16.xpose.msra.mxu0 0
    %1037 = vmatprep.subr.bf16.mxu0 0
    %1038 = vmatpush1.bf16.xpose.msra.mxu0 0
    %1039 = vmatprep.subr.bf16.mxu0 0
    %1040 = vmatpush1.bf16.xpose.msra.mxu0 0
    %1041 = vmatprep.subr.bf16.mxu0 0
    %1042 = vmatpush1.bf16.xpose.msra.mxu0 0
    %1043 = vmatprep.subr.bf16.mxu0 0
    %1044 = vmatpush1.bf16.xpose.msra.mxu0 0
    %1045 = vmatprep.subr.bf16.mxu0 0
    %1046 = vmatpush1.bf16.xpose.msra.mxu0 0
    %1047 = vmatprep.mubr.bf16.mxu0 0
    %1048 = vmatmul.mubr.bf16.gmra.mrb[0].mxu0 %v1010
    %v1049 = vpop.f32.mrb[0].mxu0
    %v1050 = vadd.f32 %v94, %v1049
    %v1051 = vpop.f32.mrb[0].mxu0
    %v1052 = vpop.f32.mrb[0].mxu0
    %v1053 = vpop.f32.mrb[0].mxu0
    %1054 = vdwg.mxu0
    %1055 = vrot.lane.b32.xlu0 %v190, 104
    %v1056 = vpop.permute.xlu0 %1055
    %1057 = vrot.lane.b32.xlu0 %v192, 72
    %v1058 = vpop.permute.xlu0 %1057
    %v1060 = vsel %vm198, %v1056, 0
    %v1063 = vsel %vm198, %v1058, 0
    %1065 = vmatprep.subr.bf16.mxu0 0
    %1066 = vmatpush1.bf16.xpose.msra.mxu0 %v1063
    %1067 = vmatprep.subr.bf16.mxu0 0
    %1068 = vmatpush1.bf16.xpose.msra.mxu0 0
    %1069 = vmatprep.subr.bf16.mxu0 0
    %1070 = vmatpush1.bf16.xpose.msra.mxu0 0
    %1071 = vmatprep.subr.bf16.mxu0 0
    %1072 = vmatpush1.bf16.xpose.msra.mxu0 0
    %1073 = vmatprep.subr.bf16.mxu0 0
    %1074 = vmatpush1.bf16.xpose.msra.mxu0 0
    %1075 = vmatprep.subr.bf16.mxu0 0
    %1076 = vmatpush1.bf16.xpose.msra.mxu0 0
    %1077 = vmatprep.subr.bf16.mxu0 0
    %1078 = vmatpush1.bf16.xpose.msra.mxu0 0
    %1079 = vmatprep.subr.bf16.mxu0 0
    %1080 = vmatpush1.bf16.xpose.msra.mxu0 0
    %1081 = vmatprep.subr.bf16.mxu0 0
    %1082 = vmatpush1.bf16.xpose.msra.mxu0 0
    %1083 = vmatprep.subr.bf16.mxu0 0
    %1084 = vmatpush1.bf16.xpose.msra.mxu0 0
    %1085 = vmatprep.subr.bf16.mxu0 0
    %1086 = vmatpush1.bf16.xpose.msra.mxu0 0
    %1087 = vmatprep.subr.bf16.mxu0 0
    %1088 = vmatpush1.bf16.xpose.msra.mxu0 0
    %1089 = vmatprep.subr.bf16.mxu0 0
    %1090 = vmatpush1.bf16.xpose.msra.mxu0 0
    %1091 = vmatprep.subr.bf16.mxu0 0
    %1092 = vmatpush1.bf16.xpose.msra.mxu0 0
    %1093 = vmatprep.subr.bf16.mxu0 0
    %1094 = vmatpush1.bf16.xpose.msra.mxu0 0
    %1095 = vmatprep.subr.bf16.mxu0 0
    %1096 = vmatpush1.bf16.xpose.msra.mxu0 0
    %1097 = vmatprep.mubr.bf16.mxu0 0
    %1098 = vmatmul.mubr.bf16.gmra.mrb[0].mxu0 %v1060
    %v1099 = vpop.f32.mrb[0].mxu0
    %v1100 = vadd.f32 %v94, %v1099
    %v1101 = vpop.f32.mrb[0].mxu0
    %v1102 = vpop.f32.mrb[0].mxu0
    %v1103 = vpop.f32.mrb[0].mxu0
    %1104 = vdwg.mxu0
    %v1105 = vsel %vm198, %v1050, -inf
    %1106 = vmax.xlane.f32.xlu0 %v1105
    %v1107 = vpop.xlane.xlu0 %1106
    %v1108 = vsel %vm198, %v1100, -inf
    %1109 = vmax.xlane.f32.xlu0 %v1108
    %v1110 = vpop.xlane.xlu0 %1109
    %v1111 = vsub.f32 %v1050, %v1107
    %v1112 = vsub.f32 %v1100, %v1110
    %v1113 = vmul.f32 %v1111, 1.442695
    %v1114 = vpow.pop %v1113
    %v1115 = vmul.f32 %v1112, 1.442695
    %v1116 = vpow.pop %v1115
    %v1117 = vsel %vm198, %v1114, 0.0
    %1118 = vadd.xlane.f32.xlu0 %v1117
    %v1119 = vpop.xlane.xlu0 %1118
    %v1120 = vsel %vm198, %v1116, 0.0
    %1121 = vadd.xlane.f32.xlu0 %v1120
    %v1122 = vpop.xlane.xlu0 %1121
    %v1123 = vrcp.pop %v1119
    %v1124 = vrcp.pop %v1122
    %v1125 = vmul.f32 %v1114, %v1123
    %v1126 = vmul.f32 %v1116, %v1124
    %v1127 = vpack.c.bf16 %v1125, %v1125
    %v1128 = vpack.c.bf16 %v1126, %v1126
    %1129 = vrot.lane.b32.xlu0 %v193, 40
    %v1130 = vpop.permute.xlu0 %1129
    %v1132 = vsel %vm198, %v1127, 0
    %v1135 = vsel %vm324, %v1130, 0
    %1137 = vmatprep.subr.bf16.mxu0 0
    %1138 = vmatpush1.bf16.msra.mxu0 %v1135
    %1139 = vmatprep.subr.bf16.mxu0 0
    %1140 = vmatpush1.bf16.msra.mxu0 0
    %1141 = vmatprep.subr.bf16.mxu0 0
    %1142 = vmatpush1.bf16.msra.mxu0 0
    %1143 = vmatprep.subr.bf16.mxu0 0
    %1144 = vmatpush1.bf16.msra.mxu0 0
    %1145 = vmatprep.subr.bf16.mxu0 0
    %1146 = vmatpush1.bf16.msra.mxu0 0
    %1147 = vmatprep.subr.bf16.mxu0 0
    %1148 = vmatpush1.bf16.msra.mxu0 0
    %1149 = vmatprep.subr.bf16.mxu0 0
    %1150 = vmatpush1.bf16.msra.mxu0 0
    %1151 = vmatprep.subr.bf16.mxu0 0
    %1152 = vmatpush1.bf16.msra.mxu0 0
    %1153 = vmatprep.subr.bf16.mxu0 0
    %1154 = vmatpush1.bf16.msra.mxu0 0
    %1155 = vmatprep.subr.bf16.mxu0 0
    %1156 = vmatpush1.bf16.msra.mxu0 0
    %1157 = vmatprep.subr.bf16.mxu0 0
    %1158 = vmatpush1.bf16.msra.mxu0 0
    %1159 = vmatprep.subr.bf16.mxu0 0
    %1160 = vmatpush1.bf16.msra.mxu0 0
    %1161 = vmatprep.subr.bf16.mxu0 0
    %1162 = vmatpush1.bf16.msra.mxu0 0
    %1163 = vmatprep.subr.bf16.mxu0 0
    %1164 = vmatpush1.bf16.msra.mxu0 0
    %1165 = vmatprep.subr.bf16.mxu0 0
    %1166 = vmatpush1.bf16.msra.mxu0 0
    %1167 = vmatprep.subr.bf16.mxu0 0
    %1168 = vmatpush1.bf16.msra.mxu0 0
    %1169 = vmatprep.mubr.bf16.mxu0 0
    %1170 = vmatmul.mubr.bf16.gmra.mrb[0].mxu0 %v1132
    %v1171 = vpop.f32.mrb[0].mxu0
    %v1172 = vadd.f32 0.0, %v1171
    %v1173 = vpop.f32.mrb[0].mxu0
    %v1174 = vpop.f32.mrb[0].mxu0
    %v1175 = vpop.f32.mrb[0].mxu0
    %1176 = vdwg.mxu0
    %1177 = vrot.lane.b32.xlu0 %v194, 40
    %v1178 = vpop.permute.xlu0 %1177
    %v1180 = vsel %vm198, %v1128, 0
    %v1183 = vsel %vm324, %v1178, 0
    %1185 = vmatprep.subr.bf16.mxu0 0
    %1186 = vmatpush1.bf16.msra.mxu0 %v1183
    %1187 = vmatprep.subr.bf16.mxu0 0
    %1188 = vmatpush1.bf16.msra.mxu0 0
    %1189 = vmatprep.subr.bf16.mxu0 0
    %1190 = vmatpush1.bf16.msra.mxu0 0
    %1191 = vmatprep.subr.bf16.mxu0 0
    %1192 = vmatpush1.bf16.msra.mxu0 0
    %1193 = vmatprep.subr.bf16.mxu0 0
    %1194 = vmatpush1.bf16.msra.mxu0 0
    %1195 = vmatprep.subr.bf16.mxu0 0
    %1196 = vmatpush1.bf16.msra.mxu0 0
    %1197 = vmatprep.subr.bf16.mxu0 0
    %1198 = vmatpush1.bf16.msra.mxu0 0
    %1199 = vmatprep.subr.bf16.mxu0 0
    %1200 = vmatpush1.bf16.msra.mxu0 0
    %1201 = vmatprep.subr.bf16.mxu0 0
    %1202 = vmatpush1.bf16.msra.mxu0 0
    %1203 = vmatprep.subr.bf16.mxu0 0
    %1204 = vmatpush1.bf16.msra.mxu0 0
    %1205 = vmatprep.subr.bf16.mxu0 0
    %1206 = vmatpush1.bf16.msra.mxu0 0
    %1207 = vmatprep.subr.bf16.mxu0 0
    %1208 = vmatpush1.bf16.msra.mxu0 0
    %1209 = vmatprep.subr.bf16.mxu0 0
    %1210 = vmatpush1.bf16.msra.mxu0 0
    %1211 = vmatprep.subr.bf16.mxu0 0
    %1212 = vmatpush1.bf16.msra.mxu0 0
    %1213 = vmatprep.subr.bf16.mxu0 0
    %1214 = vmatpush1.bf16.msra.mxu0 0
    %1215 = vmatprep.subr.bf16.mxu0 0
    %1216 = vmatpush1.bf16.msra.mxu0 0
    %1217 = vmatprep.mubr.bf16.mxu0 0
    %1218 = vmatmul.mubr.bf16.gmra.mrb[0].mxu0 %v1180
    %v1219 = vpop.f32.mrb[0].mxu0
    %v1220 = vadd.f32 0.0, %v1219
    %v1221 = vpop.f32.mrb[0].mxu0
    %v1222 = vpop.f32.mrb[0].mxu0
    %v1223 = vpop.f32.mrb[0].mxu0
    %1224 = vdwg.mxu0
    %v1225 = vpack.c.bf16 %v1220, %v1172
    %v1227 = vsel %vm198, %v1225, 0
    %v1230 = vsel %vm324, %v188, 0
    %1232 = vmatprep.subr.bf16.mxu0 0
    %1233 = vmatpush1.bf16.msra.mxu0 %v1230
    %1234 = vmatprep.subr.bf16.mxu0 0
    %1235 = vmatpush1.bf16.msra.mxu0 0
    %1236 = vmatprep.subr.bf16.mxu0 0
    %1237 = vmatpush1.bf16.msra.mxu0 0
    %1238 = vmatprep.subr.bf16.mxu0 0
    %1239 = vmatpush1.bf16.msra.mxu0 0
    %1240 = vmatprep.subr.bf16.mxu0 0
    %1241 = vmatpush1.bf16.msra.mxu0 0
    %1242 = vmatprep.subr.bf16.mxu0 0
    %1243 = vmatpush1.bf16.msra.mxu0 0
    %1244 = vmatprep.subr.bf16.mxu0 0
    %1245 = vmatpush1.bf16.msra.mxu0 0
    %1246 = vmatprep.subr.bf16.mxu0 0
    %1247 = vmatpush1.bf16.msra.mxu0 0
    %1248 = vmatprep.subr.bf16.mxu0 0
    %1249 = vmatpush1.bf16.msra.mxu0 0
    %1250 = vmatprep.subr.bf16.mxu0 0
    %1251 = vmatpush1.bf16.msra.mxu0 0
    %1252 = vmatprep.subr.bf16.mxu0 0
    %1253 = vmatpush1.bf16.msra.mxu0 0
    %1254 = vmatprep.subr.bf16.mxu0 0
    %1255 = vmatpush1.bf16.msra.mxu0 0
    %1256 = vmatprep.subr.bf16.mxu0 0
    %1257 = vmatpush1.bf16.msra.mxu0 0
    %1258 = vmatprep.subr.bf16.mxu0 0
    %1259 = vmatpush1.bf16.msra.mxu0 0
    %1260 = vmatprep.subr.bf16.mxu0 0
    %1261 = vmatpush1.bf16.msra.mxu0 0
    %1262 = vmatprep.subr.bf16.mxu0 0
    %1263 = vmatpush1.bf16.msra.mxu0 0
    %1264 = vmatprep.mubr.bf16.mxu0 0
    %1265 = vmatmul.mubr.bf16.gmra.mrb[0].mxu0 %v1227
    %v1266 = vpop.f32.mrb[0].mxu0
    %v1267 = vadd.f32 0.0, %v1266
    %v1268 = vpop.f32.mrb[0].mxu0
    %v1269 = vpop.f32.mrb[0].mxu0
    %v1270 = vadd.f32 0.0, %v1269
    %v1271 = vpop.f32.mrb[0].mxu0
    %1272 = vdwg.mxu0
    %v1273 = vadd.f32 %v1003, %v1267
    %v1274 = vadd.f32 %v1004, %v1270
    %v1275 = vlaneseq
    %v1276 = vshrl.u32 %v1275, 7
    %v1277 = vsub.s32 3, %v1276
    %v1278 = vrot.slane %v95, %v1277
    %v1279 = vadd.f32 %v1273, %v1278
    %v1280 = vadd.f32 %v1274, %v1278
    %v1281 = vadd.f32 %v81, %v1279
    %v1282 = vadd.f32 %v82, %v1280
    %v1283 = vsel %vm114, %v1281, 0.0
    %1284 = vadd.xlane.f32.xlu0 %v1283
    %v1285 = vpop.xlane.xlu0 %1284
    %v1286 = vsel %vm114, %v1282, 0.0
    %1287 = vadd.xlane.f32.xlu0 %v1286
    %v1288 = vpop.xlane.xlu0 %1287
    %v1289 = vrcp.pop 32.0
    %v1290 = vmul.f32 %v1285, %v1289
    %v1291 = vmul.f32 %v1288, %v1289
    %v1292 = vsub.f32 %v1281, %v1290
    %v1293 = vsub.f32 %v1282, %v1291
    %v1294 = vmul.f32 %v1292, %v1292
    %v1295 = vmul.f32 %v1293, %v1293
    %v1296 = vsel %vm114, %v1294, 0.0
    %1297 = vadd.xlane.f32.xlu0 %v1296
    %v1298 = vpop.xlane.xlu0 %1297
    %v1299 = vsel %vm114, %v1295, 0.0
    %1300 = vadd.xlane.f32.xlu0 %v1299
    %v1301 = vpop.xlane.xlu0 %1300
    %v1302 = vmul.f32 %v1298, %v1289
    %v1303 = vmul.f32 %v1301, %v1289
    %v1304 = vadd.f32 %v1302, 1e-05
    %v1305 = vadd.f32 %v1303, 1e-05
    %v1306 = vrsqrt.pop %v1304
    %v1307 = vrsqrt.pop %v1305
    %v1308 = vmul.f32 %v1292, %v1306
    %v1309 = vmul.f32 %v1293, %v1307
    %v1310 = vlaneseq
    %v1311 = vshrl.u32 %v1310, 7
    %v1312 = vsub.s32 0, %v1311
    %v1313 = vrot.slane %v96, %v1312
    %v1314 = vmul.f32 %v1308, %v1313
    %v1315 = vmul.f32 %v1309, %v1313
    %v1316 = vlaneseq
    %v1317 = vshrl.u32 %v1316, 7
    %v1318 = vsub.s32 1, %v1317
    %v1319 = vrot.slane %v96, %v1318
    %v1320 = vadd.f32 %v1314, %v1319
    %v1321 = vadd.f32 %v1315, %v1319
    %v1322 = vpack.c.bf16 %v1321, %v1320
    %v1323 = vld [vmem:[%s5] sm:$0xf]
    %v1324 = vld [vmem:[%s5 + $0x4] sm:$0xf]
    %v1325 = vld [vmem:[%s5 + $0x8] sm:$0xf]
    %v1326 = vld [vmem:[%s5 + $0xc] sm:$0xf]
    %v1327 = vlaneseq
    %v1328 = vshrl.u32 %v1327, 7
    %v1329 = vsub.s32 4, %v1328
    %v1330 = vrot.slane %v95, %v1329
    %v1335 = vunpack.c.l.b16 %v1323
    %v1336 = vunpack.c.l.b16 %v1324
    %v1337 = vunpack.c.l.b16 %v1325
    %v1338 = vunpack.c.l.b16 %v1326
    %v1339 = vpack.c.b16 %v1336, %v1335
    %v1340 = vpack.c.b16 %v1338, %v1337
    %v1344 = vsel %vm114, %v1322, 0
    %1346 = vmatprep.subr.bf16.mxu0 0
    %1347 = vmatpush1.bf16.msra.mxu0 %v1339
    %1348 = vmatprep.subr.bf16.mxu0 0
    %1349 = vmatpush1.bf16.msra.mxu0 %v1340
    %1350 = vmatprep.subr.bf16.mxu0 0
    %1351 = vmatpush1.bf16.msra.mxu0 0
    %1352 = vmatprep.subr.bf16.mxu0 0
    %1353 = vmatpush1.bf16.msra.mxu0 0
    %1354 = vmatprep.subr.bf16.mxu0 0
    %1355 = vmatpush1.bf16.msra.mxu0 0
    %1356 = vmatprep.subr.bf16.mxu0 0
    %1357 = vmatpush1.bf16.msra.mxu0 0
    %1358 = vmatprep.subr.bf16.mxu0 0
    %1359 = vmatpush1.bf16.msra.mxu0 0
    %1360 = vmatprep.subr.bf16.mxu0 0
    %1361 = vmatpush1.bf16.msra.mxu0 0
    %1362 = vmatprep.subr.bf16.mxu0 0
    %1363 = vmatpush1.bf16.msra.mxu0 0
    %1364 = vmatprep.subr.bf16.mxu0 0
    %1365 = vmatpush1.bf16.msra.mxu0 0
    %1366 = vmatprep.subr.bf16.mxu0 0
    %1367 = vmatpush1.bf16.msra.mxu0 0
    %1368 = vmatprep.subr.bf16.mxu0 0
    %1369 = vmatpush1.bf16.msra.mxu0 0
    %1370 = vmatprep.subr.bf16.mxu0 0
    %1371 = vmatpush1.bf16.msra.mxu0 0
    %1372 = vmatprep.subr.bf16.mxu0 0
    %1373 = vmatpush1.bf16.msra.mxu0 0
    %1374 = vmatprep.subr.bf16.mxu0 0
    %1375 = vmatpush1.bf16.msra.mxu0 0
    %1376 = vmatprep.subr.bf16.mxu0 0
    %1377 = vmatpush1.bf16.msra.mxu0 0
    %1378 = vmatprep.mubr.bf16.mxu0 0
    %1379 = vmatmul.mubr.bf16.gmra.mrb[0].mxu0 %v1344
    %v1380 = vpop.f32.mrb[0].mxu0
    %v1381 = vadd.f32 %v1330, %v1380
    %v1382 = vpop.f32.mrb[0].mxu0
    %v1383 = vpop.f32.mrb[0].mxu0
    %v1384 = vadd.f32 %v1330, %v1383
    %v1385 = vpop.f32.mrb[0].mxu0
    %1386 = vdwg.mxu0
    %v1387 = vld [vmem:[%s6] sm:$0xf]
    %v1388 = vld [vmem:[%s6 + $0x4] sm:$0xf]
    %v1389 = vld [vmem:[%s6 + $0x8] sm:$0xf]
    %v1390 = vld [vmem:[%s6 + $0xc] sm:$0xf]
    %v1395 = vunpack.c.l.b16 %v1387
    %v1396 = vunpack.c.l.b16 %v1388
    %v1397 = vunpack.c.l.b16 %v1389
    %v1398 = vunpack.c.l.b16 %v1390
    %v1399 = vpack.c.b16 %v1396, %v1395
    %v1400 = vpack.c.b16 %v1398, %v1397
    %v1404 = vsel %vm114, %v87, 0
    %v1407 = vsel %vm114, %v88, 0
    %1409 = vmatprep.subr.bf16.mxu0 0
    %1410 = vmatpush1.bf16.msra.mxu0 %v1399
    %1411 = vmatprep.subr.bf16.mxu0 0
    %1412 = vmatpush1.bf16.msra.mxu0 %v1400
    %1413 = vmatprep.subr.bf16.mxu0 0
    %1414 = vmatpush1.bf16.msra.mxu0 0
    %1415 = vmatprep.subr.bf16.mxu0 0
    %1416 = vmatpush1.bf16.msra.mxu0 0
    %1417 = vmatprep.subr.bf16.mxu0 0
    %1418 = vmatpush1.bf16.msra.mxu0 0
    %1419 = vmatprep.subr.bf16.mxu0 0
    %1420 = vmatpush1.bf16.msra.mxu0 0
    %1421 = vmatprep.subr.bf16.mxu0 0
    %1422 = vmatpush1.bf16.msra.mxu0 0
    %1423 = vmatprep.subr.bf16.mxu0 0
    %1424 = vmatpush1.bf16.msra.mxu0 0
    %1425 = vmatprep.subr.bf16.mxu0 0
    %1426 = vmatpush1.bf16.msra.mxu0 0
    %1427 = vmatprep.subr.bf16.mxu0 0
    %1428 = vmatpush1.bf16.msra.mxu0 0
    %1429 = vmatprep.subr.bf16.mxu0 0
    %1430 = vmatpush1.bf16.msra.mxu0 0
    %1431 = vmatprep.subr.bf16.mxu0 0
    %1432 = vmatpush1.bf16.msra.mxu0 0
    %1433 = vmatprep.subr.bf16.mxu0 0
    %1434 = vmatpush1.bf16.msra.mxu0 0
    %1435 = vmatprep.subr.bf16.mxu0 0
    %1436 = vmatpush1.bf16.msra.mxu0 0
    %1437 = vmatprep.subr.bf16.mxu0 0
    %1438 = vmatpush1.bf16.msra.mxu0 0
    %1439 = vmatprep.subr.bf16.mxu0 0
    %1440 = vmatpush1.bf16.msra.mxu0 0
    %1441 = vmatprep.mubr.bf16.mxu0 0
    %1442 = vmatmul.mubr.bf16.gmra.mrb[0].mxu0 %v1404
    %v1443 = vpop.f32.mrb[0].mxu0
    %v1444 = vadd.f32 0.0, %v1443
    %v1445 = vpop.f32.mrb[0].mxu0
    %v1446 = vpop.f32.mrb[0].mxu0
    %v1447 = vadd.f32 0.0, %v1446
    %v1448 = vpop.f32.mrb[0].mxu0
    %1449 = vmatprep.mubr.bf16.mxu0 0
    %1450 = vmatmul.mubr.bf16.gmra.mrb[0].mxu0 %v1407
    %v1451 = vpop.f32.mrb[0].mxu0
    %v1452 = vadd.f32 0.0, %v1451
    %v1453 = vpop.f32.mrb[0].mxu0
    %v1454 = vpop.f32.mrb[0].mxu0
    %v1455 = vadd.f32 0.0, %v1454
    %v1456 = vpop.f32.mrb[0].mxu0
    %1457 = vdwg.mxu0
    %v1458 = vlaneseq
    %v1459 = vshrl.u32 %v1458, 7
    %v1460 = vsub.s32 5, %v1459
    %v1461 = vrot.slane %v95, %v1460
    %v1462 = vadd.f32 %v1444, %v1461
    %v1463 = vadd.f32 %v1447, %v1461
    %v1464 = vadd.f32 %v1452, %v1461
    %v1465 = vadd.f32 %v1455, %v1461
    %v1466 = vlaneseq
    %v1467 = vshrl.u32 %v1466, 7
    %v1468 = vsub.s32 6, %v1467
    %v1469 = vrot.slane %v95, %v1468
    %1471 = vrot.lane.b32.xlu0 %v1469, 32
    %v1472 = vpop.permute.xlu0 %1471
    %v1474 = vadd.f32 %v1444, %v1472
    %v1475 = vadd.f32 %v1447, %v1472
    %v1476 = vadd.f32 %v1452, %v1472
    %v1477 = vadd.f32 %v1455, %v1472
    %v1478 = vld [vmem:[%s7] sm:$0xf]
    %v1479 = vld [vmem:[%s7 + $0x4] sm:$0xf]
    %v1480 = vld [vmem:[%s7 + $0x8] sm:$0xf]
    %v1481 = vld [vmem:[%s7 + $0xc] sm:$0xf]
    %v1482 = vpack.c.bf16 %v1381, %v1381
    %v1483 = vpack.c.bf16 %v1384, %v1384
    %v1484 = vpack.c.bf16 %v1463, %v1462
    %v1485 = vpack.c.bf16 %v1465, %v1464
    %v1486 = vpack.c.bf16 %v1475, %v1474
    %v1487 = vpack.c.bf16 %v1477, %v1476
    %v1489 = vsel %vm198, %v1482, 0
    %v1492 = vsel %vm198, %v1484, 0
    %1494 = vmatprep.subr.bf16.mxu0 0
    %1495 = vmatpush1.bf16.xpose.msra.mxu0 %v1492
    %1496 = vmatprep.subr.bf16.mxu0 0
    %1497 = vmatpush1.bf16.xpose.msra.mxu0 0
    %1498 = vmatprep.subr.bf16.mxu0 0
    %1499 = vmatpush1.bf16.xpose.msra.mxu0 0
    %1500 = vmatprep.subr.bf16.mxu0 0
    %1501 = vmatpush1.bf16.xpose.msra.mxu0 0
    %1502 = vmatprep.subr.bf16.mxu0 0
    %1503 = vmatpush1.bf16.xpose.msra.mxu0 0
    %1504 = vmatprep.subr.bf16.mxu0 0
    %1505 = vmatpush1.bf16.xpose.msra.mxu0 0
    %1506 = vmatprep.subr.bf16.mxu0 0
    %1507 = vmatpush1.bf16.xpose.msra.mxu0 0
    %1508 = vmatprep.subr.bf16.mxu0 0
    %1509 = vmatpush1.bf16.xpose.msra.mxu0 0
    %1510 = vmatprep.subr.bf16.mxu0 0
    %1511 = vmatpush1.bf16.xpose.msra.mxu0 0
    %1512 = vmatprep.subr.bf16.mxu0 0
    %1513 = vmatpush1.bf16.xpose.msra.mxu0 0
    %1514 = vmatprep.subr.bf16.mxu0 0
    %1515 = vmatpush1.bf16.xpose.msra.mxu0 0
    %1516 = vmatprep.subr.bf16.mxu0 0
    %1517 = vmatpush1.bf16.xpose.msra.mxu0 0
    %1518 = vmatprep.subr.bf16.mxu0 0
    %1519 = vmatpush1.bf16.xpose.msra.mxu0 0
    %1520 = vmatprep.subr.bf16.mxu0 0
    %1521 = vmatpush1.bf16.xpose.msra.mxu0 0
    %1522 = vmatprep.subr.bf16.mxu0 0
    %1523 = vmatpush1.bf16.xpose.msra.mxu0 0
    %1524 = vmatprep.subr.bf16.mxu0 0
    %1525 = vmatpush1.bf16.xpose.msra.mxu0 0
    %1526 = vmatprep.mubr.bf16.mxu0 0
    %1527 = vmatmul.mubr.bf16.gmra.mrb[0].mxu0 %v1489
    %v1528 = vpop.f32.mrb[0].mxu0
    %v1529 = vadd.f32 0.0, %v1528
    %v1530 = vpop.f32.mrb[0].mxu0
    %v1531 = vpop.f32.mrb[0].mxu0
    %v1532 = vpop.f32.mrb[0].mxu0
    %1533 = vdwg.mxu0
    %v1535 = vsel %vm198, %v1483, 0
    %v1538 = vsel %vm198, %v1485, 0
    %1540 = vmatprep.subr.bf16.mxu0 0
    %1541 = vmatpush1.bf16.xpose.msra.mxu0 %v1538
    %1542 = vmatprep.subr.bf16.mxu0 0
    %1543 = vmatpush1.bf16.xpose.msra.mxu0 0
    %1544 = vmatprep.subr.bf16.mxu0 0
    %1545 = vmatpush1.bf16.xpose.msra.mxu0 0
    %1546 = vmatprep.subr.bf16.mxu0 0
    %1547 = vmatpush1.bf16.xpose.msra.mxu0 0
    %1548 = vmatprep.subr.bf16.mxu0 0
    %1549 = vmatpush1.bf16.xpose.msra.mxu0 0
    %1550 = vmatprep.subr.bf16.mxu0 0
    %1551 = vmatpush1.bf16.xpose.msra.mxu0 0
    %1552 = vmatprep.subr.bf16.mxu0 0
    %1553 = vmatpush1.bf16.xpose.msra.mxu0 0
    %1554 = vmatprep.subr.bf16.mxu0 0
    %1555 = vmatpush1.bf16.xpose.msra.mxu0 0
    %1556 = vmatprep.subr.bf16.mxu0 0
    %1557 = vmatpush1.bf16.xpose.msra.mxu0 0
    %1558 = vmatprep.subr.bf16.mxu0 0
    %1559 = vmatpush1.bf16.xpose.msra.mxu0 0
    %1560 = vmatprep.subr.bf16.mxu0 0
    %1561 = vmatpush1.bf16.xpose.msra.mxu0 0
    %1562 = vmatprep.subr.bf16.mxu0 0
    %1563 = vmatpush1.bf16.xpose.msra.mxu0 0
    %1564 = vmatprep.subr.bf16.mxu0 0
    %1565 = vmatpush1.bf16.xpose.msra.mxu0 0
    %1566 = vmatprep.subr.bf16.mxu0 0
    %1567 = vmatpush1.bf16.xpose.msra.mxu0 0
    %1568 = vmatprep.subr.bf16.mxu0 0
    %1569 = vmatpush1.bf16.xpose.msra.mxu0 0
    %1570 = vmatprep.subr.bf16.mxu0 0
    %1571 = vmatpush1.bf16.xpose.msra.mxu0 0
    %1572 = vmatprep.mubr.bf16.mxu0 0
    %1573 = vmatmul.mubr.bf16.gmra.mrb[0].mxu0 %v1535
    %v1574 = vpop.f32.mrb[0].mxu0
    %v1575 = vadd.f32 0.0, %v1574
    %v1576 = vpop.f32.mrb[0].mxu0
    %v1577 = vpop.f32.mrb[0].mxu0
    %v1578 = vpop.f32.mrb[0].mxu0
    %1579 = vdwg.mxu0
    %vm1580 = vcmask 130048
    %v1581 = vsel %vm1580, %v1529, -inf
    %1582 = vmax.xlane.f32.xlu0 %v1581
    %v1583 = vpop.xlane.xlu0 %1582
    %v1584 = vsel %vm1580, %v1575, -inf
    %1585 = vmax.xlane.f32.xlu0 %v1584
    %v1586 = vpop.xlane.xlu0 %1585
    %v1587 = vsub.f32 %v1529, %v1583
    %v1588 = vsub.f32 %v1575, %v1586
    %v1589 = vmul.f32 %v1587, 1.442695
    %v1590 = vpow.pop %v1589
    %v1591 = vmul.f32 %v1588, 1.442695
    %v1592 = vpow.pop %v1591
    %v1593 = vsel %vm1580, %v1590, 0.0
    %1594 = vadd.xlane.f32.xlu0 %v1593
    %v1595 = vpop.xlane.xlu0 %1594
    %v1596 = vsel %vm1580, %v1592, 0.0
    %1597 = vadd.xlane.f32.xlu0 %v1596
    %v1598 = vpop.xlane.xlu0 %1597
    %v1599 = vrcp.pop %v1595
    %v1600 = vrcp.pop %v1598
    %v1601 = vmul.f32 %v1590, %v1599
    %v1602 = vmul.f32 %v1592, %v1600
    %v1603 = vpack.c.bf16 %v1601, %v1601
    %v1604 = vpack.c.bf16 %v1602, %v1602
    %1606 = vrot.lane.b32.xlu0 %v1486, 96
    %v1607 = vpop.permute.xlu0 %1606
    %v1610 = vsel %vm1580, %v1603, 0
    %1612 = vmatprep.subr.bf16.mxu0 0
    %1613 = vmatpush1.bf16.msra.mxu0 %v1607
    %1614 = vmatprep.subr.bf16.mxu0 0
    %1615 = vmatpush1.bf16.msra.mxu0 0
    %1616 = vmatprep.subr.bf16.mxu0 0
    %1617 = vmatpush1.bf16.msra.mxu0 0
    %1618 = vmatprep.subr.bf16.mxu0 0
    %1619 = vmatpush1.bf16.msra.mxu0 0
    %1620 = vmatprep.subr.bf16.mxu0 0
    %1621 = vmatpush1.bf16.msra.mxu0 0
    %1622 = vmatprep.subr.bf16.mxu0 0
    %1623 = vmatpush1.bf16.msra.mxu0 0
    %1624 = vmatprep.subr.bf16.mxu0 0
    %1625 = vmatpush1.bf16.msra.mxu0 0
    %1626 = vmatprep.subr.bf16.mxu0 0
    %1627 = vmatpush1.bf16.msra.mxu0 0
    %1628 = vmatprep.subr.bf16.mxu0 0
    %1629 = vmatpush1.bf16.msra.mxu0 0
    %1630 = vmatprep.subr.bf16.mxu0 0
    %1631 = vmatpush1.bf16.msra.mxu0 0
    %1632 = vmatprep.subr.bf16.mxu0 0
    %1633 = vmatpush1.bf16.msra.mxu0 0
    %1634 = vmatprep.subr.bf16.mxu0 0
    %1635 = vmatpush1.bf16.msra.mxu0 0
    %1636 = vmatprep.subr.bf16.mxu0 0
    %1637 = vmatpush1.bf16.msra.mxu0 0
    %1638 = vmatprep.subr.bf16.mxu0 0
    %1639 = vmatpush1.bf16.msra.mxu0 0
    %1640 = vmatprep.subr.bf16.mxu0 0
    %1641 = vmatpush1.bf16.msra.mxu0 0
    %1642 = vmatprep.subr.bf16.mxu0 0
    %1643 = vmatpush1.bf16.msra.mxu0 0
    %1644 = vmatprep.mubr.bf16.mxu0 0
    %1645 = vmatmul.mubr.bf16.gmra.mrb[0].mxu0 %v1610
    %v1646 = vpop.f32.mrb[0].mxu0
    %v1647 = vadd.f32 0.0, %v1646
    %v1648 = vpop.f32.mrb[0].mxu0
    %v1649 = vpop.f32.mrb[0].mxu0
    %v1650 = vpop.f32.mrb[0].mxu0
    %1651 = vdwg.mxu0
    %1653 = vrot.lane.b32.xlu0 %v1487, 96
    %v1654 = vpop.permute.xlu0 %1653
    %v1657 = vsel %vm1580, %v1604, 0
    %1659 = vmatprep.subr.bf16.mxu0 0
    %1660 = vmatpush1.bf16.msra.mxu0 %v1654
    %1661 = vmatprep.subr.bf16.mxu0 0
    %1662 = vmatpush1.bf16.msra.mxu0 0
    %1663 = vmatprep.subr.bf16.mxu0 0
    %1664 = vmatpush1.bf16.msra.mxu0 0
    %1665 = vmatprep.subr.bf16.mxu0 0
    %1666 = vmatpush1.bf16.msra.mxu0 0
    %1667 = vmatprep.subr.bf16.mxu0 0
    %1668 = vmatpush1.bf16.msra.mxu0 0
    %1669 = vmatprep.subr.bf16.mxu0 0
    %1670 = vmatpush1.bf16.msra.mxu0 0
    %1671 = vmatprep.subr.bf16.mxu0 0
    %1672 = vmatpush1.bf16.msra.mxu0 0
    %1673 = vmatprep.subr.bf16.mxu0 0
    %1674 = vmatpush1.bf16.msra.mxu0 0
    %1675 = vmatprep.subr.bf16.mxu0 0
    %1676 = vmatpush1.bf16.msra.mxu0 0
    %1677 = vmatprep.subr.bf16.mxu0 0
    %1678 = vmatpush1.bf16.msra.mxu0 0
    %1679 = vmatprep.subr.bf16.mxu0 0
    %1680 = vmatpush1.bf16.msra.mxu0 0
    %1681 = vmatprep.subr.bf16.mxu0 0
    %1682 = vmatpush1.bf16.msra.mxu0 0
    %1683 = vmatprep.subr.bf16.mxu0 0
    %1684 = vmatpush1.bf16.msra.mxu0 0
    %1685 = vmatprep.subr.bf16.mxu0 0
    %1686 = vmatpush1.bf16.msra.mxu0 0
    %1687 = vmatprep.subr.bf16.mxu0 0
    %1688 = vmatpush1.bf16.msra.mxu0 0
    %1689 = vmatprep.subr.bf16.mxu0 0
    %1690 = vmatpush1.bf16.msra.mxu0 0
    %1691 = vmatprep.mubr.bf16.mxu0 0
    %1692 = vmatmul.mubr.bf16.gmra.mrb[0].mxu0 %v1657
    %v1693 = vpop.f32.mrb[0].mxu0
    %v1694 = vadd.f32 0.0, %v1693
    %v1695 = vpop.f32.mrb[0].mxu0
    %v1696 = vpop.f32.mrb[0].mxu0
    %v1697 = vpop.f32.mrb[0].mxu0
    %1698 = vdwg.mxu0
    %v1699 = vpack.c.bf16 %v1694, %v1647
    %1701 = vrot.lane.b32.xlu0 %v1482, 120
    %v1702 = vpop.permute.xlu0 %1701
    %1704 = vrot.lane.b32.xlu0 %v1484, 120
    %v1705 = vpop.permute.xlu0 %1704
    %v1707 = vsel %vm198, %v1702, 0
    %v1710 = vsel %vm198, %v1705, 0
    %1712 = vmatprep.subr.bf16.mxu0 0
    %1713 = vmatpush1.bf16.xpose.msra.mxu0 %v1710
    %1714 = vmatprep.subr.bf16.mxu0 0
    %1715 = vmatpush1.bf16.xpose.msra.mxu0 0
    %1716 = vmatprep.subr.bf16.mxu0 0
    %1717 = vmatpush1.bf16.xpose.msra.mxu0 0
    %1718 = vmatprep.subr.bf16.mxu0 0
    %1719 = vmatpush1.bf16.xpose.msra.mxu0 0
    %1720 = vmatprep.subr.bf16.mxu0 0
    %1721 = vmatpush1.bf16.xpose.msra.mxu0 0
    %1722 = vmatprep.subr.bf16.mxu0 0
    %1723 = vmatpush1.bf16.xpose.msra.mxu0 0
    %1724 = vmatprep.subr.bf16.mxu0 0
    %1725 = vmatpush1.bf16.xpose.msra.mxu0 0
    %1726 = vmatprep.subr.bf16.mxu0 0
    %1727 = vmatpush1.bf16.xpose.msra.mxu0 0
    %1728 = vmatprep.subr.bf16.mxu0 0
    %1729 = vmatpush1.bf16.xpose.msra.mxu0 0
    %1730 = vmatprep.subr.bf16.mxu0 0
    %1731 = vmatpush1.bf16.xpose.msra.mxu0 0
    %1732 = vmatprep.subr.bf16.mxu0 0
    %1733 = vmatpush1.bf16.xpose.msra.mxu0 0
    %1734 = vmatprep.subr.bf16.mxu0 0
    %1735 = vmatpush1.bf16.xpose.msra.mxu0 0
    %1736 = vmatprep.subr.bf16.mxu0 0
    %1737 = vmatpush1.bf16.xpose.msra.mxu0 0
    %1738 = vmatprep.subr.bf16.mxu0 0
    %1739 = vmatpush1.bf16.xpose.msra.mxu0 0
    %1740 = vmatprep.subr.bf16.mxu0 0
    %1741 = vmatpush1.bf16.xpose.msra.mxu0 0
    %1742 = vmatprep.subr.bf16.mxu0 0
    %1743 = vmatpush1.bf16.xpose.msra.mxu0 0
    %1744 = vmatprep.mubr.bf16.mxu0 0
    %1745 = vmatmul.mubr.bf16.gmra.mrb[0].mxu0 %v1707
    %v1746 = vpop.f32.mrb[0].mxu0
    %v1747 = vadd.f32 0.0, %v1746
    %v1748 = vpop.f32.mrb[0].mxu0
    %v1749 = vpop.f32.mrb[0].mxu0
    %v1750 = vpop.f32.mrb[0].mxu0
    %1751 = vdwg.mxu0
    %1753 = vrot.lane.b32.xlu0 %v1483, 120
    %v1754 = vpop.permute.xlu0 %1753
    %1756 = vrot.lane.b32.xlu0 %v1485, 120
    %v1757 = vpop.permute.xlu0 %1756
    %v1759 = vsel %vm198, %v1754, 0
    %v1762 = vsel %vm198, %v1757, 0
    %1764 = vmatprep.subr.bf16.mxu0 0
    %1765 = vmatpush1.bf16.xpose.msra.mxu0 %v1762
    %1766 = vmatprep.subr.bf16.mxu0 0
    %1767 = vmatpush1.bf16.xpose.msra.mxu0 0
    %1768 = vmatprep.subr.bf16.mxu0 0
    %1769 = vmatpush1.bf16.xpose.msra.mxu0 0
    %1770 = vmatprep.subr.bf16.mxu0 0
    %1771 = vmatpush1.bf16.xpose.msra.mxu0 0
    %1772 = vmatprep.subr.bf16.mxu0 0
    %1773 = vmatpush1.bf16.xpose.msra.mxu0 0
    %1774 = vmatprep.subr.bf16.mxu0 0
    %1775 = vmatpush1.bf16.xpose.msra.mxu0 0
    %1776 = vmatprep.subr.bf16.mxu0 0
    %1777 = vmatpush1.bf16.xpose.msra.mxu0 0
    %1778 = vmatprep.subr.bf16.mxu0 0
    %1779 = vmatpush1.bf16.xpose.msra.mxu0 0
    %1780 = vmatprep.subr.bf16.mxu0 0
    %1781 = vmatpush1.bf16.xpose.msra.mxu0 0
    %1782 = vmatprep.subr.bf16.mxu0 0
    %1783 = vmatpush1.bf16.xpose.msra.mxu0 0
    %1784 = vmatprep.subr.bf16.mxu0 0
    %1785 = vmatpush1.bf16.xpose.msra.mxu0 0
    %1786 = vmatprep.subr.bf16.mxu0 0
    %1787 = vmatpush1.bf16.xpose.msra.mxu0 0
    %1788 = vmatprep.subr.bf16.mxu0 0
    %1789 = vmatpush1.bf16.xpose.msra.mxu0 0
    %1790 = vmatprep.subr.bf16.mxu0 0
    %1791 = vmatpush1.bf16.xpose.msra.mxu0 0
    %1792 = vmatprep.subr.bf16.mxu0 0
    %1793 = vmatpush1.bf16.xpose.msra.mxu0 0
    %1794 = vmatprep.subr.bf16.mxu0 0
    %1795 = vmatpush1.bf16.xpose.msra.mxu0 0
    %1796 = vmatprep.mubr.bf16.mxu0 0
    %1797 = vmatmul.mubr.bf16.gmra.mrb[0].mxu0 %v1759
    %v1798 = vpop.f32.mrb[0].mxu0
    %v1799 = vadd.f32 0.0, %v1798
    %v1800 = vpop.f32.mrb[0].mxu0
    %v1801 = vpop.f32.mrb[0].mxu0
    %v1802 = vpop.f32.mrb[0].mxu0
    %1803 = vdwg.mxu0
    %v1804 = vsel %vm1580, %v1747, -inf
    %1805 = vmax.xlane.f32.xlu0 %v1804
    %v1806 = vpop.xlane.xlu0 %1805
    %v1807 = vsel %vm1580, %v1799, -inf
    %1808 = vmax.xlane.f32.xlu0 %v1807
    %v1809 = vpop.xlane.xlu0 %1808
    %v1810 = vsub.f32 %v1747, %v1806
    %v1811 = vsub.f32 %v1799, %v1809
    %v1812 = vmul.f32 %v1810, 1.442695
    %v1813 = vpow.pop %v1812
    %v1814 = vmul.f32 %v1811, 1.442695
    %v1815 = vpow.pop %v1814
    %v1816 = vsel %vm1580, %v1813, 0.0
    %1817 = vadd.xlane.f32.xlu0 %v1816
    %v1818 = vpop.xlane.xlu0 %1817
    %v1819 = vsel %vm1580, %v1815, 0.0
    %1820 = vadd.xlane.f32.xlu0 %v1819
    %v1821 = vpop.xlane.xlu0 %1820
    %v1822 = vrcp.pop %v1818
    %v1823 = vrcp.pop %v1821
    %v1824 = vmul.f32 %v1813, %v1822
    %v1825 = vmul.f32 %v1815, %v1823
    %v1826 = vpack.c.bf16 %v1824, %v1824
    %v1827 = vpack.c.bf16 %v1825, %v1825
    %1828 = vrot.lane.b32.xlu0 %v1486, 88
    %v1829 = vpop.permute.xlu0 %1828
    %v1832 = vsel %vm1580, %v1826, 0
    %1834 = vmatprep.subr.bf16.mxu0 0
    %1835 = vmatpush1.bf16.msra.mxu0 %v1829
    %1836 = vmatprep.subr.bf16.mxu0 0
    %1837 = vmatpush1.bf16.msra.mxu0 0
    %1838 = vmatprep.subr.bf16.mxu0 0
    %1839 = vmatpush1.bf16.msra.mxu0 0
    %1840 = vmatprep.subr.bf16.mxu0 0
    %1841 = vmatpush1.bf16.msra.mxu0 0
    %1842 = vmatprep.subr.bf16.mxu0 0
    %1843 = vmatpush1.bf16.msra.mxu0 0
    %1844 = vmatprep.subr.bf16.mxu0 0
    %1845 = vmatpush1.bf16.msra.mxu0 0
    %1846 = vmatprep.subr.bf16.mxu0 0
    %1847 = vmatpush1.bf16.msra.mxu0 0
    %1848 = vmatprep.subr.bf16.mxu0 0
    %1849 = vmatpush1.bf16.msra.mxu0 0
    %1850 = vmatprep.subr.bf16.mxu0 0
    %1851 = vmatpush1.bf16.msra.mxu0 0
    %1852 = vmatprep.subr.bf16.mxu0 0
    %1853 = vmatpush1.bf16.msra.mxu0 0
    %1854 = vmatprep.subr.bf16.mxu0 0
    %1855 = vmatpush1.bf16.msra.mxu0 0
    %1856 = vmatprep.subr.bf16.mxu0 0
    %1857 = vmatpush1.bf16.msra.mxu0 0
    %1858 = vmatprep.subr.bf16.mxu0 0
    %1859 = vmatpush1.bf16.msra.mxu0 0
    %1860 = vmatprep.subr.bf16.mxu0 0
    %1861 = vmatpush1.bf16.msra.mxu0 0
    %1862 = vmatprep.subr.bf16.mxu0 0
    %1863 = vmatpush1.bf16.msra.mxu0 0
    %1864 = vmatprep.subr.bf16.mxu0 0
    %1865 = vmatpush1.bf16.msra.mxu0 0
    %1866 = vmatprep.mubr.bf16.mxu0 0
    %1867 = vmatmul.mubr.bf16.gmra.mrb[0].mxu0 %v1832
    %v1868 = vpop.f32.mrb[0].mxu0
    %v1869 = vadd.f32 0.0, %v1868
    %v1870 = vpop.f32.mrb[0].mxu0
    %v1871 = vpop.f32.mrb[0].mxu0
    %v1872 = vpop.f32.mrb[0].mxu0
    %1873 = vdwg.mxu0
    %1874 = vrot.lane.b32.xlu0 %v1487, 88
    %v1875 = vpop.permute.xlu0 %1874
    %v1878 = vsel %vm1580, %v1827, 0
    %1880 = vmatprep.subr.bf16.mxu0 0
    %1881 = vmatpush1.bf16.msra.mxu0 %v1875
    %1882 = vmatprep.subr.bf16.mxu0 0
    %1883 = vmatpush1.bf16.msra.mxu0 0
    %1884 = vmatprep.subr.bf16.mxu0 0
    %1885 = vmatpush1.bf16.msra.mxu0 0
    %1886 = vmatprep.subr.bf16.mxu0 0
    %1887 = vmatpush1.bf16.msra.mxu0 0
    %1888 = vmatprep.subr.bf16.mxu0 0
    %1889 = vmatpush1.bf16.msra.mxu0 0
    %1890 = vmatprep.subr.bf16.mxu0 0
    %1891 = vmatpush1.bf16.msra.mxu0 0
    %1892 = vmatprep.subr.bf16.mxu0 0
    %1893 = vmatpush1.bf16.msra.mxu0 0
    %1894 = vmatprep.subr.bf16.mxu0 0
    %1895 = vmatpush1.bf16.msra.mxu0 0
    %1896 = vmatprep.subr.bf16.mxu0 0
    %1897 = vmatpush1.bf16.msra.mxu0 0
    %1898 = vmatprep.subr.bf16.mxu0 0
    %1899 = vmatpush1.bf16.msra.mxu0 0
    %1900 = vmatprep.subr.bf16.mxu0 0
    %1901 = vmatpush1.bf16.msra.mxu0 0
    %1902 = vmatprep.subr.bf16.mxu0 0
    %1903 = vmatpush1.bf16.msra.mxu0 0
    %1904 = vmatprep.subr.bf16.mxu0 0
    %1905 = vmatpush1.bf16.msra.mxu0 0
    %1906 = vmatprep.subr.bf16.mxu0 0
    %1907 = vmatpush1.bf16.msra.mxu0 0
    %1908 = vmatprep.subr.bf16.mxu0 0
    %1909 = vmatpush1.bf16.msra.mxu0 0
    %1910 = vmatprep.subr.bf16.mxu0 0
    %1911 = vmatpush1.bf16.msra.mxu0 0
    %1912 = vmatprep.mubr.bf16.mxu0 0
    %1913 = vmatmul.mubr.bf16.gmra.mrb[0].mxu0 %v1878
    %v1914 = vpop.f32.mrb[0].mxu0
    %v1915 = vadd.f32 0.0, %v1914
    %v1916 = vpop.f32.mrb[0].mxu0
    %v1917 = vpop.f32.mrb[0].mxu0
    %v1918 = vpop.f32.mrb[0].mxu0
    %1919 = vdwg.mxu0
    %v1920 = vpack.c.bf16 %v1915, %v1869
    %v1922 = vsel %vm198, %v1920, 0
    %v1925 = vsel %vm324, %v1479, 0
    %1927 = vmatprep.subr.bf16.mxu0 0
    %1928 = vmatpush1.bf16.msra.mxu0 %v1925
    %1929 = vmatprep.subr.bf16.mxu0 0
    %1930 = vmatpush1.bf16.msra.mxu0 0
    %1931 = vmatprep.subr.bf16.mxu0 0
    %1932 = vmatpush1.bf16.msra.mxu0 0
    %1933 = vmatprep.subr.bf16.mxu0 0
    %1934 = vmatpush1.bf16.msra.mxu0 0
    %1935 = vmatprep.subr.bf16.mxu0 0
    %1936 = vmatpush1.bf16.msra.mxu0 0
    %1937 = vmatprep.subr.bf16.mxu0 0
    %1938 = vmatpush1.bf16.msra.mxu0 0
    %1939 = vmatprep.subr.bf16.mxu0 0
    %1940 = vmatpush1.bf16.msra.mxu0 0
    %1941 = vmatprep.subr.bf16.mxu0 0
    %1942 = vmatpush1.bf16.msra.mxu0 0
    %1943 = vmatprep.subr.bf16.mxu0 0
    %1944 = vmatpush1.bf16.msra.mxu0 0
    %1945 = vmatprep.subr.bf16.mxu0 0
    %1946 = vmatpush1.bf16.msra.mxu0 0
    %1947 = vmatprep.subr.bf16.mxu0 0
    %1948 = vmatpush1.bf16.msra.mxu0 0
    %1949 = vmatprep.subr.bf16.mxu0 0
    %1950 = vmatpush1.bf16.msra.mxu0 0
    %1951 = vmatprep.subr.bf16.mxu0 0
    %1952 = vmatpush1.bf16.msra.mxu0 0
    %1953 = vmatprep.subr.bf16.mxu0 0
    %1954 = vmatpush1.bf16.msra.mxu0 0
    %1955 = vmatprep.subr.bf16.mxu0 0
    %1956 = vmatpush1.bf16.msra.mxu0 0
    %1957 = vmatprep.subr.bf16.mxu0 0
    %1958 = vmatpush1.bf16.msra.mxu0 0
    %1959 = vmatprep.mubr.bf16.mxu0 0
    %1960 = vmatmul.mubr.bf16.gmra.mrb[0].mxu0 %v1922
    %v1961 = vpop.f32.mrb[0].mxu0
    %v1962 = vadd.f32 0.0, %v1961
    %v1963 = vpop.f32.mrb[0].mxu0
    %v1964 = vpop.f32.mrb[0].mxu0
    %v1965 = vadd.f32 0.0, %v1964
    %v1966 = vpop.f32.mrb[0].mxu0
    %1967 = vdwg.mxu0
    %v1969 = vsel %vm198, %v1699, 0
    %v1972 = vsel %vm324, %v1478, 0
    %1974 = vmatprep.subr.bf16.mxu0 0
    %1975 = vmatpush1.bf16.msra.mxu0 %v1972
    %1976 = vmatprep.subr.bf16.mxu0 0
    %1977 = vmatpush1.bf16.msra.mxu0 0
    %1978 = vmatprep.subr.bf16.mxu0 0
    %1979 = vmatpush1.bf16.msra.mxu0 0
    %1980 = vmatprep.subr.bf16.mxu0 0
    %1981 = vmatpush1.bf16.msra.mxu0 0
    %1982 = vmatprep.subr.bf16.mxu0 0
    %1983 = vmatpush1.bf16.msra.mxu0 0
    %1984 = vmatprep.subr.bf16.mxu0 0
    %1985 = vmatpush1.bf16.msra.mxu0 0
    %1986 = vmatprep.subr.bf16.mxu0 0
    %1987 = vmatpush1.bf16.msra.mxu0 0
    %1988 = vmatprep.subr.bf16.mxu0 0
    %1989 = vmatpush1.bf16.msra.mxu0 0
    %1990 = vmatprep.subr.bf16.mxu0 0
    %1991 = vmatpush1.bf16.msra.mxu0 0
    %1992 = vmatprep.subr.bf16.mxu0 0
    %1993 = vmatpush1.bf16.msra.mxu0 0
    %1994 = vmatprep.subr.bf16.mxu0 0
    %1995 = vmatpush1.bf16.msra.mxu0 0
    %1996 = vmatprep.subr.bf16.mxu0 0
    %1997 = vmatpush1.bf16.msra.mxu0 0
    %1998 = vmatprep.subr.bf16.mxu0 0
    %1999 = vmatpush1.bf16.msra.mxu0 0
    %2000 = vmatprep.subr.bf16.mxu0 0
    %2001 = vmatpush1.bf16.msra.mxu0 0
    %2002 = vmatprep.subr.bf16.mxu0 0
    %2003 = vmatpush1.bf16.msra.mxu0 0
    %2004 = vmatprep.subr.bf16.mxu0 0
    %2005 = vmatpush1.bf16.msra.mxu0 0
    %2006 = vmatprep.mubr.bf16.mxu0 0
    %2007 = vmatmul.mubr.bf16.gmra.mrb[0].mxu0 %v1969
    %v2008 = vpop.f32.mrb[0].mxu0
    %v2009 = vadd.f32 %v1962, %v2008
    %v2010 = vpop.f32.mrb[0].mxu0
    %v2011 = vpop.f32.mrb[0].mxu0
    %v2012 = vadd.f32 %v1965, %v2011
    %v2013 = vpop.f32.mrb[0].mxu0
    %2014 = vdwg.mxu0
    %2015 = vrot.lane.b32.xlu0 %v1482, 112
    %v2016 = vpop.permute.xlu0 %2015
    %2017 = vrot.lane.b32.xlu0 %v1484, 112
    %v2018 = vpop.permute.xlu0 %2017
    %v2020 = vsel %vm198, %v2016, 0
    %v2023 = vsel %vm198, %v2018, 0
    %2025 = vmatprep.subr.bf16.mxu0 0
    %2026 = vmatpush1.bf16.xpose.msra.mxu0 %v2023
    %2027 = vmatprep.subr.bf16.mxu0 0
    %2028 = vmatpush1.bf16.xpose.msra.mxu0 0
    %2029 = vmatprep.subr.bf16.mxu0 0
    %2030 = vmatpush1.bf16.xpose.msra.mxu0 0
    %2031 = vmatprep.subr.bf16.mxu0 0
    %2032 = vmatpush1.bf16.xpose.msra.mxu0 0
    %2033 = vmatprep.subr.bf16.mxu0 0
    %2034 = vmatpush1.bf16.xpose.msra.mxu0 0
    %2035 = vmatprep.subr.bf16.mxu0 0
    %2036 = vmatpush1.bf16.xpose.msra.mxu0 0
    %2037 = vmatprep.subr.bf16.mxu0 0
    %2038 = vmatpush1.bf16.xpose.msra.mxu0 0
    %2039 = vmatprep.subr.bf16.mxu0 0
    %2040 = vmatpush1.bf16.xpose.msra.mxu0 0
    %2041 = vmatprep.subr.bf16.mxu0 0
    %2042 = vmatpush1.bf16.xpose.msra.mxu0 0
    %2043 = vmatprep.subr.bf16.mxu0 0
    %2044 = vmatpush1.bf16.xpose.msra.mxu0 0
    %2045 = vmatprep.subr.bf16.mxu0 0
    %2046 = vmatpush1.bf16.xpose.msra.mxu0 0
    %2047 = vmatprep.subr.bf16.mxu0 0
    %2048 = vmatpush1.bf16.xpose.msra.mxu0 0
    %2049 = vmatprep.subr.bf16.mxu0 0
    %2050 = vmatpush1.bf16.xpose.msra.mxu0 0
    %2051 = vmatprep.subr.bf16.mxu0 0
    %2052 = vmatpush1.bf16.xpose.msra.mxu0 0
    %2053 = vmatprep.subr.bf16.mxu0 0
    %2054 = vmatpush1.bf16.xpose.msra.mxu0 0
    %2055 = vmatprep.subr.bf16.mxu0 0
    %2056 = vmatpush1.bf16.xpose.msra.mxu0 0
    %2057 = vmatprep.mubr.bf16.mxu0 0
    %2058 = vmatmul.mubr.bf16.gmra.mrb[0].mxu0 %v2020
    %v2059 = vpop.f32.mrb[0].mxu0
    %v2060 = vadd.f32 0.0, %v2059
    %v2061 = vpop.f32.mrb[0].mxu0
    %v2062 = vpop.f32.mrb[0].mxu0
    %v2063 = vpop.f32.mrb[0].mxu0
    %2064 = vdwg.mxu0
    %2065 = vrot.lane.b32.xlu0 %v1483, 112
    %v2066 = vpop.permute.xlu0 %2065
    %2067 = vrot.lane.b32.xlu0 %v1485, 112
    %v2068 = vpop.permute.xlu0 %2067
    %v2070 = vsel %vm198, %v2066, 0
    %v2073 = vsel %vm198, %v2068, 0
    %2075 = vmatprep.subr.bf16.mxu0 0
    %2076 = vmatpush1.bf16.xpose.msra.mxu0 %v2073
    %2077 = vmatprep.subr.bf16.mxu0 0
    %2078 = vmatpush1.bf16.xpose.msra.mxu0 0
    %2079 = vmatprep.subr.bf16.mxu0 0
    %2080 = vmatpush1.bf16.xpose.msra.mxu0 0
    %2081 = vmatprep.subr.bf16.mxu0 0
    %2082 = vmatpush1.bf16.xpose.msra.mxu0 0
    %2083 = vmatprep.subr.bf16.mxu0 0
    %2084 = vmatpush1.bf16.xpose.msra.mxu0 0
    %2085 = vmatprep.subr.bf16.mxu0 0
    %2086 = vmatpush1.bf16.xpose.msra.mxu0 0
    %2087 = vmatprep.subr.bf16.mxu0 0
    %2088 = vmatpush1.bf16.xpose.msra.mxu0 0
    %2089 = vmatprep.subr.bf16.mxu0 0
    %2090 = vmatpush1.bf16.xpose.msra.mxu0 0
    %2091 = vmatprep.subr.bf16.mxu0 0
    %2092 = vmatpush1.bf16.xpose.msra.mxu0 0
    %2093 = vmatprep.subr.bf16.mxu0 0
    %2094 = vmatpush1.bf16.xpose.msra.mxu0 0
    %2095 = vmatprep.subr.bf16.mxu0 0
    %2096 = vmatpush1.bf16.xpose.msra.mxu0 0
    %2097 = vmatprep.subr.bf16.mxu0 0
    %2098 = vmatpush1.bf16.xpose.msra.mxu0 0
    %2099 = vmatprep.subr.bf16.mxu0 0
    %2100 = vmatpush1.bf16.xpose.msra.mxu0 0
    %2101 = vmatprep.subr.bf16.mxu0 0
    %2102 = vmatpush1.bf16.xpose.msra.mxu0 0
    %2103 = vmatprep.subr.bf16.mxu0 0
    %2104 = vmatpush1.bf16.xpose.msra.mxu0 0
    %2105 = vmatprep.subr.bf16.mxu0 0
    %2106 = vmatpush1.bf16.xpose.msra.mxu0 0
    %2107 = vmatprep.mubr.bf16.mxu0 0
    %2108 = vmatmul.mubr.bf16.gmra.mrb[0].mxu0 %v2070
    %v2109 = vpop.f32.mrb[0].mxu0
    %v2110 = vadd.f32 0.0, %v2109
    %v2111 = vpop.f32.mrb[0].mxu0
    %v2112 = vpop.f32.mrb[0].mxu0
    %v2113 = vpop.f32.mrb[0].mxu0
    %2114 = vdwg.mxu0
    %v2115 = vsel %vm1580, %v2060, -inf
    %2116 = vmax.xlane.f32.xlu0 %v2115
    %v2117 = vpop.xlane.xlu0 %2116
    %v2118 = vsel %vm1580, %v2110, -inf
    %2119 = vmax.xlane.f32.xlu0 %v2118
    %v2120 = vpop.xlane.xlu0 %2119
    %v2121 = vsub.f32 %v2060, %v2117
    %v2122 = vsub.f32 %v2110, %v2120
    %v2123 = vmul.f32 %v2121, 1.442695
    %v2124 = vpow.pop %v2123
    %v2125 = vmul.f32 %v2122, 1.442695
    %v2126 = vpow.pop %v2125
    %v2127 = vsel %vm1580, %v2124, 0.0
    %2128 = vadd.xlane.f32.xlu0 %v2127
    %v2129 = vpop.xlane.xlu0 %2128
    %v2130 = vsel %vm1580, %v2126, 0.0
    %2131 = vadd.xlane.f32.xlu0 %v2130
    %v2132 = vpop.xlane.xlu0 %2131
    %v2133 = vrcp.pop %v2129
    %v2134 = vrcp.pop %v2132
    %v2135 = vmul.f32 %v2124, %v2133
    %v2136 = vmul.f32 %v2126, %v2134
    %v2137 = vpack.c.bf16 %v2135, %v2135
    %v2138 = vpack.c.bf16 %v2136, %v2136
    %2139 = vrot.lane.b32.xlu0 %v1486, 80
    %v2140 = vpop.permute.xlu0 %2139
    %v2143 = vsel %vm1580, %v2137, 0
    %2145 = vmatprep.subr.bf16.mxu0 0
    %2146 = vmatpush1.bf16.msra.mxu0 %v2140
    %2147 = vmatprep.subr.bf16.mxu0 0
    %2148 = vmatpush1.bf16.msra.mxu0 0
    %2149 = vmatprep.subr.bf16.mxu0 0
    %2150 = vmatpush1.bf16.msra.mxu0 0
    %2151 = vmatprep.subr.bf16.mxu0 0
    %2152 = vmatpush1.bf16.msra.mxu0 0
    %2153 = vmatprep.subr.bf16.mxu0 0
    %2154 = vmatpush1.bf16.msra.mxu0 0
    %2155 = vmatprep.subr.bf16.mxu0 0
    %2156 = vmatpush1.bf16.msra.mxu0 0
    %2157 = vmatprep.subr.bf16.mxu0 0
    %2158 = vmatpush1.bf16.msra.mxu0 0
    %2159 = vmatprep.subr.bf16.mxu0 0
    %2160 = vmatpush1.bf16.msra.mxu0 0
    %2161 = vmatprep.subr.bf16.mxu0 0
    %2162 = vmatpush1.bf16.msra.mxu0 0
    %2163 = vmatprep.subr.bf16.mxu0 0
    %2164 = vmatpush1.bf16.msra.mxu0 0
    %2165 = vmatprep.subr.bf16.mxu0 0
    %2166 = vmatpush1.bf16.msra.mxu0 0
    %2167 = vmatprep.subr.bf16.mxu0 0
    %2168 = vmatpush1.bf16.msra.mxu0 0
    %2169 = vmatprep.subr.bf16.mxu0 0
    %2170 = vmatpush1.bf16.msra.mxu0 0
    %2171 = vmatprep.subr.bf16.mxu0 0
    %2172 = vmatpush1.bf16.msra.mxu0 0
    %2173 = vmatprep.subr.bf16.mxu0 0
    %2174 = vmatpush1.bf16.msra.mxu0 0
    %2175 = vmatprep.subr.bf16.mxu0 0
    %2176 = vmatpush1.bf16.msra.mxu0 0
    %2177 = vmatprep.mubr.bf16.mxu0 0
    %2178 = vmatmul.mubr.bf16.gmra.mrb[0].mxu0 %v2143
    %v2179 = vpop.f32.mrb[0].mxu0
    %v2180 = vadd.f32 0.0, %v2179
    %v2181 = vpop.f32.mrb[0].mxu0
    %v2182 = vpop.f32.mrb[0].mxu0
    %v2183 = vpop.f32.mrb[0].mxu0
    %2184 = vdwg.mxu0
    %2185 = vrot.lane.b32.xlu0 %v1487, 80
    %v2186 = vpop.permute.xlu0 %2185
    %v2189 = vsel %vm1580, %v2138, 0
    %2191 = vmatprep.subr.bf16.mxu0 0
    %2192 = vmatpush1.bf16.msra.mxu0 %v2186
    %2193 = vmatprep.subr.bf16.mxu0 0
    %2194 = vmatpush1.bf16.msra.mxu0 0
    %2195 = vmatprep.subr.bf16.mxu0 0
    %2196 = vmatpush1.bf16.msra.mxu0 0
    %2197 = vmatprep.subr.bf16.mxu0 0
    %2198 = vmatpush1.bf16.msra.mxu0 0
    %2199 = vmatprep.subr.bf16.mxu0 0
    %2200 = vmatpush1.bf16.msra.mxu0 0
    %2201 = vmatprep.subr.bf16.mxu0 0
    %2202 = vmatpush1.bf16.msra.mxu0 0
    %2203 = vmatprep.subr.bf16.mxu0 0
    %2204 = vmatpush1.bf16.msra.mxu0 0
    %2205 = vmatprep.subr.bf16.mxu0 0
    %2206 = vmatpush1.bf16.msra.mxu0 0
    %2207 = vmatprep.subr.bf16.mxu0 0
    %2208 = vmatpush1.bf16.msra.mxu0 0
    %2209 = vmatprep.subr.bf16.mxu0 0
    %2210 = vmatpush1.bf16.msra.mxu0 0
    %2211 = vmatprep.subr.bf16.mxu0 0
    %2212 = vmatpush1.bf16.msra.mxu0 0
    %2213 = vmatprep.subr.bf16.mxu0 0
    %2214 = vmatpush1.bf16.msra.mxu0 0
    %2215 = vmatprep.subr.bf16.mxu0 0
    %2216 = vmatpush1.bf16.msra.mxu0 0
    %2217 = vmatprep.subr.bf16.mxu0 0
    %2218 = vmatpush1.bf16.msra.mxu0 0
    %2219 = vmatprep.subr.bf16.mxu0 0
    %2220 = vmatpush1.bf16.msra.mxu0 0
    %2221 = vmatprep.subr.bf16.mxu0 0
    %2222 = vmatpush1.bf16.msra.mxu0 0
    %2223 = vmatprep.mubr.bf16.mxu0 0
    %2224 = vmatmul.mubr.bf16.gmra.mrb[0].mxu0 %v2189
    %v2225 = vpop.f32.mrb[0].mxu0
    %v2226 = vadd.f32 0.0, %v2225
    %v2227 = vpop.f32.mrb[0].mxu0
    %v2228 = vpop.f32.mrb[0].mxu0
    %v2229 = vpop.f32.mrb[0].mxu0
    %2230 = vdwg.mxu0
    %v2231 = vpack.c.bf16 %v2226, %v2180
    %v2233 = vsel %vm198, %v2231, 0
    %v2236 = vsel %vm324, %v1480, 0
    %2238 = vmatprep.subr.bf16.mxu0 0
    %2239 = vmatpush1.bf16.msra.mxu0 %v2236
    %2240 = vmatprep.subr.bf16.mxu0 0
    %2241 = vmatpush1.bf16.msra.mxu0 0
    %2242 = vmatprep.subr.bf16.mxu0 0
    %2243 = vmatpush1.bf16.msra.mxu0 0
    %2244 = vmatprep.subr.bf16.mxu0 0
    %2245 = vmatpush1.bf16.msra.mxu0 0
    %2246 = vmatprep.subr.bf16.mxu0 0
    %2247 = vmatpush1.bf16.msra.mxu0 0
    %2248 = vmatprep.subr.bf16.mxu0 0
    %2249 = vmatpush1.bf16.msra.mxu0 0
    %2250 = vmatprep.subr.bf16.mxu0 0
    %2251 = vmatpush1.bf16.msra.mxu0 0
    %2252 = vmatprep.subr.bf16.mxu0 0
    %2253 = vmatpush1.bf16.msra.mxu0 0
    %2254 = vmatprep.subr.bf16.mxu0 0
    %2255 = vmatpush1.bf16.msra.mxu0 0
    %2256 = vmatprep.subr.bf16.mxu0 0
    %2257 = vmatpush1.bf16.msra.mxu0 0
    %2258 = vmatprep.subr.bf16.mxu0 0
    %2259 = vmatpush1.bf16.msra.mxu0 0
    %2260 = vmatprep.subr.bf16.mxu0 0
    %2261 = vmatpush1.bf16.msra.mxu0 0
    %2262 = vmatprep.subr.bf16.mxu0 0
    %2263 = vmatpush1.bf16.msra.mxu0 0
    %2264 = vmatprep.subr.bf16.mxu0 0
    %2265 = vmatpush1.bf16.msra.mxu0 0
    %2266 = vmatprep.subr.bf16.mxu0 0
    %2267 = vmatpush1.bf16.msra.mxu0 0
    %2268 = vmatprep.subr.bf16.mxu0 0
    %2269 = vmatpush1.bf16.msra.mxu0 0
    %2270 = vmatprep.mubr.bf16.mxu0 0
    %2271 = vmatmul.mubr.bf16.gmra.mrb[0].mxu0 %v2233
    %v2272 = vpop.f32.mrb[0].mxu0
    %v2273 = vadd.f32 0.0, %v2272
    %v2274 = vpop.f32.mrb[0].mxu0
    %v2275 = vpop.f32.mrb[0].mxu0
    %v2276 = vadd.f32 0.0, %v2275
    %v2277 = vpop.f32.mrb[0].mxu0
    %2278 = vdwg.mxu0
    %v2279 = vadd.f32 %v2009, %v2273
    %v2280 = vadd.f32 %v2012, %v2276
    %2281 = vrot.lane.b32.xlu0 %v1482, 104
    %v2282 = vpop.permute.xlu0 %2281
    %2283 = vrot.lane.b32.xlu0 %v1484, 104
    %v2284 = vpop.permute.xlu0 %2283
    %v2286 = vsel %vm198, %v2282, 0
    %v2289 = vsel %vm198, %v2284, 0
    %2291 = vmatprep.subr.bf16.mxu0 0
    %2292 = vmatpush1.bf16.xpose.msra.mxu0 %v2289
    %2293 = vmatprep.subr.bf16.mxu0 0
    %2294 = vmatpush1.bf16.xpose.msra.mxu0 0
    %2295 = vmatprep.subr.bf16.mxu0 0
    %2296 = vmatpush1.bf16.xpose.msra.mxu0 0
    %2297 = vmatprep.subr.bf16.mxu0 0
    %2298 = vmatpush1.bf16.xpose.msra.mxu0 0
    %2299 = vmatprep.subr.bf16.mxu0 0
    %2300 = vmatpush1.bf16.xpose.msra.mxu0 0
    %2301 = vmatprep.subr.bf16.mxu0 0
    %2302 = vmatpush1.bf16.xpose.msra.mxu0 0
    %2303 = vmatprep.subr.bf16.mxu0 0
    %2304 = vmatpush1.bf16.xpose.msra.mxu0 0
    %2305 = vmatprep.subr.bf16.mxu0 0
    %2306 = vmatpush1.bf16.xpose.msra.mxu0 0
    %2307 = vmatprep.subr.bf16.mxu0 0
    %2308 = vmatpush1.bf16.xpose.msra.mxu0 0
    %2309 = vmatprep.subr.bf16.mxu0 0
    %2310 = vmatpush1.bf16.xpose.msra.mxu0 0
    %2311 = vmatprep.subr.bf16.mxu0 0
    %2312 = vmatpush1.bf16.xpose.msra.mxu0 0
    %2313 = vmatprep.subr.bf16.mxu0 0
    %2314 = vmatpush1.bf16.xpose.msra.mxu0 0
    %2315 = vmatprep.subr.bf16.mxu0 0
    %2316 = vmatpush1.bf16.xpose.msra.mxu0 0
    %2317 = vmatprep.subr.bf16.mxu0 0
    %2318 = vmatpush1.bf16.xpose.msra.mxu0 0
    %2319 = vmatprep.subr.bf16.mxu0 0
    %2320 = vmatpush1.bf16.xpose.msra.mxu0 0
    %2321 = vmatprep.subr.bf16.mxu0 0
    %2322 = vmatpush1.bf16.xpose.msra.mxu0 0
    %2323 = vmatprep.mubr.bf16.mxu0 0
    %2324 = vmatmul.mubr.bf16.gmra.mrb[0].mxu0 %v2286
    %v2325 = vpop.f32.mrb[0].mxu0
    %v2326 = vadd.f32 0.0, %v2325
    %v2327 = vpop.f32.mrb[0].mxu0
    %v2328 = vpop.f32.mrb[0].mxu0
    %v2329 = vpop.f32.mrb[0].mxu0
    %2330 = vdwg.mxu0
    %2331 = vrot.lane.b32.xlu0 %v1483, 104
    %v2332 = vpop.permute.xlu0 %2331
    %2333 = vrot.lane.b32.xlu0 %v1485, 104
    %v2334 = vpop.permute.xlu0 %2333
    %v2336 = vsel %vm198, %v2332, 0
    %v2339 = vsel %vm198, %v2334, 0
    %2341 = vmatprep.subr.bf16.mxu0 0
    %2342 = vmatpush1.bf16.xpose.msra.mxu0 %v2339
    %2343 = vmatprep.subr.bf16.mxu0 0
    %2344 = vmatpush1.bf16.xpose.msra.mxu0 0
    %2345 = vmatprep.subr.bf16.mxu0 0
    %2346 = vmatpush1.bf16.xpose.msra.mxu0 0
    %2347 = vmatprep.subr.bf16.mxu0 0
    %2348 = vmatpush1.bf16.xpose.msra.mxu0 0
    %2349 = vmatprep.subr.bf16.mxu0 0
    %2350 = vmatpush1.bf16.xpose.msra.mxu0 0
    %2351 = vmatprep.subr.bf16.mxu0 0
    %2352 = vmatpush1.bf16.xpose.msra.mxu0 0
    %2353 = vmatprep.subr.bf16.mxu0 0
    %2354 = vmatpush1.bf16.xpose.msra.mxu0 0
    %2355 = vmatprep.subr.bf16.mxu0 0
    %2356 = vmatpush1.bf16.xpose.msra.mxu0 0
    %2357 = vmatprep.subr.bf16.mxu0 0
    %2358 = vmatpush1.bf16.xpose.msra.mxu0 0
    %2359 = vmatprep.subr.bf16.mxu0 0
    %2360 = vmatpush1.bf16.xpose.msra.mxu0 0
    %2361 = vmatprep.subr.bf16.mxu0 0
    %2362 = vmatpush1.bf16.xpose.msra.mxu0 0
    %2363 = vmatprep.subr.bf16.mxu0 0
    %2364 = vmatpush1.bf16.xpose.msra.mxu0 0
    %2365 = vmatprep.subr.bf16.mxu0 0
    %2366 = vmatpush1.bf16.xpose.msra.mxu0 0
    %2367 = vmatprep.subr.bf16.mxu0 0
    %2368 = vmatpush1.bf16.xpose.msra.mxu0 0
    %2369 = vmatprep.subr.bf16.mxu0 0
    %2370 = vmatpush1.bf16.xpose.msra.mxu0 0
    %2371 = vmatprep.subr.bf16.mxu0 0
    %2372 = vmatpush1.bf16.xpose.msra.mxu0 0
    %2373 = vmatprep.mubr.bf16.mxu0 0
    %2374 = vmatmul.mubr.bf16.gmra.mrb[0].mxu0 %v2336
    %v2375 = vpop.f32.mrb[0].mxu0
    %v2376 = vadd.f32 0.0, %v2375
    %v2377 = vpop.f32.mrb[0].mxu0
    %v2378 = vpop.f32.mrb[0].mxu0
    %v2379 = vpop.f32.mrb[0].mxu0
    %2380 = vdwg.mxu0
    %v2381 = vsel %vm1580, %v2326, -inf
    %2382 = vmax.xlane.f32.xlu0 %v2381
    %v2383 = vpop.xlane.xlu0 %2382
    %v2384 = vsel %vm1580, %v2376, -inf
    %2385 = vmax.xlane.f32.xlu0 %v2384
    %v2386 = vpop.xlane.xlu0 %2385
    %v2387 = vsub.f32 %v2326, %v2383
    %v2388 = vsub.f32 %v2376, %v2386
    %v2389 = vmul.f32 %v2387, 1.442695
    %v2390 = vpow.pop %v2389
    %v2391 = vmul.f32 %v2388, 1.442695
    %v2392 = vpow.pop %v2391
    %v2393 = vsel %vm1580, %v2390, 0.0
    %2394 = vadd.xlane.f32.xlu0 %v2393
    %v2395 = vpop.xlane.xlu0 %2394
    %v2396 = vsel %vm1580, %v2392, 0.0
    %2397 = vadd.xlane.f32.xlu0 %v2396
    %v2398 = vpop.xlane.xlu0 %2397
    %v2399 = vrcp.pop %v2395
    %v2400 = vrcp.pop %v2398
    %v2401 = vmul.f32 %v2390, %v2399
    %v2402 = vmul.f32 %v2392, %v2400
    %v2403 = vpack.c.bf16 %v2401, %v2401
    %v2404 = vpack.c.bf16 %v2402, %v2402
    %2405 = vrot.lane.b32.xlu0 %v1486, 72
    %v2406 = vpop.permute.xlu0 %2405
    %v2409 = vsel %vm1580, %v2403, 0
    %2411 = vmatprep.subr.bf16.mxu0 0
    %2412 = vmatpush1.bf16.msra.mxu0 %v2406
    %2413 = vmatprep.subr.bf16.mxu0 0
    %2414 = vmatpush1.bf16.msra.mxu0 0
    %2415 = vmatprep.subr.bf16.mxu0 0
    %2416 = vmatpush1.bf16.msra.mxu0 0
    %2417 = vmatprep.subr.bf16.mxu0 0
    %2418 = vmatpush1.bf16.msra.mxu0 0
    %2419 = vmatprep.subr.bf16.mxu0 0
    %2420 = vmatpush1.bf16.msra.mxu0 0
    %2421 = vmatprep.subr.bf16.mxu0 0
    %2422 = vmatpush1.bf16.msra.mxu0 0
    %2423 = vmatprep.subr.bf16.mxu0 0
    %2424 = vmatpush1.bf16.msra.mxu0 0
    %2425 = vmatprep.subr.bf16.mxu0 0
    %2426 = vmatpush1.bf16.msra.mxu0 0
    %2427 = vmatprep.subr.bf16.mxu0 0
    %2428 = vmatpush1.bf16.msra.mxu0 0
    %2429 = vmatprep.subr.bf16.mxu0 0
    %2430 = vmatpush1.bf16.msra.mxu0 0
    %2431 = vmatprep.subr.bf16.mxu0 0
    %2432 = vmatpush1.bf16.msra.mxu0 0
    %2433 = vmatprep.subr.bf16.mxu0 0
    %2434 = vmatpush1.bf16.msra.mxu0 0
    %2435 = vmatprep.subr.bf16.mxu0 0
    %2436 = vmatpush1.bf16.msra.mxu0 0
    %2437 = vmatprep.subr.bf16.mxu0 0
    %2438 = vmatpush1.bf16.msra.mxu0 0
    %2439 = vmatprep.subr.bf16.mxu0 0
    %2440 = vmatpush1.bf16.msra.mxu0 0
    %2441 = vmatprep.subr.bf16.mxu0 0
    %2442 = vmatpush1.bf16.msra.mxu0 0
    %2443 = vmatprep.mubr.bf16.mxu0 0
    %2444 = vmatmul.mubr.bf16.gmra.mrb[0].mxu0 %v2409
    %v2445 = vpop.f32.mrb[0].mxu0
    %v2446 = vadd.f32 0.0, %v2445
    %v2447 = vpop.f32.mrb[0].mxu0
    %v2448 = vpop.f32.mrb[0].mxu0
    %v2449 = vpop.f32.mrb[0].mxu0
    %2450 = vdwg.mxu0
    %2451 = vrot.lane.b32.xlu0 %v1487, 72
    %v2452 = vpop.permute.xlu0 %2451
    %v2455 = vsel %vm1580, %v2404, 0
    %2457 = vmatprep.subr.bf16.mxu0 0
    %2458 = vmatpush1.bf16.msra.mxu0 %v2452
    %2459 = vmatprep.subr.bf16.mxu0 0
    %2460 = vmatpush1.bf16.msra.mxu0 0
    %2461 = vmatprep.subr.bf16.mxu0 0
    %2462 = vmatpush1.bf16.msra.mxu0 0
    %2463 = vmatprep.subr.bf16.mxu0 0
    %2464 = vmatpush1.bf16.msra.mxu0 0
    %2465 = vmatprep.subr.bf16.mxu0 0
    %2466 = vmatpush1.bf16.msra.mxu0 0
    %2467 = vmatprep.subr.bf16.mxu0 0
    %2468 = vmatpush1.bf16.msra.mxu0 0
    %2469 = vmatprep.subr.bf16.mxu0 0
    %2470 = vmatpush1.bf16.msra.mxu0 0
    %2471 = vmatprep.subr.bf16.mxu0 0
    %2472 = vmatpush1.bf16.msra.mxu0 0
    %2473 = vmatprep.subr.bf16.mxu0 0
    %2474 = vmatpush1.bf16.msra.mxu0 0
    %2475 = vmatprep.subr.bf16.mxu0 0
    %2476 = vmatpush1.bf16.msra.mxu0 0
    %2477 = vmatprep.subr.bf16.mxu0 0
    %2478 = vmatpush1.bf16.msra.mxu0 0
    %2479 = vmatprep.subr.bf16.mxu0 0
    %2480 = vmatpush1.bf16.msra.mxu0 0
    %2481 = vmatprep.subr.bf16.mxu0 0
    %2482 = vmatpush1.bf16.msra.mxu0 0
    %2483 = vmatprep.subr.bf16.mxu0 0
    %2484 = vmatpush1.bf16.msra.mxu0 0
    %2485 = vmatprep.subr.bf16.mxu0 0
    %2486 = vmatpush1.bf16.msra.mxu0 0
    %2487 = vmatprep.subr.bf16.mxu0 0
    %2488 = vmatpush1.bf16.msra.mxu0 0
    %2489 = vmatprep.mubr.bf16.mxu0 0
    %2490 = vmatmul.mubr.bf16.gmra.mrb[0].mxu0 %v2455
    %v2491 = vpop.f32.mrb[0].mxu0
    %v2492 = vadd.f32 0.0, %v2491
    %v2493 = vpop.f32.mrb[0].mxu0
    %v2494 = vpop.f32.mrb[0].mxu0
    %v2495 = vpop.f32.mrb[0].mxu0
    %2496 = vdwg.mxu0
    %v2497 = vpack.c.bf16 %v2492, %v2446
    %v2499 = vsel %vm198, %v2497, 0
    %v2502 = vsel %vm324, %v1481, 0
    %2504 = vmatprep.subr.bf16.mxu0 0
    %2505 = vmatpush1.bf16.msra.mxu0 %v2502
    %2506 = vmatprep.subr.bf16.mxu0 0
    %2507 = vmatpush1.bf16.msra.mxu0 0
    %2508 = vmatprep.subr.bf16.mxu0 0
    %2509 = vmatpush1.bf16.msra.mxu0 0
    %2510 = vmatprep.subr.bf16.mxu0 0
    %2511 = vmatpush1.bf16.msra.mxu0 0
    %2512 = vmatprep.subr.bf16.mxu0 0
    %2513 = vmatpush1.bf16.msra.mxu0 0
    %2514 = vmatprep.subr.bf16.mxu0 0
    %2515 = vmatpush1.bf16.msra.mxu0 0
    %2516 = vmatprep.subr.bf16.mxu0 0
    %2517 = vmatpush1.bf16.msra.mxu0 0
    %2518 = vmatprep.subr.bf16.mxu0 0
    %2519 = vmatpush1.bf16.msra.mxu0 0
    %2520 = vmatprep.subr.bf16.mxu0 0
    %2521 = vmatpush1.bf16.msra.mxu0 0
    %2522 = vmatprep.subr.bf16.mxu0 0
    %2523 = vmatpush1.bf16.msra.mxu0 0
    %2524 = vmatprep.subr.bf16.mxu0 0
    %2525 = vmatpush1.bf16.msra.mxu0 0
    %2526 = vmatprep.subr.bf16.mxu0 0
    %2527 = vmatpush1.bf16.msra.mxu0 0
    %2528 = vmatprep.subr.bf16.mxu0 0
    %2529 = vmatpush1.bf16.msra.mxu0 0
    %2530 = vmatprep.subr.bf16.mxu0 0
    %2531 = vmatpush1.bf16.msra.mxu0 0
    %2532 = vmatprep.subr.bf16.mxu0 0
    %2533 = vmatpush1.bf16.msra.mxu0 0
    %2534 = vmatprep.subr.bf16.mxu0 0
    %2535 = vmatpush1.bf16.msra.mxu0 0
    %2536 = vmatprep.mubr.bf16.mxu0 0
    %2537 = vmatmul.mubr.bf16.gmra.mrb[0].mxu0 %v2499
    %v2538 = vpop.f32.mrb[0].mxu0
    %v2539 = vadd.f32 0.0, %v2538
    %v2540 = vpop.f32.mrb[0].mxu0
    %v2541 = vpop.f32.mrb[0].mxu0
    %v2542 = vadd.f32 0.0, %v2541
    %v2543 = vpop.f32.mrb[0].mxu0
    %2544 = vdwg.mxu0
    %v2545 = vadd.f32 %v2279, %v2539
    %v2546 = vadd.f32 %v2280, %v2542
    %v2547 = vlaneseq
    %v2548 = vshrl.u32 %v2547, 7
    %v2549 = vsub.s32 7, %v2548
    %v2550 = vrot.slane %v95, %v2549
    %v2551 = vadd.f32 %v2545, %v2550
    %v2552 = vadd.f32 %v2546, %v2550
    %v2553 = vadd.f32 %v1320, %v2551
    %v2554 = vadd.f32 %v1321, %v2552
    %v2555 = vsel %vm114, %v2553, 0.0
    %2556 = vadd.xlane.f32.xlu0 %v2555
    %v2557 = vpop.xlane.xlu0 %2556
    %v2558 = vsel %vm114, %v2554, 0.0
    %2559 = vadd.xlane.f32.xlu0 %v2558
    %v2560 = vpop.xlane.xlu0 %2559
    %v2561 = vmul.f32 %v2557, %v1289
    %v2562 = vmul.f32 %v2560, %v1289
    %v2563 = vsub.f32 %v2553, %v2561
    %v2564 = vsub.f32 %v2554, %v2562
    %v2565 = vmul.f32 %v2563, %v2563
    %v2566 = vmul.f32 %v2564, %v2564
    %v2567 = vsel %vm114, %v2565, 0.0
    %2568 = vadd.xlane.f32.xlu0 %v2567
    %v2569 = vpop.xlane.xlu0 %2568
    %v2570 = vsel %vm114, %v2566, 0.0
    %2571 = vadd.xlane.f32.xlu0 %v2570
    %v2572 = vpop.xlane.xlu0 %2571
    %v2573 = vmul.f32 %v2569, %v1289
    %v2574 = vmul.f32 %v2572, %v1289
    %v2575 = vadd.f32 %v2573, 1e-05
    %v2576 = vadd.f32 %v2574, 1e-05
    %v2577 = vrsqrt.pop %v2575
    %v2578 = vrsqrt.pop %v2576
    %v2579 = vmul.f32 %v2563, %v2577
    %v2580 = vmul.f32 %v2564, %v2578
    %v2581 = vlaneseq
    %v2582 = vshrl.u32 %v2581, 7
    %v2583 = vsub.s32 2, %v2582
    %v2584 = vrot.slane %v96, %v2583
    %v2585 = vmul.f32 %v2579, %v2584
    %v2586 = vmul.f32 %v2580, %v2584
    %v2587 = vlaneseq
    %v2588 = vshrl.u32 %v2587, 7
    %v2589 = vsub.s32 3, %v2588
    %v2590 = vrot.slane %v96, %v2589
    %v2591 = vadd.f32 %v2585, %v2590
    %v2592 = vadd.f32 %v2586, %v2590
    %v2593 = vpack.c.bf16 %v2592, %v2591
    %v2594 = vld [vmem:[%s8] sm:$0xff]
    %v2595 = vld [vmem:[%s8 + $0x8] sm:$0xff]
    %v2596 = vld [vmem:[%s8 + $0x10] sm:$0xff]
    %v2597 = vld [vmem:[%s8 + $0x18] sm:$0xff]
    %v2598 = vld [vmem:[%s8 + $0x20] sm:$0xff]
    %v2599 = vld [vmem:[%s8 + $0x28] sm:$0xff]
    %v2600 = vld [vmem:[%s8 + $0x30] sm:$0xff]
    %v2601 = vld [vmem:[%s8 + $0x38] sm:$0xff]
    %v2602 = vld [vmem:[%s8 + $0x40] sm:$0xff]
    %v2603 = vld [vmem:[%s8 + $0x48] sm:$0xff]
    %v2604 = vld [vmem:[%s8 + $0x50] sm:$0xff]
    %v2605 = vld [vmem:[%s8 + $0x58] sm:$0xff]
    %v2606 = vld [vmem:[%s8 + $0x60] sm:$0xff]
    %v2607 = vld [vmem:[%s8 + $0x68] sm:$0xff]
    %v2608 = vld [vmem:[%s8 + $0x70] sm:$0xff]
    %v2609 = vld [vmem:[%s8 + $0x78] sm:$0xff]
    %v2610 = vld [vmem:[%s8 + $0x80] sm:$0xff]
    %v2611 = vld [vmem:[%s8 + $0x88] sm:$0xff]
    %v2612 = vld [vmem:[%s8 + $0x90] sm:$0xff]
    %v2613 = vld [vmem:[%s8 + $0x98] sm:$0xff]
    %v2614 = vld [vmem:[%s8 + $0xa0] sm:$0xff]
    %v2615 = vld [vmem:[%s8 + $0xa8] sm:$0xff]
    %v2616 = vld [vmem:[%s8 + $0xb0] sm:$0xff]
    %v2617 = vld [vmem:[%s8 + $0xb8] sm:$0xff]
    %v2618 = vld [vmem:[%s8 + $0xc0] sm:$0xff]
    %v2619 = vld [vmem:[%s8 + $0xc8] sm:$0xff]
    %v2620 = vld [vmem:[%s8 + $0xd0] sm:$0xff]
    %v2621 = vld [vmem:[%s8 + $0xd8] sm:$0xff]
    %v2622 = vld [vmem:[%s8 + $0xe0] sm:$0xff]
    %v2623 = vld [vmem:[%s8 + $0xe8] sm:$0xff]
    %v2624 = vld [vmem:[%s8 + $0xf0] sm:$0xff]
    %v2625 = vld [vmem:[%s8 + $0xf8] sm:$0xff]
    %v2626 = vld [vmem:[%s11] sm:$0xff]
    %v2627 = vld [vmem:[%s11 + $0x8] sm:$0xff]
    %v2630 = vlaneseq
    %v2631 = vshrl.u32 %v2630, 7
    %v2632 = vsub.s32 0, %v2631
    %v2633 = vrot.slane %v2626, %v2632
    %v2634 = vlaneseq
    %v2635 = vshrl.u32 %v2634, 7
    %v2636 = vsub.s32 1, %v2635
    %v2637 = vrot.slane %v2626, %v2636
    %v2638 = vlaneseq
    %v2639 = vshrl.u32 %v2638, 7
    %v2640 = vsub.s32 2, %v2639
    %v2641 = vrot.slane %v2626, %v2640
    %v2642 = vlaneseq
    %v2643 = vshrl.u32 %v2642, 7
    %v2644 = vsub.s32 3, %v2643
    %v2645 = vrot.slane %v2626, %v2644
    %v2646 = vlaneseq
    %v2647 = vshrl.u32 %v2646, 7
    %v2648 = vsub.s32 4, %v2647
    %v2649 = vrot.slane %v2626, %v2648
    %v2650 = vlaneseq
    %v2651 = vshrl.u32 %v2650, 7
    %v2652 = vsub.s32 5, %v2651
    %v2653 = vrot.slane %v2626, %v2652
    %v2654 = vlaneseq
    %v2655 = vshrl.u32 %v2654, 7
    %v2656 = vsub.s32 6, %v2655
    %v2657 = vrot.slane %v2626, %v2656
    %v2658 = vlaneseq
    %v2659 = vshrl.u32 %v2658, 7
    %v2660 = vsub.s32 7, %v2659
    %v2661 = vrot.slane %v2626, %v2660
    %v2662 = vlaneseq
    %v2663 = vshrl.u32 %v2662, 7
    %v2664 = vsub.s32 0, %v2663
    %v2665 = vrot.slane %v2627, %v2664
    %v2666 = vlaneseq
    %v2667 = vshrl.u32 %v2666, 7
    %v2668 = vsub.s32 1, %v2667
    %v2669 = vrot.slane %v2627, %v2668
    %v2670 = vlaneseq
    %v2671 = vshrl.u32 %v2670, 7
    %v2672 = vsub.s32 2, %v2671
    %v2673 = vrot.slane %v2627, %v2672
    %v2674 = vlaneseq
    %v2675 = vshrl.u32 %v2674, 7
    %v2676 = vsub.s32 3, %v2675
    %v2677 = vrot.slane %v2627, %v2676
    %v2678 = vlaneseq
    %v2679 = vshrl.u32 %v2678, 7
    %v2680 = vsub.s32 4, %v2679
    %v2681 = vrot.slane %v2627, %v2680
    %v2682 = vlaneseq
    %v2683 = vshrl.u32 %v2682, 7
    %v2684 = vsub.s32 5, %v2683
    %v2685 = vrot.slane %v2627, %v2684
    %v2686 = vlaneseq
    %v2687 = vshrl.u32 %v2686, 7
    %v2688 = vsub.s32 6, %v2687
    %v2689 = vrot.slane %v2627, %v2688
    %v2690 = vlaneseq
    %v2691 = vshrl.u32 %v2690, 7
    %v2692 = vsub.s32 7, %v2691
    %v2693 = vrot.slane %v2627, %v2692
    %v2742 = vunpack.c.l.b16 %v2594
    %v2743 = vunpack.c.h.b16 %v2594
    %v2744 = vunpack.c.l.b16 %v2595
    %v2745 = vunpack.c.h.b16 %v2595
    %v2746 = vunpack.c.l.b16 %v2596
    %v2747 = vunpack.c.h.b16 %v2596
    %v2748 = vunpack.c.l.b16 %v2597
    %v2749 = vunpack.c.h.b16 %v2597
    %v2750 = vunpack.c.l.b16 %v2598
    %v2751 = vunpack.c.h.b16 %v2598
    %v2752 = vunpack.c.l.b16 %v2599
    %v2753 = vunpack.c.h.b16 %v2599
    %v2754 = vunpack.c.l.b16 %v2600
    %v2755 = vunpack.c.h.b16 %v2600
    %v2756 = vunpack.c.l.b16 %v2601
    %v2757 = vunpack.c.h.b16 %v2601
    %v2758 = vunpack.c.l.b16 %v2602
    %v2759 = vunpack.c.h.b16 %v2602
    %v2760 = vunpack.c.l.b16 %v2603
    %v2761 = vunpack.c.h.b16 %v2603
    %v2762 = vunpack.c.l.b16 %v2604
    %v2763 = vunpack.c.h.b16 %v2604
    %v2764 = vunpack.c.l.b16 %v2605
    %v2765 = vunpack.c.h.b16 %v2605
    %v2766 = vunpack.c.l.b16 %v2606
    %v2767 = vunpack.c.h.b16 %v2606
    %v2768 = vunpack.c.l.b16 %v2607
    %v2769 = vunpack.c.h.b16 %v2607
    %v2770 = vunpack.c.l.b16 %v2608
    %v2771 = vunpack.c.h.b16 %v2608
    %v2772 = vunpack.c.l.b16 %v2609
    %v2773 = vunpack.c.h.b16 %v2609
    %v2774 = vunpack.c.l.b16 %v2610
    %v2775 = vunpack.c.h.b16 %v2610
    %v2776 = vunpack.c.l.b16 %v2611
    %v2777 = vunpack.c.h.b16 %v2611
    %v2778 = vunpack.c.l.b16 %v2612
    %v2779 = vunpack.c.h.b16 %v2612
    %v2780 = vunpack.c.l.b16 %v2613
    %v2781 = vunpack.c.h.b16 %v2613
    %v2782 = vunpack.c.l.b16 %v2614
    %v2783 = vunpack.c.h.b16 %v2614
    %v2784 = vunpack.c.l.b16 %v2615
    %v2785 = vunpack.c.h.b16 %v2615
    %v2786 = vunpack.c.l.b16 %v2616
    %v2787 = vunpack.c.h.b16 %v2616
    %v2788 = vunpack.c.l.b16 %v2617
    %v2789 = vunpack.c.h.b16 %v2617
    %v2790 = vunpack.c.l.b16 %v2618
    %v2791 = vunpack.c.h.b16 %v2618
    %v2792 = vunpack.c.l.b16 %v2619
    %v2793 = vunpack.c.h.b16 %v2619
    %v2794 = vunpack.c.l.b16 %v2620
    %v2795 = vunpack.c.h.b16 %v2620
    %v2796 = vunpack.c.l.b16 %v2621
    %v2797 = vunpack.c.h.b16 %v2621
    %v2798 = vunpack.c.l.b16 %v2622
    %v2799 = vunpack.c.h.b16 %v2622
    %v2800 = vunpack.c.l.b16 %v2623
    %v2801 = vunpack.c.h.b16 %v2623
    %v2802 = vunpack.c.l.b16 %v2624
    %v2803 = vunpack.c.h.b16 %v2624
    %v2804 = vunpack.c.l.b16 %v2625
    %v2805 = vunpack.c.h.b16 %v2625
    %v2806 = vpack.c.b16 %v2758, %v2742
    %v2807 = vpack.c.b16 %v2759, %v2743
    %v2808 = vpack.c.b16 %v2760, %v2744
    %v2809 = vpack.c.b16 %v2761, %v2745
    %v2810 = vpack.c.b16 %v2762, %v2746
    %v2811 = vpack.c.b16 %v2763, %v2747
    %v2812 = vpack.c.b16 %v2764, %v2748
    %v2813 = vpack.c.b16 %v2765, %v2749
    %v2814 = vpack.c.b16 %v2766, %v2750
    %v2815 = vpack.c.b16 %v2767, %v2751
    %v2816 = vpack.c.b16 %v2768, %v2752
    %v2817 = vpack.c.b16 %v2769, %v2753
    %v2818 = vpack.c.b16 %v2770, %v2754
    %v2819 = vpack.c.b16 %v2771, %v2755
    %v2820 = vpack.c.b16 %v2772, %v2756
    %v2821 = vpack.c.b16 %v2773, %v2757
    %v2822 = vpack.c.b16 %v2790, %v2774
    %v2823 = vpack.c.b16 %v2791, %v2775
    %v2824 = vpack.c.b16 %v2792, %v2776
    %v2825 = vpack.c.b16 %v2793, %v2777
    %v2826 = vpack.c.b16 %v2794, %v2778
    %v2827 = vpack.c.b16 %v2795, %v2779
    %v2828 = vpack.c.b16 %v2796, %v2780
    %v2829 = vpack.c.b16 %v2797, %v2781
    %v2830 = vpack.c.b16 %v2798, %v2782
    %v2831 = vpack.c.b16 %v2799, %v2783
    %v2832 = vpack.c.b16 %v2800, %v2784
    %v2833 = vpack.c.b16 %v2801, %v2785
    %v2834 = vpack.c.b16 %v2802, %v2786
    %v2835 = vpack.c.b16 %v2803, %v2787
    %v2836 = vpack.c.b16 %v2804, %v2788
    %v2837 = vpack.c.b16 %v2805, %v2789
    %v2871 = vsel %vm114, %v2593, 0
    %2873 = vmatprep.subr.bf16.mxu0 %v2807
    %2874 = vmatpush1.bf16.msra.mxu0 %v2806
    %2875 = vmatprep.subr.bf16.mxu0 %v2823
    %2876 = vmatpush1.bf16.msra.mxu0 %v2822
    %2877 = vmatprep.subr.bf16.mxu0 0
    %2878 = vmatpush1.bf16.msra.mxu0 0
    %2879 = vmatprep.subr.bf16.mxu0 0
    %2880 = vmatpush1.bf16.msra.mxu0 0
    %2881 = vmatprep.subr.bf16.mxu0 0
    %2882 = vmatpush1.bf16.msra.mxu0 0
    %2883 = vmatprep.subr.bf16.mxu0 0
    %2884 = vmatpush1.bf16.msra.mxu0 0
    %2885 = vmatprep.subr.bf16.mxu0 0
    %2886 = vmatpush1.bf16.msra.mxu0 0
    %2887 = vmatprep.subr.bf16.mxu0 0
    %2888 = vmatpush1.bf16.msra.mxu0 0
    %2889 = vmatprep.subr.bf16.mxu0 0
    %2890 = vmatpush1.bf16.msra.mxu0 0
    %2891 = vmatprep.subr.bf16.mxu0 0
    %2892 = vmatpush1.bf16.msra.mxu0 0
    %2893 = vmatprep.subr.bf16.mxu0 0
    %2894 = vmatpush1.bf16.msra.mxu0 0
    %2895 = vmatprep.subr.bf16.mxu0 0
    %2896 = vmatpush1.bf16.msra.mxu0 0
    %2897 = vmatprep.subr.bf16.mxu0 0
    %2898 = vmatpush1.bf16.msra.mxu0 0
    %2899 = vmatprep.subr.bf16.mxu0 0
    %2900 = vmatpush1.bf16.msra.mxu0 0
    %2901 = vmatprep.subr.bf16.mxu0 0
    %2902 = vmatpush1.bf16.msra.mxu0 0
    %2903 = vmatprep.subr.bf16.mxu0 0
    %2904 = vmatpush1.bf16.msra.mxu0 0
    %2905 = vmatprep.mubr.bf16.mxu0 0
    %2906 = vmatmul.mubr.bf16.gmra.mrb[0].mxu0 %v2871
    %v2907 = vpop.f32.mrb[0].mxu0
    %v2908 = vadd.f32 %v2633, %v2907
    %v2909 = vpop.f32.mrb[0].mxu0
    %v2910 = vadd.f32 %v2637, %v2909
    %v2911 = vpop.f32.mrb[0].mxu0
    %v2912 = vadd.f32 %v2633, %v2911
    %v2913 = vpop.f32.mrb[0].mxu0
    %v2914 = vadd.f32 %v2637, %v2913
    %2915 = vdwg.mxu0
    %2916 = vmatprep.subr.bf16.mxu0 %v2809
    %2917 = vmatpush1.bf16.msra.mxu0 %v2808
    %2918 = vmatprep.subr.bf16.mxu0 %v2825
    %2919 = vmatpush1.bf16.msra.mxu0 %v2824
    %2920 = vmatprep.subr.bf16.mxu0 0
    %2921 = vmatpush1.bf16.msra.mxu0 0
    %2922 = vmatprep.subr.bf16.mxu0 0
    %2923 = vmatpush1.bf16.msra.mxu0 0
    %2924 = vmatprep.subr.bf16.mxu0 0
    %2925 = vmatpush1.bf16.msra.mxu0 0
    %2926 = vmatprep.subr.bf16.mxu0 0
    %2927 = vmatpush1.bf16.msra.mxu0 0
    %2928 = vmatprep.subr.bf16.mxu0 0
    %2929 = vmatpush1.bf16.msra.mxu0 0
    %2930 = vmatprep.subr.bf16.mxu0 0
    %2931 = vmatpush1.bf16.msra.mxu0 0
    %2932 = vmatprep.subr.bf16.mxu0 0
    %2933 = vmatpush1.bf16.msra.mxu0 0
    %2934 = vmatprep.subr.bf16.mxu0 0
    %2935 = vmatpush1.bf16.msra.mxu0 0
    %2936 = vmatprep.subr.bf16.mxu0 0
    %2937 = vmatpush1.bf16.msra.mxu0 0
    %2938 = vmatprep.subr.bf16.mxu0 0
    %2939 = vmatpush1.bf16.msra.mxu0 0
    %2940 = vmatprep.subr.bf16.mxu0 0
    %2941 = vmatpush1.bf16.msra.mxu0 0
    %2942 = vmatprep.subr.bf16.mxu0 0
    %2943 = vmatpush1.bf16.msra.mxu0 0
    %2944 = vmatprep.subr.bf16.mxu0 0
    %2945 = vmatpush1.bf16.msra.mxu0 0
    %2946 = vmatprep.subr.bf16.mxu0 0
    %2947 = vmatpush1.bf16.msra.mxu0 0
    %2948 = vmatprep.mubr.bf16.mxu0 0
    %2949 = vmatmul.mubr.bf16.gmra.mrb[0].mxu0 %v2871
    %v2950 = vpop.f32.mrb[0].mxu0
    %v2951 = vadd.f32 %v2641, %v2950
    %v2952 = vpop.f32.mrb[0].mxu0
    %v2953 = vadd.f32 %v2645, %v2952
    %v2954 = vpop.f32.mrb[0].mxu0
    %v2955 = vadd.f32 %v2641, %v2954
    %v2956 = vpop.f32.mrb[0].mxu0
    %v2957 = vadd.f32 %v2645, %v2956
    %2958 = vdwg.mxu0
    %2959 = vmatprep.subr.bf16.mxu0 %v2811
    %2960 = vmatpush1.bf16.msra.mxu0 %v2810
    %2961 = vmatprep.subr.bf16.mxu0 %v2827
    %2962 = vmatpush1.bf16.msra.mxu0 %v2826
    %2963 = vmatprep.subr.bf16.mxu0 0
    %2964 = vmatpush1.bf16.msra.mxu0 0
    %2965 = vmatprep.subr.bf16.mxu0 0
    %2966 = vmatpush1.bf16.msra.mxu0 0
    %2967 = vmatprep.subr.bf16.mxu0 0
    %2968 = vmatpush1.bf16.msra.mxu0 0
    %2969 = vmatprep.subr.bf16.mxu0 0
    %2970 = vmatpush1.bf16.msra.mxu0 0
    %2971 = vmatprep.subr.bf16.mxu0 0
    %2972 = vmatpush1.bf16.msra.mxu0 0
    %2973 = vmatprep.subr.bf16.mxu0 0
    %2974 = vmatpush1.bf16.msra.mxu0 0
    %2975 = vmatprep.subr.bf16.mxu0 0
    %2976 = vmatpush1.bf16.msra.mxu0 0
    %2977 = vmatprep.subr.bf16.mxu0 0
    %2978 = vmatpush1.bf16.msra.mxu0 0
    %2979 = vmatprep.subr.bf16.mxu0 0
    %2980 = vmatpush1.bf16.msra.mxu0 0
    %2981 = vmatprep.subr.bf16.mxu0 0
    %2982 = vmatpush1.bf16.msra.mxu0 0
    %2983 = vmatprep.subr.bf16.mxu0 0
    %2984 = vmatpush1.bf16.msra.mxu0 0
    %2985 = vmatprep.subr.bf16.mxu0 0
    %2986 = vmatpush1.bf16.msra.mxu0 0
    %2987 = vmatprep.subr.bf16.mxu0 0
    %2988 = vmatpush1.bf16.msra.mxu0 0
    %2989 = vmatprep.subr.bf16.mxu0 0
    %2990 = vmatpush1.bf16.msra.mxu0 0
    %2991 = vmatprep.mubr.bf16.mxu0 0
    %2992 = vmatmul.mubr.bf16.gmra.mrb[0].mxu0 %v2871
    %v2993 = vpop.f32.mrb[0].mxu0
    %v2994 = vadd.f32 %v2649, %v2993
    %v2995 = vpop.f32.mrb[0].mxu0
    %v2996 = vadd.f32 %v2653, %v2995
    %v2997 = vpop.f32.mrb[0].mxu0
    %v2998 = vadd.f32 %v2649, %v2997
    %v2999 = vpop.f32.mrb[0].mxu0
    %v3000 = vadd.f32 %v2653, %v2999
    %3001 = vdwg.mxu0
    %3002 = vmatprep.subr.bf16.mxu0 %v2813
    %3003 = vmatpush1.bf16.msra.mxu0 %v2812
    %3004 = vmatprep.subr.bf16.mxu0 %v2829
    %3005 = vmatpush1.bf16.msra.mxu0 %v2828
    %3006 = vmatprep.subr.bf16.mxu0 0
    %3007 = vmatpush1.bf16.msra.mxu0 0
    %3008 = vmatprep.subr.bf16.mxu0 0
    %3009 = vmatpush1.bf16.msra.mxu0 0
    %3010 = vmatprep.subr.bf16.mxu0 0
    %3011 = vmatpush1.bf16.msra.mxu0 0
    %3012 = vmatprep.subr.bf16.mxu0 0
    %3013 = vmatpush1.bf16.msra.mxu0 0
    %3014 = vmatprep.subr.bf16.mxu0 0
    %3015 = vmatpush1.bf16.msra.mxu0 0
    %3016 = vmatprep.subr.bf16.mxu0 0
    %3017 = vmatpush1.bf16.msra.mxu0 0
    %3018 = vmatprep.subr.bf16.mxu0 0
    %3019 = vmatpush1.bf16.msra.mxu0 0
    %3020 = vmatprep.subr.bf16.mxu0 0
    %3021 = vmatpush1.bf16.msra.mxu0 0
    %3022 = vmatprep.subr.bf16.mxu0 0
    %3023 = vmatpush1.bf16.msra.mxu0 0
    %3024 = vmatprep.subr.bf16.mxu0 0
    %3025 = vmatpush1.bf16.msra.mxu0 0
    %3026 = vmatprep.subr.bf16.mxu0 0
    %3027 = vmatpush1.bf16.msra.mxu0 0
    %3028 = vmatprep.subr.bf16.mxu0 0
    %3029 = vmatpush1.bf16.msra.mxu0 0
    %3030 = vmatprep.subr.bf16.mxu0 0
    %3031 = vmatpush1.bf16.msra.mxu0 0
    %3032 = vmatprep.subr.bf16.mxu0 0
    %3033 = vmatpush1.bf16.msra.mxu0 0
    %3034 = vmatprep.mubr.bf16.mxu0 0
    %3035 = vmatmul.mubr.bf16.gmra.mrb[0].mxu0 %v2871
    %v3036 = vpop.f32.mrb[0].mxu0
    %v3037 = vadd.f32 %v2657, %v3036
    %v3038 = vpop.f32.mrb[0].mxu0
    %v3039 = vadd.f32 %v2661, %v3038
    %v3040 = vpop.f32.mrb[0].mxu0
    %v3041 = vadd.f32 %v2657, %v3040
    %v3042 = vpop.f32.mrb[0].mxu0
    %v3043 = vadd.f32 %v2661, %v3042
    %3044 = vdwg.mxu0
    %3045 = vmatprep.subr.bf16.mxu0 %v2815
    %3046 = vmatpush1.bf16.msra.mxu0 %v2814
    %3047 = vmatprep.subr.bf16.mxu0 %v2831
    %3048 = vmatpush1.bf16.msra.mxu0 %v2830
    %3049 = vmatprep.subr.bf16.mxu0 0
    %3050 = vmatpush1.bf16.msra.mxu0 0
    %3051 = vmatprep.subr.bf16.mxu0 0
    %3052 = vmatpush1.bf16.msra.mxu0 0
    %3053 = vmatprep.subr.bf16.mxu0 0
    %3054 = vmatpush1.bf16.msra.mxu0 0
    %3055 = vmatprep.subr.bf16.mxu0 0
    %3056 = vmatpush1.bf16.msra.mxu0 0
    %3057 = vmatprep.subr.bf16.mxu0 0
    %3058 = vmatpush1.bf16.msra.mxu0 0
    %3059 = vmatprep.subr.bf16.mxu0 0
    %3060 = vmatpush1.bf16.msra.mxu0 0
    %3061 = vmatprep.subr.bf16.mxu0 0
    %3062 = vmatpush1.bf16.msra.mxu0 0
    %3063 = vmatprep.subr.bf16.mxu0 0
    %3064 = vmatpush1.bf16.msra.mxu0 0
    %3065 = vmatprep.subr.bf16.mxu0 0
    %3066 = vmatpush1.bf16.msra.mxu0 0
    %3067 = vmatprep.subr.bf16.mxu0 0
    %3068 = vmatpush1.bf16.msra.mxu0 0
    %3069 = vmatprep.subr.bf16.mxu0 0
    %3070 = vmatpush1.bf16.msra.mxu0 0
    %3071 = vmatprep.subr.bf16.mxu0 0
    %3072 = vmatpush1.bf16.msra.mxu0 0
    %3073 = vmatprep.subr.bf16.mxu0 0
    %3074 = vmatpush1.bf16.msra.mxu0 0
    %3075 = vmatprep.subr.bf16.mxu0 0
    %3076 = vmatpush1.bf16.msra.mxu0 0
    %3077 = vmatprep.mubr.bf16.mxu0 0
    %3078 = vmatmul.mubr.bf16.gmra.mrb[0].mxu0 %v2871
    %v3079 = vpop.f32.mrb[0].mxu0
    %v3080 = vadd.f32 %v2665, %v3079
    %v3081 = vpop.f32.mrb[0].mxu0
    %v3082 = vadd.f32 %v2669, %v3081
    %v3083 = vpop.f32.mrb[0].mxu0
    %v3084 = vadd.f32 %v2665, %v3083
    %v3085 = vpop.f32.mrb[0].mxu0
    %v3086 = vadd.f32 %v2669, %v3085
    %3087 = vdwg.mxu0
    %3088 = vmatprep.subr.bf16.mxu0 %v2817
    %3089 = vmatpush1.bf16.msra.mxu0 %v2816
    %3090 = vmatprep.subr.bf16.mxu0 %v2833
    %3091 = vmatpush1.bf16.msra.mxu0 %v2832
    %3092 = vmatprep.subr.bf16.mxu0 0
    %3093 = vmatpush1.bf16.msra.mxu0 0
    %3094 = vmatprep.subr.bf16.mxu0 0
    %3095 = vmatpush1.bf16.msra.mxu0 0
    %3096 = vmatprep.subr.bf16.mxu0 0
    %3097 = vmatpush1.bf16.msra.mxu0 0
    %3098 = vmatprep.subr.bf16.mxu0 0
    %3099 = vmatpush1.bf16.msra.mxu0 0
    %3100 = vmatprep.subr.bf16.mxu0 0
    %3101 = vmatpush1.bf16.msra.mxu0 0
    %3102 = vmatprep.subr.bf16.mxu0 0
    %3103 = vmatpush1.bf16.msra.mxu0 0
    %3104 = vmatprep.subr.bf16.mxu0 0
    %3105 = vmatpush1.bf16.msra.mxu0 0
    %3106 = vmatprep.subr.bf16.mxu0 0
    %3107 = vmatpush1.bf16.msra.mxu0 0
    %3108 = vmatprep.subr.bf16.mxu0 0
    %3109 = vmatpush1.bf16.msra.mxu0 0
    %3110 = vmatprep.subr.bf16.mxu0 0
    %3111 = vmatpush1.bf16.msra.mxu0 0
    %3112 = vmatprep.subr.bf16.mxu0 0
    %3113 = vmatpush1.bf16.msra.mxu0 0
    %3114 = vmatprep.subr.bf16.mxu0 0
    %3115 = vmatpush1.bf16.msra.mxu0 0
    %3116 = vmatprep.subr.bf16.mxu0 0
    %3117 = vmatpush1.bf16.msra.mxu0 0
    %3118 = vmatprep.subr.bf16.mxu0 0
    %3119 = vmatpush1.bf16.msra.mxu0 0
    %3120 = vmatprep.mubr.bf16.mxu0 0
    %3121 = vmatmul.mubr.bf16.gmra.mrb[0].mxu0 %v2871
    %v3122 = vpop.f32.mrb[0].mxu0
    %v3123 = vadd.f32 %v2673, %v3122
    %v3124 = vpop.f32.mrb[0].mxu0
    %v3125 = vadd.f32 %v2677, %v3124
    %v3126 = vpop.f32.mrb[0].mxu0
    %v3127 = vadd.f32 %v2673, %v3126
    %v3128 = vpop.f32.mrb[0].mxu0
    %v3129 = vadd.f32 %v2677, %v3128
    %3130 = vdwg.mxu0
    %3131 = vmatprep.subr.bf16.mxu0 %v2819
    %3132 = vmatpush1.bf16.msra.mxu0 %v2818
    %3133 = vmatprep.subr.bf16.mxu0 %v2835
    %3134 = vmatpush1.bf16.msra.mxu0 %v2834
    %3135 = vmatprep.subr.bf16.mxu0 0
    %3136 = vmatpush1.bf16.msra.mxu0 0
    %3137 = vmatprep.subr.bf16.mxu0 0
    %3138 = vmatpush1.bf16.msra.mxu0 0
    %3139 = vmatprep.subr.bf16.mxu0 0
    %3140 = vmatpush1.bf16.msra.mxu0 0
    %3141 = vmatprep.subr.bf16.mxu0 0
    %3142 = vmatpush1.bf16.msra.mxu0 0
    %3143 = vmatprep.subr.bf16.mxu0 0
    %3144 = vmatpush1.bf16.msra.mxu0 0
    %3145 = vmatprep.subr.bf16.mxu0 0
    %3146 = vmatpush1.bf16.msra.mxu0 0
    %3147 = vmatprep.subr.bf16.mxu0 0
    %3148 = vmatpush1.bf16.msra.mxu0 0
    %3149 = vmatprep.subr.bf16.mxu0 0
    %3150 = vmatpush1.bf16.msra.mxu0 0
    %3151 = vmatprep.subr.bf16.mxu0 0
    %3152 = vmatpush1.bf16.msra.mxu0 0
    %3153 = vmatprep.subr.bf16.mxu0 0
    %3154 = vmatpush1.bf16.msra.mxu0 0
    %3155 = vmatprep.subr.bf16.mxu0 0
    %3156 = vmatpush1.bf16.msra.mxu0 0
    %3157 = vmatprep.subr.bf16.mxu0 0
    %3158 = vmatpush1.bf16.msra.mxu0 0
    %3159 = vmatprep.subr.bf16.mxu0 0
    %3160 = vmatpush1.bf16.msra.mxu0 0
    %3161 = vmatprep.subr.bf16.mxu0 0
    %3162 = vmatpush1.bf16.msra.mxu0 0
    %3163 = vmatprep.mubr.bf16.mxu0 0
    %3164 = vmatmul.mubr.bf16.gmra.mrb[0].mxu0 %v2871
    %v3165 = vpop.f32.mrb[0].mxu0
    %v3166 = vadd.f32 %v2681, %v3165
    %v3167 = vpop.f32.mrb[0].mxu0
    %v3168 = vadd.f32 %v2685, %v3167
    %v3169 = vpop.f32.mrb[0].mxu0
    %v3170 = vadd.f32 %v2681, %v3169
    %v3171 = vpop.f32.mrb[0].mxu0
    %v3172 = vadd.f32 %v2685, %v3171
    %3173 = vdwg.mxu0
    %3174 = vmatprep.subr.bf16.mxu0 %v2821
    %3175 = vmatpush1.bf16.msra.mxu0 %v2820
    %3176 = vmatprep.subr.bf16.mxu0 %v2837
    %3177 = vmatpush1.bf16.msra.mxu0 %v2836
    %3178 = vmatprep.subr.bf16.mxu0 0
    %3179 = vmatpush1.bf16.msra.mxu0 0
    %3180 = vmatprep.subr.bf16.mxu0 0
    %3181 = vmatpush1.bf16.msra.mxu0 0
    %3182 = vmatprep.subr.bf16.mxu0 0
    %3183 = vmatpush1.bf16.msra.mxu0 0
    %3184 = vmatprep.subr.bf16.mxu0 0
    %3185 = vmatpush1.bf16.msra.mxu0 0
    %3186 = vmatprep.subr.bf16.mxu0 0
    %3187 = vmatpush1.bf16.msra.mxu0 0
    %3188 = vmatprep.subr.bf16.mxu0 0
    %3189 = vmatpush1.bf16.msra.mxu0 0
    %3190 = vmatprep.subr.bf16.mxu0 0
    %3191 = vmatpush1.bf16.msra.mxu0 0
    %3192 = vmatprep.subr.bf16.mxu0 0
    %3193 = vmatpush1.bf16.msra.mxu0 0
    %3194 = vmatprep.subr.bf16.mxu0 0
    %3195 = vmatpush1.bf16.msra.mxu0 0
    %3196 = vmatprep.subr.bf16.mxu0 0
    %3197 = vmatpush1.bf16.msra.mxu0 0
    %3198 = vmatprep.subr.bf16.mxu0 0
    %3199 = vmatpush1.bf16.msra.mxu0 0
    %3200 = vmatprep.subr.bf16.mxu0 0
    %3201 = vmatpush1.bf16.msra.mxu0 0
    %3202 = vmatprep.subr.bf16.mxu0 0
    %3203 = vmatpush1.bf16.msra.mxu0 0
    %3204 = vmatprep.subr.bf16.mxu0 0
    %3205 = vmatpush1.bf16.msra.mxu0 0
    %3206 = vmatprep.mubr.bf16.mxu0 0
    %3207 = vmatmul.mubr.bf16.gmra.mrb[0].mxu0 %v2871
    %v3208 = vpop.f32.mrb[0].mxu0
    %v3209 = vadd.f32 %v2689, %v3208
    %v3210 = vpop.f32.mrb[0].mxu0
    %v3211 = vadd.f32 %v2693, %v3210
    %v3212 = vpop.f32.mrb[0].mxu0
    %v3213 = vadd.f32 %v2689, %v3212
    %v3214 = vpop.f32.mrb[0].mxu0
    %v3215 = vadd.f32 %v2693, %v3214
    %3216 = vdwg.mxu0
    %v3217 = vmax.f32 %v2908, 0.0
    %v3218 = vmax.f32 %v2910, 0.0
    %v3219 = vmax.f32 %v2951, 0.0
    %v3220 = vmax.f32 %v2953, 0.0
    %v3221 = vmax.f32 %v2994, 0.0
    %v3222 = vmax.f32 %v2996, 0.0
    %v3223 = vmax.f32 %v3037, 0.0
    %v3224 = vmax.f32 %v3039, 0.0
    %v3225 = vmax.f32 %v3080, 0.0
    %v3226 = vmax.f32 %v3082, 0.0
    %v3227 = vmax.f32 %v3123, 0.0
    %v3228 = vmax.f32 %v3125, 0.0
    %v3229 = vmax.f32 %v3166, 0.0
    %v3230 = vmax.f32 %v3168, 0.0
    %v3231 = vmax.f32 %v3209, 0.0
    %v3232 = vmax.f32 %v3211, 0.0
    %v3233 = vmax.f32 %v2912, 0.0
    %v3234 = vmax.f32 %v2914, 0.0
    %v3235 = vmax.f32 %v2955, 0.0
    %v3236 = vmax.f32 %v2957, 0.0
    %v3237 = vmax.f32 %v2998, 0.0
    %v3238 = vmax.f32 %v3000, 0.0
    %v3239 = vmax.f32 %v3041, 0.0
    %v3240 = vmax.f32 %v3043, 0.0
    %v3241 = vmax.f32 %v3084, 0.0
    %v3242 = vmax.f32 %v3086, 0.0
    %v3243 = vmax.f32 %v3127, 0.0
    %v3244 = vmax.f32 %v3129, 0.0
    %v3245 = vmax.f32 %v3170, 0.0
    %v3246 = vmax.f32 %v3172, 0.0
    %v3247 = vmax.f32 %v3213, 0.0
    %v3248 = vmax.f32 %v3215, 0.0
    %v3249 = vpack.c.bf16 %v3233, %v3217
    %v3250 = vpack.c.bf16 %v3234, %v3218
    %v3251 = vpack.c.bf16 %v3235, %v3219
    %v3252 = vpack.c.bf16 %v3236, %v3220
    %v3253 = vpack.c.bf16 %v3237, %v3221
    %v3254 = vpack.c.bf16 %v3238, %v3222
    %v3255 = vpack.c.bf16 %v3239, %v3223
    %v3256 = vpack.c.bf16 %v3240, %v3224
    %v3257 = vpack.c.bf16 %v3241, %v3225
    %v3258 = vpack.c.bf16 %v3242, %v3226
    %v3259 = vpack.c.bf16 %v3243, %v3227
    %v3260 = vpack.c.bf16 %v3244, %v3228
    %v3261 = vpack.c.bf16 %v3245, %v3229
    %v3262 = vpack.c.bf16 %v3246, %v3230
    %v3263 = vpack.c.bf16 %v3247, %v3231
    %v3264 = vpack.c.bf16 %v3248, %v3232
    %v3265 = vld [vmem:[%s9] sm:$0xf]
    %v3266 = vld [vmem:[%s9 + $0x4] sm:$0xf]
    %v3267 = vld [vmem:[%s9 + $0x8] sm:$0xf]
    %v3268 = vld [vmem:[%s9 + $0xc] sm:$0xf]
    %v3269 = vld [vmem:[%s9 + $0x10] sm:$0xf]
    %v3270 = vld [vmem:[%s9 + $0x14] sm:$0xf]
    %v3271 = vld [vmem:[%s9 + $0x18] sm:$0xf]
    %v3272 = vld [vmem:[%s9 + $0x1c] sm:$0xf]
    %v3273 = vld [vmem:[%s9 + $0x20] sm:$0xf]
    %v3274 = vld [vmem:[%s9 + $0x24] sm:$0xf]
    %v3275 = vld [vmem:[%s9 + $0x28] sm:$0xf]
    %v3276 = vld [vmem:[%s9 + $0x2c] sm:$0xf]
    %v3277 = vld [vmem:[%s9 + $0x30] sm:$0xf]
    %v3278 = vld [vmem:[%s9 + $0x34] sm:$0xf]
    %v3279 = vld [vmem:[%s9 + $0x38] sm:$0xf]
    %v3280 = vld [vmem:[%s9 + $0x3c] sm:$0xf]
    %v3281 = vld [vmem:[%s9 + $0x40] sm:$0xf]
    %v3282 = vld [vmem:[%s9 + $0x44] sm:$0xf]
    %v3283 = vld [vmem:[%s9 + $0x48] sm:$0xf]
    %v3284 = vld [vmem:[%s9 + $0x4c] sm:$0xf]
    %v3285 = vld [vmem:[%s9 + $0x50] sm:$0xf]
    %v3286 = vld [vmem:[%s9 + $0x54] sm:$0xf]
    %v3287 = vld [vmem:[%s9 + $0x58] sm:$0xf]
    %v3288 = vld [vmem:[%s9 + $0x5c] sm:$0xf]
    %v3289 = vld [vmem:[%s9 + $0x60] sm:$0xf]
    %v3290 = vld [vmem:[%s9 + $0x64] sm:$0xf]
    %v3291 = vld [vmem:[%s9 + $0x68] sm:$0xf]
    %v3292 = vld [vmem:[%s9 + $0x6c] sm:$0xf]
    %v3293 = vld [vmem:[%s9 + $0x70] sm:$0xf]
    %v3294 = vld [vmem:[%s9 + $0x74] sm:$0xf]
    %v3295 = vld [vmem:[%s9 + $0x78] sm:$0xf]
    %v3296 = vld [vmem:[%s9 + $0x7c] sm:$0xf]
    %v3297 = vld [vmem:[%s9 + $0x80] sm:$0xf]
    %v3298 = vld [vmem:[%s9 + $0x84] sm:$0xf]
    %v3299 = vld [vmem:[%s9 + $0x88] sm:$0xf]
    %v3300 = vld [vmem:[%s9 + $0x8c] sm:$0xf]
    %v3301 = vld [vmem:[%s9 + $0x90] sm:$0xf]
    %v3302 = vld [vmem:[%s9 + $0x94] sm:$0xf]
    %v3303 = vld [vmem:[%s9 + $0x98] sm:$0xf]
    %v3304 = vld [vmem:[%s9 + $0x9c] sm:$0xf]
    %v3305 = vld [vmem:[%s9 + $0xa0] sm:$0xf]
    %v3306 = vld [vmem:[%s9 + $0xa4] sm:$0xf]
    %v3307 = vld [vmem:[%s9 + $0xa8] sm:$0xf]
    %v3308 = vld [vmem:[%s9 + $0xac] sm:$0xf]
    %v3309 = vld [vmem:[%s9 + $0xb0] sm:$0xf]
    %v3310 = vld [vmem:[%s9 + $0xb4] sm:$0xf]
    %v3311 = vld [vmem:[%s9 + $0xb8] sm:$0xf]
    %v3312 = vld [vmem:[%s9 + $0xbc] sm:$0xf]
    %v3313 = vld [vmem:[%s9 + $0xc0] sm:$0xf]
    %v3314 = vld [vmem:[%s9 + $0xc4] sm:$0xf]
    %v3315 = vld [vmem:[%s9 + $0xc8] sm:$0xf]
    %v3316 = vld [vmem:[%s9 + $0xcc] sm:$0xf]
    %v3317 = vld [vmem:[%s9 + $0xd0] sm:$0xf]
    %v3318 = vld [vmem:[%s9 + $0xd4] sm:$0xf]
    %v3319 = vld [vmem:[%s9 + $0xd8] sm:$0xf]
    %v3320 = vld [vmem:[%s9 + $0xdc] sm:$0xf]
    %v3321 = vld [vmem:[%s9 + $0xe0] sm:$0xf]
    %v3322 = vld [vmem:[%s9 + $0xe4] sm:$0xf]
    %v3323 = vld [vmem:[%s9 + $0xe8] sm:$0xf]
    %v3324 = vld [vmem:[%s9 + $0xec] sm:$0xf]
    %v3325 = vld [vmem:[%s9 + $0xf0] sm:$0xf]
    %v3326 = vld [vmem:[%s9 + $0xf4] sm:$0xf]
    %v3327 = vld [vmem:[%s9 + $0xf8] sm:$0xf]
    %v3328 = vld [vmem:[%s9 + $0xfc] sm:$0xf]
    %v3329 = vld [vmem:[%s9 + $0x100] sm:$0xf]
    %v3330 = vld [vmem:[%s9 + $0x104] sm:$0xf]
    %v3331 = vld [vmem:[%s9 + $0x108] sm:$0xf]
    %v3332 = vld [vmem:[%s9 + $0x10c] sm:$0xf]
    %v3333 = vld [vmem:[%s9 + $0x110] sm:$0xf]
    %v3334 = vld [vmem:[%s9 + $0x114] sm:$0xf]
    %v3335 = vld [vmem:[%s9 + $0x118] sm:$0xf]
    %v3336 = vld [vmem:[%s9 + $0x11c] sm:$0xf]
    %v3337 = vld [vmem:[%s9 + $0x120] sm:$0xf]
    %v3338 = vld [vmem:[%s9 + $0x124] sm:$0xf]
    %v3339 = vld [vmem:[%s9 + $0x128] sm:$0xf]
    %v3340 = vld [vmem:[%s9 + $0x12c] sm:$0xf]
    %v3341 = vld [vmem:[%s9 + $0x130] sm:$0xf]
    %v3342 = vld [vmem:[%s9 + $0x134] sm:$0xf]
    %v3343 = vld [vmem:[%s9 + $0x138] sm:$0xf]
    %v3344 = vld [vmem:[%s9 + $0x13c] sm:$0xf]
    %v3345 = vld [vmem:[%s9 + $0x140] sm:$0xf]
    %v3346 = vld [vmem:[%s9 + $0x144] sm:$0xf]
    %v3347 = vld [vmem:[%s9 + $0x148] sm:$0xf]
    %v3348 = vld [vmem:[%s9 + $0x14c] sm:$0xf]
    %v3349 = vld [vmem:[%s9 + $0x150] sm:$0xf]
    %v3350 = vld [vmem:[%s9 + $0x154] sm:$0xf]
    %v3351 = vld [vmem:[%s9 + $0x158] sm:$0xf]
    %v3352 = vld [vmem:[%s9 + $0x15c] sm:$0xf]
    %v3353 = vld [vmem:[%s9 + $0x160] sm:$0xf]
    %v3354 = vld [vmem:[%s9 + $0x164] sm:$0xf]
    %v3355 = vld [vmem:[%s9 + $0x168] sm:$0xf]
    %v3356 = vld [vmem:[%s9 + $0x16c] sm:$0xf]
    %v3357 = vld [vmem:[%s9 + $0x170] sm:$0xf]
    %v3358 = vld [vmem:[%s9 + $0x174] sm:$0xf]
    %v3359 = vld [vmem:[%s9 + $0x178] sm:$0xf]
    %v3360 = vld [vmem:[%s9 + $0x17c] sm:$0xf]
    %v3361 = vld [vmem:[%s9 + $0x180] sm:$0xf]
    %v3362 = vld [vmem:[%s9 + $0x184] sm:$0xf]
    %v3363 = vld [vmem:[%s9 + $0x188] sm:$0xf]
    %v3364 = vld [vmem:[%s9 + $0x18c] sm:$0xf]
    %v3365 = vld [vmem:[%s9 + $0x190] sm:$0xf]
    %v3366 = vld [vmem:[%s9 + $0x194] sm:$0xf]
    %v3367 = vld [vmem:[%s9 + $0x198] sm:$0xf]
    %v3368 = vld [vmem:[%s9 + $0x19c] sm:$0xf]
    %v3369 = vld [vmem:[%s9 + $0x1a0] sm:$0xf]
    %v3370 = vld [vmem:[%s9 + $0x1a4] sm:$0xf]
    %v3371 = vld [vmem:[%s9 + $0x1a8] sm:$0xf]
    %v3372 = vld [vmem:[%s9 + $0x1ac] sm:$0xf]
    %v3373 = vld [vmem:[%s9 + $0x1b0] sm:$0xf]
    %v3374 = vld [vmem:[%s9 + $0x1b4] sm:$0xf]
    %v3375 = vld [vmem:[%s9 + $0x1b8] sm:$0xf]
    %v3376 = vld [vmem:[%s9 + $0x1bc] sm:$0xf]
    %v3377 = vld [vmem:[%s9 + $0x1c0] sm:$0xf]
    %v3378 = vld [vmem:[%s9 + $0x1c4] sm:$0xf]
    %v3379 = vld [vmem:[%s9 + $0x1c8] sm:$0xf]
    %v3380 = vld [vmem:[%s9 + $0x1cc] sm:$0xf]
    %v3381 = vld [vmem:[%s9 + $0x1d0] sm:$0xf]
    %v3382 = vld [vmem:[%s9 + $0x1d4] sm:$0xf]
    %v3383 = vld [vmem:[%s9 + $0x1d8] sm:$0xf]
    %v3384 = vld [vmem:[%s9 + $0x1dc] sm:$0xf]
    %v3385 = vld [vmem:[%s9 + $0x1e0] sm:$0xf]
    %v3386 = vld [vmem:[%s9 + $0x1e4] sm:$0xf]
    %v3387 = vld [vmem:[%s9 + $0x1e8] sm:$0xf]
    %v3388 = vld [vmem:[%s9 + $0x1ec] sm:$0xf]
    %v3389 = vld [vmem:[%s9 + $0x1f0] sm:$0xf]
    %v3390 = vld [vmem:[%s9 + $0x1f4] sm:$0xf]
    %v3391 = vld [vmem:[%s9 + $0x1f8] sm:$0xf]
    %v3392 = vld [vmem:[%s9 + $0x1fc] sm:$0xf]
    %v3393 = vld [vmem:[%s9 + $0x200] sm:$0xf]
    %v3394 = vld [vmem:[%s9 + $0x204] sm:$0xf]
    %v3395 = vld [vmem:[%s9 + $0x208] sm:$0xf]
    %v3396 = vld [vmem:[%s9 + $0x20c] sm:$0xf]
    %v3397 = vld [vmem:[%s9 + $0x210] sm:$0xf]
    %v3398 = vld [vmem:[%s9 + $0x214] sm:$0xf]
    %v3399 = vld [vmem:[%s9 + $0x218] sm:$0xf]
    %v3400 = vld [vmem:[%s9 + $0x21c] sm:$0xf]
    %v3401 = vld [vmem:[%s9 + $0x220] sm:$0xf]
    %v3402 = vld [vmem:[%s9 + $0x224] sm:$0xf]
    %v3403 = vld [vmem:[%s9 + $0x228] sm:$0xf]
    %v3404 = vld [vmem:[%s9 + $0x22c] sm:$0xf]
    %v3405 = vld [vmem:[%s9 + $0x230] sm:$0xf]
    %v3406 = vld [vmem:[%s9 + $0x234] sm:$0xf]
    %v3407 = vld [vmem:[%s9 + $0x238] sm:$0xf]
    %v3408 = vld [vmem:[%s9 + $0x23c] sm:$0xf]
    %v3409 = vld [vmem:[%s9 + $0x240] sm:$0xf]
    %v3410 = vld [vmem:[%s9 + $0x244] sm:$0xf]
    %v3411 = vld [vmem:[%s9 + $0x248] sm:$0xf]
    %v3412 = vld [vmem:[%s9 + $0x24c] sm:$0xf]
    %v3413 = vld [vmem:[%s9 + $0x250] sm:$0xf]
    %v3414 = vld [vmem:[%s9 + $0x254] sm:$0xf]
    %v3415 = vld [vmem:[%s9 + $0x258] sm:$0xf]
    %v3416 = vld [vmem:[%s9 + $0x25c] sm:$0xf]
    %v3417 = vld [vmem:[%s9 + $0x260] sm:$0xf]
    %v3418 = vld [vmem:[%s9 + $0x264] sm:$0xf]
    %v3419 = vld [vmem:[%s9 + $0x268] sm:$0xf]
    %v3420 = vld [vmem:[%s9 + $0x26c] sm:$0xf]
    %v3421 = vld [vmem:[%s9 + $0x270] sm:$0xf]
    %v3422 = vld [vmem:[%s9 + $0x274] sm:$0xf]
    %v3423 = vld [vmem:[%s9 + $0x278] sm:$0xf]
    %v3424 = vld [vmem:[%s9 + $0x27c] sm:$0xf]
    %v3425 = vld [vmem:[%s9 + $0x280] sm:$0xf]
    %v3426 = vld [vmem:[%s9 + $0x284] sm:$0xf]
    %v3427 = vld [vmem:[%s9 + $0x288] sm:$0xf]
    %v3428 = vld [vmem:[%s9 + $0x28c] sm:$0xf]
    %v3429 = vld [vmem:[%s9 + $0x290] sm:$0xf]
    %v3430 = vld [vmem:[%s9 + $0x294] sm:$0xf]
    %v3431 = vld [vmem:[%s9 + $0x298] sm:$0xf]
    %v3432 = vld [vmem:[%s9 + $0x29c] sm:$0xf]
    %v3433 = vld [vmem:[%s9 + $0x2a0] sm:$0xf]
    %v3434 = vld [vmem:[%s9 + $0x2a4] sm:$0xf]
    %v3435 = vld [vmem:[%s9 + $0x2a8] sm:$0xf]
    %v3436 = vld [vmem:[%s9 + $0x2ac] sm:$0xf]
    %v3437 = vld [vmem:[%s9 + $0x2b0] sm:$0xf]
    %v3438 = vld [vmem:[%s9 + $0x2b4] sm:$0xf]
    %v3439 = vld [vmem:[%s9 + $0x2b8] sm:$0xf]
    %v3440 = vld [vmem:[%s9 + $0x2bc] sm:$0xf]
    %v3441 = vld [vmem:[%s9 + $0x2c0] sm:$0xf]
    %v3442 = vld [vmem:[%s9 + $0x2c4] sm:$0xf]
    %v3443 = vld [vmem:[%s9 + $0x2c8] sm:$0xf]
    %v3444 = vld [vmem:[%s9 + $0x2cc] sm:$0xf]
    %v3445 = vld [vmem:[%s9 + $0x2d0] sm:$0xf]
    %v3446 = vld [vmem:[%s9 + $0x2d4] sm:$0xf]
    %v3447 = vld [vmem:[%s9 + $0x2d8] sm:$0xf]
    %v3448 = vld [vmem:[%s9 + $0x2dc] sm:$0xf]
    %v3449 = vld [vmem:[%s9 + $0x2e0] sm:$0xf]
    %v3450 = vld [vmem:[%s9 + $0x2e4] sm:$0xf]
    %v3451 = vld [vmem:[%s9 + $0x2e8] sm:$0xf]
    %v3452 = vld [vmem:[%s9 + $0x2ec] sm:$0xf]
    %v3453 = vld [vmem:[%s9 + $0x2f0] sm:$0xf]
    %v3454 = vld [vmem:[%s9 + $0x2f4] sm:$0xf]
    %v3455 = vld [vmem:[%s9 + $0x2f8] sm:$0xf]
    %v3456 = vld [vmem:[%s9 + $0x2fc] sm:$0xf]
    %v3457 = vld [vmem:[%s9 + $0x300] sm:$0xf]
    %v3458 = vld [vmem:[%s9 + $0x304] sm:$0xf]
    %v3459 = vld [vmem:[%s9 + $0x308] sm:$0xf]
    %v3460 = vld [vmem:[%s9 + $0x30c] sm:$0xf]
    %v3461 = vld [vmem:[%s9 + $0x310] sm:$0xf]
    %v3462 = vld [vmem:[%s9 + $0x314] sm:$0xf]
    %v3463 = vld [vmem:[%s9 + $0x318] sm:$0xf]
    %v3464 = vld [vmem:[%s9 + $0x31c] sm:$0xf]
    %v3465 = vld [vmem:[%s9 + $0x320] sm:$0xf]
    %v3466 = vld [vmem:[%s9 + $0x324] sm:$0xf]
    %v3467 = vld [vmem:[%s9 + $0x328] sm:$0xf]
    %v3468 = vld [vmem:[%s9 + $0x32c] sm:$0xf]
    %v3469 = vld [vmem:[%s9 + $0x330] sm:$0xf]
    %v3470 = vld [vmem:[%s9 + $0x334] sm:$0xf]
    %v3471 = vld [vmem:[%s9 + $0x338] sm:$0xf]
    %v3472 = vld [vmem:[%s9 + $0x33c] sm:$0xf]
    %v3473 = vld [vmem:[%s9 + $0x340] sm:$0xf]
    %v3474 = vld [vmem:[%s9 + $0x344] sm:$0xf]
    %v3475 = vld [vmem:[%s9 + $0x348] sm:$0xf]
    %v3476 = vld [vmem:[%s9 + $0x34c] sm:$0xf]
    %v3477 = vld [vmem:[%s9 + $0x350] sm:$0xf]
    %v3478 = vld [vmem:[%s9 + $0x354] sm:$0xf]
    %v3479 = vld [vmem:[%s9 + $0x358] sm:$0xf]
    %v3480 = vld [vmem:[%s9 + $0x35c] sm:$0xf]
    %v3481 = vld [vmem:[%s9 + $0x360] sm:$0xf]
    %v3482 = vld [vmem:[%s9 + $0x364] sm:$0xf]
    %v3483 = vld [vmem:[%s9 + $0x368] sm:$0xf]
    %v3484 = vld [vmem:[%s9 + $0x36c] sm:$0xf]
    %v3485 = vld [vmem:[%s9 + $0x370] sm:$0xf]
    %v3486 = vld [vmem:[%s9 + $0x374] sm:$0xf]
    %v3487 = vld [vmem:[%s9 + $0x378] sm:$0xf]
    %v3488 = vld [vmem:[%s9 + $0x37c] sm:$0xf]
    %v3489 = vld [vmem:[%s9 + $0x380] sm:$0xf]
    %v3490 = vld [vmem:[%s9 + $0x384] sm:$0xf]
    %v3491 = vld [vmem:[%s9 + $0x388] sm:$0xf]
    %v3492 = vld [vmem:[%s9 + $0x38c] sm:$0xf]
    %v3493 = vld [vmem:[%s9 + $0x390] sm:$0xf]
    %v3494 = vld [vmem:[%s9 + $0x394] sm:$0xf]
    %v3495 = vld [vmem:[%s9 + $0x398] sm:$0xf]
    %v3496 = vld [vmem:[%s9 + $0x39c] sm:$0xf]
    %v3497 = vld [vmem:[%s9 + $0x3a0] sm:$0xf]
    %v3498 = vld [vmem:[%s9 + $0x3a4] sm:$0xf]
    %v3499 = vld [vmem:[%s9 + $0x3a8] sm:$0xf]
    %v3500 = vld [vmem:[%s9 + $0x3ac] sm:$0xf]
    %v3501 = vld [vmem:[%s9 + $0x3b0] sm:$0xf]
    %v3502 = vld [vmem:[%s9 + $0x3b4] sm:$0xf]
    %v3503 = vld [vmem:[%s9 + $0x3b8] sm:$0xf]
    %v3504 = vld [vmem:[%s9 + $0x3bc] sm:$0xf]
    %v3505 = vld [vmem:[%s9 + $0x3c0] sm:$0xf]
    %v3506 = vld [vmem:[%s9 + $0x3c4] sm:$0xf]
    %v3507 = vld [vmem:[%s9 + $0x3c8] sm:$0xf]
    %v3508 = vld [vmem:[%s9 + $0x3cc] sm:$0xf]
    %v3509 = vld [vmem:[%s9 + $0x3d0] sm:$0xf]
    %v3510 = vld [vmem:[%s9 + $0x3d4] sm:$0xf]
    %v3511 = vld [vmem:[%s9 + $0x3d8] sm:$0xf]
    %v3512 = vld [vmem:[%s9 + $0x3dc] sm:$0xf]
    %v3513 = vld [vmem:[%s9 + $0x3e0] sm:$0xf]
    %v3514 = vld [vmem:[%s9 + $0x3e4] sm:$0xf]
    %v3515 = vld [vmem:[%s9 + $0x3e8] sm:$0xf]
    %v3516 = vld [vmem:[%s9 + $0x3ec] sm:$0xf]
    %v3517 = vld [vmem:[%s9 + $0x3f0] sm:$0xf]
    %v3518 = vld [vmem:[%s9 + $0x3f4] sm:$0xf]
    %v3519 = vld [vmem:[%s9 + $0x3f8] sm:$0xf]
    %v3520 = vld [vmem:[%s9 + $0x3fc] sm:$0xf]
    %v3521 = vlaneseq
    %v3522 = vshrl.u32 %v3521, 7
    %v3523 = vsub.s32 6, %v3522
    %v3524 = vrot.slane %v96, %v3523
    %v3781 = vunpack.c.l.b16 %v3265
    %v3782 = vunpack.c.l.b16 %v3266
    %v3783 = vunpack.c.l.b16 %v3267
    %v3784 = vunpack.c.l.b16 %v3268
    %v3785 = vunpack.c.l.b16 %v3269
    %v3786 = vunpack.c.l.b16 %v3270
    %v3787 = vunpack.c.l.b16 %v3271
    %v3788 = vunpack.c.l.b16 %v3272
    %v3789 = vunpack.c.l.b16 %v3273
    %v3790 = vunpack.c.l.b16 %v3274
    %v3791 = vunpack.c.l.b16 %v3275
    %v3792 = vunpack.c.l.b16 %v3276
    %v3793 = vunpack.c.l.b16 %v3277
    %v3794 = vunpack.c.l.b16 %v3278
    %v3795 = vunpack.c.l.b16 %v3279
    %v3796 = vunpack.c.l.b16 %v3280
    %v3797 = vunpack.c.l.b16 %v3281
    %v3798 = vunpack.c.l.b16 %v3282
    %v3799 = vunpack.c.l.b16 %v3283
    %v3800 = vunpack.c.l.b16 %v3284
    %v3801 = vunpack.c.l.b16 %v3285
    %v3802 = vunpack.c.l.b16 %v3286
    %v3803 = vunpack.c.l.b16 %v3287
    %v3804 = vunpack.c.l.b16 %v3288
    %v3805 = vunpack.c.l.b16 %v3289
    %v3806 = vunpack.c.l.b16 %v3290
    %v3807 = vunpack.c.l.b16 %v3291
    %v3808 = vunpack.c.l.b16 %v3292
    %v3809 = vunpack.c.l.b16 %v3293
    %v3810 = vunpack.c.l.b16 %v3294
    %v3811 = vunpack.c.l.b16 %v3295
    %v3812 = vunpack.c.l.b16 %v3296
    %v3813 = vunpack.c.l.b16 %v3297
    %v3814 = vunpack.c.l.b16 %v3298
    %v3815 = vunpack.c.l.b16 %v3299
    %v3816 = vunpack.c.l.b16 %v3300
    %v3817 = vunpack.c.l.b16 %v3301
    %v3818 = vunpack.c.l.b16 %v3302
    %v3819 = vunpack.c.l.b16 %v3303
    %v3820 = vunpack.c.l.b16 %v3304
    %v3821 = vunpack.c.l.b16 %v3305
    %v3822 = vunpack.c.l.b16 %v3306
    %v3823 = vunpack.c.l.b16 %v3307
    %v3824 = vunpack.c.l.b16 %v3308
    %v3825 = vunpack.c.l.b16 %v3309
    %v3826 = vunpack.c.l.b16 %v3310
    %v3827 = vunpack.c.l.b16 %v3311
    %v3828 = vunpack.c.l.b16 %v3312
    %v3829 = vunpack.c.l.b16 %v3313
    %v3830 = vunpack.c.l.b16 %v3314
    %v3831 = vunpack.c.l.b16 %v3315
    %v3832 = vunpack.c.l.b16 %v3316
    %v3833 = vunpack.c.l.b16 %v3317
    %v3834 = vunpack.c.l.b16 %v3318
    %v3835 = vunpack.c.l.b16 %v3319
    %v3836 = vunpack.c.l.b16 %v3320
    %v3837 = vunpack.c.l.b16 %v3321
    %v3838 = vunpack.c.l.b16 %v3322
    %v3839 = vunpack.c.l.b16 %v3323
    %v3840 = vunpack.c.l.b16 %v3324
    %v3841 = vunpack.c.l.b16 %v3325
    %v3842 = vunpack.c.l.b16 %v3326
    %v3843 = vunpack.c.l.b16 %v3327
    %v3844 = vunpack.c.l.b16 %v3328
    %v3845 = vunpack.c.l.b16 %v3329
    %v3846 = vunpack.c.l.b16 %v3330
    %v3847 = vunpack.c.l.b16 %v3331
    %v3848 = vunpack.c.l.b16 %v3332
    %v3849 = vunpack.c.l.b16 %v3333
    %v3850 = vunpack.c.l.b16 %v3334
    %v3851 = vunpack.c.l.b16 %v3335
    %v3852 = vunpack.c.l.b16 %v3336
    %v3853 = vunpack.c.l.b16 %v3337
    %v3854 = vunpack.c.l.b16 %v3338
    %v3855 = vunpack.c.l.b16 %v3339
    %v3856 = vunpack.c.l.b16 %v3340
    %v3857 = vunpack.c.l.b16 %v3341
    %v3858 = vunpack.c.l.b16 %v3342
    %v3859 = vunpack.c.l.b16 %v3343
    %v3860 = vunpack.c.l.b16 %v3344
    %v3861 = vunpack.c.l.b16 %v3345
    %v3862 = vunpack.c.l.b16 %v3346
    %v3863 = vunpack.c.l.b16 %v3347
    %v3864 = vunpack.c.l.b16 %v3348
    %v3865 = vunpack.c.l.b16 %v3349
    %v3866 = vunpack.c.l.b16 %v3350
    %v3867 = vunpack.c.l.b16 %v3351
    %v3868 = vunpack.c.l.b16 %v3352
    %v3869 = vunpack.c.l.b16 %v3353
    %v3870 = vunpack.c.l.b16 %v3354
    %v3871 = vunpack.c.l.b16 %v3355
    %v3872 = vunpack.c.l.b16 %v3356
    %v3873 = vunpack.c.l.b16 %v3357
    %v3874 = vunpack.c.l.b16 %v3358
    %v3875 = vunpack.c.l.b16 %v3359
    %v3876 = vunpack.c.l.b16 %v3360
    %v3877 = vunpack.c.l.b16 %v3361
    %v3878 = vunpack.c.l.b16 %v3362
    %v3879 = vunpack.c.l.b16 %v3363
    %v3880 = vunpack.c.l.b16 %v3364
    %v3881 = vunpack.c.l.b16 %v3365
    %v3882 = vunpack.c.l.b16 %v3366
    %v3883 = vunpack.c.l.b16 %v3367
    %v3884 = vunpack.c.l.b16 %v3368
    %v3885 = vunpack.c.l.b16 %v3369
    %v3886 = vunpack.c.l.b16 %v3370
    %v3887 = vunpack.c.l.b16 %v3371
    %v3888 = vunpack.c.l.b16 %v3372
    %v3889 = vunpack.c.l.b16 %v3373
    %v3890 = vunpack.c.l.b16 %v3374
    %v3891 = vunpack.c.l.b16 %v3375
    %v3892 = vunpack.c.l.b16 %v3376
    %v3893 = vunpack.c.l.b16 %v3377
    %v3894 = vunpack.c.l.b16 %v3378
    %v3895 = vunpack.c.l.b16 %v3379
    %v3896 = vunpack.c.l.b16 %v3380
    %v3897 = vunpack.c.l.b16 %v3381
    %v3898 = vunpack.c.l.b16 %v3382
    %v3899 = vunpack.c.l.b16 %v3383
    %v3900 = vunpack.c.l.b16 %v3384
    %v3901 = vunpack.c.l.b16 %v3385
    %v3902 = vunpack.c.l.b16 %v3386
    %v3903 = vunpack.c.l.b16 %v3387
    %v3904 = vunpack.c.l.b16 %v3388
    %v3905 = vunpack.c.l.b16 %v3389
    %v3906 = vunpack.c.l.b16 %v3390
    %v3907 = vunpack.c.l.b16 %v3391
    %v3908 = vunpack.c.l.b16 %v3392
    %v3909 = vunpack.c.l.b16 %v3393
    %v3910 = vunpack.c.l.b16 %v3394
    %v3911 = vunpack.c.l.b16 %v3395
    %v3912 = vunpack.c.l.b16 %v3396
    %v3913 = vunpack.c.l.b16 %v3397
    %v3914 = vunpack.c.l.b16 %v3398
    %v3915 = vunpack.c.l.b16 %v3399
    %v3916 = vunpack.c.l.b16 %v3400
    %v3917 = vunpack.c.l.b16 %v3401
    %v3918 = vunpack.c.l.b16 %v3402
    %v3919 = vunpack.c.l.b16 %v3403
    %v3920 = vunpack.c.l.b16 %v3404
    %v3921 = vunpack.c.l.b16 %v3405
    %v3922 = vunpack.c.l.b16 %v3406
    %v3923 = vunpack.c.l.b16 %v3407
    %v3924 = vunpack.c.l.b16 %v3408
    %v3925 = vunpack.c.l.b16 %v3409
    %v3926 = vunpack.c.l.b16 %v3410
    %v3927 = vunpack.c.l.b16 %v3411
    %v3928 = vunpack.c.l.b16 %v3412
    %v3929 = vunpack.c.l.b16 %v3413
    %v3930 = vunpack.c.l.b16 %v3414
    %v3931 = vunpack.c.l.b16 %v3415
    %v3932 = vunpack.c.l.b16 %v3416
    %v3933 = vunpack.c.l.b16 %v3417
    %v3934 = vunpack.c.l.b16 %v3418
    %v3935 = vunpack.c.l.b16 %v3419
    %v3936 = vunpack.c.l.b16 %v3420
    %v3937 = vunpack.c.l.b16 %v3421
    %v3938 = vunpack.c.l.b16 %v3422
    %v3939 = vunpack.c.l.b16 %v3423
    %v3940 = vunpack.c.l.b16 %v3424
    %v3941 = vunpack.c.l.b16 %v3425
    %v3942 = vunpack.c.l.b16 %v3426
    %v3943 = vunpack.c.l.b16 %v3427
    %v3944 = vunpack.c.l.b16 %v3428
    %v3945 = vunpack.c.l.b16 %v3429
    %v3946 = vunpack.c.l.b16 %v3430
    %v3947 = vunpack.c.l.b16 %v3431
    %v3948 = vunpack.c.l.b16 %v3432
    %v3949 = vunpack.c.l.b16 %v3433
    %v3950 = vunpack.c.l.b16 %v3434
    %v3951 = vunpack.c.l.b16 %v3435
    %v3952 = vunpack.c.l.b16 %v3436
    %v3953 = vunpack.c.l.b16 %v3437
    %v3954 = vunpack.c.l.b16 %v3438
    %v3955 = vunpack.c.l.b16 %v3439
    %v3956 = vunpack.c.l.b16 %v3440
    %v3957 = vunpack.c.l.b16 %v3441
    %v3958 = vunpack.c.l.b16 %v3442
    %v3959 = vunpack.c.l.b16 %v3443
    %v3960 = vunpack.c.l.b16 %v3444
    %v3961 = vunpack.c.l.b16 %v3445
    %v3962 = vunpack.c.l.b16 %v3446
    %v3963 = vunpack.c.l.b16 %v3447
    %v3964 = vunpack.c.l.b16 %v3448
    %v3965 = vunpack.c.l.b16 %v3449
    %v3966 = vunpack.c.l.b16 %v3450
    %v3967 = vunpack.c.l.b16 %v3451
    %v3968 = vunpack.c.l.b16 %v3452
    %v3969 = vunpack.c.l.b16 %v3453
    %v3970 = vunpack.c.l.b16 %v3454
    %v3971 = vunpack.c.l.b16 %v3455
    %v3972 = vunpack.c.l.b16 %v3456
    %v3973 = vunpack.c.l.b16 %v3457
    %v3974 = vunpack.c.l.b16 %v3458
    %v3975 = vunpack.c.l.b16 %v3459
    %v3976 = vunpack.c.l.b16 %v3460
    %v3977 = vunpack.c.l.b16 %v3461
    %v3978 = vunpack.c.l.b16 %v3462
    %v3979 = vunpack.c.l.b16 %v3463
    %v3980 = vunpack.c.l.b16 %v3464
    %v3981 = vunpack.c.l.b16 %v3465
    %v3982 = vunpack.c.l.b16 %v3466
    %v3983 = vunpack.c.l.b16 %v3467
    %v3984 = vunpack.c.l.b16 %v3468
    %v3985 = vunpack.c.l.b16 %v3469
    %v3986 = vunpack.c.l.b16 %v3470
    %v3987 = vunpack.c.l.b16 %v3471
    %v3988 = vunpack.c.l.b16 %v3472
    %v3989 = vunpack.c.l.b16 %v3473
    %v3990 = vunpack.c.l.b16 %v3474
    %v3991 = vunpack.c.l.b16 %v3475
    %v3992 = vunpack.c.l.b16 %v3476
    %v3993 = vunpack.c.l.b16 %v3477
    %v3994 = vunpack.c.l.b16 %v3478
    %v3995 = vunpack.c.l.b16 %v3479
    %v3996 = vunpack.c.l.b16 %v3480
    %v3997 = vunpack.c.l.b16 %v3481
    %v3998 = vunpack.c.l.b16 %v3482
    %v3999 = vunpack.c.l.b16 %v3483
    %v4000 = vunpack.c.l.b16 %v3484
    %v4001 = vunpack.c.l.b16 %v3485
    %v4002 = vunpack.c.l.b16 %v3486
    %v4003 = vunpack.c.l.b16 %v3487
    %v4004 = vunpack.c.l.b16 %v3488
    %v4005 = vunpack.c.l.b16 %v3489
    %v4006 = vunpack.c.l.b16 %v3490
    %v4007 = vunpack.c.l.b16 %v3491
    %v4008 = vunpack.c.l.b16 %v3492
    %v4009 = vunpack.c.l.b16 %v3493
    %v4010 = vunpack.c.l.b16 %v3494
    %v4011 = vunpack.c.l.b16 %v3495
    %v4012 = vunpack.c.l.b16 %v3496
    %v4013 = vunpack.c.l.b16 %v3497
    %v4014 = vunpack.c.l.b16 %v3498
    %v4015 = vunpack.c.l.b16 %v3499
    %v4016 = vunpack.c.l.b16 %v3500
    %v4017 = vunpack.c.l.b16 %v3501
    %v4018 = vunpack.c.l.b16 %v3502
    %v4019 = vunpack.c.l.b16 %v3503
    %v4020 = vunpack.c.l.b16 %v3504
    %v4021 = vunpack.c.l.b16 %v3505
    %v4022 = vunpack.c.l.b16 %v3506
    %v4023 = vunpack.c.l.b16 %v3507
    %v4024 = vunpack.c.l.b16 %v3508
    %v4025 = vunpack.c.l.b16 %v3509
    %v4026 = vunpack.c.l.b16 %v3510
    %v4027 = vunpack.c.l.b16 %v3511
    %v4028 = vunpack.c.l.b16 %v3512
    %v4029 = vunpack.c.l.b16 %v3513
    %v4030 = vunpack.c.l.b16 %v3514
    %v4031 = vunpack.c.l.b16 %v3515
    %v4032 = vunpack.c.l.b16 %v3516
    %v4033 = vunpack.c.l.b16 %v3517
    %v4034 = vunpack.c.l.b16 %v3518
    %v4035 = vunpack.c.l.b16 %v3519
    %v4036 = vunpack.c.l.b16 %v3520
    %v4037 = vpack.c.b16 %v3782, %v3781
    %v4038 = vpack.c.b16 %v3784, %v3783
    %v4039 = vpack.c.b16 %v3786, %v3785
    %v4040 = vpack.c.b16 %v3788, %v3787
    %v4041 = vpack.c.b16 %v3790, %v3789
    %v4042 = vpack.c.b16 %v3792, %v3791
    %v4043 = vpack.c.b16 %v3794, %v3793
    %v4044 = vpack.c.b16 %v3796, %v3795
    %v4045 = vpack.c.b16 %v3798, %v3797
    %v4046 = vpack.c.b16 %v3800, %v3799
    %v4047 = vpack.c.b16 %v3802, %v3801
    %v4048 = vpack.c.b16 %v3804, %v3803
    %v4049 = vpack.c.b16 %v3806, %v3805
    %v4050 = vpack.c.b16 %v3808, %v3807
    %v4051 = vpack.c.b16 %v3810, %v3809
    %v4052 = vpack.c.b16 %v3812, %v3811
    %v4053 = vpack.c.b16 %v3814, %v3813
    %v4054 = vpack.c.b16 %v3816, %v3815
    %v4055 = vpack.c.b16 %v3818, %v3817
    %v4056 = vpack.c.b16 %v3820, %v3819
    %v4057 = vpack.c.b16 %v3822, %v3821
    %v4058 = vpack.c.b16 %v3824, %v3823
    %v4059 = vpack.c.b16 %v3826, %v3825
    %v4060 = vpack.c.b16 %v3828, %v3827
    %v4061 = vpack.c.b16 %v3830, %v3829
    %v4062 = vpack.c.b16 %v3832, %v3831
    %v4063 = vpack.c.b16 %v3834, %v3833
    %v4064 = vpack.c.b16 %v3836, %v3835
    %v4065 = vpack.c.b16 %v3838, %v3837
    %v4066 = vpack.c.b16 %v3840, %v3839
    %v4067 = vpack.c.b16 %v3842, %v3841
    %v4068 = vpack.c.b16 %v3844, %v3843
    %v4069 = vpack.c.b16 %v3846, %v3845
    %v4070 = vpack.c.b16 %v3848, %v3847
    %v4071 = vpack.c.b16 %v3850, %v3849
    %v4072 = vpack.c.b16 %v3852, %v3851
    %v4073 = vpack.c.b16 %v3854, %v3853
    %v4074 = vpack.c.b16 %v3856, %v3855
    %v4075 = vpack.c.b16 %v3858, %v3857
    %v4076 = vpack.c.b16 %v3860, %v3859
    %v4077 = vpack.c.b16 %v3862, %v3861
    %v4078 = vpack.c.b16 %v3864, %v3863
    %v4079 = vpack.c.b16 %v3866, %v3865
    %v4080 = vpack.c.b16 %v3868, %v3867
    %v4081 = vpack.c.b16 %v3870, %v3869
    %v4082 = vpack.c.b16 %v3872, %v3871
    %v4083 = vpack.c.b16 %v3874, %v3873
    %v4084 = vpack.c.b16 %v3876, %v3875
    %v4085 = vpack.c.b16 %v3878, %v3877
    %v4086 = vpack.c.b16 %v3880, %v3879
    %v4087 = vpack.c.b16 %v3882, %v3881
    %v4088 = vpack.c.b16 %v3884, %v3883
    %v4089 = vpack.c.b16 %v3886, %v3885
    %v4090 = vpack.c.b16 %v3888, %v3887
    %v4091 = vpack.c.b16 %v3890, %v3889
    %v4092 = vpack.c.b16 %v3892, %v3891
    %v4093 = vpack.c.b16 %v3894, %v3893
    %v4094 = vpack.c.b16 %v3896, %v3895
    %v4095 = vpack.c.b16 %v3898, %v3897
    %v4096 = vpack.c.b16 %v3900, %v3899
    %v4097 = vpack.c.b16 %v3902, %v3901
    %v4098 = vpack.c.b16 %v3904, %v3903
    %v4099 = vpack.c.b16 %v3906, %v3905
    %v4100 = vpack.c.b16 %v3908, %v3907
    %v4101 = vpack.c.b16 %v3910, %v3909
    %v4102 = vpack.c.b16 %v3912, %v3911
    %v4103 = vpack.c.b16 %v3914, %v3913
    %v4104 = vpack.c.b16 %v3916, %v3915
    %v4105 = vpack.c.b16 %v3918, %v3917
    %v4106 = vpack.c.b16 %v3920, %v3919
    %v4107 = vpack.c.b16 %v3922, %v3921
    %v4108 = vpack.c.b16 %v3924, %v3923
    %v4109 = vpack.c.b16 %v3926, %v3925
    %v4110 = vpack.c.b16 %v3928, %v3927
    %v4111 = vpack.c.b16 %v3930, %v3929
    %v4112 = vpack.c.b16 %v3932, %v3931
    %v4113 = vpack.c.b16 %v3934, %v3933
    %v4114 = vpack.c.b16 %v3936, %v3935
    %v4115 = vpack.c.b16 %v3938, %v3937
    %v4116 = vpack.c.b16 %v3940, %v3939
    %v4117 = vpack.c.b16 %v3942, %v3941
    %v4118 = vpack.c.b16 %v3944, %v3943
    %v4119 = vpack.c.b16 %v3946, %v3945
    %v4120 = vpack.c.b16 %v3948, %v3947
    %v4121 = vpack.c.b16 %v3950, %v3949
    %v4122 = vpack.c.b16 %v3952, %v3951
    %v4123 = vpack.c.b16 %v3954, %v3953
    %v4124 = vpack.c.b16 %v3956, %v3955
    %v4125 = vpack.c.b16 %v3958, %v3957
    %v4126 = vpack.c.b16 %v3960, %v3959
    %v4127 = vpack.c.b16 %v3962, %v3961
    %v4128 = vpack.c.b16 %v3964, %v3963
    %v4129 = vpack.c.b16 %v3966, %v3965
    %v4130 = vpack.c.b16 %v3968, %v3967
    %v4131 = vpack.c.b16 %v3970, %v3969
    %v4132 = vpack.c.b16 %v3972, %v3971
    %v4133 = vpack.c.b16 %v3974, %v3973
    %v4134 = vpack.c.b16 %v3976, %v3975
    %v4135 = vpack.c.b16 %v3978, %v3977
    %v4136 = vpack.c.b16 %v3980, %v3979
    %v4137 = vpack.c.b16 %v3982, %v3981
    %v4138 = vpack.c.b16 %v3984, %v3983
    %v4139 = vpack.c.b16 %v3986, %v3985
    %v4140 = vpack.c.b16 %v3988, %v3987
    %v4141 = vpack.c.b16 %v3990, %v3989
    %v4142 = vpack.c.b16 %v3992, %v3991
    %v4143 = vpack.c.b16 %v3994, %v3993
    %v4144 = vpack.c.b16 %v3996, %v3995
    %v4145 = vpack.c.b16 %v3998, %v3997
    %v4146 = vpack.c.b16 %v4000, %v3999
    %v4147 = vpack.c.b16 %v4002, %v4001
    %v4148 = vpack.c.b16 %v4004, %v4003
    %v4149 = vpack.c.b16 %v4006, %v4005
    %v4150 = vpack.c.b16 %v4008, %v4007
    %v4151 = vpack.c.b16 %v4010, %v4009
    %v4152 = vpack.c.b16 %v4012, %v4011
    %v4153 = vpack.c.b16 %v4014, %v4013
    %v4154 = vpack.c.b16 %v4016, %v4015
    %v4155 = vpack.c.b16 %v4018, %v4017
    %v4156 = vpack.c.b16 %v4020, %v4019
    %v4157 = vpack.c.b16 %v4022, %v4021
    %v4158 = vpack.c.b16 %v4024, %v4023
    %v4159 = vpack.c.b16 %v4026, %v4025
    %v4160 = vpack.c.b16 %v4028, %v4027
    %v4161 = vpack.c.b16 %v4030, %v4029
    %v4162 = vpack.c.b16 %v4032, %v4031
    %v4163 = vpack.c.b16 %v4034, %v4033
    %v4164 = vpack.c.b16 %v4036, %v4035
    %4293 = vmatprep.subr.bf16.mxu0 0
    %4294 = vmatpush1.bf16.msra.mxu0 %v4037
    %4295 = vmatprep.subr.bf16.mxu0 0
    %4296 = vmatpush1.bf16.msra.mxu0 %v4038
    %4297 = vmatprep.subr.bf16.mxu0 0
    %4298 = vmatpush1.bf16.msra.mxu0 %v4039
    %4299 = vmatprep.subr.bf16.mxu0 0
    %4300 = vmatpush1.bf16.msra.mxu0 %v4040
    %4301 = vmatprep.subr.bf16.mxu0 0
    %4302 = vmatpush1.bf16.msra.mxu0 %v4041
    %4303 = vmatprep.subr.bf16.mxu0 0
    %4304 = vmatpush1.bf16.msra.mxu0 %v4042
    %4305 = vmatprep.subr.bf16.mxu0 0
    %4306 = vmatpush1.bf16.msra.mxu0 %v4043
    %4307 = vmatprep.subr.bf16.mxu0 0
    %4308 = vmatpush1.bf16.msra.mxu0 %v4044
    %4309 = vmatprep.subr.bf16.mxu0 0
    %4310 = vmatpush1.bf16.msra.mxu0 %v4045
    %4311 = vmatprep.subr.bf16.mxu0 0
    %4312 = vmatpush1.bf16.msra.mxu0 %v4046
    %4313 = vmatprep.subr.bf16.mxu0 0
    %4314 = vmatpush1.bf16.msra.mxu0 %v4047
    %4315 = vmatprep.subr.bf16.mxu0 0
    %4316 = vmatpush1.bf16.msra.mxu0 %v4048
    %4317 = vmatprep.subr.bf16.mxu0 0
    %4318 = vmatpush1.bf16.msra.mxu0 %v4049
    %4319 = vmatprep.subr.bf16.mxu0 0
    %4320 = vmatpush1.bf16.msra.mxu0 %v4050
    %4321 = vmatprep.subr.bf16.mxu0 0
    %4322 = vmatpush1.bf16.msra.mxu0 %v4051
    %4323 = vmatprep.subr.bf16.mxu0 0
    %4324 = vmatpush1.bf16.msra.mxu0 %v4052
    %4325 = vmatprep.mubr.bf16.mxu0 %v3250
    %4326 = vmatmul.mubr.bf16.gmra.mrb[0].mxu0 %v3249
    %v4327 = vpop.f32.mrb[0].mxu0
    %v4328 = vadd.f32 %v3524, %v4327
    %v4329 = vpop.f32.mrb[0].mxu0
    %v4330 = vpop.f32.mrb[0].mxu0
    %v4331 = vadd.f32 %v3524, %v4330
    %v4332 = vpop.f32.mrb[0].mxu0
    %4333 = vdwg.mxu0
    %4334 = vmatprep.subr.bf16.mxu0 0
    %4335 = vmatpush1.bf16.msra.mxu0 %v4053
    %4336 = vmatprep.subr.bf16.mxu0 0
    %4337 = vmatpush1.bf16.msra.mxu0 %v4054
    %4338 = vmatprep.subr.bf16.mxu0 0
    %4339 = vmatpush1.bf16.msra.mxu0 %v4055
    %4340 = vmatprep.subr.bf16.mxu0 0
    %4341 = vmatpush1.bf16.msra.mxu0 %v4056
    %4342 = vmatprep.subr.bf16.mxu0 0
    %4343 = vmatpush1.bf16.msra.mxu0 %v4057
    %4344 = vmatprep.subr.bf16.mxu0 0
    %4345 = vmatpush1.bf16.msra.mxu0 %v4058
    %4346 = vmatprep.subr.bf16.mxu0 0
    %4347 = vmatpush1.bf16.msra.mxu0 %v4059
    %4348 = vmatprep.subr.bf16.mxu0 0
    %4349 = vmatpush1.bf16.msra.mxu0 %v4060
    %4350 = vmatprep.subr.bf16.mxu0 0
    %4351 = vmatpush1.bf16.msra.mxu0 %v4061
    %4352 = vmatprep.subr.bf16.mxu0 0
    %4353 = vmatpush1.bf16.msra.mxu0 %v4062
    %4354 = vmatprep.subr.bf16.mxu0 0
    %4355 = vmatpush1.bf16.msra.mxu0 %v4063
    %4356 = vmatprep.subr.bf16.mxu0 0
    %4357 = vmatpush1.bf16.msra.mxu0 %v4064
    %4358 = vmatprep.subr.bf16.mxu0 0
    %4359 = vmatpush1.bf16.msra.mxu0 %v4065
    %4360 = vmatprep.subr.bf16.mxu0 0
    %4361 = vmatpush1.bf16.msra.mxu0 %v4066
    %4362 = vmatprep.subr.bf16.mxu0 0
    %4363 = vmatpush1.bf16.msra.mxu0 %v4067
    %4364 = vmatprep.subr.bf16.mxu0 0
    %4365 = vmatpush1.bf16.msra.mxu0 %v4068
    %4366 = vmatprep.mubr.bf16.mxu0 %v3252
    %4367 = vmatmul.mubr.bf16.gmra.mrb[0].mxu0 %v3251
    %v4368 = vpop.f32.mrb[0].mxu0
    %v4369 = vadd.f32 %v4328, %v4368
    %v4370 = vpop.f32.mrb[0].mxu0
    %v4371 = vpop.f32.mrb[0].mxu0
    %v4372 = vadd.f32 %v4331, %v4371
    %v4373 = vpop.f32.mrb[0].mxu0
    %4374 = vdwg.mxu0
    %4375 = vmatprep.subr.bf16.mxu0 0
    %4376 = vmatpush1.bf16.msra.mxu0 %v4069
    %4377 = vmatprep.subr.bf16.mxu0 0
    %4378 = vmatpush1.bf16.msra.mxu0 %v4070
    %4379 = vmatprep.subr.bf16.mxu0 0
    %4380 = vmatpush1.bf16.msra.mxu0 %v4071
    %4381 = vmatprep.subr.bf16.mxu0 0
    %4382 = vmatpush1.bf16.msra.mxu0 %v4072
    %4383 = vmatprep.subr.bf16.mxu0 0
    %4384 = vmatpush1.bf16.msra.mxu0 %v4073
    %4385 = vmatprep.subr.bf16.mxu0 0
    %4386 = vmatpush1.bf16.msra.mxu0 %v4074
    %4387 = vmatprep.subr.bf16.mxu0 0
    %4388 = vmatpush1.bf16.msra.mxu0 %v4075
    %4389 = vmatprep.subr.bf16.mxu0 0
    %4390 = vmatpush1.bf16.msra.mxu0 %v4076
    %4391 = vmatprep.subr.bf16.mxu0 0
    %4392 = vmatpush1.bf16.msra.mxu0 %v4077
    %4393 = vmatprep.subr.bf16.mxu0 0
    %4394 = vmatpush1.bf16.msra.mxu0 %v4078
    %4395 = vmatprep.subr.bf16.mxu0 0
    %4396 = vmatpush1.bf16.msra.mxu0 %v4079
    %4397 = vmatprep.subr.bf16.mxu0 0
    %4398 = vmatpush1.bf16.msra.mxu0 %v4080
    %4399 = vmatprep.subr.bf16.mxu0 0
    %4400 = vmatpush1.bf16.msra.mxu0 %v4081
    %4401 = vmatprep.subr.bf16.mxu0 0
    %4402 = vmatpush1.bf16.msra.mxu0 %v4082
    %4403 = vmatprep.subr.bf16.mxu0 0
    %4404 = vmatpush1.bf16.msra.mxu0 %v4083
    %4405 = vmatprep.subr.bf16.mxu0 0
    %4406 = vmatpush1.bf16.msra.mxu0 %v4084
    %4407 = vmatprep.mubr.bf16.mxu0 %v3254
    %4408 = vmatmul.mubr.bf16.gmra.mrb[0].mxu0 %v3253
    %v4409 = vpop.f32.mrb[0].mxu0
    %v4410 = vadd.f32 %v4369, %v4409
    %v4411 = vpop.f32.mrb[0].mxu0
    %v4412 = vpop.f32.mrb[0].mxu0
    %v4413 = vadd.f32 %v4372, %v4412
    %v4414 = vpop.f32.mrb[0].mxu0
    %4415 = vdwg.mxu0
    %4416 = vmatprep.subr.bf16.mxu0 0
    %4417 = vmatpush1.bf16.msra.mxu0 %v4085
    %4418 = vmatprep.subr.bf16.mxu0 0
    %4419 = vmatpush1.bf16.msra.mxu0 %v4086
    %4420 = vmatprep.subr.bf16.mxu0 0
    %4421 = vmatpush1.bf16.msra.mxu0 %v4087
    %4422 = vmatprep.subr.bf16.mxu0 0
    %4423 = vmatpush1.bf16.msra.mxu0 %v4088
    %4424 = vmatprep.subr.bf16.mxu0 0
    %4425 = vmatpush1.bf16.msra.mxu0 %v4089
    %4426 = vmatprep.subr.bf16.mxu0 0
    %4427 = vmatpush1.bf16.msra.mxu0 %v4090
    %4428 = vmatprep.subr.bf16.mxu0 0
    %4429 = vmatpush1.bf16.msra.mxu0 %v4091
    %4430 = vmatprep.subr.bf16.mxu0 0
    %4431 = vmatpush1.bf16.msra.mxu0 %v4092
    %4432 = vmatprep.subr.bf16.mxu0 0
    %4433 = vmatpush1.bf16.msra.mxu0 %v4093
    %4434 = vmatprep.subr.bf16.mxu0 0
    %4435 = vmatpush1.bf16.msra.mxu0 %v4094
    %4436 = vmatprep.subr.bf16.mxu0 0
    %4437 = vmatpush1.bf16.msra.mxu0 %v4095
    %4438 = vmatprep.subr.bf16.mxu0 0
    %4439 = vmatpush1.bf16.msra.mxu0 %v4096
    %4440 = vmatprep.subr.bf16.mxu0 0
    %4441 = vmatpush1.bf16.msra.mxu0 %v4097
    %4442 = vmatprep.subr.bf16.mxu0 0
    %4443 = vmatpush1.bf16.msra.mxu0 %v4098
    %4444 = vmatprep.subr.bf16.mxu0 0
    %4445 = vmatpush1.bf16.msra.mxu0 %v4099
    %4446 = vmatprep.subr.bf16.mxu0 0
    %4447 = vmatpush1.bf16.msra.mxu0 %v4100
    %4448 = vmatprep.mubr.bf16.mxu0 %v3256
    %4449 = vmatmul.mubr.bf16.gmra.mrb[0].mxu0 %v3255
    %v4450 = vpop.f32.mrb[0].mxu0
    %v4451 = vadd.f32 %v4410, %v4450
    %v4452 = vpop.f32.mrb[0].mxu0
    %v4453 = vpop.f32.mrb[0].mxu0
    %v4454 = vadd.f32 %v4413, %v4453
    %v4455 = vpop.f32.mrb[0].mxu0
    %4456 = vdwg.mxu0
    %4457 = vmatprep.subr.bf16.mxu0 0
    %4458 = vmatpush1.bf16.msra.mxu0 %v4101
    %4459 = vmatprep.subr.bf16.mxu0 0
    %4460 = vmatpush1.bf16.msra.mxu0 %v4102
    %4461 = vmatprep.subr.bf16.mxu0 0
    %4462 = vmatpush1.bf16.msra.mxu0 %v4103
    %4463 = vmatprep.subr.bf16.mxu0 0
    %4464 = vmatpush1.bf16.msra.mxu0 %v4104
    %4465 = vmatprep.subr.bf16.mxu0 0
    %4466 = vmatpush1.bf16.msra.mxu0 %v4105
    %4467 = vmatprep.subr.bf16.mxu0 0
    %4468 = vmatpush1.bf16.msra.mxu0 %v4106
    %4469 = vmatprep.subr.bf16.mxu0 0
    %4470 = vmatpush1.bf16.msra.mxu0 %v4107
    %4471 = vmatprep.subr.bf16.mxu0 0
    %4472 = vmatpush1.bf16.msra.mxu0 %v4108
    %4473 = vmatprep.subr.bf16.mxu0 0
    %4474 = vmatpush1.bf16.msra.mxu0 %v4109
    %4475 = vmatprep.subr.bf16.mxu0 0
    %4476 = vmatpush1.bf16.msra.mxu0 %v4110
    %4477 = vmatprep.subr.bf16.mxu0 0
    %4478 = vmatpush1.bf16.msra.mxu0 %v4111
    %4479 = vmatprep.subr.bf16.mxu0 0
    %4480 = vmatpush1.bf16.msra.mxu0 %v4112
    %4481 = vmatprep.subr.bf16.mxu0 0
    %4482 = vmatpush1.bf16.msra.mxu0 %v4113
    %4483 = vmatprep.subr.bf16.mxu0 0
    %4484 = vmatpush1.bf16.msra.mxu0 %v4114
    %4485 = vmatprep.subr.bf16.mxu0 0
    %4486 = vmatpush1.bf16.msra.mxu0 %v4115
    %4487 = vmatprep.subr.bf16.mxu0 0
    %4488 = vmatpush1.bf16.msra.mxu0 %v4116
    %4489 = vmatprep.mubr.bf16.mxu0 %v3258
    %4490 = vmatmul.mubr.bf16.gmra.mrb[0].mxu0 %v3257
    %v4491 = vpop.f32.mrb[0].mxu0
    %v4492 = vadd.f32 %v4451, %v4491
    %v4493 = vpop.f32.mrb[0].mxu0
    %v4494 = vpop.f32.mrb[0].mxu0
    %v4495 = vadd.f32 %v4454, %v4494
    %v4496 = vpop.f32.mrb[0].mxu0
    %4497 = vdwg.mxu0
    %4498 = vmatprep.subr.bf16.mxu0 0
    %4499 = vmatpush1.bf16.msra.mxu0 %v4117
    %4500 = vmatprep.subr.bf16.mxu0 0
    %4501 = vmatpush1.bf16.msra.mxu0 %v4118
    %4502 = vmatprep.subr.bf16.mxu0 0
    %4503 = vmatpush1.bf16.msra.mxu0 %v4119
    %4504 = vmatprep.subr.bf16.mxu0 0
    %4505 = vmatpush1.bf16.msra.mxu0 %v4120
    %4506 = vmatprep.subr.bf16.mxu0 0
    %4507 = vmatpush1.bf16.msra.mxu0 %v4121
    %4508 = vmatprep.subr.bf16.mxu0 0
    %4509 = vmatpush1.bf16.msra.mxu0 %v4122
    %4510 = vmatprep.subr.bf16.mxu0 0
    %4511 = vmatpush1.bf16.msra.mxu0 %v4123
    %4512 = vmatprep.subr.bf16.mxu0 0
    %4513 = vmatpush1.bf16.msra.mxu0 %v4124
    %4514 = vmatprep.subr.bf16.mxu0 0
    %4515 = vmatpush1.bf16.msra.mxu0 %v4125
    %4516 = vmatprep.subr.bf16.mxu0 0
    %4517 = vmatpush1.bf16.msra.mxu0 %v4126
    %4518 = vmatprep.subr.bf16.mxu0 0
    %4519 = vmatpush1.bf16.msra.mxu0 %v4127
    %4520 = vmatprep.subr.bf16.mxu0 0
    %4521 = vmatpush1.bf16.msra.mxu0 %v4128
    %4522 = vmatprep.subr.bf16.mxu0 0
    %4523 = vmatpush1.bf16.msra.mxu0 %v4129
    %4524 = vmatprep.subr.bf16.mxu0 0
    %4525 = vmatpush1.bf16.msra.mxu0 %v4130
    %4526 = vmatprep.subr.bf16.mxu0 0
    %4527 = vmatpush1.bf16.msra.mxu0 %v4131
    %4528 = vmatprep.subr.bf16.mxu0 0
    %4529 = vmatpush1.bf16.msra.mxu0 %v4132
    %4530 = vmatprep.mubr.bf16.mxu0 %v3260
    %4531 = vmatmul.mubr.bf16.gmra.mrb[0].mxu0 %v3259
    %v4532 = vpop.f32.mrb[0].mxu0
    %v4533 = vadd.f32 %v4492, %v4532
    %v4534 = vpop.f32.mrb[0].mxu0
    %v4535 = vpop.f32.mrb[0].mxu0
    %v4536 = vadd.f32 %v4495, %v4535
    %v4537 = vpop.f32.mrb[0].mxu0
    %4538 = vdwg.mxu0
    %4539 = vmatprep.subr.bf16.mxu0 0
    %4540 = vmatpush1.bf16.msra.mxu0 %v4133
    %4541 = vmatprep.subr.bf16.mxu0 0
    %4542 = vmatpush1.bf16.msra.mxu0 %v4134
    %4543 = vmatprep.subr.bf16.mxu0 0
    %4544 = vmatpush1.bf16.msra.mxu0 %v4135
    %4545 = vmatprep.subr.bf16.mxu0 0
    %4546 = vmatpush1.bf16.msra.mxu0 %v4136
    %4547 = vmatprep.subr.bf16.mxu0 0
    %4548 = vmatpush1.bf16.msra.mxu0 %v4137
    %4549 = vmatprep.subr.bf16.mxu0 0
    %4550 = vmatpush1.bf16.msra.mxu0 %v4138
    %4551 = vmatprep.subr.bf16.mxu0 0
    %4552 = vmatpush1.bf16.msra.mxu0 %v4139
    %4553 = vmatprep.subr.bf16.mxu0 0
    %4554 = vmatpush1.bf16.msra.mxu0 %v4140
    %4555 = vmatprep.subr.bf16.mxu0 0
    %4556 = vmatpush1.bf16.msra.mxu0 %v4141
    %4557 = vmatprep.subr.bf16.mxu0 0
    %4558 = vmatpush1.bf16.msra.mxu0 %v4142
    %4559 = vmatprep.subr.bf16.mxu0 0
    %4560 = vmatpush1.bf16.msra.mxu0 %v4143
    %4561 = vmatprep.subr.bf16.mxu0 0
    %4562 = vmatpush1.bf16.msra.mxu0 %v4144
    %4563 = vmatprep.subr.bf16.mxu0 0
    %4564 = vmatpush1.bf16.msra.mxu0 %v4145
    %4565 = vmatprep.subr.bf16.mxu0 0
    %4566 = vmatpush1.bf16.msra.mxu0 %v4146
    %4567 = vmatprep.subr.bf16.mxu0 0
    %4568 = vmatpush1.bf16.msra.mxu0 %v4147
    %4569 = vmatprep.subr.bf16.mxu0 0
    %4570 = vmatpush1.bf16.msra.mxu0 %v4148
    %4571 = vmatprep.mubr.bf16.mxu0 %v3262
    %4572 = vmatmul.mubr.bf16.gmra.mrb[0].mxu0 %v3261
    %v4573 = vpop.f32.mrb[0].mxu0
    %v4574 = vadd.f32 %v4533, %v4573
    %v4575 = vpop.f32.mrb[0].mxu0
    %v4576 = vpop.f32.mrb[0].mxu0
    %v4577 = vadd.f32 %v4536, %v4576
    %v4578 = vpop.f32.mrb[0].mxu0
    %4579 = vdwg.mxu0
    %4580 = vmatprep.subr.bf16.mxu0 0
    %4581 = vmatpush1.bf16.msra.mxu0 %v4149
    %4582 = vmatprep.subr.bf16.mxu0 0
    %4583 = vmatpush1.bf16.msra.mxu0 %v4150
    %4584 = vmatprep.subr.bf16.mxu0 0
    %4585 = vmatpush1.bf16.msra.mxu0 %v4151
    %4586 = vmatprep.subr.bf16.mxu0 0
    %4587 = vmatpush1.bf16.msra.mxu0 %v4152
    %4588 = vmatprep.subr.bf16.mxu0 0
    %4589 = vmatpush1.bf16.msra.mxu0 %v4153
    %4590 = vmatprep.subr.bf16.mxu0 0
    %4591 = vmatpush1.bf16.msra.mxu0 %v4154
    %4592 = vmatprep.subr.bf16.mxu0 0
    %4593 = vmatpush1.bf16.msra.mxu0 %v4155
    %4594 = vmatprep.subr.bf16.mxu0 0
    %4595 = vmatpush1.bf16.msra.mxu0 %v4156
    %4596 = vmatprep.subr.bf16.mxu0 0
    %4597 = vmatpush1.bf16.msra.mxu0 %v4157
    %4598 = vmatprep.subr.bf16.mxu0 0
    %4599 = vmatpush1.bf16.msra.mxu0 %v4158
    %4600 = vmatprep.subr.bf16.mxu0 0
    %4601 = vmatpush1.bf16.msra.mxu0 %v4159
    %4602 = vmatprep.subr.bf16.mxu0 0
    %4603 = vmatpush1.bf16.msra.mxu0 %v4160
    %4604 = vmatprep.subr.bf16.mxu0 0
    %4605 = vmatpush1.bf16.msra.mxu0 %v4161
    %4606 = vmatprep.subr.bf16.mxu0 0
    %4607 = vmatpush1.bf16.msra.mxu0 %v4162
    %4608 = vmatprep.subr.bf16.mxu0 0
    %4609 = vmatpush1.bf16.msra.mxu0 %v4163
    %4610 = vmatprep.subr.bf16.mxu0 0
    %4611 = vmatpush1.bf16.msra.mxu0 %v4164
    %4612 = vmatprep.mubr.bf16.mxu0 %v3264
    %4613 = vmatmul.mubr.bf16.gmra.mrb[0].mxu0 %v3263
    %v4614 = vpop.f32.mrb[0].mxu0
    %v4615 = vadd.f32 %v4574, %v4614
    %v4616 = vpop.f32.mrb[0].mxu0
    %v4617 = vpop.f32.mrb[0].mxu0
    %v4618 = vadd.f32 %v4577, %v4617
    %v4619 = vpop.f32.mrb[0].mxu0
    %4620 = vdwg.mxu0
    %v4621 = vadd.f32 %v2591, %v4615
    %v4622 = vadd.f32 %v2592, %v4618
    %v4623 = vsel %vm114, %v4621, 0.0
    %4624 = vadd.xlane.f32.xlu0 %v4623
    %v4625 = vpop.xlane.xlu0 %4624
    %v4626 = vsel %vm114, %v4622, 0.0
    %4627 = vadd.xlane.f32.xlu0 %v4626
    %v4628 = vpop.xlane.xlu0 %4627
    %v4629 = vmul.f32 %v4625, %v1289
    %v4630 = vmul.f32 %v4628, %v1289
    %v4631 = vsub.f32 %v4621, %v4629
    %v4632 = vsub.f32 %v4622, %v4630
    %v4633 = vmul.f32 %v4631, %v4631
    %v4634 = vmul.f32 %v4632, %v4632
    %v4635 = vsel %vm114, %v4633, 0.0
    %4636 = vadd.xlane.f32.xlu0 %v4635
    %v4637 = vpop.xlane.xlu0 %4636
    %v4638 = vsel %vm114, %v4634, 0.0
    %4639 = vadd.xlane.f32.xlu0 %v4638
    %v4640 = vpop.xlane.xlu0 %4639
    %v4641 = vmul.f32 %v4637, %v1289
    %v4642 = vmul.f32 %v4640, %v1289
    %v4643 = vadd.f32 %v4641, 1e-05
    %v4644 = vadd.f32 %v4642, 1e-05
    %v4645 = vrsqrt.pop %v4643
    %v4646 = vrsqrt.pop %v4644
    %v4647 = vmul.f32 %v4631, %v4645
    %v4648 = vmul.f32 %v4632, %v4646
    %v4649 = vlaneseq
    %v4650 = vshrl.u32 %v4649, 7
    %v4651 = vsub.s32 4, %v4650
    %v4652 = vrot.slane %v96, %v4651
    %v4653 = vmul.f32 %v4647, %v4652
    %v4654 = vmul.f32 %v4648, %v4652
    %v4655 = vlaneseq
    %v4656 = vshrl.u32 %v4655, 7
    %v4657 = vsub.s32 5, %v4656
    %v4658 = vrot.slane %v96, %v4657
    %v4659 = vadd.f32 %v4653, %v4658
    %v4660 = vadd.f32 %v4654, %v4658
    %v4661 = vld [vmem:[%s19] sm:$0xff]
    %v4662 = vld [vmem:[%s19 + $0x8] sm:$0x7f]
    %v4663 = vpack.c.bf16 %v4660, %v4659
    %v4664 = vld [vmem:[%s12] sm:$0xf]
    %v4665 = vld [vmem:[%s12 + $0x4] sm:$0xf]
    %v4666 = vld [vmem:[%s12 + $0x8] sm:$0xf]
    %v4667 = vld [vmem:[%s12 + $0xc] sm:$0xf]
    %v4672 = vunpack.c.l.b16 %v4664
    %v4673 = vunpack.c.l.b16 %v4665
    %v4674 = vunpack.c.l.b16 %v4666
    %v4675 = vunpack.c.l.b16 %v4667
    %v4676 = vpack.c.b16 %v4673, %v4672
    %v4677 = vpack.c.b16 %v4675, %v4674
    %v4681 = vsel %vm114, %v4663, 0
    %4683 = vmatprep.subr.bf16.mxu0 0
    %4684 = vmatpush1.bf16.msra.mxu0 %v4676
    %4685 = vmatprep.subr.bf16.mxu0 0
    %4686 = vmatpush1.bf16.msra.mxu0 %v4677
    %4687 = vmatprep.subr.bf16.mxu0 0
    %4688 = vmatpush1.bf16.msra.mxu0 0
    %4689 = vmatprep.subr.bf16.mxu0 0
    %4690 = vmatpush1.bf16.msra.mxu0 0
    %4691 = vmatprep.subr.bf16.mxu0 0
    %4692 = vmatpush1.bf16.msra.mxu0 0
    %4693 = vmatprep.subr.bf16.mxu0 0
    %4694 = vmatpush1.bf16.msra.mxu0 0
    %4695 = vmatprep.subr.bf16.mxu0 0
    %4696 = vmatpush1.bf16.msra.mxu0 0
    %4697 = vmatprep.subr.bf16.mxu0 0
    %4698 = vmatpush1.bf16.msra.mxu0 0
    %4699 = vmatprep.subr.bf16.mxu0 0
    %4700 = vmatpush1.bf16.msra.mxu0 0
    %4701 = vmatprep.subr.bf16.mxu0 0
    %4702 = vmatpush1.bf16.msra.mxu0 0
    %4703 = vmatprep.subr.bf16.mxu0 0
    %4704 = vmatpush1.bf16.msra.mxu0 0
    %4705 = vmatprep.subr.bf16.mxu0 0
    %4706 = vmatpush1.bf16.msra.mxu0 0
    %4707 = vmatprep.subr.bf16.mxu0 0
    %4708 = vmatpush1.bf16.msra.mxu0 0
    %4709 = vmatprep.subr.bf16.mxu0 0
    %4710 = vmatpush1.bf16.msra.mxu0 0
    %4711 = vmatprep.subr.bf16.mxu0 0
    %4712 = vmatpush1.bf16.msra.mxu0 0
    %4713 = vmatprep.subr.bf16.mxu0 0
    %4714 = vmatpush1.bf16.msra.mxu0 0
    %4715 = vmatprep.mubr.bf16.mxu0 0
    %4716 = vmatmul.mubr.bf16.gmra.mrb[0].mxu0 %v4681
    %v4717 = vpop.f32.mrb[0].mxu0
    %v4718 = vadd.f32 0.0, %v4717
    %v4719 = vpop.f32.mrb[0].mxu0
    %v4720 = vpop.f32.mrb[0].mxu0
    %v4721 = vadd.f32 0.0, %v4720
    %v4722 = vpop.f32.mrb[0].mxu0
    %4723 = vdwg.mxu0
    %v4724 = vlaneseq
    %v4725 = vshrl.u32 %v4724, 7
    %v4726 = vsub.s32 0, %v4725
    %v4727 = vrot.slane %v4661, %v4726
    %v4728 = vadd.f32 %v4718, %v4727
    %v4729 = vadd.f32 %v4721, %v4727
    %v4730 = vlaneseq
    %v4731 = vshrl.u32 %v4730, 7
    %v4732 = vsub.s32 1, %v4731
    %v4733 = vrot.slane %v4661, %v4732
    %4735 = vrot.lane.b32.xlu0 %v4733, 32
    %v4736 = vpop.permute.xlu0 %4735
    %v4738 = vadd.f32 %v4718, %v4736
    %v4739 = vadd.f32 %v4721, %v4736
    %v4740 = vlaneseq
    %v4741 = vshrl.u32 %v4740, 7
    %v4742 = vsub.s32 2, %v4741
    %v4743 = vrot.slane %v4661, %v4742
    %4745 = vrot.lane.b32.xlu0 %v4743, 64
    %v4746 = vpop.permute.xlu0 %4745
    %v4748 = vadd.f32 %v4718, %v4746
    %v4749 = vadd.f32 %v4721, %v4746
    %v4750 = vld [vmem:[%s13] sm:$0xf]
    %v4751 = vld [vmem:[%s13 + $0x4] sm:$0xf]
    %v4752 = vld [vmem:[%s13 + $0x8] sm:$0xf]
    %v4753 = vld [vmem:[%s13 + $0xc] sm:$0xf]
    %v4754 = vpack.c.bf16 %v4728, %v4728
    %v4755 = vpack.c.bf16 %v4729, %v4729
    %v4756 = vpack.c.bf16 %v4738, %v4738
    %v4757 = vpack.c.bf16 %v4739, %v4739
    %v4758 = vpack.c.bf16 %v4748, %v4748
    %v4759 = vpack.c.bf16 %v4749, %v4749
    %4761 = vrot.lane.b32.xlu0 %v4756, 96
    %v4762 = vpop.permute.xlu0 %4761
    %v4764 = vsel %vm198, %v4754, 0
    %v4767 = vsel %vm198, %v4762, 0
    %4769 = vmatprep.subr.bf16.mxu0 0
    %4770 = vmatpush1.bf16.xpose.msra.mxu0 %v4767
    %4771 = vmatprep.subr.bf16.mxu0 0
    %4772 = vmatpush1.bf16.xpose.msra.mxu0 0
    %4773 = vmatprep.subr.bf16.mxu0 0
    %4774 = vmatpush1.bf16.xpose.msra.mxu0 0
    %4775 = vmatprep.subr.bf16.mxu0 0
    %4776 = vmatpush1.bf16.xpose.msra.mxu0 0
    %4777 = vmatprep.subr.bf16.mxu0 0
    %4778 = vmatpush1.bf16.xpose.msra.mxu0 0
    %4779 = vmatprep.subr.bf16.mxu0 0
    %4780 = vmatpush1.bf16.xpose.msra.mxu0 0
    %4781 = vmatprep.subr.bf16.mxu0 0
    %4782 = vmatpush1.bf16.xpose.msra.mxu0 0
    %4783 = vmatprep.subr.bf16.mxu0 0
    %4784 = vmatpush1.bf16.xpose.msra.mxu0 0
    %4785 = vmatprep.subr.bf16.mxu0 0
    %4786 = vmatpush1.bf16.xpose.msra.mxu0 0
    %4787 = vmatprep.subr.bf16.mxu0 0
    %4788 = vmatpush1.bf16.xpose.msra.mxu0 0
    %4789 = vmatprep.subr.bf16.mxu0 0
    %4790 = vmatpush1.bf16.xpose.msra.mxu0 0
    %4791 = vmatprep.subr.bf16.mxu0 0
    %4792 = vmatpush1.bf16.xpose.msra.mxu0 0
    %4793 = vmatprep.subr.bf16.mxu0 0
    %4794 = vmatpush1.bf16.xpose.msra.mxu0 0
    %4795 = vmatprep.subr.bf16.mxu0 0
    %4796 = vmatpush1.bf16.xpose.msra.mxu0 0
    %4797 = vmatprep.subr.bf16.mxu0 0
    %4798 = vmatpush1.bf16.xpose.msra.mxu0 0
    %4799 = vmatprep.subr.bf16.mxu0 0
    %4800 = vmatpush1.bf16.xpose.msra.mxu0 0
    %4801 = vmatprep.mubr.bf16.mxu0 0
    %4802 = vmatmul.mubr.bf16.gmra.mrb[0].mxu0 %v4764
    %v4803 = vpop.f32.mrb[0].mxu0
    %v4804 = vadd.f32 %v94, %v4803
    %v4805 = vpop.f32.mrb[0].mxu0
    %v4806 = vpop.f32.mrb[0].mxu0
    %v4807 = vpop.f32.mrb[0].mxu0
    %4808 = vdwg.mxu0
    %4810 = vrot.lane.b32.xlu0 %v4757, 96
    %v4811 = vpop.permute.xlu0 %4810
    %v4813 = vsel %vm198, %v4755, 0
    %v4816 = vsel %vm198, %v4811, 0
    %4818 = vmatprep.subr.bf16.mxu0 0
    %4819 = vmatpush1.bf16.xpose.msra.mxu0 %v4816
    %4820 = vmatprep.subr.bf16.mxu0 0
    %4821 = vmatpush1.bf16.xpose.msra.mxu0 0
    %4822 = vmatprep.subr.bf16.mxu0 0
    %4823 = vmatpush1.bf16.xpose.msra.mxu0 0
    %4824 = vmatprep.subr.bf16.mxu0 0
    %4825 = vmatpush1.bf16.xpose.msra.mxu0 0
    %4826 = vmatprep.subr.bf16.mxu0 0
    %4827 = vmatpush1.bf16.xpose.msra.mxu0 0
    %4828 = vmatprep.subr.bf16.mxu0 0
    %4829 = vmatpush1.bf16.xpose.msra.mxu0 0
    %4830 = vmatprep.subr.bf16.mxu0 0
    %4831 = vmatpush1.bf16.xpose.msra.mxu0 0
    %4832 = vmatprep.subr.bf16.mxu0 0
    %4833 = vmatpush1.bf16.xpose.msra.mxu0 0
    %4834 = vmatprep.subr.bf16.mxu0 0
    %4835 = vmatpush1.bf16.xpose.msra.mxu0 0
    %4836 = vmatprep.subr.bf16.mxu0 0
    %4837 = vmatpush1.bf16.xpose.msra.mxu0 0
    %4838 = vmatprep.subr.bf16.mxu0 0
    %4839 = vmatpush1.bf16.xpose.msra.mxu0 0
    %4840 = vmatprep.subr.bf16.mxu0 0
    %4841 = vmatpush1.bf16.xpose.msra.mxu0 0
    %4842 = vmatprep.subr.bf16.mxu0 0
    %4843 = vmatpush1.bf16.xpose.msra.mxu0 0
    %4844 = vmatprep.subr.bf16.mxu0 0
    %4845 = vmatpush1.bf16.xpose.msra.mxu0 0
    %4846 = vmatprep.subr.bf16.mxu0 0
    %4847 = vmatpush1.bf16.xpose.msra.mxu0 0
    %4848 = vmatprep.subr.bf16.mxu0 0
    %4849 = vmatpush1.bf16.xpose.msra.mxu0 0
    %4850 = vmatprep.mubr.bf16.mxu0 0
    %4851 = vmatmul.mubr.bf16.gmra.mrb[0].mxu0 %v4813
    %v4852 = vpop.f32.mrb[0].mxu0
    %v4853 = vadd.f32 %v94, %v4852
    %v4854 = vpop.f32.mrb[0].mxu0
    %v4855 = vpop.f32.mrb[0].mxu0
    %v4856 = vpop.f32.mrb[0].mxu0
    %4857 = vdwg.mxu0
    %v4858 = vsel %vm198, %v4804, -inf
    %4859 = vmax.xlane.f32.xlu0 %v4858
    %v4860 = vpop.xlane.xlu0 %4859
    %v4861 = vsel %vm198, %v4853, -inf
    %4862 = vmax.xlane.f32.xlu0 %v4861
    %v4863 = vpop.xlane.xlu0 %4862
    %v4864 = vsub.f32 %v4804, %v4860
    %v4865 = vsub.f32 %v4853, %v4863
    %v4866 = vmul.f32 %v4864, 1.442695
    %v4867 = vpow.pop %v4866
    %v4868 = vmul.f32 %v4865, 1.442695
    %v4869 = vpow.pop %v4868
    %v4870 = vsel %vm198, %v4867, 0.0
    %4871 = vadd.xlane.f32.xlu0 %v4870
    %v4872 = vpop.xlane.xlu0 %4871
    %v4873 = vsel %vm198, %v4869, 0.0
    %4874 = vadd.xlane.f32.xlu0 %v4873
    %v4875 = vpop.xlane.xlu0 %4874
    %v4876 = vrcp.pop %v4872
    %v4877 = vrcp.pop %v4875
    %v4878 = vmul.f32 %v4867, %v4876
    %v4879 = vmul.f32 %v4869, %v4877
    %v4880 = vpack.c.bf16 %v4878, %v4878
    %v4881 = vpack.c.bf16 %v4879, %v4879
    %4883 = vrot.lane.b32.xlu0 %v4758, 64
    %v4884 = vpop.permute.xlu0 %4883
    %v4886 = vsel %vm198, %v4880, 0
    %v4889 = vsel %vm324, %v4884, 0
    %4891 = vmatprep.subr.bf16.mxu0 0
    %4892 = vmatpush1.bf16.msra.mxu0 %v4889
    %4893 = vmatprep.subr.bf16.mxu0 0
    %4894 = vmatpush1.bf16.msra.mxu0 0
    %4895 = vmatprep.subr.bf16.mxu0 0
    %4896 = vmatpush1.bf16.msra.mxu0 0
    %4897 = vmatprep.subr.bf16.mxu0 0
    %4898 = vmatpush1.bf16.msra.mxu0 0
    %4899 = vmatprep.subr.bf16.mxu0 0
    %4900 = vmatpush1.bf16.msra.mxu0 0
    %4901 = vmatprep.subr.bf16.mxu0 0
    %4902 = vmatpush1.bf16.msra.mxu0 0
    %4903 = vmatprep.subr.bf16.mxu0 0
    %4904 = vmatpush1.bf16.msra.mxu0 0
    %4905 = vmatprep.subr.bf16.mxu0 0
    %4906 = vmatpush1.bf16.msra.mxu0 0
    %4907 = vmatprep.subr.bf16.mxu0 0
    %4908 = vmatpush1.bf16.msra.mxu0 0
    %4909 = vmatprep.subr.bf16.mxu0 0
    %4910 = vmatpush1.bf16.msra.mxu0 0
    %4911 = vmatprep.subr.bf16.mxu0 0
    %4912 = vmatpush1.bf16.msra.mxu0 0
    %4913 = vmatprep.subr.bf16.mxu0 0
    %4914 = vmatpush1.bf16.msra.mxu0 0
    %4915 = vmatprep.subr.bf16.mxu0 0
    %4916 = vmatpush1.bf16.msra.mxu0 0
    %4917 = vmatprep.subr.bf16.mxu0 0
    %4918 = vmatpush1.bf16.msra.mxu0 0
    %4919 = vmatprep.subr.bf16.mxu0 0
    %4920 = vmatpush1.bf16.msra.mxu0 0
    %4921 = vmatprep.subr.bf16.mxu0 0
    %4922 = vmatpush1.bf16.msra.mxu0 0
    %4923 = vmatprep.mubr.bf16.mxu0 0
    %4924 = vmatmul.mubr.bf16.gmra.mrb[0].mxu0 %v4886
    %v4925 = vpop.f32.mrb[0].mxu0
    %v4926 = vadd.f32 0.0, %v4925
    %v4927 = vpop.f32.mrb[0].mxu0
    %v4928 = vpop.f32.mrb[0].mxu0
    %v4929 = vpop.f32.mrb[0].mxu0
    %4930 = vdwg.mxu0
    %4932 = vrot.lane.b32.xlu0 %v4759, 64
    %v4933 = vpop.permute.xlu0 %4932
    %v4935 = vsel %vm198, %v4881, 0
    %v4938 = vsel %vm324, %v4933, 0
    %4940 = vmatprep.subr.bf16.mxu0 0
    %4941 = vmatpush1.bf16.msra.mxu0 %v4938
    %4942 = vmatprep.subr.bf16.mxu0 0
    %4943 = vmatpush1.bf16.msra.mxu0 0
    %4944 = vmatprep.subr.bf16.mxu0 0
    %4945 = vmatpush1.bf16.msra.mxu0 0
    %4946 = vmatprep.subr.bf16.mxu0 0
    %4947 = vmatpush1.bf16.msra.mxu0 0
    %4948 = vmatprep.subr.bf16.mxu0 0
    %4949 = vmatpush1.bf16.msra.mxu0 0
    %4950 = vmatprep.subr.bf16.mxu0 0
    %4951 = vmatpush1.bf16.msra.mxu0 0
    %4952 = vmatprep.subr.bf16.mxu0 0
    %4953 = vmatpush1.bf16.msra.mxu0 0
    %4954 = vmatprep.subr.bf16.mxu0 0
    %4955 = vmatpush1.bf16.msra.mxu0 0
    %4956 = vmatprep.subr.bf16.mxu0 0
    %4957 = vmatpush1.bf16.msra.mxu0 0
    %4958 = vmatprep.subr.bf16.mxu0 0
    %4959 = vmatpush1.bf16.msra.mxu0 0
    %4960 = vmatprep.subr.bf16.mxu0 0
    %4961 = vmatpush1.bf16.msra.mxu0 0
    %4962 = vmatprep.subr.bf16.mxu0 0
    %4963 = vmatpush1.bf16.msra.mxu0 0
    %4964 = vmatprep.subr.bf16.mxu0 0
    %4965 = vmatpush1.bf16.msra.mxu0 0
    %4966 = vmatprep.subr.bf16.mxu0 0
    %4967 = vmatpush1.bf16.msra.mxu0 0
    %4968 = vmatprep.subr.bf16.mxu0 0
    %4969 = vmatpush1.bf16.msra.mxu0 0
    %4970 = vmatprep.subr.bf16.mxu0 0
    %4971 = vmatpush1.bf16.msra.mxu0 0
    %4972 = vmatprep.mubr.bf16.mxu0 0
    %4973 = vmatmul.mubr.bf16.gmra.mrb[0].mxu0 %v4935
    %v4974 = vpop.f32.mrb[0].mxu0
    %v4975 = vadd.f32 0.0, %v4974
    %v4976 = vpop.f32.mrb[0].mxu0
    %v4977 = vpop.f32.mrb[0].mxu0
    %v4978 = vpop.f32.mrb[0].mxu0
    %4979 = vdwg.mxu0
    %v4980 = vpack.c.bf16 %v4975, %v4926
    %4982 = vrot.lane.b32.xlu0 %v4754, 120
    %v4983 = vpop.permute.xlu0 %4982
    %4984 = vrot.lane.b32.xlu0 %v4756, 88
    %v4985 = vpop.permute.xlu0 %4984
    %v4987 = vsel %vm198, %v4983, 0
    %v4990 = vsel %vm198, %v4985, 0
    %4992 = vmatprep.subr.bf16.mxu0 0
    %4993 = vmatpush1.bf16.xpose.msra.mxu0 %v4990
    %4994 = vmatprep.subr.bf16.mxu0 0
    %4995 = vmatpush1.bf16.xpose.msra.mxu0 0
    %4996 = vmatprep.subr.bf16.mxu0 0
    %4997 = vmatpush1.bf16.xpose.msra.mxu0 0
    %4998 = vmatprep.subr.bf16.mxu0 0
    %4999 = vmatpush1.bf16.xpose.msra.mxu0 0
    %5000 = vmatprep.subr.bf16.mxu0 0
    %5001 = vmatpush1.bf16.xpose.msra.mxu0 0
    %5002 = vmatprep.subr.bf16.mxu0 0
    %5003 = vmatpush1.bf16.xpose.msra.mxu0 0
    %5004 = vmatprep.subr.bf16.mxu0 0
    %5005 = vmatpush1.bf16.xpose.msra.mxu0 0
    %5006 = vmatprep.subr.bf16.mxu0 0
    %5007 = vmatpush1.bf16.xpose.msra.mxu0 0
    %5008 = vmatprep.subr.bf16.mxu0 0
    %5009 = vmatpush1.bf16.xpose.msra.mxu0 0
    %5010 = vmatprep.subr.bf16.mxu0 0
    %5011 = vmatpush1.bf16.xpose.msra.mxu0 0
    %5012 = vmatprep.subr.bf16.mxu0 0
    %5013 = vmatpush1.bf16.xpose.msra.mxu0 0
    %5014 = vmatprep.subr.bf16.mxu0 0
    %5015 = vmatpush1.bf16.xpose.msra.mxu0 0
    %5016 = vmatprep.subr.bf16.mxu0 0
    %5017 = vmatpush1.bf16.xpose.msra.mxu0 0
    %5018 = vmatprep.subr.bf16.mxu0 0
    %5019 = vmatpush1.bf16.xpose.msra.mxu0 0
    %5020 = vmatprep.subr.bf16.mxu0 0
    %5021 = vmatpush1.bf16.xpose.msra.mxu0 0
    %5022 = vmatprep.subr.bf16.mxu0 0
    %5023 = vmatpush1.bf16.xpose.msra.mxu0 0
    %5024 = vmatprep.mubr.bf16.mxu0 0
    %5025 = vmatmul.mubr.bf16.gmra.mrb[0].mxu0 %v4987
    %v5026 = vpop.f32.mrb[0].mxu0
    %v5027 = vadd.f32 %v94, %v5026
    %v5028 = vpop.f32.mrb[0].mxu0
    %v5029 = vpop.f32.mrb[0].mxu0
    %v5030 = vpop.f32.mrb[0].mxu0
    %5031 = vdwg.mxu0
    %5033 = vrot.lane.b32.xlu0 %v4755, 120
    %v5034 = vpop.permute.xlu0 %5033
    %5035 = vrot.lane.b32.xlu0 %v4757, 88
    %v5036 = vpop.permute.xlu0 %5035
    %v5038 = vsel %vm198, %v5034, 0
    %v5041 = vsel %vm198, %v5036, 0
    %5043 = vmatprep.subr.bf16.mxu0 0
    %5044 = vmatpush1.bf16.xpose.msra.mxu0 %v5041
    %5045 = vmatprep.subr.bf16.mxu0 0
    %5046 = vmatpush1.bf16.xpose.msra.mxu0 0
    %5047 = vmatprep.subr.bf16.mxu0 0
    %5048 = vmatpush1.bf16.xpose.msra.mxu0 0
    %5049 = vmatprep.subr.bf16.mxu0 0
    %5050 = vmatpush1.bf16.xpose.msra.mxu0 0
    %5051 = vmatprep.subr.bf16.mxu0 0
    %5052 = vmatpush1.bf16.xpose.msra.mxu0 0
    %5053 = vmatprep.subr.bf16.mxu0 0
    %5054 = vmatpush1.bf16.xpose.msra.mxu0 0
    %5055 = vmatprep.subr.bf16.mxu0 0
    %5056 = vmatpush1.bf16.xpose.msra.mxu0 0
    %5057 = vmatprep.subr.bf16.mxu0 0
    %5058 = vmatpush1.bf16.xpose.msra.mxu0 0
    %5059 = vmatprep.subr.bf16.mxu0 0
    %5060 = vmatpush1.bf16.xpose.msra.mxu0 0
    %5061 = vmatprep.subr.bf16.mxu0 0
    %5062 = vmatpush1.bf16.xpose.msra.mxu0 0
    %5063 = vmatprep.subr.bf16.mxu0 0
    %5064 = vmatpush1.bf16.xpose.msra.mxu0 0
    %5065 = vmatprep.subr.bf16.mxu0 0
    %5066 = vmatpush1.bf16.xpose.msra.mxu0 0
    %5067 = vmatprep.subr.bf16.mxu0 0
    %5068 = vmatpush1.bf16.xpose.msra.mxu0 0
    %5069 = vmatprep.subr.bf16.mxu0 0
    %5070 = vmatpush1.bf16.xpose.msra.mxu0 0
    %5071 = vmatprep.subr.bf16.mxu0 0
    %5072 = vmatpush1.bf16.xpose.msra.mxu0 0
    %5073 = vmatprep.subr.bf16.mxu0 0
    %5074 = vmatpush1.bf16.xpose.msra.mxu0 0
    %5075 = vmatprep.mubr.bf16.mxu0 0
    %5076 = vmatmul.mubr.bf16.gmra.mrb[0].mxu0 %v5038
    %v5077 = vpop.f32.mrb[0].mxu0
    %v5078 = vadd.f32 %v94, %v5077
    %v5079 = vpop.f32.mrb[0].mxu0
    %v5080 = vpop.f32.mrb[0].mxu0
    %v5081 = vpop.f32.mrb[0].mxu0
    %5082 = vdwg.mxu0
    %v5083 = vsel %vm198, %v5027, -inf
    %5084 = vmax.xlane.f32.xlu0 %v5083
    %v5085 = vpop.xlane.xlu0 %5084
    %v5086 = vsel %vm198, %v5078, -inf
    %5087 = vmax.xlane.f32.xlu0 %v5086
    %v5088 = vpop.xlane.xlu0 %5087
    %v5089 = vsub.f32 %v5027, %v5085
    %v5090 = vsub.f32 %v5078, %v5088
    %v5091 = vmul.f32 %v5089, 1.442695
    %v5092 = vpow.pop %v5091
    %v5093 = vmul.f32 %v5090, 1.442695
    %v5094 = vpow.pop %v5093
    %v5095 = vsel %vm198, %v5092, 0.0
    %5096 = vadd.xlane.f32.xlu0 %v5095
    %v5097 = vpop.xlane.xlu0 %5096
    %v5098 = vsel %vm198, %v5094, 0.0
    %5099 = vadd.xlane.f32.xlu0 %v5098
    %v5100 = vpop.xlane.xlu0 %5099
    %v5101 = vrcp.pop %v5097
    %v5102 = vrcp.pop %v5100
    %v5103 = vmul.f32 %v5092, %v5101
    %v5104 = vmul.f32 %v5094, %v5102
    %v5105 = vpack.c.bf16 %v5103, %v5103
    %v5106 = vpack.c.bf16 %v5104, %v5104
    %5107 = vrot.lane.b32.xlu0 %v4758, 56
    %v5108 = vpop.permute.xlu0 %5107
    %v5110 = vsel %vm198, %v5105, 0
    %v5113 = vsel %vm324, %v5108, 0
    %5115 = vmatprep.subr.bf16.mxu0 0
    %5116 = vmatpush1.bf16.msra.mxu0 %v5113
    %5117 = vmatprep.subr.bf16.mxu0 0
    %5118 = vmatpush1.bf16.msra.mxu0 0
    %5119 = vmatprep.subr.bf16.mxu0 0
    %5120 = vmatpush1.bf16.msra.mxu0 0
    %5121 = vmatprep.subr.bf16.mxu0 0
    %5122 = vmatpush1.bf16.msra.mxu0 0
    %5123 = vmatprep.subr.bf16.mxu0 0
    %5124 = vmatpush1.bf16.msra.mxu0 0
    %5125 = vmatprep.subr.bf16.mxu0 0
    %5126 = vmatpush1.bf16.msra.mxu0 0
    %5127 = vmatprep.subr.bf16.mxu0 0
    %5128 = vmatpush1.bf16.msra.mxu0 0
    %5129 = vmatprep.subr.bf16.mxu0 0
    %5130 = vmatpush1.bf16.msra.mxu0 0
    %5131 = vmatprep.subr.bf16.mxu0 0
    %5132 = vmatpush1.bf16.msra.mxu0 0
    %5133 = vmatprep.subr.bf16.mxu0 0
    %5134 = vmatpush1.bf16.msra.mxu0 0
    %5135 = vmatprep.subr.bf16.mxu0 0
    %5136 = vmatpush1.bf16.msra.mxu0 0
    %5137 = vmatprep.subr.bf16.mxu0 0
    %5138 = vmatpush1.bf16.msra.mxu0 0
    %5139 = vmatprep.subr.bf16.mxu0 0
    %5140 = vmatpush1.bf16.msra.mxu0 0
    %5141 = vmatprep.subr.bf16.mxu0 0
    %5142 = vmatpush1.bf16.msra.mxu0 0
    %5143 = vmatprep.subr.bf16.mxu0 0
    %5144 = vmatpush1.bf16.msra.mxu0 0
    %5145 = vmatprep.subr.bf16.mxu0 0
    %5146 = vmatpush1.bf16.msra.mxu0 0
    %5147 = vmatprep.mubr.bf16.mxu0 0
    %5148 = vmatmul.mubr.bf16.gmra.mrb[0].mxu0 %v5110
    %v5149 = vpop.f32.mrb[0].mxu0
    %v5150 = vadd.f32 0.0, %v5149
    %v5151 = vpop.f32.mrb[0].mxu0
    %v5152 = vpop.f32.mrb[0].mxu0
    %v5153 = vpop.f32.mrb[0].mxu0
    %5154 = vdwg.mxu0
    %5155 = vrot.lane.b32.xlu0 %v4759, 56
    %v5156 = vpop.permute.xlu0 %5155
    %v5158 = vsel %vm198, %v5106, 0
    %v5161 = vsel %vm324, %v5156, 0
    %5163 = vmatprep.subr.bf16.mxu0 0
    %5164 = vmatpush1.bf16.msra.mxu0 %v5161
    %5165 = vmatprep.subr.bf16.mxu0 0
    %5166 = vmatpush1.bf16.msra.mxu0 0
    %5167 = vmatprep.subr.bf16.mxu0 0
    %5168 = vmatpush1.bf16.msra.mxu0 0
    %5169 = vmatprep.subr.bf16.mxu0 0
    %5170 = vmatpush1.bf16.msra.mxu0 0
    %5171 = vmatprep.subr.bf16.mxu0 0
    %5172 = vmatpush1.bf16.msra.mxu0 0
    %5173 = vmatprep.subr.bf16.mxu0 0
    %5174 = vmatpush1.bf16.msra.mxu0 0
    %5175 = vmatprep.subr.bf16.mxu0 0
    %5176 = vmatpush1.bf16.msra.mxu0 0
    %5177 = vmatprep.subr.bf16.mxu0 0
    %5178 = vmatpush1.bf16.msra.mxu0 0
    %5179 = vmatprep.subr.bf16.mxu0 0
    %5180 = vmatpush1.bf16.msra.mxu0 0
    %5181 = vmatprep.subr.bf16.mxu0 0
    %5182 = vmatpush1.bf16.msra.mxu0 0
    %5183 = vmatprep.subr.bf16.mxu0 0
    %5184 = vmatpush1.bf16.msra.mxu0 0
    %5185 = vmatprep.subr.bf16.mxu0 0
    %5186 = vmatpush1.bf16.msra.mxu0 0
    %5187 = vmatprep.subr.bf16.mxu0 0
    %5188 = vmatpush1.bf16.msra.mxu0 0
    %5189 = vmatprep.subr.bf16.mxu0 0
    %5190 = vmatpush1.bf16.msra.mxu0 0
    %5191 = vmatprep.subr.bf16.mxu0 0
    %5192 = vmatpush1.bf16.msra.mxu0 0
    %5193 = vmatprep.subr.bf16.mxu0 0
    %5194 = vmatpush1.bf16.msra.mxu0 0
    %5195 = vmatprep.mubr.bf16.mxu0 0
    %5196 = vmatmul.mubr.bf16.gmra.mrb[0].mxu0 %v5158
    %v5197 = vpop.f32.mrb[0].mxu0
    %v5198 = vadd.f32 0.0, %v5197
    %v5199 = vpop.f32.mrb[0].mxu0
    %v5200 = vpop.f32.mrb[0].mxu0
    %v5201 = vpop.f32.mrb[0].mxu0
    %5202 = vdwg.mxu0
    %v5203 = vpack.c.bf16 %v5198, %v5150
    %v5205 = vsel %vm198, %v5203, 0
    %v5208 = vsel %vm324, %v4751, 0
    %5210 = vmatprep.subr.bf16.mxu0 0
    %5211 = vmatpush1.bf16.msra.mxu0 %v5208
    %5212 = vmatprep.subr.bf16.mxu0 0
    %5213 = vmatpush1.bf16.msra.mxu0 0
    %5214 = vmatprep.subr.bf16.mxu0 0
    %5215 = vmatpush1.bf16.msra.mxu0 0
    %5216 = vmatprep.subr.bf16.mxu0 0
    %5217 = vmatpush1.bf16.msra.mxu0 0
    %5218 = vmatprep.subr.bf16.mxu0 0
    %5219 = vmatpush1.bf16.msra.mxu0 0
    %5220 = vmatprep.subr.bf16.mxu0 0
    %5221 = vmatpush1.bf16.msra.mxu0 0
    %5222 = vmatprep.subr.bf16.mxu0 0
    %5223 = vmatpush1.bf16.msra.mxu0 0
    %5224 = vmatprep.subr.bf16.mxu0 0
    %5225 = vmatpush1.bf16.msra.mxu0 0
    %5226 = vmatprep.subr.bf16.mxu0 0
    %5227 = vmatpush1.bf16.msra.mxu0 0
    %5228 = vmatprep.subr.bf16.mxu0 0
    %5229 = vmatpush1.bf16.msra.mxu0 0
    %5230 = vmatprep.subr.bf16.mxu0 0
    %5231 = vmatpush1.bf16.msra.mxu0 0
    %5232 = vmatprep.subr.bf16.mxu0 0
    %5233 = vmatpush1.bf16.msra.mxu0 0
    %5234 = vmatprep.subr.bf16.mxu0 0
    %5235 = vmatpush1.bf16.msra.mxu0 0
    %5236 = vmatprep.subr.bf16.mxu0 0
    %5237 = vmatpush1.bf16.msra.mxu0 0
    %5238 = vmatprep.subr.bf16.mxu0 0
    %5239 = vmatpush1.bf16.msra.mxu0 0
    %5240 = vmatprep.subr.bf16.mxu0 0
    %5241 = vmatpush1.bf16.msra.mxu0 0
    %5242 = vmatprep.mubr.bf16.mxu0 0
    %5243 = vmatmul.mubr.bf16.gmra.mrb[0].mxu0 %v5205
    %v5244 = vpop.f32.mrb[0].mxu0
    %v5245 = vadd.f32 0.0, %v5244
    %v5246 = vpop.f32.mrb[0].mxu0
    %v5247 = vpop.f32.mrb[0].mxu0
    %v5248 = vadd.f32 0.0, %v5247
    %v5249 = vpop.f32.mrb[0].mxu0
    %5250 = vdwg.mxu0
    %v5252 = vsel %vm198, %v4980, 0
    %v5255 = vsel %vm324, %v4750, 0
    %5257 = vmatprep.subr.bf16.mxu0 0
    %5258 = vmatpush1.bf16.msra.mxu0 %v5255
    %5259 = vmatprep.subr.bf16.mxu0 0
    %5260 = vmatpush1.bf16.msra.mxu0 0
    %5261 = vmatprep.subr.bf16.mxu0 0
    %5262 = vmatpush1.bf16.msra.mxu0 0
    %5263 = vmatprep.subr.bf16.mxu0 0
    %5264 = vmatpush1.bf16.msra.mxu0 0
    %5265 = vmatprep.subr.bf16.mxu0 0
    %5266 = vmatpush1.bf16.msra.mxu0 0
    %5267 = vmatprep.subr.bf16.mxu0 0
    %5268 = vmatpush1.bf16.msra.mxu0 0
    %5269 = vmatprep.subr.bf16.mxu0 0
    %5270 = vmatpush1.bf16.msra.mxu0 0
    %5271 = vmatprep.subr.bf16.mxu0 0
    %5272 = vmatpush1.bf16.msra.mxu0 0
    %5273 = vmatprep.subr.bf16.mxu0 0
    %5274 = vmatpush1.bf16.msra.mxu0 0
    %5275 = vmatprep.subr.bf16.mxu0 0
    %5276 = vmatpush1.bf16.msra.mxu0 0
    %5277 = vmatprep.subr.bf16.mxu0 0
    %5278 = vmatpush1.bf16.msra.mxu0 0
    %5279 = vmatprep.subr.bf16.mxu0 0
    %5280 = vmatpush1.bf16.msra.mxu0 0
    %5281 = vmatprep.subr.bf16.mxu0 0
    %5282 = vmatpush1.bf16.msra.mxu0 0
    %5283 = vmatprep.subr.bf16.mxu0 0
    %5284 = vmatpush1.bf16.msra.mxu0 0
    %5285 = vmatprep.subr.bf16.mxu0 0
    %5286 = vmatpush1.bf16.msra.mxu0 0
    %5287 = vmatprep.subr.bf16.mxu0 0
    %5288 = vmatpush1.bf16.msra.mxu0 0
    %5289 = vmatprep.mubr.bf16.mxu0 0
    %5290 = vmatmul.mubr.bf16.gmra.mrb[0].mxu0 %v5252
    %v5291 = vpop.f32.mrb[0].mxu0
    %v5292 = vadd.f32 %v5245, %v5291
    %v5293 = vpop.f32.mrb[0].mxu0
    %v5294 = vpop.f32.mrb[0].mxu0
    %v5295 = vadd.f32 %v5248, %v5294
    %v5296 = vpop.f32.mrb[0].mxu0
    %5297 = vdwg.mxu0
    %5298 = vrot.lane.b32.xlu0 %v4754, 112
    %v5299 = vpop.permute.xlu0 %5298
    %5300 = vrot.lane.b32.xlu0 %v4756, 80
    %v5301 = vpop.permute.xlu0 %5300
    %v5303 = vsel %vm198, %v5299, 0
    %v5306 = vsel %vm198, %v5301, 0
    %5308 = vmatprep.subr.bf16.mxu0 0
    %5309 = vmatpush1.bf16.xpose.msra.mxu0 %v5306
    %5310 = vmatprep.subr.bf16.mxu0 0
    %5311 = vmatpush1.bf16.xpose.msra.mxu0 0
    %5312 = vmatprep.subr.bf16.mxu0 0
    %5313 = vmatpush1.bf16.xpose.msra.mxu0 0
    %5314 = vmatprep.subr.bf16.mxu0 0
    %5315 = vmatpush1.bf16.xpose.msra.mxu0 0
    %5316 = vmatprep.subr.bf16.mxu0 0
    %5317 = vmatpush1.bf16.xpose.msra.mxu0 0
    %5318 = vmatprep.subr.bf16.mxu0 0
    %5319 = vmatpush1.bf16.xpose.msra.mxu0 0
    %5320 = vmatprep.subr.bf16.mxu0 0
    %5321 = vmatpush1.bf16.xpose.msra.mxu0 0
    %5322 = vmatprep.subr.bf16.mxu0 0
    %5323 = vmatpush1.bf16.xpose.msra.mxu0 0
    %5324 = vmatprep.subr.bf16.mxu0 0
    %5325 = vmatpush1.bf16.xpose.msra.mxu0 0
    %5326 = vmatprep.subr.bf16.mxu0 0
    %5327 = vmatpush1.bf16.xpose.msra.mxu0 0
    %5328 = vmatprep.subr.bf16.mxu0 0
    %5329 = vmatpush1.bf16.xpose.msra.mxu0 0
    %5330 = vmatprep.subr.bf16.mxu0 0
    %5331 = vmatpush1.bf16.xpose.msra.mxu0 0
    %5332 = vmatprep.subr.bf16.mxu0 0
    %5333 = vmatpush1.bf16.xpose.msra.mxu0 0
    %5334 = vmatprep.subr.bf16.mxu0 0
    %5335 = vmatpush1.bf16.xpose.msra.mxu0 0
    %5336 = vmatprep.subr.bf16.mxu0 0
    %5337 = vmatpush1.bf16.xpose.msra.mxu0 0
    %5338 = vmatprep.subr.bf16.mxu0 0
    %5339 = vmatpush1.bf16.xpose.msra.mxu0 0
    %5340 = vmatprep.mubr.bf16.mxu0 0
    %5341 = vmatmul.mubr.bf16.gmra.mrb[0].mxu0 %v5303
    %v5342 = vpop.f32.mrb[0].mxu0
    %v5343 = vadd.f32 %v94, %v5342
    %v5344 = vpop.f32.mrb[0].mxu0
    %v5345 = vpop.f32.mrb[0].mxu0
    %v5346 = vpop.f32.mrb[0].mxu0
    %5347 = vdwg.mxu0
    %5348 = vrot.lane.b32.xlu0 %v4755, 112
    %v5349 = vpop.permute.xlu0 %5348
    %5350 = vrot.lane.b32.xlu0 %v4757, 80
    %v5351 = vpop.permute.xlu0 %5350
    %v5353 = vsel %vm198, %v5349, 0
    %v5356 = vsel %vm198, %v5351, 0
    %5358 = vmatprep.subr.bf16.mxu0 0
    %5359 = vmatpush1.bf16.xpose.msra.mxu0 %v5356
    %5360 = vmatprep.subr.bf16.mxu0 0
    %5361 = vmatpush1.bf16.xpose.msra.mxu0 0
    %5362 = vmatprep.subr.bf16.mxu0 0
    %5363 = vmatpush1.bf16.xpose.msra.mxu0 0
    %5364 = vmatprep.subr.bf16.mxu0 0
    %5365 = vmatpush1.bf16.xpose.msra.mxu0 0
    %5366 = vmatprep.subr.bf16.mxu0 0
    %5367 = vmatpush1.bf16.xpose.msra.mxu0 0
    %5368 = vmatprep.subr.bf16.mxu0 0
    %5369 = vmatpush1.bf16.xpose.msra.mxu0 0
    %5370 = vmatprep.subr.bf16.mxu0 0
    %5371 = vmatpush1.bf16.xpose.msra.mxu0 0
    %5372 = vmatprep.subr.bf16.mxu0 0
    %5373 = vmatpush1.bf16.xpose.msra.mxu0 0
    %5374 = vmatprep.subr.bf16.mxu0 0
    %5375 = vmatpush1.bf16.xpose.msra.mxu0 0
    %5376 = vmatprep.subr.bf16.mxu0 0
    %5377 = vmatpush1.bf16.xpose.msra.mxu0 0
    %5378 = vmatprep.subr.bf16.mxu0 0
    %5379 = vmatpush1.bf16.xpose.msra.mxu0 0
    %5380 = vmatprep.subr.bf16.mxu0 0
    %5381 = vmatpush1.bf16.xpose.msra.mxu0 0
    %5382 = vmatprep.subr.bf16.mxu0 0
    %5383 = vmatpush1.bf16.xpose.msra.mxu0 0
    %5384 = vmatprep.subr.bf16.mxu0 0
    %5385 = vmatpush1.bf16.xpose.msra.mxu0 0
    %5386 = vmatprep.subr.bf16.mxu0 0
    %5387 = vmatpush1.bf16.xpose.msra.mxu0 0
    %5388 = vmatprep.subr.bf16.mxu0 0
    %5389 = vmatpush1.bf16.xpose.msra.mxu0 0
    %5390 = vmatprep.mubr.bf16.mxu0 0
    %5391 = vmatmul.mubr.bf16.gmra.mrb[0].mxu0 %v5353
    %v5392 = vpop.f32.mrb[0].mxu0
    %v5393 = vadd.f32 %v94, %v5392
    %v5394 = vpop.f32.mrb[0].mxu0
    %v5395 = vpop.f32.mrb[0].mxu0
    %v5396 = vpop.f32.mrb[0].mxu0
    %5397 = vdwg.mxu0
    %v5398 = vsel %vm198, %v5343, -inf
    %5399 = vmax.xlane.f32.xlu0 %v5398
    %v5400 = vpop.xlane.xlu0 %5399
    %v5401 = vsel %vm198, %v5393, -inf
    %5402 = vmax.xlane.f32.xlu0 %v5401
    %v5403 = vpop.xlane.xlu0 %5402
    %v5404 = vsub.f32 %v5343, %v5400
    %v5405 = vsub.f32 %v5393, %v5403
    %v5406 = vmul.f32 %v5404, 1.442695
    %v5407 = vpow.pop %v5406
    %v5408 = vmul.f32 %v5405, 1.442695
    %v5409 = vpow.pop %v5408
    %v5410 = vsel %vm198, %v5407, 0.0
    %5411 = vadd.xlane.f32.xlu0 %v5410
    %v5412 = vpop.xlane.xlu0 %5411
    %v5413 = vsel %vm198, %v5409, 0.0
    %5414 = vadd.xlane.f32.xlu0 %v5413
    %v5415 = vpop.xlane.xlu0 %5414
    %v5416 = vrcp.pop %v5412
    %v5417 = vrcp.pop %v5415
    %v5418 = vmul.f32 %v5407, %v5416
    %v5419 = vmul.f32 %v5409, %v5417
    %v5420 = vpack.c.bf16 %v5418, %v5418
    %v5421 = vpack.c.bf16 %v5419, %v5419
    %5422 = vrot.lane.b32.xlu0 %v4758, 48
    %v5423 = vpop.permute.xlu0 %5422
    %v5425 = vsel %vm198, %v5420, 0
    %v5428 = vsel %vm324, %v5423, 0
    %5430 = vmatprep.subr.bf16.mxu0 0
    %5431 = vmatpush1.bf16.msra.mxu0 %v5428
    %5432 = vmatprep.subr.bf16.mxu0 0
    %5433 = vmatpush1.bf16.msra.mxu0 0
    %5434 = vmatprep.subr.bf16.mxu0 0
    %5435 = vmatpush1.bf16.msra.mxu0 0
    %5436 = vmatprep.subr.bf16.mxu0 0
    %5437 = vmatpush1.bf16.msra.mxu0 0
    %5438 = vmatprep.subr.bf16.mxu0 0
    %5439 = vmatpush1.bf16.msra.mxu0 0
    %5440 = vmatprep.subr.bf16.mxu0 0
    %5441 = vmatpush1.bf16.msra.mxu0 0
    %5442 = vmatprep.subr.bf16.mxu0 0
    %5443 = vmatpush1.bf16.msra.mxu0 0
    %5444 = vmatprep.subr.bf16.mxu0 0
    %5445 = vmatpush1.bf16.msra.mxu0 0
    %5446 = vmatprep.subr.bf16.mxu0 0
    %5447 = vmatpush1.bf16.msra.mxu0 0
    %5448 = vmatprep.subr.bf16.mxu0 0
    %5449 = vmatpush1.bf16.msra.mxu0 0
    %5450 = vmatprep.subr.bf16.mxu0 0
    %5451 = vmatpush1.bf16.msra.mxu0 0
    %5452 = vmatprep.subr.bf16.mxu0 0
    %5453 = vmatpush1.bf16.msra.mxu0 0
    %5454 = vmatprep.subr.bf16.mxu0 0
    %5455 = vmatpush1.bf16.msra.mxu0 0
    %5456 = vmatprep.subr.bf16.mxu0 0
    %5457 = vmatpush1.bf16.msra.mxu0 0
    %5458 = vmatprep.subr.bf16.mxu0 0
    %5459 = vmatpush1.bf16.msra.mxu0 0
    %5460 = vmatprep.subr.bf16.mxu0 0
    %5461 = vmatpush1.bf16.msra.mxu0 0
    %5462 = vmatprep.mubr.bf16.mxu0 0
    %5463 = vmatmul.mubr.bf16.gmra.mrb[0].mxu0 %v5425
    %v5464 = vpop.f32.mrb[0].mxu0
    %v5465 = vadd.f32 0.0, %v5464
    %v5466 = vpop.f32.mrb[0].mxu0
    %v5467 = vpop.f32.mrb[0].mxu0
    %v5468 = vpop.f32.mrb[0].mxu0
    %5469 = vdwg.mxu0
    %5470 = vrot.lane.b32.xlu0 %v4759, 48
    %v5471 = vpop.permute.xlu0 %5470
    %v5473 = vsel %vm198, %v5421, 0
    %v5476 = vsel %vm324, %v5471, 0
    %5478 = vmatprep.subr.bf16.mxu0 0
    %5479 = vmatpush1.bf16.msra.mxu0 %v5476
    %5480 = vmatprep.subr.bf16.mxu0 0
    %5481 = vmatpush1.bf16.msra.mxu0 0
    %5482 = vmatprep.subr.bf16.mxu0 0
    %5483 = vmatpush1.bf16.msra.mxu0 0
    %5484 = vmatprep.subr.bf16.mxu0 0
    %5485 = vmatpush1.bf16.msra.mxu0 0
    %5486 = vmatprep.subr.bf16.mxu0 0
    %5487 = vmatpush1.bf16.msra.mxu0 0
    %5488 = vmatprep.subr.bf16.mxu0 0
    %5489 = vmatpush1.bf16.msra.mxu0 0
    %5490 = vmatprep.subr.bf16.mxu0 0
    %5491 = vmatpush1.bf16.msra.mxu0 0
    %5492 = vmatprep.subr.bf16.mxu0 0
    %5493 = vmatpush1.bf16.msra.mxu0 0
    %5494 = vmatprep.subr.bf16.mxu0 0
    %5495 = vmatpush1.bf16.msra.mxu0 0
    %5496 = vmatprep.subr.bf16.mxu0 0
    %5497 = vmatpush1.bf16.msra.mxu0 0
    %5498 = vmatprep.subr.bf16.mxu0 0
    %5499 = vmatpush1.bf16.msra.mxu0 0
    %5500 = vmatprep.subr.bf16.mxu0 0
    %5501 = vmatpush1.bf16.msra.mxu0 0
    %5502 = vmatprep.subr.bf16.mxu0 0
    %5503 = vmatpush1.bf16.msra.mxu0 0
    %5504 = vmatprep.subr.bf16.mxu0 0
    %5505 = vmatpush1.bf16.msra.mxu0 0
    %5506 = vmatprep.subr.bf16.mxu0 0
    %5507 = vmatpush1.bf16.msra.mxu0 0
    %5508 = vmatprep.subr.bf16.mxu0 0
    %5509 = vmatpush1.bf16.msra.mxu0 0
    %5510 = vmatprep.mubr.bf16.mxu0 0
    %5511 = vmatmul.mubr.bf16.gmra.mrb[0].mxu0 %v5473
    %v5512 = vpop.f32.mrb[0].mxu0
    %v5513 = vadd.f32 0.0, %v5512
    %v5514 = vpop.f32.mrb[0].mxu0
    %v5515 = vpop.f32.mrb[0].mxu0
    %v5516 = vpop.f32.mrb[0].mxu0
    %5517 = vdwg.mxu0
    %v5518 = vpack.c.bf16 %v5513, %v5465
    %v5520 = vsel %vm198, %v5518, 0
    %v5523 = vsel %vm324, %v4752, 0
    %5525 = vmatprep.subr.bf16.mxu0 0
    %5526 = vmatpush1.bf16.msra.mxu0 %v5523
    %5527 = vmatprep.subr.bf16.mxu0 0
    %5528 = vmatpush1.bf16.msra.mxu0 0
    %5529 = vmatprep.subr.bf16.mxu0 0
    %5530 = vmatpush1.bf16.msra.mxu0 0
    %5531 = vmatprep.subr.bf16.mxu0 0
    %5532 = vmatpush1.bf16.msra.mxu0 0
    %5533 = vmatprep.subr.bf16.mxu0 0
    %5534 = vmatpush1.bf16.msra.mxu0 0
    %5535 = vmatprep.subr.bf16.mxu0 0
    %5536 = vmatpush1.bf16.msra.mxu0 0
    %5537 = vmatprep.subr.bf16.mxu0 0
    %5538 = vmatpush1.bf16.msra.mxu0 0
    %5539 = vmatprep.subr.bf16.mxu0 0
    %5540 = vmatpush1.bf16.msra.mxu0 0
    %5541 = vmatprep.subr.bf16.mxu0 0
    %5542 = vmatpush1.bf16.msra.mxu0 0
    %5543 = vmatprep.subr.bf16.mxu0 0
    %5544 = vmatpush1.bf16.msra.mxu0 0
    %5545 = vmatprep.subr.bf16.mxu0 0
    %5546 = vmatpush1.bf16.msra.mxu0 0
    %5547 = vmatprep.subr.bf16.mxu0 0
    %5548 = vmatpush1.bf16.msra.mxu0 0
    %5549 = vmatprep.subr.bf16.mxu0 0
    %5550 = vmatpush1.bf16.msra.mxu0 0
    %5551 = vmatprep.subr.bf16.mxu0 0
    %5552 = vmatpush1.bf16.msra.mxu0 0
    %5553 = vmatprep.subr.bf16.mxu0 0
    %5554 = vmatpush1.bf16.msra.mxu0 0
    %5555 = vmatprep.subr.bf16.mxu0 0
    %5556 = vmatpush1.bf16.msra.mxu0 0
    %5557 = vmatprep.mubr.bf16.mxu0 0
    %5558 = vmatmul.mubr.bf16.gmra.mrb[0].mxu0 %v5520
    %v5559 = vpop.f32.mrb[0].mxu0
    %v5560 = vadd.f32 0.0, %v5559
    %v5561 = vpop.f32.mrb[0].mxu0
    %v5562 = vpop.f32.mrb[0].mxu0
    %v5563 = vadd.f32 0.0, %v5562
    %v5564 = vpop.f32.mrb[0].mxu0
    %5565 = vdwg.mxu0
    %v5566 = vadd.f32 %v5292, %v5560
    %v5567 = vadd.f32 %v5295, %v5563
    %5568 = vrot.lane.b32.xlu0 %v4754, 104
    %v5569 = vpop.permute.xlu0 %5568
    %5570 = vrot.lane.b32.xlu0 %v4756, 72
    %v5571 = vpop.permute.xlu0 %5570
    %v5573 = vsel %vm198, %v5569, 0
    %v5576 = vsel %vm198, %v5571, 0
    %5578 = vmatprep.subr.bf16.mxu0 0
    %5579 = vmatpush1.bf16.xpose.msra.mxu0 %v5576
    %5580 = vmatprep.subr.bf16.mxu0 0
    %5581 = vmatpush1.bf16.xpose.msra.mxu0 0
    %5582 = vmatprep.subr.bf16.mxu0 0
    %5583 = vmatpush1.bf16.xpose.msra.mxu0 0
    %5584 = vmatprep.subr.bf16.mxu0 0
    %5585 = vmatpush1.bf16.xpose.msra.mxu0 0
    %5586 = vmatprep.subr.bf16.mxu0 0
    %5587 = vmatpush1.bf16.xpose.msra.mxu0 0
    %5588 = vmatprep.subr.bf16.mxu0 0
    %5589 = vmatpush1.bf16.xpose.msra.mxu0 0
    %5590 = vmatprep.subr.bf16.mxu0 0
    %5591 = vmatpush1.bf16.xpose.msra.mxu0 0
    %5592 = vmatprep.subr.bf16.mxu0 0
    %5593 = vmatpush1.bf16.xpose.msra.mxu0 0
    %5594 = vmatprep.subr.bf16.mxu0 0
    %5595 = vmatpush1.bf16.xpose.msra.mxu0 0
    %5596 = vmatprep.subr.bf16.mxu0 0
    %5597 = vmatpush1.bf16.xpose.msra.mxu0 0
    %5598 = vmatprep.subr.bf16.mxu0 0
    %5599 = vmatpush1.bf16.xpose.msra.mxu0 0
    %5600 = vmatprep.subr.bf16.mxu0 0
    %5601 = vmatpush1.bf16.xpose.msra.mxu0 0
    %5602 = vmatprep.subr.bf16.mxu0 0
    %5603 = vmatpush1.bf16.xpose.msra.mxu0 0
    %5604 = vmatprep.subr.bf16.mxu0 0
    %5605 = vmatpush1.bf16.xpose.msra.mxu0 0
    %5606 = vmatprep.subr.bf16.mxu0 0
    %5607 = vmatpush1.bf16.xpose.msra.mxu0 0
    %5608 = vmatprep.subr.bf16.mxu0 0
    %5609 = vmatpush1.bf16.xpose.msra.mxu0 0
    %5610 = vmatprep.mubr.bf16.mxu0 0
    %5611 = vmatmul.mubr.bf16.gmra.mrb[0].mxu0 %v5573
    %v5612 = vpop.f32.mrb[0].mxu0
    %v5613 = vadd.f32 %v94, %v5612
    %v5614 = vpop.f32.mrb[0].mxu0
    %v5615 = vpop.f32.mrb[0].mxu0
    %v5616 = vpop.f32.mrb[0].mxu0
    %5617 = vdwg.mxu0
    %5618 = vrot.lane.b32.xlu0 %v4755, 104
    %v5619 = vpop.permute.xlu0 %5618
    %5620 = vrot.lane.b32.xlu0 %v4757, 72
    %v5621 = vpop.permute.xlu0 %5620
    %v5623 = vsel %vm198, %v5619, 0
    %v5626 = vsel %vm198, %v5621, 0
    %5628 = vmatprep.subr.bf16.mxu0 0
    %5629 = vmatpush1.bf16.xpose.msra.mxu0 %v5626
    %5630 = vmatprep.subr.bf16.mxu0 0
    %5631 = vmatpush1.bf16.xpose.msra.mxu0 0
    %5632 = vmatprep.subr.bf16.mxu0 0
    %5633 = vmatpush1.bf16.xpose.msra.mxu0 0
    %5634 = vmatprep.subr.bf16.mxu0 0
    %5635 = vmatpush1.bf16.xpose.msra.mxu0 0
    %5636 = vmatprep.subr.bf16.mxu0 0
    %5637 = vmatpush1.bf16.xpose.msra.mxu0 0
    %5638 = vmatprep.subr.bf16.mxu0 0
    %5639 = vmatpush1.bf16.xpose.msra.mxu0 0
    %5640 = vmatprep.subr.bf16.mxu0 0
    %5641 = vmatpush1.bf16.xpose.msra.mxu0 0
    %5642 = vmatprep.subr.bf16.mxu0 0
    %5643 = vmatpush1.bf16.xpose.msra.mxu0 0
    %5644 = vmatprep.subr.bf16.mxu0 0
    %5645 = vmatpush1.bf16.xpose.msra.mxu0 0
    %5646 = vmatprep.subr.bf16.mxu0 0
    %5647 = vmatpush1.bf16.xpose.msra.mxu0 0
    %5648 = vmatprep.subr.bf16.mxu0 0
    %5649 = vmatpush1.bf16.xpose.msra.mxu0 0
    %5650 = vmatprep.subr.bf16.mxu0 0
    %5651 = vmatpush1.bf16.xpose.msra.mxu0 0
    %5652 = vmatprep.subr.bf16.mxu0 0
    %5653 = vmatpush1.bf16.xpose.msra.mxu0 0
    %5654 = vmatprep.subr.bf16.mxu0 0
    %5655 = vmatpush1.bf16.xpose.msra.mxu0 0
    %5656 = vmatprep.subr.bf16.mxu0 0
    %5657 = vmatpush1.bf16.xpose.msra.mxu0 0
    %5658 = vmatprep.subr.bf16.mxu0 0
    %5659 = vmatpush1.bf16.xpose.msra.mxu0 0
    %5660 = vmatprep.mubr.bf16.mxu0 0
    %5661 = vmatmul.mubr.bf16.gmra.mrb[0].mxu0 %v5623
    %v5662 = vpop.f32.mrb[0].mxu0
    %v5663 = vadd.f32 %v94, %v5662
    %v5664 = vpop.f32.mrb[0].mxu0
    %v5665 = vpop.f32.mrb[0].mxu0
    %v5666 = vpop.f32.mrb[0].mxu0
    %5667 = vdwg.mxu0
    %v5668 = vsel %vm198, %v5613, -inf
    %5669 = vmax.xlane.f32.xlu0 %v5668
    %v5670 = vpop.xlane.xlu0 %5669
    %v5671 = vsel %vm198, %v5663, -inf
    %5672 = vmax.xlane.f32.xlu0 %v5671
    %v5673 = vpop.xlane.xlu0 %5672
    %v5674 = vsub.f32 %v5613, %v5670
    %v5675 = vsub.f32 %v5663, %v5673
    %v5676 = vmul.f32 %v5674, 1.442695
    %v5677 = vpow.pop %v5676
    %v5678 = vmul.f32 %v5675, 1.442695
    %v5679 = vpow.pop %v5678
    %v5680 = vsel %vm198, %v5677, 0.0
    %5681 = vadd.xlane.f32.xlu0 %v5680
    %v5682 = vpop.xlane.xlu0 %5681
    %v5683 = vsel %vm198, %v5679, 0.0
    %5684 = vadd.xlane.f32.xlu0 %v5683
    %v5685 = vpop.xlane.xlu0 %5684
    %v5686 = vrcp.pop %v5682
    %v5687 = vrcp.pop %v5685
    %v5688 = vmul.f32 %v5677, %v5686
    %v5689 = vmul.f32 %v5679, %v5687
    %v5690 = vpack.c.bf16 %v5688, %v5688
    %v5691 = vpack.c.bf16 %v5689, %v5689
    %5692 = vrot.lane.b32.xlu0 %v4758, 40
    %v5693 = vpop.permute.xlu0 %5692
    %v5695 = vsel %vm198, %v5690, 0
    %v5698 = vsel %vm324, %v5693, 0
    %5700 = vmatprep.subr.bf16.mxu0 0
    %5701 = vmatpush1.bf16.msra.mxu0 %v5698
    %5702 = vmatprep.subr.bf16.mxu0 0
    %5703 = vmatpush1.bf16.msra.mxu0 0
    %5704 = vmatprep.subr.bf16.mxu0 0
    %5705 = vmatpush1.bf16.msra.mxu0 0
    %5706 = vmatprep.subr.bf16.mxu0 0
    %5707 = vmatpush1.bf16.msra.mxu0 0
    %5708 = vmatprep.subr.bf16.mxu0 0
    %5709 = vmatpush1.bf16.msra.mxu0 0
    %5710 = vmatprep.subr.bf16.mxu0 0
    %5711 = vmatpush1.bf16.msra.mxu0 0
    %5712 = vmatprep.subr.bf16.mxu0 0
    %5713 = vmatpush1.bf16.msra.mxu0 0
    %5714 = vmatprep.subr.bf16.mxu0 0
    %5715 = vmatpush1.bf16.msra.mxu0 0
    %5716 = vmatprep.subr.bf16.mxu0 0
    %5717 = vmatpush1.bf16.msra.mxu0 0
    %5718 = vmatprep.subr.bf16.mxu0 0
    %5719 = vmatpush1.bf16.msra.mxu0 0
    %5720 = vmatprep.subr.bf16.mxu0 0
    %5721 = vmatpush1.bf16.msra.mxu0 0
    %5722 = vmatprep.subr.bf16.mxu0 0
    %5723 = vmatpush1.bf16.msra.mxu0 0
    %5724 = vmatprep.subr.bf16.mxu0 0
    %5725 = vmatpush1.bf16.msra.mxu0 0
    %5726 = vmatprep.subr.bf16.mxu0 0
    %5727 = vmatpush1.bf16.msra.mxu0 0
    %5728 = vmatprep.subr.bf16.mxu0 0
    %5729 = vmatpush1.bf16.msra.mxu0 0
    %5730 = vmatprep.subr.bf16.mxu0 0
    %5731 = vmatpush1.bf16.msra.mxu0 0
    %5732 = vmatprep.mubr.bf16.mxu0 0
    %5733 = vmatmul.mubr.bf16.gmra.mrb[0].mxu0 %v5695
    %v5734 = vpop.f32.mrb[0].mxu0
    %v5735 = vadd.f32 0.0, %v5734
    %v5736 = vpop.f32.mrb[0].mxu0
    %v5737 = vpop.f32.mrb[0].mxu0
    %v5738 = vpop.f32.mrb[0].mxu0
    %5739 = vdwg.mxu0
    %5740 = vrot.lane.b32.xlu0 %v4759, 40
    %v5741 = vpop.permute.xlu0 %5740
    %v5743 = vsel %vm198, %v5691, 0
    %v5746 = vsel %vm324, %v5741, 0
    %5748 = vmatprep.subr.bf16.mxu0 0
    %5749 = vmatpush1.bf16.msra.mxu0 %v5746
    %5750 = vmatprep.subr.bf16.mxu0 0
    %5751 = vmatpush1.bf16.msra.mxu0 0
    %5752 = vmatprep.subr.bf16.mxu0 0
    %5753 = vmatpush1.bf16.msra.mxu0 0
    %5754 = vmatprep.subr.bf16.mxu0 0
    %5755 = vmatpush1.bf16.msra.mxu0 0
    %5756 = vmatprep.subr.bf16.mxu0 0
    %5757 = vmatpush1.bf16.msra.mxu0 0
    %5758 = vmatprep.subr.bf16.mxu0 0
    %5759 = vmatpush1.bf16.msra.mxu0 0
    %5760 = vmatprep.subr.bf16.mxu0 0
    %5761 = vmatpush1.bf16.msra.mxu0 0
    %5762 = vmatprep.subr.bf16.mxu0 0
    %5763 = vmatpush1.bf16.msra.mxu0 0
    %5764 = vmatprep.subr.bf16.mxu0 0
    %5765 = vmatpush1.bf16.msra.mxu0 0
    %5766 = vmatprep.subr.bf16.mxu0 0
    %5767 = vmatpush1.bf16.msra.mxu0 0
    %5768 = vmatprep.subr.bf16.mxu0 0
    %5769 = vmatpush1.bf16.msra.mxu0 0
    %5770 = vmatprep.subr.bf16.mxu0 0
    %5771 = vmatpush1.bf16.msra.mxu0 0
    %5772 = vmatprep.subr.bf16.mxu0 0
    %5773 = vmatpush1.bf16.msra.mxu0 0
    %5774 = vmatprep.subr.bf16.mxu0 0
    %5775 = vmatpush1.bf16.msra.mxu0 0
    %5776 = vmatprep.subr.bf16.mxu0 0
    %5777 = vmatpush1.bf16.msra.mxu0 0
    %5778 = vmatprep.subr.bf16.mxu0 0
    %5779 = vmatpush1.bf16.msra.mxu0 0
    %5780 = vmatprep.mubr.bf16.mxu0 0
    %5781 = vmatmul.mubr.bf16.gmra.mrb[0].mxu0 %v5743
    %v5782 = vpop.f32.mrb[0].mxu0
    %v5783 = vadd.f32 0.0, %v5782
    %v5784 = vpop.f32.mrb[0].mxu0
    %v5785 = vpop.f32.mrb[0].mxu0
    %v5786 = vpop.f32.mrb[0].mxu0
    %5787 = vdwg.mxu0
    %v5788 = vpack.c.bf16 %v5783, %v5735
    %v5790 = vsel %vm198, %v5788, 0
    %v5793 = vsel %vm324, %v4753, 0
    %5795 = vmatprep.subr.bf16.mxu0 0
    %5796 = vmatpush1.bf16.msra.mxu0 %v5793
    %5797 = vmatprep.subr.bf16.mxu0 0
    %5798 = vmatpush1.bf16.msra.mxu0 0
    %5799 = vmatprep.subr.bf16.mxu0 0
    %5800 = vmatpush1.bf16.msra.mxu0 0
    %5801 = vmatprep.subr.bf16.mxu0 0
    %5802 = vmatpush1.bf16.msra.mxu0 0
    %5803 = vmatprep.subr.bf16.mxu0 0
    %5804 = vmatpush1.bf16.msra.mxu0 0
    %5805 = vmatprep.subr.bf16.mxu0 0
    %5806 = vmatpush1.bf16.msra.mxu0 0
    %5807 = vmatprep.subr.bf16.mxu0 0
    %5808 = vmatpush1.bf16.msra.mxu0 0
    %5809 = vmatprep.subr.bf16.mxu0 0
    %5810 = vmatpush1.bf16.msra.mxu0 0
    %5811 = vmatprep.subr.bf16.mxu0 0
    %5812 = vmatpush1.bf16.msra.mxu0 0
    %5813 = vmatprep.subr.bf16.mxu0 0
    %5814 = vmatpush1.bf16.msra.mxu0 0
    %5815 = vmatprep.subr.bf16.mxu0 0
    %5816 = vmatpush1.bf16.msra.mxu0 0
    %5817 = vmatprep.subr.bf16.mxu0 0
    %5818 = vmatpush1.bf16.msra.mxu0 0
    %5819 = vmatprep.subr.bf16.mxu0 0
    %5820 = vmatpush1.bf16.msra.mxu0 0
    %5821 = vmatprep.subr.bf16.mxu0 0
    %5822 = vmatpush1.bf16.msra.mxu0 0
    %5823 = vmatprep.subr.bf16.mxu0 0
    %5824 = vmatpush1.bf16.msra.mxu0 0
    %5825 = vmatprep.subr.bf16.mxu0 0
    %5826 = vmatpush1.bf16.msra.mxu0 0
    %5827 = vmatprep.mubr.bf16.mxu0 0
    %5828 = vmatmul.mubr.bf16.gmra.mrb[0].mxu0 %v5790
    %v5829 = vpop.f32.mrb[0].mxu0
    %v5830 = vadd.f32 0.0, %v5829
    %v5831 = vpop.f32.mrb[0].mxu0
    %v5832 = vpop.f32.mrb[0].mxu0
    %v5833 = vadd.f32 0.0, %v5832
    %v5834 = vpop.f32.mrb[0].mxu0
    %5835 = vdwg.mxu0
    %v5836 = vadd.f32 %v5566, %v5830
    %v5837 = vadd.f32 %v5567, %v5833
    %v5838 = vlaneseq
    %v5839 = vshrl.u32 %v5838, 7
    %v5840 = vsub.s32 3, %v5839
    %v5841 = vrot.slane %v4661, %v5840
    %v5842 = vadd.f32 %v5836, %v5841
    %v5843 = vadd.f32 %v5837, %v5841
    %v5844 = vadd.f32 %v4659, %v5842
    %v5845 = vadd.f32 %v4660, %v5843
    %v5846 = vsel %vm114, %v5844, 0.0
    %5847 = vadd.xlane.f32.xlu0 %v5846
    %v5848 = vpop.xlane.xlu0 %5847
    %v5849 = vsel %vm114, %v5845, 0.0
    %5850 = vadd.xlane.f32.xlu0 %v5849
    %v5851 = vpop.xlane.xlu0 %5850
    %v5852 = vmul.f32 %v5848, %v1289
    %v5853 = vmul.f32 %v5851, %v1289
    %v5854 = vsub.f32 %v5844, %v5852
    %v5855 = vsub.f32 %v5845, %v5853
    %v5856 = vmul.f32 %v5854, %v5854
    %v5857 = vmul.f32 %v5855, %v5855
    %v5858 = vsel %vm114, %v5856, 0.0
    %5859 = vadd.xlane.f32.xlu0 %v5858
    %v5860 = vpop.xlane.xlu0 %5859
    %v5861 = vsel %vm114, %v5857, 0.0
    %5862 = vadd.xlane.f32.xlu0 %v5861
    %v5863 = vpop.xlane.xlu0 %5862
    %v5864 = vmul.f32 %v5860, %v1289
    %v5865 = vmul.f32 %v5863, %v1289
    %v5866 = vadd.f32 %v5864, 1e-05
    %v5867 = vadd.f32 %v5865, 1e-05
    %v5868 = vrsqrt.pop %v5866
    %v5869 = vrsqrt.pop %v5867
    %v5870 = vmul.f32 %v5854, %v5868
    %v5871 = vmul.f32 %v5855, %v5869
    %v5872 = vlaneseq
    %v5873 = vshrl.u32 %v5872, 7
    %v5874 = vsub.s32 0, %v5873
    %v5875 = vrot.slane %v4662, %v5874
    %v5876 = vmul.f32 %v5870, %v5875
    %v5877 = vmul.f32 %v5871, %v5875
    %v5878 = vlaneseq
    %v5879 = vshrl.u32 %v5878, 7
    %v5880 = vsub.s32 1, %v5879
    %v5881 = vrot.slane %v4662, %v5880
    %v5882 = vadd.f32 %v5876, %v5881
    %v5883 = vadd.f32 %v5877, %v5881
    %v5884 = vpack.c.bf16 %v5883, %v5882
    %v5885 = vld [vmem:[%s14] sm:$0xf]
    %v5886 = vld [vmem:[%s14 + $0x4] sm:$0xf]
    %v5887 = vld [vmem:[%s14 + $0x8] sm:$0xf]
    %v5888 = vld [vmem:[%s14 + $0xc] sm:$0xf]
    %v5889 = vlaneseq
    %v5890 = vshrl.u32 %v5889, 7
    %v5891 = vsub.s32 4, %v5890
    %v5892 = vrot.slane %v4661, %v5891
    %v5897 = vunpack.c.l.b16 %v5885
    %v5898 = vunpack.c.l.b16 %v5886
    %v5899 = vunpack.c.l.b16 %v5887
    %v5900 = vunpack.c.l.b16 %v5888
    %v5901 = vpack.c.b16 %v5898, %v5897
    %v5902 = vpack.c.b16 %v5900, %v5899
    %v5906 = vsel %vm114, %v5884, 0
    %5908 = vmatprep.subr.bf16.mxu0 0
    %5909 = vmatpush1.bf16.msra.mxu0 %v5901
    %5910 = vmatprep.subr.bf16.mxu0 0
    %5911 = vmatpush1.bf16.msra.mxu0 %v5902
    %5912 = vmatprep.subr.bf16.mxu0 0
    %5913 = vmatpush1.bf16.msra.mxu0 0
    %5914 = vmatprep.subr.bf16.mxu0 0
    %5915 = vmatpush1.bf16.msra.mxu0 0
    %5916 = vmatprep.subr.bf16.mxu0 0
    %5917 = vmatpush1.bf16.msra.mxu0 0
    %5918 = vmatprep.subr.bf16.mxu0 0
    %5919 = vmatpush1.bf16.msra.mxu0 0
    %5920 = vmatprep.subr.bf16.mxu0 0
    %5921 = vmatpush1.bf16.msra.mxu0 0
    %5922 = vmatprep.subr.bf16.mxu0 0
    %5923 = vmatpush1.bf16.msra.mxu0 0
    %5924 = vmatprep.subr.bf16.mxu0 0
    %5925 = vmatpush1.bf16.msra.mxu0 0
    %5926 = vmatprep.subr.bf16.mxu0 0
    %5927 = vmatpush1.bf16.msra.mxu0 0
    %5928 = vmatprep.subr.bf16.mxu0 0
    %5929 = vmatpush1.bf16.msra.mxu0 0
    %5930 = vmatprep.subr.bf16.mxu0 0
    %5931 = vmatpush1.bf16.msra.mxu0 0
    %5932 = vmatprep.subr.bf16.mxu0 0
    %5933 = vmatpush1.bf16.msra.mxu0 0
    %5934 = vmatprep.subr.bf16.mxu0 0
    %5935 = vmatpush1.bf16.msra.mxu0 0
    %5936 = vmatprep.subr.bf16.mxu0 0
    %5937 = vmatpush1.bf16.msra.mxu0 0
    %5938 = vmatprep.subr.bf16.mxu0 0
    %5939 = vmatpush1.bf16.msra.mxu0 0
    %5940 = vmatprep.mubr.bf16.mxu0 0
    %5941 = vmatmul.mubr.bf16.gmra.mrb[0].mxu0 %v5906
    %v5942 = vpop.f32.mrb[0].mxu0
    %v5943 = vadd.f32 %v5892, %v5942
    %v5944 = vpop.f32.mrb[0].mxu0
    %v5945 = vpop.f32.mrb[0].mxu0
    %v5946 = vadd.f32 %v5892, %v5945
    %v5947 = vpop.f32.mrb[0].mxu0
    %5948 = vdwg.mxu0
    %v5949 = vld [vmem:[%s15] sm:$0xf]
    %v5950 = vld [vmem:[%s15 + $0x4] sm:$0xf]
    %v5951 = vld [vmem:[%s15 + $0x8] sm:$0xf]
    %v5952 = vld [vmem:[%s15 + $0xc] sm:$0xf]
    %v5957 = vunpack.c.l.b16 %v5949
    %v5958 = vunpack.c.l.b16 %v5950
    %v5959 = vunpack.c.l.b16 %v5951
    %v5960 = vunpack.c.l.b16 %v5952
    %v5961 = vpack.c.b16 %v5958, %v5957
    %v5962 = vpack.c.b16 %v5960, %v5959
    %5965 = vmatprep.subr.bf16.mxu0 0
    %5966 = vmatpush1.bf16.msra.mxu0 %v5961
    %5967 = vmatprep.subr.bf16.mxu0 0
    %5968 = vmatpush1.bf16.msra.mxu0 %v5962
    %5969 = vmatprep.subr.bf16.mxu0 0
    %5970 = vmatpush1.bf16.msra.mxu0 0
    %5971 = vmatprep.subr.bf16.mxu0 0
    %5972 = vmatpush1.bf16.msra.mxu0 0
    %5973 = vmatprep.subr.bf16.mxu0 0
    %5974 = vmatpush1.bf16.msra.mxu0 0
    %5975 = vmatprep.subr.bf16.mxu0 0
    %5976 = vmatpush1.bf16.msra.mxu0 0
    %5977 = vmatprep.subr.bf16.mxu0 0
    %5978 = vmatpush1.bf16.msra.mxu0 0
    %5979 = vmatprep.subr.bf16.mxu0 0
    %5980 = vmatpush1.bf16.msra.mxu0 0
    %5981 = vmatprep.subr.bf16.mxu0 0
    %5982 = vmatpush1.bf16.msra.mxu0 0
    %5983 = vmatprep.subr.bf16.mxu0 0
    %5984 = vmatpush1.bf16.msra.mxu0 0
    %5985 = vmatprep.subr.bf16.mxu0 0
    %5986 = vmatpush1.bf16.msra.mxu0 0
    %5987 = vmatprep.subr.bf16.mxu0 0
    %5988 = vmatpush1.bf16.msra.mxu0 0
    %5989 = vmatprep.subr.bf16.mxu0 0
    %5990 = vmatpush1.bf16.msra.mxu0 0
    %5991 = vmatprep.subr.bf16.mxu0 0
    %5992 = vmatpush1.bf16.msra.mxu0 0
    %5993 = vmatprep.subr.bf16.mxu0 0
    %5994 = vmatpush1.bf16.msra.mxu0 0
    %5995 = vmatprep.subr.bf16.mxu0 0
    %5996 = vmatpush1.bf16.msra.mxu0 0
    %5997 = vmatprep.mubr.bf16.mxu0 0
    %5998 = vmatmul.mubr.bf16.gmra.mrb[0].mxu0 %v1404
    %v5999 = vpop.f32.mrb[0].mxu0
    %v6000 = vadd.f32 0.0, %v5999
    %v6001 = vpop.f32.mrb[0].mxu0
    %v6002 = vpop.f32.mrb[0].mxu0
    %v6003 = vadd.f32 0.0, %v6002
    %v6004 = vpop.f32.mrb[0].mxu0
    %6005 = vmatprep.mubr.bf16.mxu0 0
    %6006 = vmatmul.mubr.bf16.gmra.mrb[0].mxu0 %v1407
    %v6007 = vpop.f32.mrb[0].mxu0
    %v6008 = vadd.f32 0.0, %v6007
    %v6009 = vpop.f32.mrb[0].mxu0
    %v6010 = vpop.f32.mrb[0].mxu0
    %v6011 = vadd.f32 0.0, %v6010
    %v6012 = vpop.f32.mrb[0].mxu0
    %6013 = vdwg.mxu0
    %v6014 = vlaneseq
    %v6015 = vshrl.u32 %v6014, 7
    %v6016 = vsub.s32 5, %v6015
    %v6017 = vrot.slane %v4661, %v6016
    %v6018 = vadd.f32 %v6000, %v6017
    %v6019 = vadd.f32 %v6003, %v6017
    %v6020 = vadd.f32 %v6008, %v6017
    %v6021 = vadd.f32 %v6011, %v6017
    %v6022 = vlaneseq
    %v6023 = vshrl.u32 %v6022, 7
    %v6024 = vsub.s32 6, %v6023
    %v6025 = vrot.slane %v4661, %v6024
    %6027 = vrot.lane.b32.xlu0 %v6025, 32
    %v6028 = vpop.permute.xlu0 %6027
    %v6030 = vadd.f32 %v6000, %v6028
    %v6031 = vadd.f32 %v6003, %v6028
    %v6032 = vadd.f32 %v6008, %v6028
    %v6033 = vadd.f32 %v6011, %v6028
    %v6034 = vld [vmem:[%s16] sm:$0xf]
    %v6035 = vld [vmem:[%s16 + $0x4] sm:$0xf]
    %v6036 = vld [vmem:[%s16 + $0x8] sm:$0xf]
    %v6037 = vld [vmem:[%s16 + $0xc] sm:$0xf]
    %v6038 = vpack.c.bf16 %v5943, %v5943
    %v6039 = vpack.c.bf16 %v5946, %v5946
    %v6040 = vpack.c.bf16 %v6019, %v6018
    %v6041 = vpack.c.bf16 %v6021, %v6020
    %v6042 = vpack.c.bf16 %v6031, %v6030
    %v6043 = vpack.c.bf16 %v6033, %v6032
    %v6045 = vsel %vm198, %v6038, 0
    %v6048 = vsel %vm198, %v6040, 0
    %6050 = vmatprep.subr.bf16.mxu0 0
    %6051 = vmatpush1.bf16.xpose.msra.mxu0 %v6048
    %6052 = vmatprep.subr.bf16.mxu0 0
    %6053 = vmatpush1.bf16.xpose.msra.mxu0 0
    %6054 = vmatprep.subr.bf16.mxu0 0
    %6055 = vmatpush1.bf16.xpose.msra.mxu0 0
    %6056 = vmatprep.subr.bf16.mxu0 0
    %6057 = vmatpush1.bf16.xpose.msra.mxu0 0
    %6058 = vmatprep.subr.bf16.mxu0 0
    %6059 = vmatpush1.bf16.xpose.msra.mxu0 0
    %6060 = vmatprep.subr.bf16.mxu0 0
    %6061 = vmatpush1.bf16.xpose.msra.mxu0 0
    %6062 = vmatprep.subr.bf16.mxu0 0
    %6063 = vmatpush1.bf16.xpose.msra.mxu0 0
    %6064 = vmatprep.subr.bf16.mxu0 0
    %6065 = vmatpush1.bf16.xpose.msra.mxu0 0
    %6066 = vmatprep.subr.bf16.mxu0 0
    %6067 = vmatpush1.bf16.xpose.msra.mxu0 0
    %6068 = vmatprep.subr.bf16.mxu0 0
    %6069 = vmatpush1.bf16.xpose.msra.mxu0 0
    %6070 = vmatprep.subr.bf16.mxu0 0
    %6071 = vmatpush1.bf16.xpose.msra.mxu0 0
    %6072 = vmatprep.subr.bf16.mxu0 0
    %6073 = vmatpush1.bf16.xpose.msra.mxu0 0
    %6074 = vmatprep.subr.bf16.mxu0 0
    %6075 = vmatpush1.bf16.xpose.msra.mxu0 0
    %6076 = vmatprep.subr.bf16.mxu0 0
    %6077 = vmatpush1.bf16.xpose.msra.mxu0 0
    %6078 = vmatprep.subr.bf16.mxu0 0
    %6079 = vmatpush1.bf16.xpose.msra.mxu0 0
    %6080 = vmatprep.subr.bf16.mxu0 0
    %6081 = vmatpush1.bf16.xpose.msra.mxu0 0
    %6082 = vmatprep.mubr.bf16.mxu0 0
    %6083 = vmatmul.mubr.bf16.gmra.mrb[0].mxu0 %v6045
    %v6084 = vpop.f32.mrb[0].mxu0
    %v6085 = vadd.f32 0.0, %v6084
    %v6086 = vpop.f32.mrb[0].mxu0
    %v6087 = vpop.f32.mrb[0].mxu0
    %v6088 = vpop.f32.mrb[0].mxu0
    %6089 = vdwg.mxu0
    %v6091 = vsel %vm198, %v6039, 0
    %v6094 = vsel %vm198, %v6041, 0
    %6096 = vmatprep.subr.bf16.mxu0 0
    %6097 = vmatpush1.bf16.xpose.msra.mxu0 %v6094
    %6098 = vmatprep.subr.bf16.mxu0 0
    %6099 = vmatpush1.bf16.xpose.msra.mxu0 0
    %6100 = vmatprep.subr.bf16.mxu0 0
    %6101 = vmatpush1.bf16.xpose.msra.mxu0 0
    %6102 = vmatprep.subr.bf16.mxu0 0
    %6103 = vmatpush1.bf16.xpose.msra.mxu0 0
    %6104 = vmatprep.subr.bf16.mxu0 0
    %6105 = vmatpush1.bf16.xpose.msra.mxu0 0
    %6106 = vmatprep.subr.bf16.mxu0 0
    %6107 = vmatpush1.bf16.xpose.msra.mxu0 0
    %6108 = vmatprep.subr.bf16.mxu0 0
    %6109 = vmatpush1.bf16.xpose.msra.mxu0 0
    %6110 = vmatprep.subr.bf16.mxu0 0
    %6111 = vmatpush1.bf16.xpose.msra.mxu0 0
    %6112 = vmatprep.subr.bf16.mxu0 0
    %6113 = vmatpush1.bf16.xpose.msra.mxu0 0
    %6114 = vmatprep.subr.bf16.mxu0 0
    %6115 = vmatpush1.bf16.xpose.msra.mxu0 0
    %6116 = vmatprep.subr.bf16.mxu0 0
    %6117 = vmatpush1.bf16.xpose.msra.mxu0 0
    %6118 = vmatprep.subr.bf16.mxu0 0
    %6119 = vmatpush1.bf16.xpose.msra.mxu0 0
    %6120 = vmatprep.subr.bf16.mxu0 0
    %6121 = vmatpush1.bf16.xpose.msra.mxu0 0
    %6122 = vmatprep.subr.bf16.mxu0 0
    %6123 = vmatpush1.bf16.xpose.msra.mxu0 0
    %6124 = vmatprep.subr.bf16.mxu0 0
    %6125 = vmatpush1.bf16.xpose.msra.mxu0 0
    %6126 = vmatprep.subr.bf16.mxu0 0
    %6127 = vmatpush1.bf16.xpose.msra.mxu0 0
    %6128 = vmatprep.mubr.bf16.mxu0 0
    %6129 = vmatmul.mubr.bf16.gmra.mrb[0].mxu0 %v6091
    %v6130 = vpop.f32.mrb[0].mxu0
    %v6131 = vadd.f32 0.0, %v6130
    %v6132 = vpop.f32.mrb[0].mxu0
    %v6133 = vpop.f32.mrb[0].mxu0
    %v6134 = vpop.f32.mrb[0].mxu0
    %6135 = vdwg.mxu0
    %v6136 = vsel %vm1580, %v6085, -inf
    %6137 = vmax.xlane.f32.xlu0 %v6136
    %v6138 = vpop.xlane.xlu0 %6137
    %v6139 = vsel %vm1580, %v6131, -inf
    %6140 = vmax.xlane.f32.xlu0 %v6139
    %v6141 = vpop.xlane.xlu0 %6140
    %v6142 = vsub.f32 %v6085, %v6138
    %v6143 = vsub.f32 %v6131, %v6141
    %v6144 = vmul.f32 %v6142, 1.442695
    %v6145 = vpow.pop %v6144
    %v6146 = vmul.f32 %v6143, 1.442695
    %v6147 = vpow.pop %v6146
    %v6148 = vsel %vm1580, %v6145, 0.0
    %6149 = vadd.xlane.f32.xlu0 %v6148
    %v6150 = vpop.xlane.xlu0 %6149
    %v6151 = vsel %vm1580, %v6147, 0.0
    %6152 = vadd.xlane.f32.xlu0 %v6151
    %v6153 = vpop.xlane.xlu0 %6152
    %v6154 = vrcp.pop %v6150
    %v6155 = vrcp.pop %v6153
    %v6156 = vmul.f32 %v6145, %v6154
    %v6157 = vmul.f32 %v6147, %v6155
    %v6158 = vpack.c.bf16 %v6156, %v6156
    %v6159 = vpack.c.bf16 %v6157, %v6157
    %6161 = vrot.lane.b32.xlu0 %v6042, 96
    %v6162 = vpop.permute.xlu0 %6161
    %v6165 = vsel %vm1580, %v6158, 0
    %6167 = vmatprep.subr.bf16.mxu0 0
    %6168 = vmatpush1.bf16.msra.mxu0 %v6162
    %6169 = vmatprep.subr.bf16.mxu0 0
    %6170 = vmatpush1.bf16.msra.mxu0 0
    %6171 = vmatprep.subr.bf16.mxu0 0
    %6172 = vmatpush1.bf16.msra.mxu0 0
    %6173 = vmatprep.subr.bf16.mxu0 0
    %6174 = vmatpush1.bf16.msra.mxu0 0
    %6175 = vmatprep.subr.bf16.mxu0 0
    %6176 = vmatpush1.bf16.msra.mxu0 0
    %6177 = vmatprep.subr.bf16.mxu0 0
    %6178 = vmatpush1.bf16.msra.mxu0 0
    %6179 = vmatprep.subr.bf16.mxu0 0
    %6180 = vmatpush1.bf16.msra.mxu0 0
    %6181 = vmatprep.subr.bf16.mxu0 0
    %6182 = vmatpush1.bf16.msra.mxu0 0
    %6183 = vmatprep.subr.bf16.mxu0 0
    %6184 = vmatpush1.bf16.msra.mxu0 0
    %6185 = vmatprep.subr.bf16.mxu0 0
    %6186 = vmatpush1.bf16.msra.mxu0 0
    %6187 = vmatprep.subr.bf16.mxu0 0
    %6188 = vmatpush1.bf16.msra.mxu0 0
    %6189 = vmatprep.subr.bf16.mxu0 0
    %6190 = vmatpush1.bf16.msra.mxu0 0
    %6191 = vmatprep.subr.bf16.mxu0 0
    %6192 = vmatpush1.bf16.msra.mxu0 0
    %6193 = vmatprep.subr.bf16.mxu0 0
    %6194 = vmatpush1.bf16.msra.mxu0 0
    %6195 = vmatprep.subr.bf16.mxu0 0
    %6196 = vmatpush1.bf16.msra.mxu0 0
    %6197 = vmatprep.subr.bf16.mxu0 0
    %6198 = vmatpush1.bf16.msra.mxu0 0
    %6199 = vmatprep.mubr.bf16.mxu0 0
    %6200 = vmatmul.mubr.bf16.gmra.mrb[0].mxu0 %v6165
    %v6201 = vpop.f32.mrb[0].mxu0
    %v6202 = vadd.f32 0.0, %v6201
    %v6203 = vpop.f32.mrb[0].mxu0
    %v6204 = vpop.f32.mrb[0].mxu0
    %v6205 = vpop.f32.mrb[0].mxu0
    %6206 = vdwg.mxu0
    %6208 = vrot.lane.b32.xlu0 %v6043, 96
    %v6209 = vpop.permute.xlu0 %6208
    %v6212 = vsel %vm1580, %v6159, 0
    %6214 = vmatprep.subr.bf16.mxu0 0
    %6215 = vmatpush1.bf16.msra.mxu0 %v6209
    %6216 = vmatprep.subr.bf16.mxu0 0
    %6217 = vmatpush1.bf16.msra.mxu0 0
    %6218 = vmatprep.subr.bf16.mxu0 0
    %6219 = vmatpush1.bf16.msra.mxu0 0
    %6220 = vmatprep.subr.bf16.mxu0 0
    %6221 = vmatpush1.bf16.msra.mxu0 0
    %6222 = vmatprep.subr.bf16.mxu0 0
    %6223 = vmatpush1.bf16.msra.mxu0 0
    %6224 = vmatprep.subr.bf16.mxu0 0
    %6225 = vmatpush1.bf16.msra.mxu0 0
    %6226 = vmatprep.subr.bf16.mxu0 0
    %6227 = vmatpush1.bf16.msra.mxu0 0
    %6228 = vmatprep.subr.bf16.mxu0 0
    %6229 = vmatpush1.bf16.msra.mxu0 0
    %6230 = vmatprep.subr.bf16.mxu0 0
    %6231 = vmatpush1.bf16.msra.mxu0 0
    %6232 = vmatprep.subr.bf16.mxu0 0
    %6233 = vmatpush1.bf16.msra.mxu0 0
    %6234 = vmatprep.subr.bf16.mxu0 0
    %6235 = vmatpush1.bf16.msra.mxu0 0
    %6236 = vmatprep.subr.bf16.mxu0 0
    %6237 = vmatpush1.bf16.msra.mxu0 0
    %6238 = vmatprep.subr.bf16.mxu0 0
    %6239 = vmatpush1.bf16.msra.mxu0 0
    %6240 = vmatprep.subr.bf16.mxu0 0
    %6241 = vmatpush1.bf16.msra.mxu0 0
    %6242 = vmatprep.subr.bf16.mxu0 0
    %6243 = vmatpush1.bf16.msra.mxu0 0
    %6244 = vmatprep.subr.bf16.mxu0 0
    %6245 = vmatpush1.bf16.msra.mxu0 0
    %6246 = vmatprep.mubr.bf16.mxu0 0
    %6247 = vmatmul.mubr.bf16.gmra.mrb[0].mxu0 %v6212
    %v6248 = vpop.f32.mrb[0].mxu0
    %v6249 = vadd.f32 0.0, %v6248
    %v6250 = vpop.f32.mrb[0].mxu0
    %v6251 = vpop.f32.mrb[0].mxu0
    %v6252 = vpop.f32.mrb[0].mxu0
    %6253 = vdwg.mxu0
    %v6254 = vpack.c.bf16 %v6249, %v6202
    %6256 = vrot.lane.b32.xlu0 %v6038, 120
    %v6257 = vpop.permute.xlu0 %6256
    %6259 = vrot.lane.b32.xlu0 %v6040, 120
    %v6260 = vpop.permute.xlu0 %6259
    %v6262 = vsel %vm198, %v6257, 0
    %v6265 = vsel %vm198, %v6260, 0
    %6267 = vmatprep.subr.bf16.mxu0 0
    %6268 = vmatpush1.bf16.xpose.msra.mxu0 %v6265
    %6269 = vmatprep.subr.bf16.mxu0 0
    %6270 = vmatpush1.bf16.xpose.msra.mxu0 0
    %6271 = vmatprep.subr.bf16.mxu0 0
    %6272 = vmatpush1.bf16.xpose.msra.mxu0 0
    %6273 = vmatprep.subr.bf16.mxu0 0
    %6274 = vmatpush1.bf16.xpose.msra.mxu0 0
    %6275 = vmatprep.subr.bf16.mxu0 0
    %6276 = vmatpush1.bf16.xpose.msra.mxu0 0
    %6277 = vmatprep.subr.bf16.mxu0 0
    %6278 = vmatpush1.bf16.xpose.msra.mxu0 0
    %6279 = vmatprep.subr.bf16.mxu0 0
    %6280 = vmatpush1.bf16.xpose.msra.mxu0 0
    %6281 = vmatprep.subr.bf16.mxu0 0
    %6282 = vmatpush1.bf16.xpose.msra.mxu0 0
    %6283 = vmatprep.subr.bf16.mxu0 0
    %6284 = vmatpush1.bf16.xpose.msra.mxu0 0
    %6285 = vmatprep.subr.bf16.mxu0 0
    %6286 = vmatpush1.bf16.xpose.msra.mxu0 0
    %6287 = vmatprep.subr.bf16.mxu0 0
    %6288 = vmatpush1.bf16.xpose.msra.mxu0 0
    %6289 = vmatprep.subr.bf16.mxu0 0
    %6290 = vmatpush1.bf16.xpose.msra.mxu0 0
    %6291 = vmatprep.subr.bf16.mxu0 0
    %6292 = vmatpush1.bf16.xpose.msra.mxu0 0
    %6293 = vmatprep.subr.bf16.mxu0 0
    %6294 = vmatpush1.bf16.xpose.msra.mxu0 0
    %6295 = vmatprep.subr.bf16.mxu0 0
    %6296 = vmatpush1.bf16.xpose.msra.mxu0 0
    %6297 = vmatprep.subr.bf16.mxu0 0
    %6298 = vmatpush1.bf16.xpose.msra.mxu0 0
    %6299 = vmatprep.mubr.bf16.mxu0 0
    %6300 = vmatmul.mubr.bf16.gmra.mrb[0].mxu0 %v6262
    %v6301 = vpop.f32.mrb[0].mxu0
    %v6302 = vadd.f32 0.0, %v6301
    %v6303 = vpop.f32.mrb[0].mxu0
    %v6304 = vpop.f32.mrb[0].mxu0
    %v6305 = vpop.f32.mrb[0].mxu0
    %6306 = vdwg.mxu0
    %6308 = vrot.lane.b32.xlu0 %v6039, 120
    %v6309 = vpop.permute.xlu0 %6308
    %6311 = vrot.lane.b32.xlu0 %v6041, 120
    %v6312 = vpop.permute.xlu0 %6311
    %v6314 = vsel %vm198, %v6309, 0
    %v6317 = vsel %vm198, %v6312, 0
    %6319 = vmatprep.subr.bf16.mxu0 0
    %6320 = vmatpush1.bf16.xpose.msra.mxu0 %v6317
    %6321 = vmatprep.subr.bf16.mxu0 0
    %6322 = vmatpush1.bf16.xpose.msra.mxu0 0
    %6323 = vmatprep.subr.bf16.mxu0 0
    %6324 = vmatpush1.bf16.xpose.msra.mxu0 0
    %6325 = vmatprep.subr.bf16.mxu0 0
    %6326 = vmatpush1.bf16.xpose.msra.mxu0 0
    %6327 = vmatprep.subr.bf16.mxu0 0
    %6328 = vmatpush1.bf16.xpose.msra.mxu0 0
    %6329 = vmatprep.subr.bf16.mxu0 0
    %6330 = vmatpush1.bf16.xpose.msra.mxu0 0
    %6331 = vmatprep.subr.bf16.mxu0 0
    %6332 = vmatpush1.bf16.xpose.msra.mxu0 0
    %6333 = vmatprep.subr.bf16.mxu0 0
    %6334 = vmatpush1.bf16.xpose.msra.mxu0 0
    %6335 = vmatprep.subr.bf16.mxu0 0
    %6336 = vmatpush1.bf16.xpose.msra.mxu0 0
    %6337 = vmatprep.subr.bf16.mxu0 0
    %6338 = vmatpush1.bf16.xpose.msra.mxu0 0
    %6339 = vmatprep.subr.bf16.mxu0 0
    %6340 = vmatpush1.bf16.xpose.msra.mxu0 0
    %6341 = vmatprep.subr.bf16.mxu0 0
    %6342 = vmatpush1.bf16.xpose.msra.mxu0 0
    %6343 = vmatprep.subr.bf16.mxu0 0
    %6344 = vmatpush1.bf16.xpose.msra.mxu0 0
    %6345 = vmatprep.subr.bf16.mxu0 0
    %6346 = vmatpush1.bf16.xpose.msra.mxu0 0
    %6347 = vmatprep.subr.bf16.mxu0 0
    %6348 = vmatpush1.bf16.xpose.msra.mxu0 0
    %6349 = vmatprep.subr.bf16.mxu0 0
    %6350 = vmatpush1.bf16.xpose.msra.mxu0 0
    %6351 = vmatprep.mubr.bf16.mxu0 0
    %6352 = vmatmul.mubr.bf16.gmra.mrb[0].mxu0 %v6314
    %v6353 = vpop.f32.mrb[0].mxu0
    %v6354 = vadd.f32 0.0, %v6353
    %v6355 = vpop.f32.mrb[0].mxu0
    %v6356 = vpop.f32.mrb[0].mxu0
    %v6357 = vpop.f32.mrb[0].mxu0
    %6358 = vdwg.mxu0
    %v6359 = vsel %vm1580, %v6302, -inf
    %6360 = vmax.xlane.f32.xlu0 %v6359
    %v6361 = vpop.xlane.xlu0 %6360
    %v6362 = vsel %vm1580, %v6354, -inf
    %6363 = vmax.xlane.f32.xlu0 %v6362
    %v6364 = vpop.xlane.xlu0 %6363
    %v6365 = vsub.f32 %v6302, %v6361
    %v6366 = vsub.f32 %v6354, %v6364
    %v6367 = vmul.f32 %v6365, 1.442695
    %v6368 = vpow.pop %v6367
    %v6369 = vmul.f32 %v6366, 1.442695
    %v6370 = vpow.pop %v6369
    %v6371 = vsel %vm1580, %v6368, 0.0
    %6372 = vadd.xlane.f32.xlu0 %v6371
    %v6373 = vpop.xlane.xlu0 %6372
    %v6374 = vsel %vm1580, %v6370, 0.0
    %6375 = vadd.xlane.f32.xlu0 %v6374
    %v6376 = vpop.xlane.xlu0 %6375
    %v6377 = vrcp.pop %v6373
    %v6378 = vrcp.pop %v6376
    %v6379 = vmul.f32 %v6368, %v6377
    %v6380 = vmul.f32 %v6370, %v6378
    %v6381 = vpack.c.bf16 %v6379, %v6379
    %v6382 = vpack.c.bf16 %v6380, %v6380
    %6383 = vrot.lane.b32.xlu0 %v6042, 88
    %v6384 = vpop.permute.xlu0 %6383
    %v6387 = vsel %vm1580, %v6381, 0
    %6389 = vmatprep.subr.bf16.mxu0 0
    %6390 = vmatpush1.bf16.msra.mxu0 %v6384
    %6391 = vmatprep.subr.bf16.mxu0 0
    %6392 = vmatpush1.bf16.msra.mxu0 0
    %6393 = vmatprep.subr.bf16.mxu0 0
    %6394 = vmatpush1.bf16.msra.mxu0 0
    %6395 = vmatprep.subr.bf16.mxu0 0
    %6396 = vmatpush1.bf16.msra.mxu0 0
    %6397 = vmatprep.subr.bf16.mxu0 0
    %6398 = vmatpush1.bf16.msra.mxu0 0
    %6399 = vmatprep.subr.bf16.mxu0 0
    %6400 = vmatpush1.bf16.msra.mxu0 0
    %6401 = vmatprep.subr.bf16.mxu0 0
    %6402 = vmatpush1.bf16.msra.mxu0 0
    %6403 = vmatprep.subr.bf16.mxu0 0
    %6404 = vmatpush1.bf16.msra.mxu0 0
    %6405 = vmatprep.subr.bf16.mxu0 0
    %6406 = vmatpush1.bf16.msra.mxu0 0
    %6407 = vmatprep.subr.bf16.mxu0 0
    %6408 = vmatpush1.bf16.msra.mxu0 0
    %6409 = vmatprep.subr.bf16.mxu0 0
    %6410 = vmatpush1.bf16.msra.mxu0 0
    %6411 = vmatprep.subr.bf16.mxu0 0
    %6412 = vmatpush1.bf16.msra.mxu0 0
    %6413 = vmatprep.subr.bf16.mxu0 0
    %6414 = vmatpush1.bf16.msra.mxu0 0
    %6415 = vmatprep.subr.bf16.mxu0 0
    %6416 = vmatpush1.bf16.msra.mxu0 0
    %6417 = vmatprep.subr.bf16.mxu0 0
    %6418 = vmatpush1.bf16.msra.mxu0 0
    %6419 = vmatprep.subr.bf16.mxu0 0
    %6420 = vmatpush1.bf16.msra.mxu0 0
    %6421 = vmatprep.mubr.bf16.mxu0 0
    %6422 = vmatmul.mubr.bf16.gmra.mrb[0].mxu0 %v6387
    %v6423 = vpop.f32.mrb[0].mxu0
    %v6424 = vadd.f32 0.0, %v6423
    %v6425 = vpop.f32.mrb[0].mxu0
    %v6426 = vpop.f32.mrb[0].mxu0
    %v6427 = vpop.f32.mrb[0].mxu0
    %6428 = vdwg.mxu0
    %6429 = vrot.lane.b32.xlu0 %v6043, 88
    %v6430 = vpop.permute.xlu0 %6429
    %v6433 = vsel %vm1580, %v6382, 0
    %6435 = vmatprep.subr.bf16.mxu0 0
    %6436 = vmatpush1.bf16.msra.mxu0 %v6430
    %6437 = vmatprep.subr.bf16.mxu0 0
    %6438 = vmatpush1.bf16.msra.mxu0 0
    %6439 = vmatprep.subr.bf16.mxu0 0
    %6440 = vmatpush1.bf16.msra.mxu0 0
    %6441 = vmatprep.subr.bf16.mxu0 0
    %6442 = vmatpush1.bf16.msra.mxu0 0
    %6443 = vmatprep.subr.bf16.mxu0 0
    %6444 = vmatpush1.bf16.msra.mxu0 0
    %6445 = vmatprep.subr.bf16.mxu0 0
    %6446 = vmatpush1.bf16.msra.mxu0 0
    %6447 = vmatprep.subr.bf16.mxu0 0
    %6448 = vmatpush1.bf16.msra.mxu0 0
    %6449 = vmatprep.subr.bf16.mxu0 0
    %6450 = vmatpush1.bf16.msra.mxu0 0
    %6451 = vmatprep.subr.bf16.mxu0 0
    %6452 = vmatpush1.bf16.msra.mxu0 0
    %6453 = vmatprep.subr.bf16.mxu0 0
    %6454 = vmatpush1.bf16.msra.mxu0 0
    %6455 = vmatprep.subr.bf16.mxu0 0
    %6456 = vmatpush1.bf16.msra.mxu0 0
    %6457 = vmatprep.subr.bf16.mxu0 0
    %6458 = vmatpush1.bf16.msra.mxu0 0
    %6459 = vmatprep.subr.bf16.mxu0 0
    %6460 = vmatpush1.bf16.msra.mxu0 0
    %6461 = vmatprep.subr.bf16.mxu0 0
    %6462 = vmatpush1.bf16.msra.mxu0 0
    %6463 = vmatprep.subr.bf16.mxu0 0
    %6464 = vmatpush1.bf16.msra.mxu0 0
    %6465 = vmatprep.subr.bf16.mxu0 0
    %6466 = vmatpush1.bf16.msra.mxu0 0
    %6467 = vmatprep.mubr.bf16.mxu0 0
    %6468 = vmatmul.mubr.bf16.gmra.mrb[0].mxu0 %v6433
    %v6469 = vpop.f32.mrb[0].mxu0
    %v6470 = vadd.f32 0.0, %v6469
    %v6471 = vpop.f32.mrb[0].mxu0
    %v6472 = vpop.f32.mrb[0].mxu0
    %v6473 = vpop.f32.mrb[0].mxu0
    %6474 = vdwg.mxu0
    %v6475 = vpack.c.bf16 %v6470, %v6424
    %v6477 = vsel %vm198, %v6475, 0
    %v6480 = vsel %vm324, %v6035, 0
    %6482 = vmatprep.subr.bf16.mxu0 0
    %6483 = vmatpush1.bf16.msra.mxu0 %v6480
    %6484 = vmatprep.subr.bf16.mxu0 0
    %6485 = vmatpush1.bf16.msra.mxu0 0
    %6486 = vmatprep.subr.bf16.mxu0 0
    %6487 = vmatpush1.bf16.msra.mxu0 0
    %6488 = vmatprep.subr.bf16.mxu0 0
    %6489 = vmatpush1.bf16.msra.mxu0 0
    %6490 = vmatprep.subr.bf16.mxu0 0
    %6491 = vmatpush1.bf16.msra.mxu0 0
    %6492 = vmatprep.subr.bf16.mxu0 0
    %6493 = vmatpush1.bf16.msra.mxu0 0
    %6494 = vmatprep.subr.bf16.mxu0 0
    %6495 = vmatpush1.bf16.msra.mxu0 0
    %6496 = vmatprep.subr.bf16.mxu0 0
    %6497 = vmatpush1.bf16.msra.mxu0 0
    %6498 = vmatprep.subr.bf16.mxu0 0
    %6499 = vmatpush1.bf16.msra.mxu0 0
    %6500 = vmatprep.subr.bf16.mxu0 0
    %6501 = vmatpush1.bf16.msra.mxu0 0
    %6502 = vmatprep.subr.bf16.mxu0 0
    %6503 = vmatpush1.bf16.msra.mxu0 0
    %6504 = vmatprep.subr.bf16.mxu0 0
    %6505 = vmatpush1.bf16.msra.mxu0 0
    %6506 = vmatprep.subr.bf16.mxu0 0
    %6507 = vmatpush1.bf16.msra.mxu0 0
    %6508 = vmatprep.subr.bf16.mxu0 0
    %6509 = vmatpush1.bf16.msra.mxu0 0
    %6510 = vmatprep.subr.bf16.mxu0 0
    %6511 = vmatpush1.bf16.msra.mxu0 0
    %6512 = vmatprep.subr.bf16.mxu0 0
    %6513 = vmatpush1.bf16.msra.mxu0 0
    %6514 = vmatprep.mubr.bf16.mxu0 0
    %6515 = vmatmul.mubr.bf16.gmra.mrb[0].mxu0 %v6477
    %v6516 = vpop.f32.mrb[0].mxu0
    %v6517 = vadd.f32 0.0, %v6516
    %v6518 = vpop.f32.mrb[0].mxu0
    %v6519 = vpop.f32.mrb[0].mxu0
    %v6520 = vadd.f32 0.0, %v6519
    %v6521 = vpop.f32.mrb[0].mxu0
    %6522 = vdwg.mxu0
    %v6524 = vsel %vm198, %v6254, 0
    %v6527 = vsel %vm324, %v6034, 0
    %6529 = vmatprep.subr.bf16.mxu0 0
    %6530 = vmatpush1.bf16.msra.mxu0 %v6527
    %6531 = vmatprep.subr.bf16.mxu0 0
    %6532 = vmatpush1.bf16.msra.mxu0 0
    %6533 = vmatprep.subr.bf16.mxu0 0
    %6534 = vmatpush1.bf16.msra.mxu0 0
    %6535 = vmatprep.subr.bf16.mxu0 0
    %6536 = vmatpush1.bf16.msra.mxu0 0
    %6537 = vmatprep.subr.bf16.mxu0 0
    %6538 = vmatpush1.bf16.msra.mxu0 0
    %6539 = vmatprep.subr.bf16.mxu0 0
    %6540 = vmatpush1.bf16.msra.mxu0 0
    %6541 = vmatprep.subr.bf16.mxu0 0
    %6542 = vmatpush1.bf16.msra.mxu0 0
    %6543 = vmatprep.subr.bf16.mxu0 0
    %6544 = vmatpush1.bf16.msra.mxu0 0
    %6545 = vmatprep.subr.bf16.mxu0 0
    %6546 = vmatpush1.bf16.msra.mxu0 0
    %6547 = vmatprep.subr.bf16.mxu0 0
    %6548 = vmatpush1.bf16.msra.mxu0 0
    %6549 = vmatprep.subr.bf16.mxu0 0
    %6550 = vmatpush1.bf16.msra.mxu0 0
    %6551 = vmatprep.subr.bf16.mxu0 0
    %6552 = vmatpush1.bf16.msra.mxu0 0
    %6553 = vmatprep.subr.bf16.mxu0 0
    %6554 = vmatpush1.bf16.msra.mxu0 0
    %6555 = vmatprep.subr.bf16.mxu0 0
    %6556 = vmatpush1.bf16.msra.mxu0 0
    %6557 = vmatprep.subr.bf16.mxu0 0
    %6558 = vmatpush1.bf16.msra.mxu0 0
    %6559 = vmatprep.subr.bf16.mxu0 0
    %6560 = vmatpush1.bf16.msra.mxu0 0
    %6561 = vmatprep.mubr.bf16.mxu0 0
    %6562 = vmatmul.mubr.bf16.gmra.mrb[0].mxu0 %v6524
    %v6563 = vpop.f32.mrb[0].mxu0
    %v6564 = vadd.f32 %v6517, %v6563
    %v6565 = vpop.f32.mrb[0].mxu0
    %v6566 = vpop.f32.mrb[0].mxu0
    %v6567 = vadd.f32 %v6520, %v6566
    %v6568 = vpop.f32.mrb[0].mxu0
    %6569 = vdwg.mxu0
    %6570 = vrot.lane.b32.xlu0 %v6038, 112
    %v6571 = vpop.permute.xlu0 %6570
    %6572 = vrot.lane.b32.xlu0 %v6040, 112
    %v6573 = vpop.permute.xlu0 %6572
    %v6575 = vsel %vm198, %v6571, 0
    %v6578 = vsel %vm198, %v6573, 0
    %6580 = vmatprep.subr.bf16.mxu0 0
    %6581 = vmatpush1.bf16.xpose.msra.mxu0 %v6578
    %6582 = vmatprep.subr.bf16.mxu0 0
    %6583 = vmatpush1.bf16.xpose.msra.mxu0 0
    %6584 = vmatprep.subr.bf16.mxu0 0
    %6585 = vmatpush1.bf16.xpose.msra.mxu0 0
    %6586 = vmatprep.subr.bf16.mxu0 0
    %6587 = vmatpush1.bf16.xpose.msra.mxu0 0
    %6588 = vmatprep.subr.bf16.mxu0 0
    %6589 = vmatpush1.bf16.xpose.msra.mxu0 0
    %6590 = vmatprep.subr.bf16.mxu0 0
    %6591 = vmatpush1.bf16.xpose.msra.mxu0 0
    %6592 = vmatprep.subr.bf16.mxu0 0
    %6593 = vmatpush1.bf16.xpose.msra.mxu0 0
    %6594 = vmatprep.subr.bf16.mxu0 0
    %6595 = vmatpush1.bf16.xpose.msra.mxu0 0
    %6596 = vmatprep.subr.bf16.mxu0 0
    %6597 = vmatpush1.bf16.xpose.msra.mxu0 0
    %6598 = vmatprep.subr.bf16.mxu0 0
    %6599 = vmatpush1.bf16.xpose.msra.mxu0 0
    %6600 = vmatprep.subr.bf16.mxu0 0
    %6601 = vmatpush1.bf16.xpose.msra.mxu0 0
    %6602 = vmatprep.subr.bf16.mxu0 0
    %6603 = vmatpush1.bf16.xpose.msra.mxu0 0
    %6604 = vmatprep.subr.bf16.mxu0 0
    %6605 = vmatpush1.bf16.xpose.msra.mxu0 0
    %6606 = vmatprep.subr.bf16.mxu0 0
    %6607 = vmatpush1.bf16.xpose.msra.mxu0 0
    %6608 = vmatprep.subr.bf16.mxu0 0
    %6609 = vmatpush1.bf16.xpose.msra.mxu0 0
    %6610 = vmatprep.subr.bf16.mxu0 0
    %6611 = vmatpush1.bf16.xpose.msra.mxu0 0
    %6612 = vmatprep.mubr.bf16.mxu0 0
    %6613 = vmatmul.mubr.bf16.gmra.mrb[0].mxu0 %v6575
    %v6614 = vpop.f32.mrb[0].mxu0
    %v6615 = vadd.f32 0.0, %v6614
    %v6616 = vpop.f32.mrb[0].mxu0
    %v6617 = vpop.f32.mrb[0].mxu0
    %v6618 = vpop.f32.mrb[0].mxu0
    %6619 = vdwg.mxu0
    %6620 = vrot.lane.b32.xlu0 %v6039, 112
    %v6621 = vpop.permute.xlu0 %6620
    %6622 = vrot.lane.b32.xlu0 %v6041, 112
    %v6623 = vpop.permute.xlu0 %6622
    %v6625 = vsel %vm198, %v6621, 0
    %v6628 = vsel %vm198, %v6623, 0
    %6630 = vmatprep.subr.bf16.mxu0 0
    %6631 = vmatpush1.bf16.xpose.msra.mxu0 %v6628
    %6632 = vmatprep.subr.bf16.mxu0 0
    %6633 = vmatpush1.bf16.xpose.msra.mxu0 0
    %6634 = vmatprep.subr.bf16.mxu0 0
    %6635 = vmatpush1.bf16.xpose.msra.mxu0 0
    %6636 = vmatprep.subr.bf16.mxu0 0
    %6637 = vmatpush1.bf16.xpose.msra.mxu0 0
    %6638 = vmatprep.subr.bf16.mxu0 0
    %6639 = vmatpush1.bf16.xpose.msra.mxu0 0
    %6640 = vmatprep.subr.bf16.mxu0 0
    %6641 = vmatpush1.bf16.xpose.msra.mxu0 0
    %6642 = vmatprep.subr.bf16.mxu0 0
    %6643 = vmatpush1.bf16.xpose.msra.mxu0 0
    %6644 = vmatprep.subr.bf16.mxu0 0
    %6645 = vmatpush1.bf16.xpose.msra.mxu0 0
    %6646 = vmatprep.subr.bf16.mxu0 0
    %6647 = vmatpush1.bf16.xpose.msra.mxu0 0
    %6648 = vmatprep.subr.bf16.mxu0 0
    %6649 = vmatpush1.bf16.xpose.msra.mxu0 0
    %6650 = vmatprep.subr.bf16.mxu0 0
    %6651 = vmatpush1.bf16.xpose.msra.mxu0 0
    %6652 = vmatprep.subr.bf16.mxu0 0
    %6653 = vmatpush1.bf16.xpose.msra.mxu0 0
    %6654 = vmatprep.subr.bf16.mxu0 0
    %6655 = vmatpush1.bf16.xpose.msra.mxu0 0
    %6656 = vmatprep.subr.bf16.mxu0 0
    %6657 = vmatpush1.bf16.xpose.msra.mxu0 0
    %6658 = vmatprep.subr.bf16.mxu0 0
    %6659 = vmatpush1.bf16.xpose.msra.mxu0 0
    %6660 = vmatprep.subr.bf16.mxu0 0
    %6661 = vmatpush1.bf16.xpose.msra.mxu0 0
    %6662 = vmatprep.mubr.bf16.mxu0 0
    %6663 = vmatmul.mubr.bf16.gmra.mrb[0].mxu0 %v6625
    %v6664 = vpop.f32.mrb[0].mxu0
    %v6665 = vadd.f32 0.0, %v6664
    %v6666 = vpop.f32.mrb[0].mxu0
    %v6667 = vpop.f32.mrb[0].mxu0
    %v6668 = vpop.f32.mrb[0].mxu0
    %6669 = vdwg.mxu0
    %v6670 = vsel %vm1580, %v6615, -inf
    %6671 = vmax.xlane.f32.xlu0 %v6670
    %v6672 = vpop.xlane.xlu0 %6671
    %v6673 = vsel %vm1580, %v6665, -inf
    %6674 = vmax.xlane.f32.xlu0 %v6673
    %v6675 = vpop.xlane.xlu0 %6674
    %v6676 = vsub.f32 %v6615, %v6672
    %v6677 = vsub.f32 %v6665, %v6675
    %v6678 = vmul.f32 %v6676, 1.442695
    %v6679 = vpow.pop %v6678
    %v6680 = vmul.f32 %v6677, 1.442695
    %v6681 = vpow.pop %v6680
    %v6682 = vsel %vm1580, %v6679, 0.0
    %6683 = vadd.xlane.f32.xlu0 %v6682
    %v6684 = vpop.xlane.xlu0 %6683
    %v6685 = vsel %vm1580, %v6681, 0.0
    %6686 = vadd.xlane.f32.xlu0 %v6685
    %v6687 = vpop.xlane.xlu0 %6686
    %v6688 = vrcp.pop %v6684
    %v6689 = vrcp.pop %v6687
    %v6690 = vmul.f32 %v6679, %v6688
    %v6691 = vmul.f32 %v6681, %v6689
    %v6692 = vpack.c.bf16 %v6690, %v6690
    %v6693 = vpack.c.bf16 %v6691, %v6691
    %6694 = vrot.lane.b32.xlu0 %v6042, 80
    %v6695 = vpop.permute.xlu0 %6694
    %v6698 = vsel %vm1580, %v6692, 0
    %6700 = vmatprep.subr.bf16.mxu0 0
    %6701 = vmatpush1.bf16.msra.mxu0 %v6695
    %6702 = vmatprep.subr.bf16.mxu0 0
    %6703 = vmatpush1.bf16.msra.mxu0 0
    %6704 = vmatprep.subr.bf16.mxu0 0
    %6705 = vmatpush1.bf16.msra.mxu0 0
    %6706 = vmatprep.subr.bf16.mxu0 0
    %6707 = vmatpush1.bf16.msra.mxu0 0
    %6708 = vmatprep.subr.bf16.mxu0 0
    %6709 = vmatpush1.bf16.msra.mxu0 0
    %6710 = vmatprep.subr.bf16.mxu0 0
    %6711 = vmatpush1.bf16.msra.mxu0 0
    %6712 = vmatprep.subr.bf16.mxu0 0
    %6713 = vmatpush1.bf16.msra.mxu0 0
    %6714 = vmatprep.subr.bf16.mxu0 0
    %6715 = vmatpush1.bf16.msra.mxu0 0
    %6716 = vmatprep.subr.bf16.mxu0 0
    %6717 = vmatpush1.bf16.msra.mxu0 0
    %6718 = vmatprep.subr.bf16.mxu0 0
    %6719 = vmatpush1.bf16.msra.mxu0 0
    %6720 = vmatprep.subr.bf16.mxu0 0
    %6721 = vmatpush1.bf16.msra.mxu0 0
    %6722 = vmatprep.subr.bf16.mxu0 0
    %6723 = vmatpush1.bf16.msra.mxu0 0
    %6724 = vmatprep.subr.bf16.mxu0 0
    %6725 = vmatpush1.bf16.msra.mxu0 0
    %6726 = vmatprep.subr.bf16.mxu0 0
    %6727 = vmatpush1.bf16.msra.mxu0 0
    %6728 = vmatprep.subr.bf16.mxu0 0
    %6729 = vmatpush1.bf16.msra.mxu0 0
    %6730 = vmatprep.subr.bf16.mxu0 0
    %6731 = vmatpush1.bf16.msra.mxu0 0
    %6732 = vmatprep.mubr.bf16.mxu0 0
    %6733 = vmatmul.mubr.bf16.gmra.mrb[0].mxu0 %v6698
    %v6734 = vpop.f32.mrb[0].mxu0
    %v6735 = vadd.f32 0.0, %v6734
    %v6736 = vpop.f32.mrb[0].mxu0
    %v6737 = vpop.f32.mrb[0].mxu0
    %v6738 = vpop.f32.mrb[0].mxu0
    %6739 = vdwg.mxu0
    %6740 = vrot.lane.b32.xlu0 %v6043, 80
    %v6741 = vpop.permute.xlu0 %6740
    %v6744 = vsel %vm1580, %v6693, 0
    %6746 = vmatprep.subr.bf16.mxu0 0
    %6747 = vmatpush1.bf16.msra.mxu0 %v6741
    %6748 = vmatprep.subr.bf16.mxu0 0
    %6749 = vmatpush1.bf16.msra.mxu0 0
    %6750 = vmatprep.subr.bf16.mxu0 0
    %6751 = vmatpush1.bf16.msra.mxu0 0
    %6752 = vmatprep.subr.bf16.mxu0 0
    %6753 = vmatpush1.bf16.msra.mxu0 0
    %6754 = vmatprep.subr.bf16.mxu0 0
    %6755 = vmatpush1.bf16.msra.mxu0 0
    %6756 = vmatprep.subr.bf16.mxu0 0
    %6757 = vmatpush1.bf16.msra.mxu0 0
    %6758 = vmatprep.subr.bf16.mxu0 0
    %6759 = vmatpush1.bf16.msra.mxu0 0
    %6760 = vmatprep.subr.bf16.mxu0 0
    %6761 = vmatpush1.bf16.msra.mxu0 0
    %6762 = vmatprep.subr.bf16.mxu0 0
    %6763 = vmatpush1.bf16.msra.mxu0 0
    %6764 = vmatprep.subr.bf16.mxu0 0
    %6765 = vmatpush1.bf16.msra.mxu0 0
    %6766 = vmatprep.subr.bf16.mxu0 0
    %6767 = vmatpush1.bf16.msra.mxu0 0
    %6768 = vmatprep.subr.bf16.mxu0 0
    %6769 = vmatpush1.bf16.msra.mxu0 0
    %6770 = vmatprep.subr.bf16.mxu0 0
    %6771 = vmatpush1.bf16.msra.mxu0 0
    %6772 = vmatprep.subr.bf16.mxu0 0
    %6773 = vmatpush1.bf16.msra.mxu0 0
    %6774 = vmatprep.subr.bf16.mxu0 0
    %6775 = vmatpush1.bf16.msra.mxu0 0
    %6776 = vmatprep.subr.bf16.mxu0 0
    %6777 = vmatpush1.bf16.msra.mxu0 0
    %6778 = vmatprep.mubr.bf16.mxu0 0
    %6779 = vmatmul.mubr.bf16.gmra.mrb[0].mxu0 %v6744
    %v6780 = vpop.f32.mrb[0].mxu0
    %v6781 = vadd.f32 0.0, %v6780
    %v6782 = vpop.f32.mrb[0].mxu0
    %v6783 = vpop.f32.mrb[0].mxu0
    %v6784 = vpop.f32.mrb[0].mxu0
    %6785 = vdwg.mxu0
    %v6786 = vpack.c.bf16 %v6781, %v6735
    %v6788 = vsel %vm198, %v6786, 0
    %v6791 = vsel %vm324, %v6036, 0
    %6793 = vmatprep.subr.bf16.mxu0 0
    %6794 = vmatpush1.bf16.msra.mxu0 %v6791
    %6795 = vmatprep.subr.bf16.mxu0 0
    %6796 = vmatpush1.bf16.msra.mxu0 0
    %6797 = vmatprep.subr.bf16.mxu0 0
    %6798 = vmatpush1.bf16.msra.mxu0 0
    %6799 = vmatprep.subr.bf16.mxu0 0
    %6800 = vmatpush1.bf16.msra.mxu0 0
    %6801 = vmatprep.subr.bf16.mxu0 0
    %6802 = vmatpush1.bf16.msra.mxu0 0
    %6803 = vmatprep.subr.bf16.mxu0 0
    %6804 = vmatpush1.bf16.msra.mxu0 0
    %6805 = vmatprep.subr.bf16.mxu0 0
    %6806 = vmatpush1.bf16.msra.mxu0 0
    %6807 = vmatprep.subr.bf16.mxu0 0
    %6808 = vmatpush1.bf16.msra.mxu0 0
    %6809 = vmatprep.subr.bf16.mxu0 0
    %6810 = vmatpush1.bf16.msra.mxu0 0
    %6811 = vmatprep.subr.bf16.mxu0 0
    %6812 = vmatpush1.bf16.msra.mxu0 0
    %6813 = vmatprep.subr.bf16.mxu0 0
    %6814 = vmatpush1.bf16.msra.mxu0 0
    %6815 = vmatprep.subr.bf16.mxu0 0
    %6816 = vmatpush1.bf16.msra.mxu0 0
    %6817 = vmatprep.subr.bf16.mxu0 0
    %6818 = vmatpush1.bf16.msra.mxu0 0
    %6819 = vmatprep.subr.bf16.mxu0 0
    %6820 = vmatpush1.bf16.msra.mxu0 0
    %6821 = vmatprep.subr.bf16.mxu0 0
    %6822 = vmatpush1.bf16.msra.mxu0 0
    %6823 = vmatprep.subr.bf16.mxu0 0
    %6824 = vmatpush1.bf16.msra.mxu0 0
    %6825 = vmatprep.mubr.bf16.mxu0 0
    %6826 = vmatmul.mubr.bf16.gmra.mrb[0].mxu0 %v6788
    %v6827 = vpop.f32.mrb[0].mxu0
    %v6828 = vadd.f32 0.0, %v6827
    %v6829 = vpop.f32.mrb[0].mxu0
    %v6830 = vpop.f32.mrb[0].mxu0
    %v6831 = vadd.f32 0.0, %v6830
    %v6832 = vpop.f32.mrb[0].mxu0
    %6833 = vdwg.mxu0
    %v6834 = vadd.f32 %v6564, %v6828
    %v6835 = vadd.f32 %v6567, %v6831
    %6836 = vrot.lane.b32.xlu0 %v6038, 104
    %v6837 = vpop.permute.xlu0 %6836
    %6838 = vrot.lane.b32.xlu0 %v6040, 104
    %v6839 = vpop.permute.xlu0 %6838
    %v6841 = vsel %vm198, %v6837, 0
    %v6844 = vsel %vm198, %v6839, 0
    %6846 = vmatprep.subr.bf16.mxu0 0
    %6847 = vmatpush1.bf16.xpose.msra.mxu0 %v6844
    %6848 = vmatprep.subr.bf16.mxu0 0
    %6849 = vmatpush1.bf16.xpose.msra.mxu0 0
    %6850 = vmatprep.subr.bf16.mxu0 0
    %6851 = vmatpush1.bf16.xpose.msra.mxu0 0
    %6852 = vmatprep.subr.bf16.mxu0 0
    %6853 = vmatpush1.bf16.xpose.msra.mxu0 0
    %6854 = vmatprep.subr.bf16.mxu0 0
    %6855 = vmatpush1.bf16.xpose.msra.mxu0 0
    %6856 = vmatprep.subr.bf16.mxu0 0
    %6857 = vmatpush1.bf16.xpose.msra.mxu0 0
    %6858 = vmatprep.subr.bf16.mxu0 0
    %6859 = vmatpush1.bf16.xpose.msra.mxu0 0
    %6860 = vmatprep.subr.bf16.mxu0 0
    %6861 = vmatpush1.bf16.xpose.msra.mxu0 0
    %6862 = vmatprep.subr.bf16.mxu0 0
    %6863 = vmatpush1.bf16.xpose.msra.mxu0 0
    %6864 = vmatprep.subr.bf16.mxu0 0
    %6865 = vmatpush1.bf16.xpose.msra.mxu0 0
    %6866 = vmatprep.subr.bf16.mxu0 0
    %6867 = vmatpush1.bf16.xpose.msra.mxu0 0
    %6868 = vmatprep.subr.bf16.mxu0 0
    %6869 = vmatpush1.bf16.xpose.msra.mxu0 0
    %6870 = vmatprep.subr.bf16.mxu0 0
    %6871 = vmatpush1.bf16.xpose.msra.mxu0 0
    %6872 = vmatprep.subr.bf16.mxu0 0
    %6873 = vmatpush1.bf16.xpose.msra.mxu0 0
    %6874 = vmatprep.subr.bf16.mxu0 0
    %6875 = vmatpush1.bf16.xpose.msra.mxu0 0
    %6876 = vmatprep.subr.bf16.mxu0 0
    %6877 = vmatpush1.bf16.xpose.msra.mxu0 0
    %6878 = vmatprep.mubr.bf16.mxu0 0
    %6879 = vmatmul.mubr.bf16.gmra.mrb[0].mxu0 %v6841
    %v6880 = vpop.f32.mrb[0].mxu0
    %v6881 = vadd.f32 0.0, %v6880
    %v6882 = vpop.f32.mrb[0].mxu0
    %v6883 = vpop.f32.mrb[0].mxu0
    %v6884 = vpop.f32.mrb[0].mxu0
    %6885 = vdwg.mxu0
    %6886 = vrot.lane.b32.xlu0 %v6039, 104
    %v6887 = vpop.permute.xlu0 %6886
    %6888 = vrot.lane.b32.xlu0 %v6041, 104
    %v6889 = vpop.permute.xlu0 %6888
    %v6891 = vsel %vm198, %v6887, 0
    %v6894 = vsel %vm198, %v6889, 0
    %6896 = vmatprep.subr.bf16.mxu0 0
    %6897 = vmatpush1.bf16.xpose.msra.mxu0 %v6894
    %6898 = vmatprep.subr.bf16.mxu0 0
    %6899 = vmatpush1.bf16.xpose.msra.mxu0 0
    %6900 = vmatprep.subr.bf16.mxu0 0
    %6901 = vmatpush1.bf16.xpose.msra.mxu0 0
    %6902 = vmatprep.subr.bf16.mxu0 0
    %6903 = vmatpush1.bf16.xpose.msra.mxu0 0
    %6904 = vmatprep.subr.bf16.mxu0 0
    %6905 = vmatpush1.bf16.xpose.msra.mxu0 0
    %6906 = vmatprep.subr.bf16.mxu0 0
    %6907 = vmatpush1.bf16.xpose.msra.mxu0 0
    %6908 = vmatprep.subr.bf16.mxu0 0
    %6909 = vmatpush1.bf16.xpose.msra.mxu0 0
    %6910 = vmatprep.subr.bf16.mxu0 0
    %6911 = vmatpush1.bf16.xpose.msra.mxu0 0
    %6912 = vmatprep.subr.bf16.mxu0 0
    %6913 = vmatpush1.bf16.xpose.msra.mxu0 0
    %6914 = vmatprep.subr.bf16.mxu0 0
    %6915 = vmatpush1.bf16.xpose.msra.mxu0 0
    %6916 = vmatprep.subr.bf16.mxu0 0
    %6917 = vmatpush1.bf16.xpose.msra.mxu0 0
    %6918 = vmatprep.subr.bf16.mxu0 0
    %6919 = vmatpush1.bf16.xpose.msra.mxu0 0
    %6920 = vmatprep.subr.bf16.mxu0 0
    %6921 = vmatpush1.bf16.xpose.msra.mxu0 0
    %6922 = vmatprep.subr.bf16.mxu0 0
    %6923 = vmatpush1.bf16.xpose.msra.mxu0 0
    %6924 = vmatprep.subr.bf16.mxu0 0
    %6925 = vmatpush1.bf16.xpose.msra.mxu0 0
    %6926 = vmatprep.subr.bf16.mxu0 0
    %6927 = vmatpush1.bf16.xpose.msra.mxu0 0
    %6928 = vmatprep.mubr.bf16.mxu0 0
    %6929 = vmatmul.mubr.bf16.gmra.mrb[0].mxu0 %v6891
    %v6930 = vpop.f32.mrb[0].mxu0
    %v6931 = vadd.f32 0.0, %v6930
    %v6932 = vpop.f32.mrb[0].mxu0
    %v6933 = vpop.f32.mrb[0].mxu0
    %v6934 = vpop.f32.mrb[0].mxu0
    %6935 = vdwg.mxu0
    %v6936 = vsel %vm1580, %v6881, -inf
    %6937 = vmax.xlane.f32.xlu0 %v6936
    %v6938 = vpop.xlane.xlu0 %6937
    %v6939 = vsel %vm1580, %v6931, -inf
    %6940 = vmax.xlane.f32.xlu0 %v6939
    %v6941 = vpop.xlane.xlu0 %6940
    %v6942 = vsub.f32 %v6881, %v6938
    %v6943 = vsub.f32 %v6931, %v6941
    %v6944 = vmul.f32 %v6942, 1.442695
    %v6945 = vpow.pop %v6944
    %v6946 = vmul.f32 %v6943, 1.442695
    %v6947 = vpow.pop %v6946
    %v6948 = vsel %vm1580, %v6945, 0.0
    %6949 = vadd.xlane.f32.xlu0 %v6948
    %v6950 = vpop.xlane.xlu0 %6949
    %v6951 = vsel %vm1580, %v6947, 0.0
    %6952 = vadd.xlane.f32.xlu0 %v6951
    %v6953 = vpop.xlane.xlu0 %6952
    %v6954 = vrcp.pop %v6950
    %v6955 = vrcp.pop %v6953
    %v6956 = vmul.f32 %v6945, %v6954
    %v6957 = vmul.f32 %v6947, %v6955
    %v6958 = vpack.c.bf16 %v6956, %v6956
    %v6959 = vpack.c.bf16 %v6957, %v6957
    %6960 = vrot.lane.b32.xlu0 %v6042, 72
    %v6961 = vpop.permute.xlu0 %6960
    %v6964 = vsel %vm1580, %v6958, 0
    %6966 = vmatprep.subr.bf16.mxu0 0
    %6967 = vmatpush1.bf16.msra.mxu0 %v6961
    %6968 = vmatprep.subr.bf16.mxu0 0
    %6969 = vmatpush1.bf16.msra.mxu0 0
    %6970 = vmatprep.subr.bf16.mxu0 0
    %6971 = vmatpush1.bf16.msra.mxu0 0
    %6972 = vmatprep.subr.bf16.mxu0 0
    %6973 = vmatpush1.bf16.msra.mxu0 0
    %6974 = vmatprep.subr.bf16.mxu0 0
    %6975 = vmatpush1.bf16.msra.mxu0 0
    %6976 = vmatprep.subr.bf16.mxu0 0
    %6977 = vmatpush1.bf16.msra.mxu0 0
    %6978 = vmatprep.subr.bf16.mxu0 0
    %6979 = vmatpush1.bf16.msra.mxu0 0
    %6980 = vmatprep.subr.bf16.mxu0 0
    %6981 = vmatpush1.bf16.msra.mxu0 0
    %6982 = vmatprep.subr.bf16.mxu0 0
    %6983 = vmatpush1.bf16.msra.mxu0 0
    %6984 = vmatprep.subr.bf16.mxu0 0
    %6985 = vmatpush1.bf16.msra.mxu0 0
    %6986 = vmatprep.subr.bf16.mxu0 0
    %6987 = vmatpush1.bf16.msra.mxu0 0
    %6988 = vmatprep.subr.bf16.mxu0 0
    %6989 = vmatpush1.bf16.msra.mxu0 0
    %6990 = vmatprep.subr.bf16.mxu0 0
    %6991 = vmatpush1.bf16.msra.mxu0 0
    %6992 = vmatprep.subr.bf16.mxu0 0
    %6993 = vmatpush1.bf16.msra.mxu0 0
    %6994 = vmatprep.subr.bf16.mxu0 0
    %6995 = vmatpush1.bf16.msra.mxu0 0
    %6996 = vmatprep.subr.bf16.mxu0 0
    %6997 = vmatpush1.bf16.msra.mxu0 0
    %6998 = vmatprep.mubr.bf16.mxu0 0
    %6999 = vmatmul.mubr.bf16.gmra.mrb[0].mxu0 %v6964
    %v7000 = vpop.f32.mrb[0].mxu0
    %v7001 = vadd.f32 0.0, %v7000
    %v7002 = vpop.f32.mrb[0].mxu0
    %v7003 = vpop.f32.mrb[0].mxu0
    %v7004 = vpop.f32.mrb[0].mxu0
    %7005 = vdwg.mxu0
    %7006 = vrot.lane.b32.xlu0 %v6043, 72
    %v7007 = vpop.permute.xlu0 %7006
    %v7010 = vsel %vm1580, %v6959, 0
    %7012 = vmatprep.subr.bf16.mxu0 0
    %7013 = vmatpush1.bf16.msra.mxu0 %v7007
    %7014 = vmatprep.subr.bf16.mxu0 0
    %7015 = vmatpush1.bf16.msra.mxu0 0
    %7016 = vmatprep.subr.bf16.mxu0 0
    %7017 = vmatpush1.bf16.msra.mxu0 0
    %7018 = vmatprep.subr.bf16.mxu0 0
    %7019 = vmatpush1.bf16.msra.mxu0 0
    %7020 = vmatprep.subr.bf16.mxu0 0
    %7021 = vmatpush1.bf16.msra.mxu0 0
    %7022 = vmatprep.subr.bf16.mxu0 0
    %7023 = vmatpush1.bf16.msra.mxu0 0
    %7024 = vmatprep.subr.bf16.mxu0 0
    %7025 = vmatpush1.bf16.msra.mxu0 0
    %7026 = vmatprep.subr.bf16.mxu0 0
    %7027 = vmatpush1.bf16.msra.mxu0 0
    %7028 = vmatprep.subr.bf16.mxu0 0
    %7029 = vmatpush1.bf16.msra.mxu0 0
    %7030 = vmatprep.subr.bf16.mxu0 0
    %7031 = vmatpush1.bf16.msra.mxu0 0
    %7032 = vmatprep.subr.bf16.mxu0 0
    %7033 = vmatpush1.bf16.msra.mxu0 0
    %7034 = vmatprep.subr.bf16.mxu0 0
    %7035 = vmatpush1.bf16.msra.mxu0 0
    %7036 = vmatprep.subr.bf16.mxu0 0
    %7037 = vmatpush1.bf16.msra.mxu0 0
    %7038 = vmatprep.subr.bf16.mxu0 0
    %7039 = vmatpush1.bf16.msra.mxu0 0
    %7040 = vmatprep.subr.bf16.mxu0 0
    %7041 = vmatpush1.bf16.msra.mxu0 0
    %7042 = vmatprep.subr.bf16.mxu0 0
    %7043 = vmatpush1.bf16.msra.mxu0 0
    %7044 = vmatprep.mubr.bf16.mxu0 0
    %7045 = vmatmul.mubr.bf16.gmra.mrb[0].mxu0 %v7010
    %v7046 = vpop.f32.mrb[0].mxu0
    %v7047 = vadd.f32 0.0, %v7046
    %v7048 = vpop.f32.mrb[0].mxu0
    %v7049 = vpop.f32.mrb[0].mxu0
    %v7050 = vpop.f32.mrb[0].mxu0
    %7051 = vdwg.mxu0
    %v7052 = vpack.c.bf16 %v7047, %v7001
    %v7054 = vsel %vm198, %v7052, 0
    %v7057 = vsel %vm324, %v6037, 0
    %7059 = vmatprep.subr.bf16.mxu0 0
    %7060 = vmatpush1.bf16.msra.mxu0 %v7057
    %7061 = vmatprep.subr.bf16.mxu0 0
    %7062 = vmatpush1.bf16.msra.mxu0 0
    %7063 = vmatprep.subr.bf16.mxu0 0
    %7064 = vmatpush1.bf16.msra.mxu0 0
    %7065 = vmatprep.subr.bf16.mxu0 0
    %7066 = vmatpush1.bf16.msra.mxu0 0
    %7067 = vmatprep.subr.bf16.mxu0 0
    %7068 = vmatpush1.bf16.msra.mxu0 0
    %7069 = vmatprep.subr.bf16.mxu0 0
    %7070 = vmatpush1.bf16.msra.mxu0 0
    %7071 = vmatprep.subr.bf16.mxu0 0
    %7072 = vmatpush1.bf16.msra.mxu0 0
    %7073 = vmatprep.subr.bf16.mxu0 0
    %7074 = vmatpush1.bf16.msra.mxu0 0
    %7075 = vmatprep.subr.bf16.mxu0 0
    %7076 = vmatpush1.bf16.msra.mxu0 0
    %7077 = vmatprep.subr.bf16.mxu0 0
    %7078 = vmatpush1.bf16.msra.mxu0 0
    %7079 = vmatprep.subr.bf16.mxu0 0
    %7080 = vmatpush1.bf16.msra.mxu0 0
    %7081 = vmatprep.subr.bf16.mxu0 0
    %7082 = vmatpush1.bf16.msra.mxu0 0
    %7083 = vmatprep.subr.bf16.mxu0 0
    %7084 = vmatpush1.bf16.msra.mxu0 0
    %7085 = vmatprep.subr.bf16.mxu0 0
    %7086 = vmatpush1.bf16.msra.mxu0 0
    %7087 = vmatprep.subr.bf16.mxu0 0
    %7088 = vmatpush1.bf16.msra.mxu0 0
    %7089 = vmatprep.subr.bf16.mxu0 0
    %7090 = vmatpush1.bf16.msra.mxu0 0
    %7091 = vmatprep.mubr.bf16.mxu0 0
    %7092 = vmatmul.mubr.bf16.gmra.mrb[0].mxu0 %v7054
    %v7093 = vpop.f32.mrb[0].mxu0
    %v7094 = vadd.f32 0.0, %v7093
    %v7095 = vpop.f32.mrb[0].mxu0
    %v7096 = vpop.f32.mrb[0].mxu0
    %v7097 = vadd.f32 0.0, %v7096
    %v7098 = vpop.f32.mrb[0].mxu0
    %7099 = vdwg.mxu0
    %v7100 = vadd.f32 %v6834, %v7094
    %v7101 = vadd.f32 %v6835, %v7097
    %v7102 = vlaneseq
    %v7103 = vshrl.u32 %v7102, 7
    %v7104 = vsub.s32 7, %v7103
    %v7105 = vrot.slane %v4661, %v7104
    %v7106 = vadd.f32 %v7100, %v7105
    %v7107 = vadd.f32 %v7101, %v7105
    %v7108 = vadd.f32 %v5882, %v7106
    %v7109 = vadd.f32 %v5883, %v7107
    %v7110 = vsel %vm114, %v7108, 0.0
    %7111 = vadd.xlane.f32.xlu0 %v7110
    %v7112 = vpop.xlane.xlu0 %7111
    %v7113 = vsel %vm114, %v7109, 0.0
    %7114 = vadd.xlane.f32.xlu0 %v7113
    %v7115 = vpop.xlane.xlu0 %7114
    %v7116 = vmul.f32 %v7112, %v1289
    %v7117 = vmul.f32 %v7115, %v1289
    %v7118 = vsub.f32 %v7108, %v7116
    %v7119 = vsub.f32 %v7109, %v7117
    %v7120 = vmul.f32 %v7118, %v7118
    %v7121 = vmul.f32 %v7119, %v7119
    %v7122 = vsel %vm114, %v7120, 0.0
    %7123 = vadd.xlane.f32.xlu0 %v7122
    %v7124 = vpop.xlane.xlu0 %7123
    %v7125 = vsel %vm114, %v7121, 0.0
    %7126 = vadd.xlane.f32.xlu0 %v7125
    %v7127 = vpop.xlane.xlu0 %7126
    %v7128 = vmul.f32 %v7124, %v1289
    %v7129 = vmul.f32 %v7127, %v1289
    %v7130 = vadd.f32 %v7128, 1e-05
    %v7131 = vadd.f32 %v7129, 1e-05
    %v7132 = vrsqrt.pop %v7130
    %v7133 = vrsqrt.pop %v7131
    %v7134 = vmul.f32 %v7118, %v7132
    %v7135 = vmul.f32 %v7119, %v7133
    %v7136 = vlaneseq
    %v7137 = vshrl.u32 %v7136, 7
    %v7138 = vsub.s32 2, %v7137
    %v7139 = vrot.slane %v4662, %v7138
    %v7140 = vmul.f32 %v7134, %v7139
    %v7141 = vmul.f32 %v7135, %v7139
    %v7142 = vlaneseq
    %v7143 = vshrl.u32 %v7142, 7
    %v7144 = vsub.s32 3, %v7143
    %v7145 = vrot.slane %v4662, %v7144
    %v7146 = vadd.f32 %v7140, %v7145
    %v7147 = vadd.f32 %v7141, %v7145
    %v7148 = vpack.c.bf16 %v7147, %v7146
    %v7149 = vld [vmem:[%s17] sm:$0xff]
    %v7150 = vld [vmem:[%s17 + $0x8] sm:$0xff]
    %v7151 = vld [vmem:[%s17 + $0x10] sm:$0xff]
    %v7152 = vld [vmem:[%s17 + $0x18] sm:$0xff]
    %v7153 = vld [vmem:[%s17 + $0x20] sm:$0xff]
    %v7154 = vld [vmem:[%s17 + $0x28] sm:$0xff]
    %v7155 = vld [vmem:[%s17 + $0x30] sm:$0xff]
    %v7156 = vld [vmem:[%s17 + $0x38] sm:$0xff]
    %v7157 = vld [vmem:[%s17 + $0x40] sm:$0xff]
    %v7158 = vld [vmem:[%s17 + $0x48] sm:$0xff]
    %v7159 = vld [vmem:[%s17 + $0x50] sm:$0xff]
    %v7160 = vld [vmem:[%s17 + $0x58] sm:$0xff]
    %v7161 = vld [vmem:[%s17 + $0x60] sm:$0xff]
    %v7162 = vld [vmem:[%s17 + $0x68] sm:$0xff]
    %v7163 = vld [vmem:[%s17 + $0x70] sm:$0xff]
    %v7164 = vld [vmem:[%s17 + $0x78] sm:$0xff]
    %v7165 = vld [vmem:[%s17 + $0x80] sm:$0xff]
    %v7166 = vld [vmem:[%s17 + $0x88] sm:$0xff]
    %v7167 = vld [vmem:[%s17 + $0x90] sm:$0xff]
    %v7168 = vld [vmem:[%s17 + $0x98] sm:$0xff]
    %v7169 = vld [vmem:[%s17 + $0xa0] sm:$0xff]
    %v7170 = vld [vmem:[%s17 + $0xa8] sm:$0xff]
    %v7171 = vld [vmem:[%s17 + $0xb0] sm:$0xff]
    %v7172 = vld [vmem:[%s17 + $0xb8] sm:$0xff]
    %v7173 = vld [vmem:[%s17 + $0xc0] sm:$0xff]
    %v7174 = vld [vmem:[%s17 + $0xc8] sm:$0xff]
    %v7175 = vld [vmem:[%s17 + $0xd0] sm:$0xff]
    %v7176 = vld [vmem:[%s17 + $0xd8] sm:$0xff]
    %v7177 = vld [vmem:[%s17 + $0xe0] sm:$0xff]
    %v7178 = vld [vmem:[%s17 + $0xe8] sm:$0xff]
    %v7179 = vld [vmem:[%s17 + $0xf0] sm:$0xff]
    %v7180 = vld [vmem:[%s17 + $0xf8] sm:$0xff]
    %v7181 = vld [vmem:[%s20] sm:$0xff]
    %v7182 = vld [vmem:[%s20 + $0x8] sm:$0xff]
    %v7185 = vlaneseq
    %v7186 = vshrl.u32 %v7185, 7
    %v7187 = vsub.s32 0, %v7186
    %v7188 = vrot.slane %v7181, %v7187
    %v7189 = vlaneseq
    %v7190 = vshrl.u32 %v7189, 7
    %v7191 = vsub.s32 1, %v7190
    %v7192 = vrot.slane %v7181, %v7191
    %v7193 = vlaneseq
    %v7194 = vshrl.u32 %v7193, 7
    %v7195 = vsub.s32 2, %v7194
    %v7196 = vrot.slane %v7181, %v7195
    %v7197 = vlaneseq
    %v7198 = vshrl.u32 %v7197, 7
    %v7199 = vsub.s32 3, %v7198
    %v7200 = vrot.slane %v7181, %v7199
    %v7201 = vlaneseq
    %v7202 = vshrl.u32 %v7201, 7
    %v7203 = vsub.s32 4, %v7202
    %v7204 = vrot.slane %v7181, %v7203
    %v7205 = vlaneseq
    %v7206 = vshrl.u32 %v7205, 7
    %v7207 = vsub.s32 5, %v7206
    %v7208 = vrot.slane %v7181, %v7207
    %v7209 = vlaneseq
    %v7210 = vshrl.u32 %v7209, 7
    %v7211 = vsub.s32 6, %v7210
    %v7212 = vrot.slane %v7181, %v7211
    %v7213 = vlaneseq
    %v7214 = vshrl.u32 %v7213, 7
    %v7215 = vsub.s32 7, %v7214
    %v7216 = vrot.slane %v7181, %v7215
    %v7217 = vlaneseq
    %v7218 = vshrl.u32 %v7217, 7
    %v7219 = vsub.s32 0, %v7218
    %v7220 = vrot.slane %v7182, %v7219
    %v7221 = vlaneseq
    %v7222 = vshrl.u32 %v7221, 7
    %v7223 = vsub.s32 1, %v7222
    %v7224 = vrot.slane %v7182, %v7223
    %v7225 = vlaneseq
    %v7226 = vshrl.u32 %v7225, 7
    %v7227 = vsub.s32 2, %v7226
    %v7228 = vrot.slane %v7182, %v7227
    %v7229 = vlaneseq
    %v7230 = vshrl.u32 %v7229, 7
    %v7231 = vsub.s32 3, %v7230
    %v7232 = vrot.slane %v7182, %v7231
    %v7233 = vlaneseq
    %v7234 = vshrl.u32 %v7233, 7
    %v7235 = vsub.s32 4, %v7234
    %v7236 = vrot.slane %v7182, %v7235
    %v7237 = vlaneseq
    %v7238 = vshrl.u32 %v7237, 7
    %v7239 = vsub.s32 5, %v7238
    %v7240 = vrot.slane %v7182, %v7239
    %v7241 = vlaneseq
    %v7242 = vshrl.u32 %v7241, 7
    %v7243 = vsub.s32 6, %v7242
    %v7244 = vrot.slane %v7182, %v7243
    %v7245 = vlaneseq
    %v7246 = vshrl.u32 %v7245, 7
    %v7247 = vsub.s32 7, %v7246
    %v7248 = vrot.slane %v7182, %v7247
    %v7297 = vunpack.c.l.b16 %v7149
    %v7298 = vunpack.c.h.b16 %v7149
    %v7299 = vunpack.c.l.b16 %v7150
    %v7300 = vunpack.c.h.b16 %v7150
    %v7301 = vunpack.c.l.b16 %v7151
    %v7302 = vunpack.c.h.b16 %v7151
    %v7303 = vunpack.c.l.b16 %v7152
    %v7304 = vunpack.c.h.b16 %v7152
    %v7305 = vunpack.c.l.b16 %v7153
    %v7306 = vunpack.c.h.b16 %v7153
    %v7307 = vunpack.c.l.b16 %v7154
    %v7308 = vunpack.c.h.b16 %v7154
    %v7309 = vunpack.c.l.b16 %v7155
    %v7310 = vunpack.c.h.b16 %v7155
    %v7311 = vunpack.c.l.b16 %v7156
    %v7312 = vunpack.c.h.b16 %v7156
    %v7313 = vunpack.c.l.b16 %v7157
    %v7314 = vunpack.c.h.b16 %v7157
    %v7315 = vunpack.c.l.b16 %v7158
    %v7316 = vunpack.c.h.b16 %v7158
    %v7317 = vunpack.c.l.b16 %v7159
    %v7318 = vunpack.c.h.b16 %v7159
    %v7319 = vunpack.c.l.b16 %v7160
    %v7320 = vunpack.c.h.b16 %v7160
    %v7321 = vunpack.c.l.b16 %v7161
    %v7322 = vunpack.c.h.b16 %v7161
    %v7323 = vunpack.c.l.b16 %v7162
    %v7324 = vunpack.c.h.b16 %v7162
    %v7325 = vunpack.c.l.b16 %v7163
    %v7326 = vunpack.c.h.b16 %v7163
    %v7327 = vunpack.c.l.b16 %v7164
    %v7328 = vunpack.c.h.b16 %v7164
    %v7329 = vunpack.c.l.b16 %v7165
    %v7330 = vunpack.c.h.b16 %v7165
    %v7331 = vunpack.c.l.b16 %v7166
    %v7332 = vunpack.c.h.b16 %v7166
    %v7333 = vunpack.c.l.b16 %v7167
    %v7334 = vunpack.c.h.b16 %v7167
    %v7335 = vunpack.c.l.b16 %v7168
    %v7336 = vunpack.c.h.b16 %v7168
    %v7337 = vunpack.c.l.b16 %v7169
    %v7338 = vunpack.c.h.b16 %v7169
    %v7339 = vunpack.c.l.b16 %v7170
    %v7340 = vunpack.c.h.b16 %v7170
    %v7341 = vunpack.c.l.b16 %v7171
    %v7342 = vunpack.c.h.b16 %v7171
    %v7343 = vunpack.c.l.b16 %v7172
    %v7344 = vunpack.c.h.b16 %v7172
    %v7345 = vunpack.c.l.b16 %v7173
    %v7346 = vunpack.c.h.b16 %v7173
    %v7347 = vunpack.c.l.b16 %v7174
    %v7348 = vunpack.c.h.b16 %v7174
    %v7349 = vunpack.c.l.b16 %v7175
    %v7350 = vunpack.c.h.b16 %v7175
    %v7351 = vunpack.c.l.b16 %v7176
    %v7352 = vunpack.c.h.b16 %v7176
    %v7353 = vunpack.c.l.b16 %v7177
    %v7354 = vunpack.c.h.b16 %v7177
    %v7355 = vunpack.c.l.b16 %v7178
    %v7356 = vunpack.c.h.b16 %v7178
    %v7357 = vunpack.c.l.b16 %v7179
    %v7358 = vunpack.c.h.b16 %v7179
    %v7359 = vunpack.c.l.b16 %v7180
    %v7360 = vunpack.c.h.b16 %v7180
    %v7361 = vpack.c.b16 %v7313, %v7297
    %v7362 = vpack.c.b16 %v7314, %v7298
    %v7363 = vpack.c.b16 %v7315, %v7299
    %v7364 = vpack.c.b16 %v7316, %v7300
    %v7365 = vpack.c.b16 %v7317, %v7301
    %v7366 = vpack.c.b16 %v7318, %v7302
    %v7367 = vpack.c.b16 %v7319, %v7303
    %v7368 = vpack.c.b16 %v7320, %v7304
    %v7369 = vpack.c.b16 %v7321, %v7305
    %v7370 = vpack.c.b16 %v7322, %v7306
    %v7371 = vpack.c.b16 %v7323, %v7307
    %v7372 = vpack.c.b16 %v7324, %v7308
    %v7373 = vpack.c.b16 %v7325, %v7309
    %v7374 = vpack.c.b16 %v7326, %v7310
    %v7375 = vpack.c.b16 %v7327, %v7311
    %v7376 = vpack.c.b16 %v7328, %v7312
    %v7377 = vpack.c.b16 %v7345, %v7329
    %v7378 = vpack.c.b16 %v7346, %v7330
    %v7379 = vpack.c.b16 %v7347, %v7331
    %v7380 = vpack.c.b16 %v7348, %v7332
    %v7381 = vpack.c.b16 %v7349, %v7333
    %v7382 = vpack.c.b16 %v7350, %v7334
    %v7383 = vpack.c.b16 %v7351, %v7335
    %v7384 = vpack.c.b16 %v7352, %v7336
    %v7385 = vpack.c.b16 %v7353, %v7337
    %v7386 = vpack.c.b16 %v7354, %v7338
    %v7387 = vpack.c.b16 %v7355, %v7339
    %v7388 = vpack.c.b16 %v7356, %v7340
    %v7389 = vpack.c.b16 %v7357, %v7341
    %v7390 = vpack.c.b16 %v7358, %v7342
    %v7391 = vpack.c.b16 %v7359, %v7343
    %v7392 = vpack.c.b16 %v7360, %v7344
    %v7426 = vsel %vm114, %v7148, 0
    %7428 = vmatprep.subr.bf16.mxu0 %v7362
    %7429 = vmatpush1.bf16.msra.mxu0 %v7361
    %7430 = vmatprep.subr.bf16.mxu0 %v7378
    %7431 = vmatpush1.bf16.msra.mxu0 %v7377
    %7432 = vmatprep.subr.bf16.mxu0 0
    %7433 = vmatpush1.bf16.msra.mxu0 0
    %7434 = vmatprep.subr.bf16.mxu0 0
    %7435 = vmatpush1.bf16.msra.mxu0 0
    %7436 = vmatprep.subr.bf16.mxu0 0
    %7437 = vmatpush1.bf16.msra.mxu0 0
    %7438 = vmatprep.subr.bf16.mxu0 0
    %7439 = vmatpush1.bf16.msra.mxu0 0
    %7440 = vmatprep.subr.bf16.mxu0 0
    %7441 = vmatpush1.bf16.msra.mxu0 0
    %7442 = vmatprep.subr.bf16.mxu0 0
    %7443 = vmatpush1.bf16.msra.mxu0 0
    %7444 = vmatprep.subr.bf16.mxu0 0
    %7445 = vmatpush1.bf16.msra.mxu0 0
    %7446 = vmatprep.subr.bf16.mxu0 0
    %7447 = vmatpush1.bf16.msra.mxu0 0
    %7448 = vmatprep.subr.bf16.mxu0 0
    %7449 = vmatpush1.bf16.msra.mxu0 0
    %7450 = vmatprep.subr.bf16.mxu0 0
    %7451 = vmatpush1.bf16.msra.mxu0 0
    %7452 = vmatprep.subr.bf16.mxu0 0
    %7453 = vmatpush1.bf16.msra.mxu0 0
    %7454 = vmatprep.subr.bf16.mxu0 0
    %7455 = vmatpush1.bf16.msra.mxu0 0
    %7456 = vmatprep.subr.bf16.mxu0 0
    %7457 = vmatpush1.bf16.msra.mxu0 0
    %7458 = vmatprep.subr.bf16.mxu0 0
    %7459 = vmatpush1.bf16.msra.mxu0 0
    %7460 = vmatprep.mubr.bf16.mxu0 0
    %7461 = vmatmul.mubr.bf16.gmra.mrb[0].mxu0 %v7426
    %v7462 = vpop.f32.mrb[0].mxu0
    %v7463 = vadd.f32 %v7188, %v7462
    %v7464 = vpop.f32.mrb[0].mxu0
    %v7465 = vadd.f32 %v7192, %v7464
    %v7466 = vpop.f32.mrb[0].mxu0
    %v7467 = vadd.f32 %v7188, %v7466
    %v7468 = vpop.f32.mrb[0].mxu0
    %v7469 = vadd.f32 %v7192, %v7468
    %7470 = vdwg.mxu0
    %7471 = vmatprep.subr.bf16.mxu0 %v7364
    %7472 = vmatpush1.bf16.msra.mxu0 %v7363
    %7473 = vmatprep.subr.bf16.mxu0 %v7380
    %7474 = vmatpush1.bf16.msra.mxu0 %v7379
    %7475 = vmatprep.subr.bf16.mxu0 0
    %7476 = vmatpush1.bf16.msra.mxu0 0
    %7477 = vmatprep.subr.bf16.mxu0 0
    %7478 = vmatpush1.bf16.msra.mxu0 0
    %7479 = vmatprep.subr.bf16.mxu0 0
    %7480 = vmatpush1.bf16.msra.mxu0 0
    %7481 = vmatprep.subr.bf16.mxu0 0
    %7482 = vmatpush1.bf16.msra.mxu0 0
    %7483 = vmatprep.subr.bf16.mxu0 0
    %7484 = vmatpush1.bf16.msra.mxu0 0
    %7485 = vmatprep.subr.bf16.mxu0 0
    %7486 = vmatpush1.bf16.msra.mxu0 0
    %7487 = vmatprep.subr.bf16.mxu0 0
    %7488 = vmatpush1.bf16.msra.mxu0 0
    %7489 = vmatprep.subr.bf16.mxu0 0
    %7490 = vmatpush1.bf16.msra.mxu0 0
    %7491 = vmatprep.subr.bf16.mxu0 0
    %7492 = vmatpush1.bf16.msra.mxu0 0
    %7493 = vmatprep.subr.bf16.mxu0 0
    %7494 = vmatpush1.bf16.msra.mxu0 0
    %7495 = vmatprep.subr.bf16.mxu0 0
    %7496 = vmatpush1.bf16.msra.mxu0 0
    %7497 = vmatprep.subr.bf16.mxu0 0
    %7498 = vmatpush1.bf16.msra.mxu0 0
    %7499 = vmatprep.subr.bf16.mxu0 0
    %7500 = vmatpush1.bf16.msra.mxu0 0
    %7501 = vmatprep.subr.bf16.mxu0 0
    %7502 = vmatpush1.bf16.msra.mxu0 0
    %7503 = vmatprep.mubr.bf16.mxu0 0
    %7504 = vmatmul.mubr.bf16.gmra.mrb[0].mxu0 %v7426
    %v7505 = vpop.f32.mrb[0].mxu0
    %v7506 = vadd.f32 %v7196, %v7505
    %v7507 = vpop.f32.mrb[0].mxu0
    %v7508 = vadd.f32 %v7200, %v7507
    %v7509 = vpop.f32.mrb[0].mxu0
    %v7510 = vadd.f32 %v7196, %v7509
    %v7511 = vpop.f32.mrb[0].mxu0
    %v7512 = vadd.f32 %v7200, %v7511
    %7513 = vdwg.mxu0
    %7514 = vmatprep.subr.bf16.mxu0 %v7366
    %7515 = vmatpush1.bf16.msra.mxu0 %v7365
    %7516 = vmatprep.subr.bf16.mxu0 %v7382
    %7517 = vmatpush1.bf16.msra.mxu0 %v7381
    %7518 = vmatprep.subr.bf16.mxu0 0
    %7519 = vmatpush1.bf16.msra.mxu0 0
    %7520 = vmatprep.subr.bf16.mxu0 0
    %7521 = vmatpush1.bf16.msra.mxu0 0
    %7522 = vmatprep.subr.bf16.mxu0 0
    %7523 = vmatpush1.bf16.msra.mxu0 0
    %7524 = vmatprep.subr.bf16.mxu0 0
    %7525 = vmatpush1.bf16.msra.mxu0 0
    %7526 = vmatprep.subr.bf16.mxu0 0
    %7527 = vmatpush1.bf16.msra.mxu0 0
    %7528 = vmatprep.subr.bf16.mxu0 0
    %7529 = vmatpush1.bf16.msra.mxu0 0
    %7530 = vmatprep.subr.bf16.mxu0 0
    %7531 = vmatpush1.bf16.msra.mxu0 0
    %7532 = vmatprep.subr.bf16.mxu0 0
    %7533 = vmatpush1.bf16.msra.mxu0 0
    %7534 = vmatprep.subr.bf16.mxu0 0
    %7535 = vmatpush1.bf16.msra.mxu0 0
    %7536 = vmatprep.subr.bf16.mxu0 0
    %7537 = vmatpush1.bf16.msra.mxu0 0
    %7538 = vmatprep.subr.bf16.mxu0 0
    %7539 = vmatpush1.bf16.msra.mxu0 0
    %7540 = vmatprep.subr.bf16.mxu0 0
    %7541 = vmatpush1.bf16.msra.mxu0 0
    %7542 = vmatprep.subr.bf16.mxu0 0
    %7543 = vmatpush1.bf16.msra.mxu0 0
    %7544 = vmatprep.subr.bf16.mxu0 0
    %7545 = vmatpush1.bf16.msra.mxu0 0
    %7546 = vmatprep.mubr.bf16.mxu0 0
    %7547 = vmatmul.mubr.bf16.gmra.mrb[0].mxu0 %v7426
    %v7548 = vpop.f32.mrb[0].mxu0
    %v7549 = vadd.f32 %v7204, %v7548
    %v7550 = vpop.f32.mrb[0].mxu0
    %v7551 = vadd.f32 %v7208, %v7550
    %v7552 = vpop.f32.mrb[0].mxu0
    %v7553 = vadd.f32 %v7204, %v7552
    %v7554 = vpop.f32.mrb[0].mxu0
    %v7555 = vadd.f32 %v7208, %v7554
    %7556 = vdwg.mxu0
    %7557 = vmatprep.subr.bf16.mxu0 %v7368
    %7558 = vmatpush1.bf16.msra.mxu0 %v7367
    %7559 = vmatprep.subr.bf16.mxu0 %v7384
    %7560 = vmatpush1.bf16.msra.mxu0 %v7383
    %7561 = vmatprep.subr.bf16.mxu0 0
    %7562 = vmatpush1.bf16.msra.mxu0 0
    %7563 = vmatprep.subr.bf16.mxu0 0
    %7564 = vmatpush1.bf16.msra.mxu0 0
    %7565 = vmatprep.subr.bf16.mxu0 0
    %7566 = vmatpush1.bf16.msra.mxu0 0
    %7567 = vmatprep.subr.bf16.mxu0 0
    %7568 = vmatpush1.bf16.msra.mxu0 0
    %7569 = vmatprep.subr.bf16.mxu0 0
    %7570 = vmatpush1.bf16.msra.mxu0 0
    %7571 = vmatprep.subr.bf16.mxu0 0
    %7572 = vmatpush1.bf16.msra.mxu0 0
    %7573 = vmatprep.subr.bf16.mxu0 0
    %7574 = vmatpush1.bf16.msra.mxu0 0
    %7575 = vmatprep.subr.bf16.mxu0 0
    %7576 = vmatpush1.bf16.msra.mxu0 0
    %7577 = vmatprep.subr.bf16.mxu0 0
    %7578 = vmatpush1.bf16.msra.mxu0 0
    %7579 = vmatprep.subr.bf16.mxu0 0
    %7580 = vmatpush1.bf16.msra.mxu0 0
    %7581 = vmatprep.subr.bf16.mxu0 0
    %7582 = vmatpush1.bf16.msra.mxu0 0
    %7583 = vmatprep.subr.bf16.mxu0 0
    %7584 = vmatpush1.bf16.msra.mxu0 0
    %7585 = vmatprep.subr.bf16.mxu0 0
    %7586 = vmatpush1.bf16.msra.mxu0 0
    %7587 = vmatprep.subr.bf16.mxu0 0
    %7588 = vmatpush1.bf16.msra.mxu0 0
    %7589 = vmatprep.mubr.bf16.mxu0 0
    %7590 = vmatmul.mubr.bf16.gmra.mrb[0].mxu0 %v7426
    %v7591 = vpop.f32.mrb[0].mxu0
    %v7592 = vadd.f32 %v7212, %v7591
    %v7593 = vpop.f32.mrb[0].mxu0
    %v7594 = vadd.f32 %v7216, %v7593
    %v7595 = vpop.f32.mrb[0].mxu0
    %v7596 = vadd.f32 %v7212, %v7595
    %v7597 = vpop.f32.mrb[0].mxu0
    %v7598 = vadd.f32 %v7216, %v7597
    %7599 = vdwg.mxu0
    %7600 = vmatprep.subr.bf16.mxu0 %v7370
    %7601 = vmatpush1.bf16.msra.mxu0 %v7369
    %7602 = vmatprep.subr.bf16.mxu0 %v7386
    %7603 = vmatpush1.bf16.msra.mxu0 %v7385
    %7604 = vmatprep.subr.bf16.mxu0 0
    %7605 = vmatpush1.bf16.msra.mxu0 0
    %7606 = vmatprep.subr.bf16.mxu0 0
    %7607 = vmatpush1.bf16.msra.mxu0 0
    %7608 = vmatprep.subr.bf16.mxu0 0
    %7609 = vmatpush1.bf16.msra.mxu0 0
    %7610 = vmatprep.subr.bf16.mxu0 0
    %7611 = vmatpush1.bf16.msra.mxu0 0
    %7612 = vmatprep.subr.bf16.mxu0 0
    %7613 = vmatpush1.bf16.msra.mxu0 0
    %7614 = vmatprep.subr.bf16.mxu0 0
    %7615 = vmatpush1.bf16.msra.mxu0 0
    %7616 = vmatprep.subr.bf16.mxu0 0
    %7617 = vmatpush1.bf16.msra.mxu0 0
    %7618 = vmatprep.subr.bf16.mxu0 0
    %7619 = vmatpush1.bf16.msra.mxu0 0
    %7620 = vmatprep.subr.bf16.mxu0 0
    %7621 = vmatpush1.bf16.msra.mxu0 0
    %7622 = vmatprep.subr.bf16.mxu0 0
    %7623 = vmatpush1.bf16.msra.mxu0 0
    %7624 = vmatprep.subr.bf16.mxu0 0
    %7625 = vmatpush1.bf16.msra.mxu0 0
    %7626 = vmatprep.subr.bf16.mxu0 0
    %7627 = vmatpush1.bf16.msra.mxu0 0
    %7628 = vmatprep.subr.bf16.mxu0 0
    %7629 = vmatpush1.bf16.msra.mxu0 0
    %7630 = vmatprep.subr.bf16.mxu0 0
    %7631 = vmatpush1.bf16.msra.mxu0 0
    %7632 = vmatprep.mubr.bf16.mxu0 0
    %7633 = vmatmul.mubr.bf16.gmra.mrb[0].mxu0 %v7426
    %v7634 = vpop.f32.mrb[0].mxu0
    %v7635 = vadd.f32 %v7220, %v7634
    %v7636 = vpop.f32.mrb[0].mxu0
    %v7637 = vadd.f32 %v7224, %v7636
    %v7638 = vpop.f32.mrb[0].mxu0
    %v7639 = vadd.f32 %v7220, %v7638
    %v7640 = vpop.f32.mrb[0].mxu0
    %v7641 = vadd.f32 %v7224, %v7640
    %7642 = vdwg.mxu0
    %7643 = vmatprep.subr.bf16.mxu0 %v7372
    %7644 = vmatpush1.bf16.msra.mxu0 %v7371
    %7645 = vmatprep.subr.bf16.mxu0 %v7388
    %7646 = vmatpush1.bf16.msra.mxu0 %v7387
    %7647 = vmatprep.subr.bf16.mxu0 0
    %7648 = vmatpush1.bf16.msra.mxu0 0
    %7649 = vmatprep.subr.bf16.mxu0 0
    %7650 = vmatpush1.bf16.msra.mxu0 0
    %7651 = vmatprep.subr.bf16.mxu0 0
    %7652 = vmatpush1.bf16.msra.mxu0 0
    %7653 = vmatprep.subr.bf16.mxu0 0
    %7654 = vmatpush1.bf16.msra.mxu0 0
    %7655 = vmatprep.subr.bf16.mxu0 0
    %7656 = vmatpush1.bf16.msra.mxu0 0
    %7657 = vmatprep.subr.bf16.mxu0 0
    %7658 = vmatpush1.bf16.msra.mxu0 0
    %7659 = vmatprep.subr.bf16.mxu0 0
    %7660 = vmatpush1.bf16.msra.mxu0 0
    %7661 = vmatprep.subr.bf16.mxu0 0
    %7662 = vmatpush1.bf16.msra.mxu0 0
    %7663 = vmatprep.subr.bf16.mxu0 0
    %7664 = vmatpush1.bf16.msra.mxu0 0
    %7665 = vmatprep.subr.bf16.mxu0 0
    %7666 = vmatpush1.bf16.msra.mxu0 0
    %7667 = vmatprep.subr.bf16.mxu0 0
    %7668 = vmatpush1.bf16.msra.mxu0 0
    %7669 = vmatprep.subr.bf16.mxu0 0
    %7670 = vmatpush1.bf16.msra.mxu0 0
    %7671 = vmatprep.subr.bf16.mxu0 0
    %7672 = vmatpush1.bf16.msra.mxu0 0
    %7673 = vmatprep.subr.bf16.mxu0 0
    %7674 = vmatpush1.bf16.msra.mxu0 0
    %7675 = vmatprep.mubr.bf16.mxu0 0
    %7676 = vmatmul.mubr.bf16.gmra.mrb[0].mxu0 %v7426
    %v7677 = vpop.f32.mrb[0].mxu0
    %v7678 = vadd.f32 %v7228, %v7677
    %v7679 = vpop.f32.mrb[0].mxu0
    %v7680 = vadd.f32 %v7232, %v7679
    %v7681 = vpop.f32.mrb[0].mxu0
    %v7682 = vadd.f32 %v7228, %v7681
    %v7683 = vpop.f32.mrb[0].mxu0
    %v7684 = vadd.f32 %v7232, %v7683
    %7685 = vdwg.mxu0
    %7686 = vmatprep.subr.bf16.mxu0 %v7374
    %7687 = vmatpush1.bf16.msra.mxu0 %v7373
    %7688 = vmatprep.subr.bf16.mxu0 %v7390
    %7689 = vmatpush1.bf16.msra.mxu0 %v7389
    %7690 = vmatprep.subr.bf16.mxu0 0
    %7691 = vmatpush1.bf16.msra.mxu0 0
    %7692 = vmatprep.subr.bf16.mxu0 0
    %7693 = vmatpush1.bf16.msra.mxu0 0
    %7694 = vmatprep.subr.bf16.mxu0 0
    %7695 = vmatpush1.bf16.msra.mxu0 0
    %7696 = vmatprep.subr.bf16.mxu0 0
    %7697 = vmatpush1.bf16.msra.mxu0 0
    %7698 = vmatprep.subr.bf16.mxu0 0
    %7699 = vmatpush1.bf16.msra.mxu0 0
    %7700 = vmatprep.subr.bf16.mxu0 0
    %7701 = vmatpush1.bf16.msra.mxu0 0
    %7702 = vmatprep.subr.bf16.mxu0 0
    %7703 = vmatpush1.bf16.msra.mxu0 0
    %7704 = vmatprep.subr.bf16.mxu0 0
    %7705 = vmatpush1.bf16.msra.mxu0 0
    %7706 = vmatprep.subr.bf16.mxu0 0
    %7707 = vmatpush1.bf16.msra.mxu0 0
    %7708 = vmatprep.subr.bf16.mxu0 0
    %7709 = vmatpush1.bf16.msra.mxu0 0
    %7710 = vmatprep.subr.bf16.mxu0 0
    %7711 = vmatpush1.bf16.msra.mxu0 0
    %7712 = vmatprep.subr.bf16.mxu0 0
    %7713 = vmatpush1.bf16.msra.mxu0 0
    %7714 = vmatprep.subr.bf16.mxu0 0
    %7715 = vmatpush1.bf16.msra.mxu0 0
    %7716 = vmatprep.subr.bf16.mxu0 0
    %7717 = vmatpush1.bf16.msra.mxu0 0
    %7718 = vmatprep.mubr.bf16.mxu0 0
    %7719 = vmatmul.mubr.bf16.gmra.mrb[0].mxu0 %v7426
    %v7720 = vpop.f32.mrb[0].mxu0
    %v7721 = vadd.f32 %v7236, %v7720
    %v7722 = vpop.f32.mrb[0].mxu0
    %v7723 = vadd.f32 %v7240, %v7722
    %v7724 = vpop.f32.mrb[0].mxu0
    %v7725 = vadd.f32 %v7236, %v7724
    %v7726 = vpop.f32.mrb[0].mxu0
    %v7727 = vadd.f32 %v7240, %v7726
    %7728 = vdwg.mxu0
    %7729 = vmatprep.subr.bf16.mxu0 %v7376
    %7730 = vmatpush1.bf16.msra.mxu0 %v7375
    %7731 = vmatprep.subr.bf16.mxu0 %v7392
    %7732 = vmatpush1.bf16.msra.mxu0 %v7391
    %7733 = vmatprep.subr.bf16.mxu0 0
    %7734 = vmatpush1.bf16.msra.mxu0 0
    %7735 = vmatprep.subr.bf16.mxu0 0
    %7736 = vmatpush1.bf16.msra.mxu0 0
    %7737 = vmatprep.subr.bf16.mxu0 0
    %7738 = vmatpush1.bf16.msra.mxu0 0
    %7739 = vmatprep.subr.bf16.mxu0 0
    %7740 = vmatpush1.bf16.msra.mxu0 0
    %7741 = vmatprep.subr.bf16.mxu0 0
    %7742 = vmatpush1.bf16.msra.mxu0 0
    %7743 = vmatprep.subr.bf16.mxu0 0
    %7744 = vmatpush1.bf16.msra.mxu0 0
    %7745 = vmatprep.subr.bf16.mxu0 0
    %7746 = vmatpush1.bf16.msra.mxu0 0
    %7747 = vmatprep.subr.bf16.mxu0 0
    %7748 = vmatpush1.bf16.msra.mxu0 0
    %7749 = vmatprep.subr.bf16.mxu0 0
    %7750 = vmatpush1.bf16.msra.mxu0 0
    %7751 = vmatprep.subr.bf16.mxu0 0
    %7752 = vmatpush1.bf16.msra.mxu0 0
    %7753 = vmatprep.subr.bf16.mxu0 0
    %7754 = vmatpush1.bf16.msra.mxu0 0
    %7755 = vmatprep.subr.bf16.mxu0 0
    %7756 = vmatpush1.bf16.msra.mxu0 0
    %7757 = vmatprep.subr.bf16.mxu0 0
    %7758 = vmatpush1.bf16.msra.mxu0 0
    %7759 = vmatprep.subr.bf16.mxu0 0
    %7760 = vmatpush1.bf16.msra.mxu0 0
    %7761 = vmatprep.mubr.bf16.mxu0 0
    %7762 = vmatmul.mubr.bf16.gmra.mrb[0].mxu0 %v7426
    %v7763 = vpop.f32.mrb[0].mxu0
    %v7764 = vadd.f32 %v7244, %v7763
    %v7765 = vpop.f32.mrb[0].mxu0
    %v7766 = vadd.f32 %v7248, %v7765
    %v7767 = vpop.f32.mrb[0].mxu0
    %v7768 = vadd.f32 %v7244, %v7767
    %v7769 = vpop.f32.mrb[0].mxu0
    %v7770 = vadd.f32 %v7248, %v7769
    %7771 = vdwg.mxu0
    %v7772 = vmax.f32 %v7463, 0.0
    %v7773 = vmax.f32 %v7465, 0.0
    %v7774 = vmax.f32 %v7506, 0.0
    %v7775 = vmax.f32 %v7508, 0.0
    %v7776 = vmax.f32 %v7549, 0.0
    %v7777 = vmax.f32 %v7551, 0.0
    %v7778 = vmax.f32 %v7592, 0.0
    %v7779 = vmax.f32 %v7594, 0.0
    %v7780 = vmax.f32 %v7635, 0.0
    %v7781 = vmax.f32 %v7637, 0.0
    %v7782 = vmax.f32 %v7678, 0.0
    %v7783 = vmax.f32 %v7680, 0.0
    %v7784 = vmax.f32 %v7721, 0.0
    %v7785 = vmax.f32 %v7723, 0.0
    %v7786 = vmax.f32 %v7764, 0.0
    %v7787 = vmax.f32 %v7766, 0.0
    %v7788 = vmax.f32 %v7467, 0.0
    %v7789 = vmax.f32 %v7469, 0.0
    %v7790 = vmax.f32 %v7510, 0.0
    %v7791 = vmax.f32 %v7512, 0.0
    %v7792 = vmax.f32 %v7553, 0.0
    %v7793 = vmax.f32 %v7555, 0.0
    %v7794 = vmax.f32 %v7596, 0.0
    %v7795 = vmax.f32 %v7598, 0.0
    %v7796 = vmax.f32 %v7639, 0.0
    %v7797 = vmax.f32 %v7641, 0.0
    %v7798 = vmax.f32 %v7682, 0.0
    %v7799 = vmax.f32 %v7684, 0.0
    %v7800 = vmax.f32 %v7725, 0.0
    %v7801 = vmax.f32 %v7727, 0.0
    %v7802 = vmax.f32 %v7768, 0.0
    %v7803 = vmax.f32 %v7770, 0.0
    %v7804 = vpack.c.bf16 %v7788, %v7772
    %v7805 = vpack.c.bf16 %v7789, %v7773
    %v7806 = vpack.c.bf16 %v7790, %v7774
    %v7807 = vpack.c.bf16 %v7791, %v7775
    %v7808 = vpack.c.bf16 %v7792, %v7776
    %v7809 = vpack.c.bf16 %v7793, %v7777
    %v7810 = vpack.c.bf16 %v7794, %v7778
    %v7811 = vpack.c.bf16 %v7795, %v7779
    %v7812 = vpack.c.bf16 %v7796, %v7780
    %v7813 = vpack.c.bf16 %v7797, %v7781
    %v7814 = vpack.c.bf16 %v7798, %v7782
    %v7815 = vpack.c.bf16 %v7799, %v7783
    %v7816 = vpack.c.bf16 %v7800, %v7784
    %v7817 = vpack.c.bf16 %v7801, %v7785
    %v7818 = vpack.c.bf16 %v7802, %v7786
    %v7819 = vpack.c.bf16 %v7803, %v7787
    %v7820 = vld [vmem:[%s18] sm:$0xf]
    %v7821 = vld [vmem:[%s18 + $0x4] sm:$0xf]
    %v7822 = vld [vmem:[%s18 + $0x8] sm:$0xf]
    %v7823 = vld [vmem:[%s18 + $0xc] sm:$0xf]
    %v7824 = vld [vmem:[%s18 + $0x10] sm:$0xf]
    %v7825 = vld [vmem:[%s18 + $0x14] sm:$0xf]
    %v7826 = vld [vmem:[%s18 + $0x18] sm:$0xf]
    %v7827 = vld [vmem:[%s18 + $0x1c] sm:$0xf]
    %v7828 = vld [vmem:[%s18 + $0x20] sm:$0xf]
    %v7829 = vld [vmem:[%s18 + $0x24] sm:$0xf]
    %v7830 = vld [vmem:[%s18 + $0x28] sm:$0xf]
    %v7831 = vld [vmem:[%s18 + $0x2c] sm:$0xf]
    %v7832 = vld [vmem:[%s18 + $0x30] sm:$0xf]
    %v7833 = vld [vmem:[%s18 + $0x34] sm:$0xf]
    %v7834 = vld [vmem:[%s18 + $0x38] sm:$0xf]
    %v7835 = vld [vmem:[%s18 + $0x3c] sm:$0xf]
    %v7836 = vld [vmem:[%s18 + $0x40] sm:$0xf]
    %v7837 = vld [vmem:[%s18 + $0x44] sm:$0xf]
    %v7838 = vld [vmem:[%s18 + $0x48] sm:$0xf]
    %v7839 = vld [vmem:[%s18 + $0x4c] sm:$0xf]
    %v7840 = vld [vmem:[%s18 + $0x50] sm:$0xf]
    %v7841 = vld [vmem:[%s18 + $0x54] sm:$0xf]
    %v7842 = vld [vmem:[%s18 + $0x58] sm:$0xf]
    %v7843 = vld [vmem:[%s18 + $0x5c] sm:$0xf]
    %v7844 = vld [vmem:[%s18 + $0x60] sm:$0xf]
    %v7845 = vld [vmem:[%s18 + $0x64] sm:$0xf]
    %v7846 = vld [vmem:[%s18 + $0x68] sm:$0xf]
    %v7847 = vld [vmem:[%s18 + $0x6c] sm:$0xf]
    %v7848 = vld [vmem:[%s18 + $0x70] sm:$0xf]
    %v7849 = vld [vmem:[%s18 + $0x74] sm:$0xf]
    %v7850 = vld [vmem:[%s18 + $0x78] sm:$0xf]
    %v7851 = vld [vmem:[%s18 + $0x7c] sm:$0xf]
    %v7852 = vld [vmem:[%s18 + $0x80] sm:$0xf]
    %v7853 = vld [vmem:[%s18 + $0x84] sm:$0xf]
    %v7854 = vld [vmem:[%s18 + $0x88] sm:$0xf]
    %v7855 = vld [vmem:[%s18 + $0x8c] sm:$0xf]
    %v7856 = vld [vmem:[%s18 + $0x90] sm:$0xf]
    %v7857 = vld [vmem:[%s18 + $0x94] sm:$0xf]
    %v7858 = vld [vmem:[%s18 + $0x98] sm:$0xf]
    %v7859 = vld [vmem:[%s18 + $0x9c] sm:$0xf]
    %v7860 = vld [vmem:[%s18 + $0xa0] sm:$0xf]
    %v7861 = vld [vmem:[%s18 + $0xa4] sm:$0xf]
    %v7862 = vld [vmem:[%s18 + $0xa8] sm:$0xf]
    %v7863 = vld [vmem:[%s18 + $0xac] sm:$0xf]
    %v7864 = vld [vmem:[%s18 + $0xb0] sm:$0xf]
    %v7865 = vld [vmem:[%s18 + $0xb4] sm:$0xf]
    %v7866 = vld [vmem:[%s18 + $0xb8] sm:$0xf]
    %v7867 = vld [vmem:[%s18 + $0xbc] sm:$0xf]
    %v7868 = vld [vmem:[%s18 + $0xc0] sm:$0xf]
    %v7869 = vld [vmem:[%s18 + $0xc4] sm:$0xf]
    %v7870 = vld [vmem:[%s18 + $0xc8] sm:$0xf]
    %v7871 = vld [vmem:[%s18 + $0xcc] sm:$0xf]
    %v7872 = vld [vmem:[%s18 + $0xd0] sm:$0xf]
    %v7873 = vld [vmem:[%s18 + $0xd4] sm:$0xf]
    %v7874 = vld [vmem:[%s18 + $0xd8] sm:$0xf]
    %v7875 = vld [vmem:[%s18 + $0xdc] sm:$0xf]
    %v7876 = vld [vmem:[%s18 + $0xe0] sm:$0xf]
    %v7877 = vld [vmem:[%s18 + $0xe4] sm:$0xf]
    %v7878 = vld [vmem:[%s18 + $0xe8] sm:$0xf]
    %v7879 = vld [vmem:[%s18 + $0xec] sm:$0xf]
    %v7880 = vld [vmem:[%s18 + $0xf0] sm:$0xf]
    %v7881 = vld [vmem:[%s18 + $0xf4] sm:$0xf]
    %v7882 = vld [vmem:[%s18 + $0xf8] sm:$0xf]
    %v7883 = vld [vmem:[%s18 + $0xfc] sm:$0xf]
    %v7884 = vld [vmem:[%s18 + $0x100] sm:$0xf]
    %v7885 = vld [vmem:[%s18 + $0x104] sm:$0xf]
    %v7886 = vld [vmem:[%s18 + $0x108] sm:$0xf]
    %v7887 = vld [vmem:[%s18 + $0x10c] sm:$0xf]
    %v7888 = vld [vmem:[%s18 + $0x110] sm:$0xf]
    %v7889 = vld [vmem:[%s18 + $0x114] sm:$0xf]
    %v7890 = vld [vmem:[%s18 + $0x118] sm:$0xf]
    %v7891 = vld [vmem:[%s18 + $0x11c] sm:$0xf]
    %v7892 = vld [vmem:[%s18 + $0x120] sm:$0xf]
    %v7893 = vld [vmem:[%s18 + $0x124] sm:$0xf]
    %v7894 = vld [vmem:[%s18 + $0x128] sm:$0xf]
    %v7895 = vld [vmem:[%s18 + $0x12c] sm:$0xf]
    %v7896 = vld [vmem:[%s18 + $0x130] sm:$0xf]
    %v7897 = vld [vmem:[%s18 + $0x134] sm:$0xf]
    %v7898 = vld [vmem:[%s18 + $0x138] sm:$0xf]
    %v7899 = vld [vmem:[%s18 + $0x13c] sm:$0xf]
    %v7900 = vld [vmem:[%s18 + $0x140] sm:$0xf]
    %v7901 = vld [vmem:[%s18 + $0x144] sm:$0xf]
    %v7902 = vld [vmem:[%s18 + $0x148] sm:$0xf]
    %v7903 = vld [vmem:[%s18 + $0x14c] sm:$0xf]
    %v7904 = vld [vmem:[%s18 + $0x150] sm:$0xf]
    %v7905 = vld [vmem:[%s18 + $0x154] sm:$0xf]
    %v7906 = vld [vmem:[%s18 + $0x158] sm:$0xf]
    %v7907 = vld [vmem:[%s18 + $0x15c] sm:$0xf]
    %v7908 = vld [vmem:[%s18 + $0x160] sm:$0xf]
    %v7909 = vld [vmem:[%s18 + $0x164] sm:$0xf]
    %v7910 = vld [vmem:[%s18 + $0x168] sm:$0xf]
    %v7911 = vld [vmem:[%s18 + $0x16c] sm:$0xf]
    %v7912 = vld [vmem:[%s18 + $0x170] sm:$0xf]
    %v7913 = vld [vmem:[%s18 + $0x174] sm:$0xf]
    %v7914 = vld [vmem:[%s18 + $0x178] sm:$0xf]
    %v7915 = vld [vmem:[%s18 + $0x17c] sm:$0xf]
    %v7916 = vld [vmem:[%s18 + $0x180] sm:$0xf]
    %v7917 = vld [vmem:[%s18 + $0x184] sm:$0xf]
    %v7918 = vld [vmem:[%s18 + $0x188] sm:$0xf]
    %v7919 = vld [vmem:[%s18 + $0x18c] sm:$0xf]
    %v7920 = vld [vmem:[%s18 + $0x190] sm:$0xf]
    %v7921 = vld [vmem:[%s18 + $0x194] sm:$0xf]
    %v7922 = vld [vmem:[%s18 + $0x198] sm:$0xf]
    %v7923 = vld [vmem:[%s18 + $0x19c] sm:$0xf]
    %v7924 = vld [vmem:[%s18 + $0x1a0] sm:$0xf]
    %v7925 = vld [vmem:[%s18 + $0x1a4] sm:$0xf]
    %v7926 = vld [vmem:[%s18 + $0x1a8] sm:$0xf]
    %v7927 = vld [vmem:[%s18 + $0x1ac] sm:$0xf]
    %v7928 = vld [vmem:[%s18 + $0x1b0] sm:$0xf]
    %v7929 = vld [vmem:[%s18 + $0x1b4] sm:$0xf]
    %v7930 = vld [vmem:[%s18 + $0x1b8] sm:$0xf]
    %v7931 = vld [vmem:[%s18 + $0x1bc] sm:$0xf]
    %v7932 = vld [vmem:[%s18 + $0x1c0] sm:$0xf]
    %v7933 = vld [vmem:[%s18 + $0x1c4] sm:$0xf]
    %v7934 = vld [vmem:[%s18 + $0x1c8] sm:$0xf]
    %v7935 = vld [vmem:[%s18 + $0x1cc] sm:$0xf]
    %v7936 = vld [vmem:[%s18 + $0x1d0] sm:$0xf]
    %v7937 = vld [vmem:[%s18 + $0x1d4] sm:$0xf]
    %v7938 = vld [vmem:[%s18 + $0x1d8] sm:$0xf]
    %v7939 = vld [vmem:[%s18 + $0x1dc] sm:$0xf]
    %v7940 = vld [vmem:[%s18 + $0x1e0] sm:$0xf]
    %v7941 = vld [vmem:[%s18 + $0x1e4] sm:$0xf]
    %v7942 = vld [vmem:[%s18 + $0x1e8] sm:$0xf]
    %v7943 = vld [vmem:[%s18 + $0x1ec] sm:$0xf]
    %v7944 = vld [vmem:[%s18 + $0x1f0] sm:$0xf]
    %v7945 = vld [vmem:[%s18 + $0x1f4] sm:$0xf]
    %v7946 = vld [vmem:[%s18 + $0x1f8] sm:$0xf]
    %v7947 = vld [vmem:[%s18 + $0x1fc] sm:$0xf]
    %v7948 = vld [vmem:[%s18 + $0x200] sm:$0xf]
    %v7949 = vld [vmem:[%s18 + $0x204] sm:$0xf]
    %v7950 = vld [vmem:[%s18 + $0x208] sm:$0xf]
    %v7951 = vld [vmem:[%s18 + $0x20c] sm:$0xf]
    %v7952 = vld [vmem:[%s18 + $0x210] sm:$0xf]
    %v7953 = vld [vmem:[%s18 + $0x214] sm:$0xf]
    %v7954 = vld [vmem:[%s18 + $0x218] sm:$0xf]
    %v7955 = vld [vmem:[%s18 + $0x21c] sm:$0xf]
    %v7956 = vld [vmem:[%s18 + $0x220] sm:$0xf]
    %v7957 = vld [vmem:[%s18 + $0x224] sm:$0xf]
    %v7958 = vld [vmem:[%s18 + $0x228] sm:$0xf]
    %v7959 = vld [vmem:[%s18 + $0x22c] sm:$0xf]
    %v7960 = vld [vmem:[%s18 + $0x230] sm:$0xf]
    %v7961 = vld [vmem:[%s18 + $0x234] sm:$0xf]
    %v7962 = vld [vmem:[%s18 + $0x238] sm:$0xf]
    %v7963 = vld [vmem:[%s18 + $0x23c] sm:$0xf]
    %v7964 = vld [vmem:[%s18 + $0x240] sm:$0xf]
    %v7965 = vld [vmem:[%s18 + $0x244] sm:$0xf]
    %v7966 = vld [vmem:[%s18 + $0x248] sm:$0xf]
    %v7967 = vld [vmem:[%s18 + $0x24c] sm:$0xf]
    %v7968 = vld [vmem:[%s18 + $0x250] sm:$0xf]
    %v7969 = vld [vmem:[%s18 + $0x254] sm:$0xf]
    %v7970 = vld [vmem:[%s18 + $0x258] sm:$0xf]
    %v7971 = vld [vmem:[%s18 + $0x25c] sm:$0xf]
    %v7972 = vld [vmem:[%s18 + $0x260] sm:$0xf]
    %v7973 = vld [vmem:[%s18 + $0x264] sm:$0xf]
    %v7974 = vld [vmem:[%s18 + $0x268] sm:$0xf]
    %v7975 = vld [vmem:[%s18 + $0x26c] sm:$0xf]
    %v7976 = vld [vmem:[%s18 + $0x270] sm:$0xf]
    %v7977 = vld [vmem:[%s18 + $0x274] sm:$0xf]
    %v7978 = vld [vmem:[%s18 + $0x278] sm:$0xf]
    %v7979 = vld [vmem:[%s18 + $0x27c] sm:$0xf]
    %v7980 = vld [vmem:[%s18 + $0x280] sm:$0xf]
    %v7981 = vld [vmem:[%s18 + $0x284] sm:$0xf]
    %v7982 = vld [vmem:[%s18 + $0x288] sm:$0xf]
    %v7983 = vld [vmem:[%s18 + $0x28c] sm:$0xf]
    %v7984 = vld [vmem:[%s18 + $0x290] sm:$0xf]
    %v7985 = vld [vmem:[%s18 + $0x294] sm:$0xf]
    %v7986 = vld [vmem:[%s18 + $0x298] sm:$0xf]
    %v7987 = vld [vmem:[%s18 + $0x29c] sm:$0xf]
    %v7988 = vld [vmem:[%s18 + $0x2a0] sm:$0xf]
    %v7989 = vld [vmem:[%s18 + $0x2a4] sm:$0xf]
    %v7990 = vld [vmem:[%s18 + $0x2a8] sm:$0xf]
    %v7991 = vld [vmem:[%s18 + $0x2ac] sm:$0xf]
    %v7992 = vld [vmem:[%s18 + $0x2b0] sm:$0xf]
    %v7993 = vld [vmem:[%s18 + $0x2b4] sm:$0xf]
    %v7994 = vld [vmem:[%s18 + $0x2b8] sm:$0xf]
    %v7995 = vld [vmem:[%s18 + $0x2bc] sm:$0xf]
    %v7996 = vld [vmem:[%s18 + $0x2c0] sm:$0xf]
    %v7997 = vld [vmem:[%s18 + $0x2c4] sm:$0xf]
    %v7998 = vld [vmem:[%s18 + $0x2c8] sm:$0xf]
    %v7999 = vld [vmem:[%s18 + $0x2cc] sm:$0xf]
    %v8000 = vld [vmem:[%s18 + $0x2d0] sm:$0xf]
    %v8001 = vld [vmem:[%s18 + $0x2d4] sm:$0xf]
    %v8002 = vld [vmem:[%s18 + $0x2d8] sm:$0xf]
    %v8003 = vld [vmem:[%s18 + $0x2dc] sm:$0xf]
    %v8004 = vld [vmem:[%s18 + $0x2e0] sm:$0xf]
    %v8005 = vld [vmem:[%s18 + $0x2e4] sm:$0xf]
    %v8006 = vld [vmem:[%s18 + $0x2e8] sm:$0xf]
    %v8007 = vld [vmem:[%s18 + $0x2ec] sm:$0xf]
    %v8008 = vld [vmem:[%s18 + $0x2f0] sm:$0xf]
    %v8009 = vld [vmem:[%s18 + $0x2f4] sm:$0xf]
    %v8010 = vld [vmem:[%s18 + $0x2f8] sm:$0xf]
    %v8011 = vld [vmem:[%s18 + $0x2fc] sm:$0xf]
    %v8012 = vld [vmem:[%s18 + $0x300] sm:$0xf]
    %v8013 = vld [vmem:[%s18 + $0x304] sm:$0xf]
    %v8014 = vld [vmem:[%s18 + $0x308] sm:$0xf]
    %v8015 = vld [vmem:[%s18 + $0x30c] sm:$0xf]
    %v8016 = vld [vmem:[%s18 + $0x310] sm:$0xf]
    %v8017 = vld [vmem:[%s18 + $0x314] sm:$0xf]
    %v8018 = vld [vmem:[%s18 + $0x318] sm:$0xf]
    %v8019 = vld [vmem:[%s18 + $0x31c] sm:$0xf]
    %v8020 = vld [vmem:[%s18 + $0x320] sm:$0xf]
    %v8021 = vld [vmem:[%s18 + $0x324] sm:$0xf]
    %v8022 = vld [vmem:[%s18 + $0x328] sm:$0xf]
    %v8023 = vld [vmem:[%s18 + $0x32c] sm:$0xf]
    %v8024 = vld [vmem:[%s18 + $0x330] sm:$0xf]
    %v8025 = vld [vmem:[%s18 + $0x334] sm:$0xf]
    %v8026 = vld [vmem:[%s18 + $0x338] sm:$0xf]
    %v8027 = vld [vmem:[%s18 + $0x33c] sm:$0xf]
    %v8028 = vld [vmem:[%s18 + $0x340] sm:$0xf]
    %v8029 = vld [vmem:[%s18 + $0x344] sm:$0xf]
    %v8030 = vld [vmem:[%s18 + $0x348] sm:$0xf]
    %v8031 = vld [vmem:[%s18 + $0x34c] sm:$0xf]
    %v8032 = vld [vmem:[%s18 + $0x350] sm:$0xf]
    %v8033 = vld [vmem:[%s18 + $0x354] sm:$0xf]
    %v8034 = vld [vmem:[%s18 + $0x358] sm:$0xf]
    %v8035 = vld [vmem:[%s18 + $0x35c] sm:$0xf]
    %v8036 = vld [vmem:[%s18 + $0x360] sm:$0xf]
    %v8037 = vld [vmem:[%s18 + $0x364] sm:$0xf]
    %v8038 = vld [vmem:[%s18 + $0x368] sm:$0xf]
    %v8039 = vld [vmem:[%s18 + $0x36c] sm:$0xf]
    %v8040 = vld [vmem:[%s18 + $0x370] sm:$0xf]
    %v8041 = vld [vmem:[%s18 + $0x374] sm:$0xf]
    %v8042 = vld [vmem:[%s18 + $0x378] sm:$0xf]
    %v8043 = vld [vmem:[%s18 + $0x37c] sm:$0xf]
    %v8044 = vld [vmem:[%s18 + $0x380] sm:$0xf]
    %v8045 = vld [vmem:[%s18 + $0x384] sm:$0xf]
    %v8046 = vld [vmem:[%s18 + $0x388] sm:$0xf]
    %v8047 = vld [vmem:[%s18 + $0x38c] sm:$0xf]
    %v8048 = vld [vmem:[%s18 + $0x390] sm:$0xf]
    %v8049 = vld [vmem:[%s18 + $0x394] sm:$0xf]
    %v8050 = vld [vmem:[%s18 + $0x398] sm:$0xf]
    %v8051 = vld [vmem:[%s18 + $0x39c] sm:$0xf]
    %v8052 = vld [vmem:[%s18 + $0x3a0] sm:$0xf]
    %v8053 = vld [vmem:[%s18 + $0x3a4] sm:$0xf]
    %v8054 = vld [vmem:[%s18 + $0x3a8] sm:$0xf]
    %v8055 = vld [vmem:[%s18 + $0x3ac] sm:$0xf]
    %v8056 = vld [vmem:[%s18 + $0x3b0] sm:$0xf]
    %v8057 = vld [vmem:[%s18 + $0x3b4] sm:$0xf]
    %v8058 = vld [vmem:[%s18 + $0x3b8] sm:$0xf]
    %v8059 = vld [vmem:[%s18 + $0x3bc] sm:$0xf]
    %v8060 = vld [vmem:[%s18 + $0x3c0] sm:$0xf]
    %v8061 = vld [vmem:[%s18 + $0x3c4] sm:$0xf]
    %v8062 = vld [vmem:[%s18 + $0x3c8] sm:$0xf]
    %v8063 = vld [vmem:[%s18 + $0x3cc] sm:$0xf]
    %v8064 = vld [vmem:[%s18 + $0x3d0] sm:$0xf]
    %v8065 = vld [vmem:[%s18 + $0x3d4] sm:$0xf]
    %v8066 = vld [vmem:[%s18 + $0x3d8] sm:$0xf]
    %v8067 = vld [vmem:[%s18 + $0x3dc] sm:$0xf]
    %v8068 = vld [vmem:[%s18 + $0x3e0] sm:$0xf]
    %v8069 = vld [vmem:[%s18 + $0x3e4] sm:$0xf]
    %v8070 = vld [vmem:[%s18 + $0x3e8] sm:$0xf]
    %v8071 = vld [vmem:[%s18 + $0x3ec] sm:$0xf]
    %v8072 = vld [vmem:[%s18 + $0x3f0] sm:$0xf]
    %v8073 = vld [vmem:[%s18 + $0x3f4] sm:$0xf]
    %v8074 = vld [vmem:[%s18 + $0x3f8] sm:$0xf]
    %v8075 = vld [vmem:[%s18 + $0x3fc] sm:$0xf]
    %v8076 = vlaneseq
    %v8077 = vshrl.u32 %v8076, 7
    %v8078 = vsub.s32 6, %v8077
    %v8079 = vrot.slane %v4662, %v8078
    %v8336 = vunpack.c.l.b16 %v7820
    %v8337 = vunpack.c.l.b16 %v7821
    %v8338 = vunpack.c.l.b16 %v7822
    %v8339 = vunpack.c.l.b16 %v7823
    %v8340 = vunpack.c.l.b16 %v7824
    %v8341 = vunpack.c.l.b16 %v7825
    %v8342 = vunpack.c.l.b16 %v7826
    %v8343 = vunpack.c.l.b16 %v7827
    %v8344 = vunpack.c.l.b16 %v7828
    %v8345 = vunpack.c.l.b16 %v7829
    %v8346 = vunpack.c.l.b16 %v7830
    %v8347 = vunpack.c.l.b16 %v7831
    %v8348 = vunpack.c.l.b16 %v7832
    %v8349 = vunpack.c.l.b16 %v7833
    %v8350 = vunpack.c.l.b16 %v7834
    %v8351 = vunpack.c.l.b16 %v7835
    %v8352 = vunpack.c.l.b16 %v7836
    %v8353 = vunpack.c.l.b16 %v7837
    %v8354 = vunpack.c.l.b16 %v7838
    %v8355 = vunpack.c.l.b16 %v7839
    %v8356 = vunpack.c.l.b16 %v7840
    %v8357 = vunpack.c.l.b16 %v7841
    %v8358 = vunpack.c.l.b16 %v7842
    %v8359 = vunpack.c.l.b16 %v7843
    %v8360 = vunpack.c.l.b16 %v7844
    %v8361 = vunpack.c.l.b16 %v7845
    %v8362 = vunpack.c.l.b16 %v7846
    %v8363 = vunpack.c.l.b16 %v7847
    %v8364 = vunpack.c.l.b16 %v7848
    %v8365 = vunpack.c.l.b16 %v7849
    %v8366 = vunpack.c.l.b16 %v7850
    %v8367 = vunpack.c.l.b16 %v7851
    %v8368 = vunpack.c.l.b16 %v7852
    %v8369 = vunpack.c.l.b16 %v7853
    %v8370 = vunpack.c.l.b16 %v7854
    %v8371 = vunpack.c.l.b16 %v7855
    %v8372 = vunpack.c.l.b16 %v7856
    %v8373 = vunpack.c.l.b16 %v7857
    %v8374 = vunpack.c.l.b16 %v7858
    %v8375 = vunpack.c.l.b16 %v7859
    %v8376 = vunpack.c.l.b16 %v7860
    %v8377 = vunpack.c.l.b16 %v7861
    %v8378 = vunpack.c.l.b16 %v7862
    %v8379 = vunpack.c.l.b16 %v7863
    %v8380 = vunpack.c.l.b16 %v7864
    %v8381 = vunpack.c.l.b16 %v7865
    %v8382 = vunpack.c.l.b16 %v7866
    %v8383 = vunpack.c.l.b16 %v7867
    %v8384 = vunpack.c.l.b16 %v7868
    %v8385 = vunpack.c.l.b16 %v7869
    %v8386 = vunpack.c.l.b16 %v7870
    %v8387 = vunpack.c.l.b16 %v7871
    %v8388 = vunpack.c.l.b16 %v7872
    %v8389 = vunpack.c.l.b16 %v7873
    %v8390 = vunpack.c.l.b16 %v7874
    %v8391 = vunpack.c.l.b16 %v7875
    %v8392 = vunpack.c.l.b16 %v7876
    %v8393 = vunpack.c.l.b16 %v7877
    %v8394 = vunpack.c.l.b16 %v7878
    %v8395 = vunpack.c.l.b16 %v7879
    %v8396 = vunpack.c.l.b16 %v7880
    %v8397 = vunpack.c.l.b16 %v7881
    %v8398 = vunpack.c.l.b16 %v7882
    %v8399 = vunpack.c.l.b16 %v7883
    %v8400 = vunpack.c.l.b16 %v7884
    %v8401 = vunpack.c.l.b16 %v7885
    %v8402 = vunpack.c.l.b16 %v7886
    %v8403 = vunpack.c.l.b16 %v7887
    %v8404 = vunpack.c.l.b16 %v7888
    %v8405 = vunpack.c.l.b16 %v7889
    %v8406 = vunpack.c.l.b16 %v7890
    %v8407 = vunpack.c.l.b16 %v7891
    %v8408 = vunpack.c.l.b16 %v7892
    %v8409 = vunpack.c.l.b16 %v7893
    %v8410 = vunpack.c.l.b16 %v7894
    %v8411 = vunpack.c.l.b16 %v7895
    %v8412 = vunpack.c.l.b16 %v7896
    %v8413 = vunpack.c.l.b16 %v7897
    %v8414 = vunpack.c.l.b16 %v7898
    %v8415 = vunpack.c.l.b16 %v7899
    %v8416 = vunpack.c.l.b16 %v7900
    %v8417 = vunpack.c.l.b16 %v7901
    %v8418 = vunpack.c.l.b16 %v7902
    %v8419 = vunpack.c.l.b16 %v7903
    %v8420 = vunpack.c.l.b16 %v7904
    %v8421 = vunpack.c.l.b16 %v7905
    %v8422 = vunpack.c.l.b16 %v7906
    %v8423 = vunpack.c.l.b16 %v7907
    %v8424 = vunpack.c.l.b16 %v7908
    %v8425 = vunpack.c.l.b16 %v7909
    %v8426 = vunpack.c.l.b16 %v7910
    %v8427 = vunpack.c.l.b16 %v7911
    %v8428 = vunpack.c.l.b16 %v7912
    %v8429 = vunpack.c.l.b16 %v7913
    %v8430 = vunpack.c.l.b16 %v7914
    %v8431 = vunpack.c.l.b16 %v7915
    %v8432 = vunpack.c.l.b16 %v7916
    %v8433 = vunpack.c.l.b16 %v7917
    %v8434 = vunpack.c.l.b16 %v7918
    %v8435 = vunpack.c.l.b16 %v7919
    %v8436 = vunpack.c.l.b16 %v7920
    %v8437 = vunpack.c.l.b16 %v7921
    %v8438 = vunpack.c.l.b16 %v7922
    %v8439 = vunpack.c.l.b16 %v7923
    %v8440 = vunpack.c.l.b16 %v7924
    %v8441 = vunpack.c.l.b16 %v7925
    %v8442 = vunpack.c.l.b16 %v7926
    %v8443 = vunpack.c.l.b16 %v7927
    %v8444 = vunpack.c.l.b16 %v7928
    %v8445 = vunpack.c.l.b16 %v7929
    %v8446 = vunpack.c.l.b16 %v7930
    %v8447 = vunpack.c.l.b16 %v7931
    %v8448 = vunpack.c.l.b16 %v7932
    %v8449 = vunpack.c.l.b16 %v7933
    %v8450 = vunpack.c.l.b16 %v7934
    %v8451 = vunpack.c.l.b16 %v7935
    %v8452 = vunpack.c.l.b16 %v7936
    %v8453 = vunpack.c.l.b16 %v7937
    %v8454 = vunpack.c.l.b16 %v7938
    %v8455 = vunpack.c.l.b16 %v7939
    %v8456 = vunpack.c.l.b16 %v7940
    %v8457 = vunpack.c.l.b16 %v7941
    %v8458 = vunpack.c.l.b16 %v7942
    %v8459 = vunpack.c.l.b16 %v7943
    %v8460 = vunpack.c.l.b16 %v7944
    %v8461 = vunpack.c.l.b16 %v7945
    %v8462 = vunpack.c.l.b16 %v7946
    %v8463 = vunpack.c.l.b16 %v7947
    %v8464 = vunpack.c.l.b16 %v7948
    %v8465 = vunpack.c.l.b16 %v7949
    %v8466 = vunpack.c.l.b16 %v7950
    %v8467 = vunpack.c.l.b16 %v7951
    %v8468 = vunpack.c.l.b16 %v7952
    %v8469 = vunpack.c.l.b16 %v7953
    %v8470 = vunpack.c.l.b16 %v7954
    %v8471 = vunpack.c.l.b16 %v7955
    %v8472 = vunpack.c.l.b16 %v7956
    %v8473 = vunpack.c.l.b16 %v7957
    %v8474 = vunpack.c.l.b16 %v7958
    %v8475 = vunpack.c.l.b16 %v7959
    %v8476 = vunpack.c.l.b16 %v7960
    %v8477 = vunpack.c.l.b16 %v7961
    %v8478 = vunpack.c.l.b16 %v7962
    %v8479 = vunpack.c.l.b16 %v7963
    %v8480 = vunpack.c.l.b16 %v7964
    %v8481 = vunpack.c.l.b16 %v7965
    %v8482 = vunpack.c.l.b16 %v7966
    %v8483 = vunpack.c.l.b16 %v7967
    %v8484 = vunpack.c.l.b16 %v7968
    %v8485 = vunpack.c.l.b16 %v7969
    %v8486 = vunpack.c.l.b16 %v7970
    %v8487 = vunpack.c.l.b16 %v7971
    %v8488 = vunpack.c.l.b16 %v7972
    %v8489 = vunpack.c.l.b16 %v7973
    %v8490 = vunpack.c.l.b16 %v7974
    %v8491 = vunpack.c.l.b16 %v7975
    %v8492 = vunpack.c.l.b16 %v7976
    %v8493 = vunpack.c.l.b16 %v7977
    %v8494 = vunpack.c.l.b16 %v7978
    %v8495 = vunpack.c.l.b16 %v7979
    %v8496 = vunpack.c.l.b16 %v7980
    %v8497 = vunpack.c.l.b16 %v7981
    %v8498 = vunpack.c.l.b16 %v7982
    %v8499 = vunpack.c.l.b16 %v7983
    %v8500 = vunpack.c.l.b16 %v7984
    %v8501 = vunpack.c.l.b16 %v7985
    %v8502 = vunpack.c.l.b16 %v7986
    %v8503 = vunpack.c.l.b16 %v7987
    %v8504 = vunpack.c.l.b16 %v7988
    %v8505 = vunpack.c.l.b16 %v7989
    %v8506 = vunpack.c.l.b16 %v7990
    %v8507 = vunpack.c.l.b16 %v7991
    %v8508 = vunpack.c.l.b16 %v7992
    %v8509 = vunpack.c.l.b16 %v7993
    %v8510 = vunpack.c.l.b16 %v7994
    %v8511 = vunpack.c.l.b16 %v7995
    %v8512 = vunpack.c.l.b16 %v7996
    %v8513 = vunpack.c.l.b16 %v7997
    %v8514 = vunpack.c.l.b16 %v7998
    %v8515 = vunpack.c.l.b16 %v7999
    %v8516 = vunpack.c.l.b16 %v8000
    %v8517 = vunpack.c.l.b16 %v8001
    %v8518 = vunpack.c.l.b16 %v8002
    %v8519 = vunpack.c.l.b16 %v8003
    %v8520 = vunpack.c.l.b16 %v8004
    %v8521 = vunpack.c.l.b16 %v8005
    %v8522 = vunpack.c.l.b16 %v8006
    %v8523 = vunpack.c.l.b16 %v8007
    %v8524 = vunpack.c.l.b16 %v8008
    %v8525 = vunpack.c.l.b16 %v8009
    %v8526 = vunpack.c.l.b16 %v8010
    %v8527 = vunpack.c.l.b16 %v8011
    %v8528 = vunpack.c.l.b16 %v8012
    %v8529 = vunpack.c.l.b16 %v8013
    %v8530 = vunpack.c.l.b16 %v8014
    %v8531 = vunpack.c.l.b16 %v8015
    %v8532 = vunpack.c.l.b16 %v8016
    %v8533 = vunpack.c.l.b16 %v8017
    %v8534 = vunpack.c.l.b16 %v8018
    %v8535 = vunpack.c.l.b16 %v8019
    %v8536 = vunpack.c.l.b16 %v8020
    %v8537 = vunpack.c.l.b16 %v8021
    %v8538 = vunpack.c.l.b16 %v8022
    %v8539 = vunpack.c.l.b16 %v8023
    %v8540 = vunpack.c.l.b16 %v8024
    %v8541 = vunpack.c.l.b16 %v8025
    %v8542 = vunpack.c.l.b16 %v8026
    %v8543 = vunpack.c.l.b16 %v8027
    %v8544 = vunpack.c.l.b16 %v8028
    %v8545 = vunpack.c.l.b16 %v8029
    %v8546 = vunpack.c.l.b16 %v8030
    %v8547 = vunpack.c.l.b16 %v8031
    %v8548 = vunpack.c.l.b16 %v8032
    %v8549 = vunpack.c.l.b16 %v8033
    %v8550 = vunpack.c.l.b16 %v8034
    %v8551 = vunpack.c.l.b16 %v8035
    %v8552 = vunpack.c.l.b16 %v8036
    %v8553 = vunpack.c.l.b16 %v8037
    %v8554 = vunpack.c.l.b16 %v8038
    %v8555 = vunpack.c.l.b16 %v8039
    %v8556 = vunpack.c.l.b16 %v8040
    %v8557 = vunpack.c.l.b16 %v8041
    %v8558 = vunpack.c.l.b16 %v8042
    %v8559 = vunpack.c.l.b16 %v8043
    %v8560 = vunpack.c.l.b16 %v8044
    %v8561 = vunpack.c.l.b16 %v8045
    %v8562 = vunpack.c.l.b16 %v8046
    %v8563 = vunpack.c.l.b16 %v8047
    %v8564 = vunpack.c.l.b16 %v8048
    %v8565 = vunpack.c.l.b16 %v8049
    %v8566 = vunpack.c.l.b16 %v8050
    %v8567 = vunpack.c.l.b16 %v8051
    %v8568 = vunpack.c.l.b16 %v8052
    %v8569 = vunpack.c.l.b16 %v8053
    %v8570 = vunpack.c.l.b16 %v8054
    %v8571 = vunpack.c.l.b16 %v8055
    %v8572 = vunpack.c.l.b16 %v8056
    %v8573 = vunpack.c.l.b16 %v8057
    %v8574 = vunpack.c.l.b16 %v8058
    %v8575 = vunpack.c.l.b16 %v8059
    %v8576 = vunpack.c.l.b16 %v8060
    %v8577 = vunpack.c.l.b16 %v8061
    %v8578 = vunpack.c.l.b16 %v8062
    %v8579 = vunpack.c.l.b16 %v8063
    %v8580 = vunpack.c.l.b16 %v8064
    %v8581 = vunpack.c.l.b16 %v8065
    %v8582 = vunpack.c.l.b16 %v8066
    %v8583 = vunpack.c.l.b16 %v8067
    %v8584 = vunpack.c.l.b16 %v8068
    %v8585 = vunpack.c.l.b16 %v8069
    %v8586 = vunpack.c.l.b16 %v8070
    %v8587 = vunpack.c.l.b16 %v8071
    %v8588 = vunpack.c.l.b16 %v8072
    %v8589 = vunpack.c.l.b16 %v8073
    %v8590 = vunpack.c.l.b16 %v8074
    %v8591 = vunpack.c.l.b16 %v8075
    %v8592 = vpack.c.b16 %v8337, %v8336
    %v8593 = vpack.c.b16 %v8339, %v8338
    %v8594 = vpack.c.b16 %v8341, %v8340
    %v8595 = vpack.c.b16 %v8343, %v8342
    %v8596 = vpack.c.b16 %v8345, %v8344
    %v8597 = vpack.c.b16 %v8347, %v8346
    %v8598 = vpack.c.b16 %v8349, %v8348
    %v8599 = vpack.c.b16 %v8351, %v8350
    %v8600 = vpack.c.b16 %v8353, %v8352
    %v8601 = vpack.c.b16 %v8355, %v8354
    %v8602 = vpack.c.b16 %v8357, %v8356
    %v8603 = vpack.c.b16 %v8359, %v8358
    %v8604 = vpack.c.b16 %v8361, %v8360
    %v8605 = vpack.c.b16 %v8363, %v8362
    %v8606 = vpack.c.b16 %v8365, %v8364
    %v8607 = vpack.c.b16 %v8367, %v8366
    %v8608 = vpack.c.b16 %v8369, %v8368
    %v8609 = vpack.c.b16 %v8371, %v8370
    %v8610 = vpack.c.b16 %v8373, %v8372
    %v8611 = vpack.c.b16 %v8375, %v8374
    %v8612 = vpack.c.b16 %v8377, %v8376
    %v8613 = vpack.c.b16 %v8379, %v8378
    %v8614 = vpack.c.b16 %v8381, %v8380
    %v8615 = vpack.c.b16 %v8383, %v8382
    %v8616 = vpack.c.b16 %v8385, %v8384
    %v8617 = vpack.c.b16 %v8387, %v8386
    %v8618 = vpack.c.b16 %v8389, %v8388
    %v8619 = vpack.c.b16 %v8391, %v8390
    %v8620 = vpack.c.b16 %v8393, %v8392
    %v8621 = vpack.c.b16 %v8395, %v8394
    %v8622 = vpack.c.b16 %v8397, %v8396
    %v8623 = vpack.c.b16 %v8399, %v8398
    %v8624 = vpack.c.b16 %v8401, %v8400
    %v8625 = vpack.c.b16 %v8403, %v8402
    %v8626 = vpack.c.b16 %v8405, %v8404
    %v8627 = vpack.c.b16 %v8407, %v8406
    %v8628 = vpack.c.b16 %v8409, %v8408
    %v8629 = vpack.c.b16 %v8411, %v8410
    %v8630 = vpack.c.b16 %v8413, %v8412
    %v8631 = vpack.c.b16 %v8415, %v8414
    %v8632 = vpack.c.b16 %v8417, %v8416
    %v8633 = vpack.c.b16 %v8419, %v8418
    %v8634 = vpack.c.b16 %v8421, %v8420
    %v8635 = vpack.c.b16 %v8423, %v8422
    %v8636 = vpack.c.b16 %v8425, %v8424
    %v8637 = vpack.c.b16 %v8427, %v8426
    %v8638 = vpack.c.b16 %v8429, %v8428
    %v8639 = vpack.c.b16 %v8431, %v8430
    %v8640 = vpack.c.b16 %v8433, %v8432
    %v8641 = vpack.c.b16 %v8435, %v8434
    %v8642 = vpack.c.b16 %v8437, %v8436
    %v8643 = vpack.c.b16 %v8439, %v8438
    %v8644 = vpack.c.b16 %v8441, %v8440
    %v8645 = vpack.c.b16 %v8443, %v8442
    %v8646 = vpack.c.b16 %v8445, %v8444
    %v8647 = vpack.c.b16 %v8447, %v8446
    %v8648 = vpack.c.b16 %v8449, %v8448
    %v8649 = vpack.c.b16 %v8451, %v8450
    %v8650 = vpack.c.b16 %v8453, %v8452
    %v8651 = vpack.c.b16 %v8455, %v8454
    %v8652 = vpack.c.b16 %v8457, %v8456
    %v8653 = vpack.c.b16 %v8459, %v8458
    %v8654 = vpack.c.b16 %v8461, %v8460
    %v8655 = vpack.c.b16 %v8463, %v8462
    %v8656 = vpack.c.b16 %v8465, %v8464
    %v8657 = vpack.c.b16 %v8467, %v8466
    %v8658 = vpack.c.b16 %v8469, %v8468
    %v8659 = vpack.c.b16 %v8471, %v8470
    %v8660 = vpack.c.b16 %v8473, %v8472
    %v8661 = vpack.c.b16 %v8475, %v8474
    %v8662 = vpack.c.b16 %v8477, %v8476
    %v8663 = vpack.c.b16 %v8479, %v8478
    %v8664 = vpack.c.b16 %v8481, %v8480
    %v8665 = vpack.c.b16 %v8483, %v8482
    %v8666 = vpack.c.b16 %v8485, %v8484
    %v8667 = vpack.c.b16 %v8487, %v8486
    %v8668 = vpack.c.b16 %v8489, %v8488
    %v8669 = vpack.c.b16 %v8491, %v8490
    %v8670 = vpack.c.b16 %v8493, %v8492
    %v8671 = vpack.c.b16 %v8495, %v8494
    %v8672 = vpack.c.b16 %v8497, %v8496
    %v8673 = vpack.c.b16 %v8499, %v8498
    %v8674 = vpack.c.b16 %v8501, %v8500
    %v8675 = vpack.c.b16 %v8503, %v8502
    %v8676 = vpack.c.b16 %v8505, %v8504
    %v8677 = vpack.c.b16 %v8507, %v8506
    %v8678 = vpack.c.b16 %v8509, %v8508
    %v8679 = vpack.c.b16 %v8511, %v8510
    %v8680 = vpack.c.b16 %v8513, %v8512
    %v8681 = vpack.c.b16 %v8515, %v8514
    %v8682 = vpack.c.b16 %v8517, %v8516
    %v8683 = vpack.c.b16 %v8519, %v8518
    %v8684 = vpack.c.b16 %v8521, %v8520
    %v8685 = vpack.c.b16 %v8523, %v8522
    %v8686 = vpack.c.b16 %v8525, %v8524
    %v8687 = vpack.c.b16 %v8527, %v8526
    %v8688 = vpack.c.b16 %v8529, %v8528
    %v8689 = vpack.c.b16 %v8531, %v8530
    %v8690 = vpack.c.b16 %v8533, %v8532
    %v8691 = vpack.c.b16 %v8535, %v8534
    %v8692 = vpack.c.b16 %v8537, %v8536
    %v8693 = vpack.c.b16 %v8539, %v8538
    %v8694 = vpack.c.b16 %v8541, %v8540
    %v8695 = vpack.c.b16 %v8543, %v8542
    %v8696 = vpack.c.b16 %v8545, %v8544
    %v8697 = vpack.c.b16 %v8547, %v8546
    %v8698 = vpack.c.b16 %v8549, %v8548
    %v8699 = vpack.c.b16 %v8551, %v8550
    %v8700 = vpack.c.b16 %v8553, %v8552
    %v8701 = vpack.c.b16 %v8555, %v8554
    %v8702 = vpack.c.b16 %v8557, %v8556
    %v8703 = vpack.c.b16 %v8559, %v8558
    %v8704 = vpack.c.b16 %v8561, %v8560
    %v8705 = vpack.c.b16 %v8563, %v8562
    %v8706 = vpack.c.b16 %v8565, %v8564
    %v8707 = vpack.c.b16 %v8567, %v8566
    %v8708 = vpack.c.b16 %v8569, %v8568
    %v8709 = vpack.c.b16 %v8571, %v8570
    %v8710 = vpack.c.b16 %v8573, %v8572
    %v8711 = vpack.c.b16 %v8575, %v8574
    %v8712 = vpack.c.b16 %v8577, %v8576
    %v8713 = vpack.c.b16 %v8579, %v8578
    %v8714 = vpack.c.b16 %v8581, %v8580
    %v8715 = vpack.c.b16 %v8583, %v8582
    %v8716 = vpack.c.b16 %v8585, %v8584
    %v8717 = vpack.c.b16 %v8587, %v8586
    %v8718 = vpack.c.b16 %v8589, %v8588
    %v8719 = vpack.c.b16 %v8591, %v8590
    %8848 = vmatprep.subr.bf16.mxu0 0
    %8849 = vmatpush1.bf16.msra.mxu0 %v8592
    %8850 = vmatprep.subr.bf16.mxu0 0
    %8851 = vmatpush1.bf16.msra.mxu0 %v8593
    %8852 = vmatprep.subr.bf16.mxu0 0
    %8853 = vmatpush1.bf16.msra.mxu0 %v8594
    %8854 = vmatprep.subr.bf16.mxu0 0
    %8855 = vmatpush1.bf16.msra.mxu0 %v8595
    %8856 = vmatprep.subr.bf16.mxu0 0
    %8857 = vmatpush1.bf16.msra.mxu0 %v8596
    %8858 = vmatprep.subr.bf16.mxu0 0
    %8859 = vmatpush1.bf16.msra.mxu0 %v8597
    %8860 = vmatprep.subr.bf16.mxu0 0
    %8861 = vmatpush1.bf16.msra.mxu0 %v8598
    %8862 = vmatprep.subr.bf16.mxu0 0
    %8863 = vmatpush1.bf16.msra.mxu0 %v8599
    %8864 = vmatprep.subr.bf16.mxu0 0
    %8865 = vmatpush1.bf16.msra.mxu0 %v8600
    %8866 = vmatprep.subr.bf16.mxu0 0
    %8867 = vmatpush1.bf16.msra.mxu0 %v8601
    %8868 = vmatprep.subr.bf16.mxu0 0
    %8869 = vmatpush1.bf16.msra.mxu0 %v8602
    %8870 = vmatprep.subr.bf16.mxu0 0
    %8871 = vmatpush1.bf16.msra.mxu0 %v8603
    %8872 = vmatprep.subr.bf16.mxu0 0
    %8873 = vmatpush1.bf16.msra.mxu0 %v8604
    %8874 = vmatprep.subr.bf16.mxu0 0
    %8875 = vmatpush1.bf16.msra.mxu0 %v8605
    %8876 = vmatprep.subr.bf16.mxu0 0
    %8877 = vmatpush1.bf16.msra.mxu0 %v8606
    %8878 = vmatprep.subr.bf16.mxu0 0
    %8879 = vmatpush1.bf16.msra.mxu0 %v8607
    %8880 = vmatprep.mubr.bf16.mxu0 %v7805
    %8881 = vmatmul.mubr.bf16.gmra.mrb[0].mxu0 %v7804
    %v8882 = vpop.f32.mrb[0].mxu0
    %v8883 = vadd.f32 %v8079, %v8882
    %v8884 = vpop.f32.mrb[0].mxu0
    %v8885 = vpop.f32.mrb[0].mxu0
    %v8886 = vadd.f32 %v8079, %v8885
    %v8887 = vpop.f32.mrb[0].mxu0
    %8888 = vdwg.mxu0
    %8889 = vmatprep.subr.bf16.mxu0 0
    %8890 = vmatpush1.bf16.msra.mxu0 %v8608
    %8891 = vmatprep.subr.bf16.mxu0 0
    %8892 = vmatpush1.bf16.msra.mxu0 %v8609
    %8893 = vmatprep.subr.bf16.mxu0 0
    %8894 = vmatpush1.bf16.msra.mxu0 %v8610
    %8895 = vmatprep.subr.bf16.mxu0 0
    %8896 = vmatpush1.bf16.msra.mxu0 %v8611
    %8897 = vmatprep.subr.bf16.mxu0 0
    %8898 = vmatpush1.bf16.msra.mxu0 %v8612
    %8899 = vmatprep.subr.bf16.mxu0 0
    %8900 = vmatpush1.bf16.msra.mxu0 %v8613
    %8901 = vmatprep.subr.bf16.mxu0 0
    %8902 = vmatpush1.bf16.msra.mxu0 %v8614
    %8903 = vmatprep.subr.bf16.mxu0 0
    %8904 = vmatpush1.bf16.msra.mxu0 %v8615
    %8905 = vmatprep.subr.bf16.mxu0 0
    %8906 = vmatpush1.bf16.msra.mxu0 %v8616
    %8907 = vmatprep.subr.bf16.mxu0 0
    %8908 = vmatpush1.bf16.msra.mxu0 %v8617
    %8909 = vmatprep.subr.bf16.mxu0 0
    %8910 = vmatpush1.bf16.msra.mxu0 %v8618
    %8911 = vmatprep.subr.bf16.mxu0 0
    %8912 = vmatpush1.bf16.msra.mxu0 %v8619
    %8913 = vmatprep.subr.bf16.mxu0 0
    %8914 = vmatpush1.bf16.msra.mxu0 %v8620
    %8915 = vmatprep.subr.bf16.mxu0 0
    %8916 = vmatpush1.bf16.msra.mxu0 %v8621
    %8917 = vmatprep.subr.bf16.mxu0 0
    %8918 = vmatpush1.bf16.msra.mxu0 %v8622
    %8919 = vmatprep.subr.bf16.mxu0 0
    %8920 = vmatpush1.bf16.msra.mxu0 %v8623
    %8921 = vmatprep.mubr.bf16.mxu0 %v7807
    %8922 = vmatmul.mubr.bf16.gmra.mrb[0].mxu0 %v7806
    %v8923 = vpop.f32.mrb[0].mxu0
    %v8924 = vadd.f32 %v8883, %v8923
    %v8925 = vpop.f32.mrb[0].mxu0
    %v8926 = vpop.f32.mrb[0].mxu0
    %v8927 = vadd.f32 %v8886, %v8926
    %v8928 = vpop.f32.mrb[0].mxu0
    %8929 = vdwg.mxu0
    %8930 = vmatprep.subr.bf16.mxu0 0
    %8931 = vmatpush1.bf16.msra.mxu0 %v8624
    %8932 = vmatprep.subr.bf16.mxu0 0
    %8933 = vmatpush1.bf16.msra.mxu0 %v8625
    %8934 = vmatprep.subr.bf16.mxu0 0
    %8935 = vmatpush1.bf16.msra.mxu0 %v8626
    %8936 = vmatprep.subr.bf16.mxu0 0
    %8937 = vmatpush1.bf16.msra.mxu0 %v8627
    %8938 = vmatprep.subr.bf16.mxu0 0
    %8939 = vmatpush1.bf16.msra.mxu0 %v8628
    %8940 = vmatprep.subr.bf16.mxu0 0
    %8941 = vmatpush1.bf16.msra.mxu0 %v8629
    %8942 = vmatprep.subr.bf16.mxu0 0
    %8943 = vmatpush1.bf16.msra.mxu0 %v8630
    %8944 = vmatprep.subr.bf16.mxu0 0
    %8945 = vmatpush1.bf16.msra.mxu0 %v8631
    %8946 = vmatprep.subr.bf16.mxu0 0
    %8947 = vmatpush1.bf16.msra.mxu0 %v8632
    %8948 = vmatprep.subr.bf16.mxu0 0
    %8949 = vmatpush1.bf16.msra.mxu0 %v8633
    %8950 = vmatprep.subr.bf16.mxu0 0
    %8951 = vmatpush1.bf16.msra.mxu0 %v8634
    %8952 = vmatprep.subr.bf16.mxu0 0
    %8953 = vmatpush1.bf16.msra.mxu0 %v8635
    %8954 = vmatprep.subr.bf16.mxu0 0
    %8955 = vmatpush1.bf16.msra.mxu0 %v8636
    %8956 = vmatprep.subr.bf16.mxu0 0
    %8957 = vmatpush1.bf16.msra.mxu0 %v8637
    %8958 = vmatprep.subr.bf16.mxu0 0
    %8959 = vmatpush1.bf16.msra.mxu0 %v8638
    %8960 = vmatprep.subr.bf16.mxu0 0
    %8961 = vmatpush1.bf16.msra.mxu0 %v8639
    %8962 = vmatprep.mubr.bf16.mxu0 %v7809
    %8963 = vmatmul.mubr.bf16.gmra.mrb[0].mxu0 %v7808
    %v8964 = vpop.f32.mrb[0].mxu0
    %v8965 = vadd.f32 %v8924, %v8964
    %v8966 = vpop.f32.mrb[0].mxu0
    %v8967 = vpop.f32.mrb[0].mxu0
    %v8968 = vadd.f32 %v8927, %v8967
    %v8969 = vpop.f32.mrb[0].mxu0
    %8970 = vdwg.mxu0
    %8971 = vmatprep.subr.bf16.mxu0 0
    %8972 = vmatpush1.bf16.msra.mxu0 %v8640
    %8973 = vmatprep.subr.bf16.mxu0 0
    %8974 = vmatpush1.bf16.msra.mxu0 %v8641
    %8975 = vmatprep.subr.bf16.mxu0 0
    %8976 = vmatpush1.bf16.msra.mxu0 %v8642
    %8977 = vmatprep.subr.bf16.mxu0 0
    %8978 = vmatpush1.bf16.msra.mxu0 %v8643
    %8979 = vmatprep.subr.bf16.mxu0 0
    %8980 = vmatpush1.bf16.msra.mxu0 %v8644
    %8981 = vmatprep.subr.bf16.mxu0 0
    %8982 = vmatpush1.bf16.msra.mxu0 %v8645
    %8983 = vmatprep.subr.bf16.mxu0 0
    %8984 = vmatpush1.bf16.msra.mxu0 %v8646
    %8985 = vmatprep.subr.bf16.mxu0 0
    %8986 = vmatpush1.bf16.msra.mxu0 %v8647
    %8987 = vmatprep.subr.bf16.mxu0 0
    %8988 = vmatpush1.bf16.msra.mxu0 %v8648
    %8989 = vmatprep.subr.bf16.mxu0 0
    %8990 = vmatpush1.bf16.msra.mxu0 %v8649
    %8991 = vmatprep.subr.bf16.mxu0 0
    %8992 = vmatpush1.bf16.msra.mxu0 %v8650
    %8993 = vmatprep.subr.bf16.mxu0 0
    %8994 = vmatpush1.bf16.msra.mxu0 %v8651
    %8995 = vmatprep.subr.bf16.mxu0 0
    %8996 = vmatpush1.bf16.msra.mxu0 %v8652
    %8997 = vmatprep.subr.bf16.mxu0 0
    %8998 = vmatpush1.bf16.msra.mxu0 %v8653
    %8999 = vmatprep.subr.bf16.mxu0 0
    %9000 = vmatpush1.bf16.msra.mxu0 %v8654
    %9001 = vmatprep.subr.bf16.mxu0 0
    %9002 = vmatpush1.bf16.msra.mxu0 %v8655
    %9003 = vmatprep.mubr.bf16.mxu0 %v7811
    %9004 = vmatmul.mubr.bf16.gmra.mrb[0].mxu0 %v7810
    %v9005 = vpop.f32.mrb[0].mxu0
    %v9006 = vadd.f32 %v8965, %v9005
    %v9007 = vpop.f32.mrb[0].mxu0
    %v9008 = vpop.f32.mrb[0].mxu0
    %v9009 = vadd.f32 %v8968, %v9008
    %v9010 = vpop.f32.mrb[0].mxu0
    %9011 = vdwg.mxu0
    %9012 = vmatprep.subr.bf16.mxu0 0
    %9013 = vmatpush1.bf16.msra.mxu0 %v8656
    %9014 = vmatprep.subr.bf16.mxu0 0
    %9015 = vmatpush1.bf16.msra.mxu0 %v8657
    %9016 = vmatprep.subr.bf16.mxu0 0
    %9017 = vmatpush1.bf16.msra.mxu0 %v8658
    %9018 = vmatprep.subr.bf16.mxu0 0
    %9019 = vmatpush1.bf16.msra.mxu0 %v8659
    %9020 = vmatprep.subr.bf16.mxu0 0
    %9021 = vmatpush1.bf16.msra.mxu0 %v8660
    %9022 = vmatprep.subr.bf16.mxu0 0
    %9023 = vmatpush1.bf16.msra.mxu0 %v8661
    %9024 = vmatprep.subr.bf16.mxu0 0
    %9025 = vmatpush1.bf16.msra.mxu0 %v8662
    %9026 = vmatprep.subr.bf16.mxu0 0
    %9027 = vmatpush1.bf16.msra.mxu0 %v8663
    %9028 = vmatprep.subr.bf16.mxu0 0
    %9029 = vmatpush1.bf16.msra.mxu0 %v8664
    %9030 = vmatprep.subr.bf16.mxu0 0
    %9031 = vmatpush1.bf16.msra.mxu0 %v8665
    %9032 = vmatprep.subr.bf16.mxu0 0
    %9033 = vmatpush1.bf16.msra.mxu0 %v8666
    %9034 = vmatprep.subr.bf16.mxu0 0
    %9035 = vmatpush1.bf16.msra.mxu0 %v8667
    %9036 = vmatprep.subr.bf16.mxu0 0
    %9037 = vmatpush1.bf16.msra.mxu0 %v8668
    %9038 = vmatprep.subr.bf16.mxu0 0
    %9039 = vmatpush1.bf16.msra.mxu0 %v8669
    %9040 = vmatprep.subr.bf16.mxu0 0
    %9041 = vmatpush1.bf16.msra.mxu0 %v8670
    %9042 = vmatprep.subr.bf16.mxu0 0
    %9043 = vmatpush1.bf16.msra.mxu0 %v8671
    %9044 = vmatprep.mubr.bf16.mxu0 %v7813
    %9045 = vmatmul.mubr.bf16.gmra.mrb[0].mxu0 %v7812
    %v9046 = vpop.f32.mrb[0].mxu0
    %v9047 = vadd.f32 %v9006, %v9046
    %v9048 = vpop.f32.mrb[0].mxu0
    %v9049 = vpop.f32.mrb[0].mxu0
    %v9050 = vadd.f32 %v9009, %v9049
    %v9051 = vpop.f32.mrb[0].mxu0
    %9052 = vdwg.mxu0
    %9053 = vmatprep.subr.bf16.mxu0 0
    %9054 = vmatpush1.bf16.msra.mxu0 %v8672
    %9055 = vmatprep.subr.bf16.mxu0 0
    %9056 = vmatpush1.bf16.msra.mxu0 %v8673
    %9057 = vmatprep.subr.bf16.mxu0 0
    %9058 = vmatpush1.bf16.msra.mxu0 %v8674
    %9059 = vmatprep.subr.bf16.mxu0 0
    %9060 = vmatpush1.bf16.msra.mxu0 %v8675
    %9061 = vmatprep.subr.bf16.mxu0 0
    %9062 = vmatpush1.bf16.msra.mxu0 %v8676
    %9063 = vmatprep.subr.bf16.mxu0 0
    %9064 = vmatpush1.bf16.msra.mxu0 %v8677
    %9065 = vmatprep.subr.bf16.mxu0 0
    %9066 = vmatpush1.bf16.msra.mxu0 %v8678
    %9067 = vmatprep.subr.bf16.mxu0 0
    %9068 = vmatpush1.bf16.msra.mxu0 %v8679
    %9069 = vmatprep.subr.bf16.mxu0 0
    %9070 = vmatpush1.bf16.msra.mxu0 %v8680
    %9071 = vmatprep.subr.bf16.mxu0 0
    %9072 = vmatpush1.bf16.msra.mxu0 %v8681
    %9073 = vmatprep.subr.bf16.mxu0 0
    %9074 = vmatpush1.bf16.msra.mxu0 %v8682
    %9075 = vmatprep.subr.bf16.mxu0 0
    %9076 = vmatpush1.bf16.msra.mxu0 %v8683
    %9077 = vmatprep.subr.bf16.mxu0 0
    %9078 = vmatpush1.bf16.msra.mxu0 %v8684
    %9079 = vmatprep.subr.bf16.mxu0 0
    %9080 = vmatpush1.bf16.msra.mxu0 %v8685
    %9081 = vmatprep.subr.bf16.mxu0 0
    %9082 = vmatpush1.bf16.msra.mxu0 %v8686
    %9083 = vmatprep.subr.bf16.mxu0 0
    %9084 = vmatpush1.bf16.msra.mxu0 %v8687
    %9085 = vmatprep.mubr.bf16.mxu0 %v7815
    %9086 = vmatmul.mubr.bf16.gmra.mrb[0].mxu0 %v7814
    %v9087 = vpop.f32.mrb[0].mxu0
    %v9088 = vadd.f32 %v9047, %v9087
    %v9089 = vpop.f32.mrb[0].mxu0
    %v9090 = vpop.f32.mrb[0].mxu0
    %v9091 = vadd.f32 %v9050, %v9090
    %v9092 = vpop.f32.mrb[0].mxu0
    %9093 = vdwg.mxu0
    %9094 = vmatprep.subr.bf16.mxu0 0
    %9095 = vmatpush1.bf16.msra.mxu0 %v8688
    %9096 = vmatprep.subr.bf16.mxu0 0
    %9097 = vmatpush1.bf16.msra.mxu0 %v8689
    %9098 = vmatprep.subr.bf16.mxu0 0
    %9099 = vmatpush1.bf16.msra.mxu0 %v8690
    %9100 = vmatprep.subr.bf16.mxu0 0
    %9101 = vmatpush1.bf16.msra.mxu0 %v8691
    %9102 = vmatprep.subr.bf16.mxu0 0
    %9103 = vmatpush1.bf16.msra.mxu0 %v8692
    %9104 = vmatprep.subr.bf16.mxu0 0
    %9105 = vmatpush1.bf16.msra.mxu0 %v8693
    %9106 = vmatprep.subr.bf16.mxu0 0
    %9107 = vmatpush1.bf16.msra.mxu0 %v8694
    %9108 = vmatprep.subr.bf16.mxu0 0
    %9109 = vmatpush1.bf16.msra.mxu0 %v8695
    %9110 = vmatprep.subr.bf16.mxu0 0
    %9111 = vmatpush1.bf16.msra.mxu0 %v8696
    %9112 = vmatprep.subr.bf16.mxu0 0
    %9113 = vmatpush1.bf16.msra.mxu0 %v8697
    %9114 = vmatprep.subr.bf16.mxu0 0
    %9115 = vmatpush1.bf16.msra.mxu0 %v8698
    %9116 = vmatprep.subr.bf16.mxu0 0
    %9117 = vmatpush1.bf16.msra.mxu0 %v8699
    %9118 = vmatprep.subr.bf16.mxu0 0
    %9119 = vmatpush1.bf16.msra.mxu0 %v8700
    %9120 = vmatprep.subr.bf16.mxu0 0
    %9121 = vmatpush1.bf16.msra.mxu0 %v8701
    %9122 = vmatprep.subr.bf16.mxu0 0
    %9123 = vmatpush1.bf16.msra.mxu0 %v8702
    %9124 = vmatprep.subr.bf16.mxu0 0
    %9125 = vmatpush1.bf16.msra.mxu0 %v8703
    %9126 = vmatprep.mubr.bf16.mxu0 %v7817
    %9127 = vmatmul.mubr.bf16.gmra.mrb[0].mxu0 %v7816
    %v9128 = vpop.f32.mrb[0].mxu0
    %v9129 = vadd.f32 %v9088, %v9128
    %v9130 = vpop.f32.mrb[0].mxu0
    %v9131 = vpop.f32.mrb[0].mxu0
    %v9132 = vadd.f32 %v9091, %v9131
    %v9133 = vpop.f32.mrb[0].mxu0
    %9134 = vdwg.mxu0
    %9135 = vmatprep.subr.bf16.mxu0 0
    %9136 = vmatpush1.bf16.msra.mxu0 %v8704
    %9137 = vmatprep.subr.bf16.mxu0 0
    %9138 = vmatpush1.bf16.msra.mxu0 %v8705
    %9139 = vmatprep.subr.bf16.mxu0 0
    %9140 = vmatpush1.bf16.msra.mxu0 %v8706
    %9141 = vmatprep.subr.bf16.mxu0 0
    %9142 = vmatpush1.bf16.msra.mxu0 %v8707
    %9143 = vmatprep.subr.bf16.mxu0 0
    %9144 = vmatpush1.bf16.msra.mxu0 %v8708
    %9145 = vmatprep.subr.bf16.mxu0 0
    %9146 = vmatpush1.bf16.msra.mxu0 %v8709
    %9147 = vmatprep.subr.bf16.mxu0 0
    %9148 = vmatpush1.bf16.msra.mxu0 %v8710
    %9149 = vmatprep.subr.bf16.mxu0 0
    %9150 = vmatpush1.bf16.msra.mxu0 %v8711
    %9151 = vmatprep.subr.bf16.mxu0 0
    %9152 = vmatpush1.bf16.msra.mxu0 %v8712
    %9153 = vmatprep.subr.bf16.mxu0 0
    %9154 = vmatpush1.bf16.msra.mxu0 %v8713
    %9155 = vmatprep.subr.bf16.mxu0 0
    %9156 = vmatpush1.bf16.msra.mxu0 %v8714
    %9157 = vmatprep.subr.bf16.mxu0 0
    %9158 = vmatpush1.bf16.msra.mxu0 %v8715
    %9159 = vmatprep.subr.bf16.mxu0 0
    %9160 = vmatpush1.bf16.msra.mxu0 %v8716
    %9161 = vmatprep.subr.bf16.mxu0 0
    %9162 = vmatpush1.bf16.msra.mxu0 %v8717
    %9163 = vmatprep.subr.bf16.mxu0 0
    %9164 = vmatpush1.bf16.msra.mxu0 %v8718
    %9165 = vmatprep.subr.bf16.mxu0 0
    %9166 = vmatpush1.bf16.msra.mxu0 %v8719
    %9167 = vmatprep.mubr.bf16.mxu0 %v7819
    %9168 = vmatmul.mubr.bf16.gmra.mrb[0].mxu0 %v7818
    %v9169 = vpop.f32.mrb[0].mxu0
    %v9170 = vadd.f32 %v9129, %v9169
    %v9171 = vpop.f32.mrb[0].mxu0
    %v9172 = vpop.f32.mrb[0].mxu0
    %v9173 = vadd.f32 %v9132, %v9172
    %v9174 = vpop.f32.mrb[0].mxu0
    %9175 = vdwg.mxu0
    %v9176 = vadd.f32 %v7146, %v9170
    %v9177 = vadd.f32 %v7147, %v9173
    %v9178 = vsel %vm114, %v9176, 0.0
    %9179 = vadd.xlane.f32.xlu0 %v9178
    %v9180 = vpop.xlane.xlu0 %9179
    %v9181 = vsel %vm114, %v9177, 0.0
    %9182 = vadd.xlane.f32.xlu0 %v9181
    %v9183 = vpop.xlane.xlu0 %9182
    %v9184 = vmul.f32 %v9180, %v1289
    %v9185 = vmul.f32 %v9183, %v1289
    %v9186 = vsub.f32 %v9176, %v9184
    %v9187 = vsub.f32 %v9177, %v9185
    %v9188 = vmul.f32 %v9186, %v9186
    %v9189 = vmul.f32 %v9187, %v9187
    %v9190 = vsel %vm114, %v9188, 0.0
    %9191 = vadd.xlane.f32.xlu0 %v9190
    %v9192 = vpop.xlane.xlu0 %9191
    %v9193 = vsel %vm114, %v9189, 0.0
    %9194 = vadd.xlane.f32.xlu0 %v9193
    %v9195 = vpop.xlane.xlu0 %9194
    %v9196 = vmul.f32 %v9192, %v1289
    %v9197 = vmul.f32 %v9195, %v1289
    %v9198 = vadd.f32 %v9196, 1e-05
    %v9199 = vadd.f32 %v9197, 1e-05
    %v9200 = vrsqrt.pop %v9198
    %v9201 = vrsqrt.pop %v9199
    %v9202 = vmul.f32 %v9186, %v9200
    %v9203 = vmul.f32 %v9187, %v9201
    %v9204 = vlaneseq
    %v9205 = vshrl.u32 %v9204, 7
    %v9206 = vsub.s32 4, %v9205
    %v9207 = vrot.slane %v4662, %v9206
    %v9208 = vmul.f32 %v9202, %v9207
    %v9209 = vmul.f32 %v9203, %v9207
    %v9210 = vlaneseq
    %v9211 = vshrl.u32 %v9210, 7
    %v9212 = vsub.s32 5, %v9211
    %v9213 = vrot.slane %v4662, %v9212
    %v9214 = vadd.f32 %v9208, %v9213
    %v9215 = vadd.f32 %v9209, %v9213
    %v9216 = vpack.c.bf16 %v9215, %v9214
    %v9217 = vld [vmem:[%s21] sm:$0xf]
    %v9218 = vld [vmem:[%s21 + $0x4] sm:$0xf]
    %v9219 = vld [vmem:[%s21 + $0x8] sm:$0xf]
    %v9220 = vld [vmem:[%s21 + $0xc] sm:$0xf]
    %v9221 = vld [vmem:[%s22] sm:$0x1]
    %v9223 = vlaneseq
    %v9224 = vshrl.u32 %v9223, 7
    %v9225 = vsub.s32 0, %v9224
    %v9226 = vrot.slane %v9221, %v9225
    %v9232 = vunpack.c.l.b16 %v9217
    %v9233 = vunpack.c.l.b16 %v9218
    %v9234 = vunpack.c.l.b16 %v9219
    %v9235 = vunpack.c.l.b16 %v9220
    %v9236 = vpack.c.b16 %v9233, %v9232
    %v9237 = vpack.c.b16 %v9235, %v9234
    %v9241 = vsel %vm114, %v9216, 0
    %9243 = vmatprep.subr.bf16.mxu0 0
    %9244 = vmatpush1.bf16.msra.mxu0 %v9236
    %9245 = vmatprep.subr.bf16.mxu0 0
    %9246 = vmatpush1.bf16.msra.mxu0 %v9237
    %9247 = vmatprep.subr.bf16.mxu0 0
    %9248 = vmatpush1.bf16.msra.mxu0 0
    %9249 = vmatprep.subr.bf16.mxu0 0
    %9250 = vmatpush1.bf16.msra.mxu0 0
    %9251 = vmatprep.subr.bf16.mxu0 0
    %9252 = vmatpush1.bf16.msra.mxu0 0
    %9253 = vmatprep.subr.bf16.mxu0 0
    %9254 = vmatpush1.bf16.msra.mxu0 0
    %9255 = vmatprep.subr.bf16.mxu0 0
    %9256 = vmatpush1.bf16.msra.mxu0 0
    %9257 = vmatprep.subr.bf16.mxu0 0
    %9258 = vmatpush1.bf16.msra.mxu0 0
    %9259 = vmatprep.subr.bf16.mxu0 0
    %9260 = vmatpush1.bf16.msra.mxu0 0
    %9261 = vmatprep.subr.bf16.mxu0 0
    %9262 = vmatpush1.bf16.msra.mxu0 0
    %9263 = vmatprep.subr.bf16.mxu0 0
    %9264 = vmatpush1.bf16.msra.mxu0 0
    %9265 = vmatprep.subr.bf16.mxu0 0
    %9266 = vmatpush1.bf16.msra.mxu0 0
    %9267 = vmatprep.subr.bf16.mxu0 0
    %9268 = vmatpush1.bf16.msra.mxu0 0
    %9269 = vmatprep.subr.bf16.mxu0 0
    %9270 = vmatpush1.bf16.msra.mxu0 0
    %9271 = vmatprep.subr.bf16.mxu0 0
    %9272 = vmatpush1.bf16.msra.mxu0 0
    %9273 = vmatprep.subr.bf16.mxu0 0
    %9274 = vmatpush1.bf16.msra.mxu0 0
    %9275 = vmatprep.mubr.bf16.mxu0 0
    %9276 = vmatmul.mubr.bf16.gmra.mrb[0].mxu0 %v9241
    %v9277 = vpop.f32.mrb[0].mxu0
    %v9278 = vadd.f32 %v9226, %v9277
    %v9279 = vpop.f32.mrb[0].mxu0
    %v9280 = vpop.f32.mrb[0].mxu0
    %v9281 = vadd.f32 %v9226, %v9280
    %v9282 = vpop.f32.mrb[0].mxu0
    %9283 = vdwg.mxu0
    %9284 = vst [vmem:[#allocation2] sm:$0xff] %v9278
    %9285 = vst [vmem:[#allocation2 + $0x8] sm:$0xff] %v9281
    // Predicated region
    $region94: #{tpu_custom_call.1} parent=1 // pred_check
      _
    $region95: #{tpu_custom_call.1} parent=1 // pred_check_branch
      %9287 = sbr.rel (0) target = $region97
    $region96: #{tpu_custom_call.1} parent=1 // pred_region
      %s9289 = ssub.s32 256, 256
      %9290 = vsyncadd [#allocation3], %s9289
      %s9291 = sshll.u32 [#allocation2], 4
      %s9292 = int_to_ptr.vmem [resolvable:$true] %s9291
      %9297 = dma.vmem_to_hbm [thread:$0]  %s9292, 256, %s23, [#allocation3], 128, 128, 8
    $region97: #{tpu_custom_call.1} parent=1 // pred_fallthru
      _
    // Predicated region
    $region98: #{tpu_custom_call.1} parent=1 // pred_check
      _
    $region99: #{tpu_custom_call.1} parent=1 // pred_check_branch
      %9299 = sbr.rel (0) target = $region101
    $region100: #{tpu_custom_call.1} parent=1 // pred_region
      %9300 = dma.done [#allocation3], 256
    $region101: #{tpu_custom_call.1} parent=1 // pred_fallthru
      _
    %9301 = vsyncpa [#allocation3], 1

</llo_original>
